<compile_context>
chip_gen: v7x
topology: tpu7x:2x2x1
jax: 0.10.0
libtpu: 0.0.40
codegen_flags: <defaults>
</compile_context>

<pallas_src>
import jax
import jax.numpy as jnp
from jax import lax
from jax.experimental import pallas as pl
from jax.experimental.pallas import tpu as pltpu

# Physical / numerical constants (identical to tke_pytorch.integrate_tke)
DT_TRACER = 1.0
DT_MOM = 1.0
DT_TKE = DT_MOM
AB_EPS = 0.1
ALPHA_TKE = 1.0
C_EPS = 0.7
K_H_TKE = 2000.0
EPS = 1e-20

HALO = 4  # rows of halo kept on each side inside an X tile (>= 2 needed)


def _round_up(x, m):
    return ((x + m - 1) // m) * m


def _limiter(cr):
    return jnp.maximum(
        0.0,
        jnp.maximum(jnp.minimum(1.0, 2.0 * cr), jnp.minimum(2.0, 0.5 * (1.0 + cr))),
    )


def _calc_cr(rjp, rj, rjm, vel):
    num = jnp.where(vel > 0.0, rjm, rjp)
    den = jnp.where(jnp.abs(rj) < EPS, EPS, rj)
    # exact reciprocal; approx=True would also be acceptable (result is clamped
    # by the superbee limiter) but is left off to stay close to the reference.
    return num * pl.reciprocal(den, approx=False)


def _make_kernel(Z, T, X, Y, Y_pad):
    WIN = T + 2 * HALO

    def kernel(
        # SMEM per-level scalars
        dzw_ref, inv_dzw_ref, inv_dzt_ref,
        # (1, Ypad) row metrics
        fn_fac_ref, inv_cdyt_ref, cosu_ref,
        # halo-tiled 2-D metric planes (WIN, Ypad)
        fe_fac_ref, inv_cdxt_ref,
        # core-tiled 2-D fields (T, Ypad)
        forc_s_ref, kbot_ref,
        # halo-tiled 3-D fields (Z, WIN, Ypad)
        u_ref, mU_ref, mW_ref, tke0_ref,
        # core-tiled 3-D fields (Z, T, Ypad)
        v_ref, w_ref, mV_ref, kap_ref, mxl_ref, forc_ref,
        tke1_ref, dtke0_ref, dtke2_ref,
        # outputs
        tke1_out_ref, dtke0_out_ref, tsc_out_ref,
    ):
        i = pl.program_id(0)
        row0 = i * T

        # ---------------- interior mask (single blended store later) -------
        rows = lax.broadcasted_iota(jnp.int32, (T, Y_pad), 0) + row0
        cols = lax.broadcasted_iota(jnp.int32, (T, Y_pad), 1)
        int_mask = ((rows >= 2) & (rows <= X - 3)
                    & (cols >= 2) & (cols <= Y - 3))
        int_mask3 = int_mask[None, :, :]

        # ---------------- hoisted loads ------------------------------------
        t_win = tke0_ref[...]          # (Z, WIN, Ypad)
        mW_win = mW_ref[...]
        mU_win = mU_ref[...]
        u_win = u_ref[...]
        fe_fac_w = fe_fac_ref[...]     # (WIN, Ypad)
        icdxt_w = inv_cdxt_ref[...]

        t_c = t_win[:, HALO:HALO + T, :]     # core rows of tke(tau)
        mW_c = mW_win[:, HALO:HALO + T, :]
        icdxt_c = icdxt_w[HALO:HALO + T, :]

        v_c = v_ref[...]
        w_c = w_ref[...]
        mV_c = mV_ref[...]
        kap_c = kap_ref[...]
        mxl_c = mxl_ref[...]
        forc_c = forc_ref[...]
        tke1_c = tke1_ref[...]
        dtke0_c = dtke0_ref[...]
        dtke2_c = dtke2_ref[...]
        forc_s = forc_s_ref[...]
        kbot_c = kbot_ref[...]
        fn_fac = fn_fac_ref[...]
        icdyt = inv_cdyt_ref[...]
        cosu_r = cosu_ref[...]

        def shift(x, s):
            # shift(x, s)[..., j] == x[..., j + s] (cyclic; wrapped lanes only
            # ever land on non-interior columns, which are masked out).
            return pltpu.roll(x, shift=(-s) % Y_pad, axis=2)

        # =========== vertical mixing: implicit tridiagonal solve ===========
        ks = kbot_c - 1                    # (T, Ypad) int32
        land = ks >= 0
        sq = jnp.sqrt(jnp.maximum(t_c, 0.0))

        cps = []          # c' per level (Thomas)
        dps = []          # d' per level
        delta_prev = None
        for k in range(Z):
            diss_k = (DT_TKE * C_EPS) * sq[k] / mxl_c[k]
            d_raw = t_c[k] + DT_TKE * forc_c[k]
            if k < Z - 1:
                delta_k = ((DT_TKE * ALPHA_TKE * 0.5) * inv_dzt_ref[k + 1]) * (
                    kap_c[k] + kap_c[k + 1])
            else:
                delta_k = None             # delta[Z-1] == 0 in the reference

            if k == 0:
                inv_dz = inv_dzw_ref[0]
                a_raw = None
                b_raw = None               # row 0 is either edge or land
                b_edge = 1.0 + delta_k * inv_dz + diss_k
                c_raw = -delta_k * inv_dz
            elif k < Z - 1:
                inv_dz = inv_dzw_ref[k]
                a_raw = -delta_prev * inv_dz
                b_raw = 1.0 + (delta_k + delta_prev) * inv_dz + diss_k
                b_edge = 1.0 + delta_k * inv_dz + diss_k
                c_raw = -delta_k * inv_dz
            else:
                inv_dz = 2.0 * inv_dzw_ref[Z - 1]    # 1 / (0.5 * dzw[-1])
                a_raw = -delta_prev * inv_dz
                b_raw = 1.0 + delta_prev * inv_dz + diss_k
                b_edge = 1.0 + diss_k
                c_raw = None
                d_raw = d_raw + (DT_TKE * inv_dz) * forc_s

            edge_k = land & (ks == k)
            water_k = land & (k >= ks)

            if b_raw is None:
                b_m = jnp.where(edge_k, b_edge, 1.0)
            else:
                b_m = jnp.where(edge_k, b_edge, jnp.where(water_k, b_raw, 1.0))
            c_m = jnp.where(water_k, c_raw, 0.0) if c_raw is not None else None
            d_m = jnp.where(water_k, d_raw, 0.0)

            if k == 0:
                denom = b_m
                dnum = d_m
            else:
                a_m = jnp.where(water_k & jnp.logical_not(edge_k), a_raw, 0.0)
                denom = b_m - a_m * cps[k - 1]
                dnum = d_m - a_m * dps[k - 1]
            inv = pl.reciprocal(denom, approx=False)
            cps.append(c_m * inv if c_m is not None else None)
            dps.append(dnum * inv)
            delta_prev = delta_k

        sol = dps[Z - 1]
        sol_rev = [sol]
        for k in range(Z - 2, -1, -1):
            sol = dps[k] - cps[k] * sol
            sol_rev.append(sol)
        sol3 = jnp.stack(sol_rev[::-1], axis=0)       # (Z, T, Ypad)

        kz = lax.broadcasted_iota(jnp.int32, (Z, T, Y_pad), 0)
        water3 = land[None] & (kz >= ks[None])

        # taup1 after implicit solve (interior water columns get sol)
        A3 = jnp.where(int_mask3 & water3, sol3, tke1_c)

        # -------- surface correction & clamp (FULL domain, as reference) ---
        a_top = A3[Z - 1]
        tsc = jnp.where(a_top < 0.0,
                        -a_top * (0.5 * dzw_ref[Z - 1] / DT_TKE), 0.0)
        top_mask = kz == (Z - 1)
        A3 = jnp.where(top_mask, jnp.maximum(A3, 0.0), A3)

        # =========== lateral diffusion + x advection (sublane stencil) =====
        dtx = t_win[:, 1:, :] - t_win[:, :-1, :]      # shared neighbour diff
        fe = (fe_fac_w[HALO - 1:HALO + T, :]
              * dtx[:, HALO - 1:HALO + T, :]
              * mU_win[:, HALO - 1:HALO + T, :])      # (Z, T+1, Ypad)
        lat_x = (fe[:, 1:, :] - fe[:, :-1, :]) * icdxt_c

        qx = (dtx[:, HALO - 2:HALO + T + 1, :]
              * mW_win[:, HALO - 1:HALO + T + 2, :]
              * mW_win[:, HALO - 2:HALO + T + 1, :])  # (Z, T+3, Ypad)
        vel0 = u_win[:, HALO - 1:HALO + T, :]         # (Z, T+1, Ypad)
        ucfl0 = jnp.abs(vel0) * (DT_TRACER * icdxt_w[HALO - 1:HALO + T, :])
        rj0 = qx[:, 1:T + 2, :]
        rjp0 = qx[:, 2:T + 3, :]
        rjm0 = qx[:, 0:T + 1, :]
        cr0 = _limiter(_calc_cr(rjp0, rj0, rjm0, vel0))
        adv_fe = (vel0 * (t_win[:, HALO:HALO + T + 1, :]
                          + t_win[:, HALO - 1:HALO + T, :]) * 0.5
                  - jnp.abs(vel0) * ((1.0 - cr0) + ucfl0 * cr0) * rj0 * 0.5)
        dadv_x = (adv_fe[:, 1:, :] - adv_fe[:, :-1, :]) * icdxt_c

        # =========== lateral diffusion + y advection (lane shifts, XLU) ====
        t_p1 = shift(t_c, +1)
        dty = t_p1 - t_c                              # shared neighbour diff
        fn = fn_fac * dty * mV_c
        lat_y = (fn - shift(fn, -1)) * icdyt

        qy = dty * (shift(mW_c, +1) * mW_c)
        vv1 = cosu_r * v_c
        ucfl1 = jnp.abs(vv1) * (DT_TRACER * icdyt)
        cr1 = _limiter(_calc_cr(shift(qy, +1), qy, shift(qy, -1), v_c))
        adv_fn = (vv1 * (t_p1 + t_c) * 0.5
                  - jnp.abs(vv1) * ((1.0 - cr1) + ucfl1 * cr1) * qy * 0.5)
        dadv_y = (adv_fn - shift(adv_fn, -1)) * icdyt

        # =========== z advection (unrolled; Z is small and static) =========
        dzq = [(t_c[k + 1] - t_c[k]) * mW_c[k + 1] * mW_c[k] for k in range(Z - 1)]
        ft = []
        for k in range(Z - 1):
            rj = dzq[k]
            rjp = dzq[k + 1] if k + 1 <= Z - 2 else jnp.zeros_like(rj)
            rjm = dzq[k - 1] if k >= 1 else jnp.zeros_like(rj)
            wk = w_c[k]
            ucfl = jnp.abs(wk) * (DT_TRACER * inv_dzw_ref[k])
            cr = _limiter(_calc_cr(rjp, rj, rjm, wk))
            ft.append(wk * (t_c[k + 1] + t_c[k]) * 0.5
                      - jnp.abs(wk) * ((1.0 - cr) + ucfl * cr) * rj * 0.5)

        vert = [-ft[0] * inv_dzw_ref[0]]
        for k in range(1, Z - 1):
            vert.append(-(ft[k] - ft[k - 1]) * inv_dzw_ref[k])
        vert.append(ft[Z - 2] * (2.0 * inv_dzw_ref[Z - 1]))  # flux_top[-1] == 0
        vert3 = jnp.stack(vert, axis=0)

        # =========== combine tendencies, Adam-Bashforth, single stores =====
        lat3 = DT_TKE * mW_c * (lat_x + lat_y)
        adv3 = mW_c * (-dadv_x - dadv_y)
        dtke_new3 = jnp.where(int_mask3, adv3 + vert3, dtke0_c)

        A3 = A3 + jnp.where(int_mask3, lat3, 0.0)
        tke1_new3 = A3 + DT_TRACER * ((1.5 + AB_EPS) * dtke_new3
                                      - (0.5 + AB_EPS) * dtke2_c)

        tke1_out_ref[...] = tke1_new3
        dtke0_out_ref[...] = dtke_new3
        tsc_out_ref[...] = tsc

    return kernel


def integrate_tke(u, v, w, maskU, maskV, maskW, dxt, dxu, dyt, dyu, dzt, dzw,
                  cost, cosu, kbot, kappaM, mxl, forc, forc_tke_surface,
                  tke, dtke, *, tile_x=None):
    """JAX/Pallas equivalent of tke_pytorch.integrate_tke (float32)."""
    X, Y, Z = maskU.shape
    tau, taup1, taum1 = 0, 1, 2
    f32 = jnp.float32

    if tile_x is None:
        tile_x = min(128, _round_up(X, 8))
    T = max(8, _round_up(int(tile_x), 8))
    n = (X + T - 1) // T
    WIN = T + 2 * HALO
    Y_pad = max(128, _round_up(Y, 128))
    Xp = n * T + 2 * HALO

    cost_f, cosu_f = cost.astype(f32), cosu.astype(f32)
    dxt_f, dxu_f = dxt.astype(f32), dxu.astype(f32)
    dyt_f, dyu_f = dyt.astype(f32), dyu.astype(f32)
    dzt_f, dzw_f = dzt.astype(f32), dzw.astype(f32)

    # Pre-inverted metric planes / rows / scalars (kernel multiplies only).
    fe_fac = K_H_TKE / (cost_f[None, :] * dxu_f[:, None])       # (X, Y)
    inv_cdxt = 1.0 / (cost_f[None, :] * dxt_f[:, None])         # (X, Y)
    fn_fac = (K_H_TKE * cosu_f / dyu_f)[None, :]                # (1, Y)
    inv_cdyt = (1.0 / (cost_f * dyt_f))[None, :]                # (1, Y)
    cosu_row = cosu_f[None, :]                                  # (1, Y)
    inv_dzw = 1.0 / dzw_f
    inv_dzt = 1.0 / dzt_f

    # ---------------- padding / tiling helpers (wrapper side) --------------
    def pad_zxy(a_xyz, cval=0.0):
        a = jnp.transpose(a_xyz.astype(f32), (2, 0, 1))         # (Z, X, Y)
        return jnp.pad(a, ((0, 0), (HALO, Xp - HALO - X), (0, Y_pad - Y)),
                       constant_values=cval)

    def pad_xy(a_xy, cval):
        return jnp.pad(a_xy, ((HALO, Xp - HALO - X), (0, Y_pad - Y)),
                       constant_values=cval)

    def pad_row(r, cval=1.0):
        return jnp.pad(r.astype(f32), ((0, 0), (0, Y_pad - Y)),
                       constant_values=cval)

    win_idx = (jnp.arange(n)[:, None] * T + jnp.arange(WIN)[None, :]).reshape(-1)

    def halo3(p):
        return jnp.take(p, win_idx, axis=1)      # (Z, n*WIN, Ypad)

    def halo2(p):
        return jnp.take(p, win_idx, axis=0)      # (n*WIN, Ypad)

    def core3(p):
        return p[:, HALO:HALO + n * T, :]        # (Z, n*T, Ypad)

    def core2(p):
        return p[HALO:HALO + n * T, :]           # (n*T, Ypad)

    u_p = pad_zxy(u[..., tau]);   v_p = pad_zxy(v[..., tau]);  w_p = pad_zxy(w[..., tau])
    mU_p = pad_zxy(maskU);        mV_p = pad_zxy(maskV);       mW_p = pad_zxy(maskW)
    kap_p = pad_zxy(kappaM, 1.0); mxl_p = pad_zxy(mxl, 1.0);   forc_p = pad_zxy(forc)
    tke0_p = pad_zxy(tke[..., tau]);   tke1_p = pad_zxy(tke[..., taup1])
    dtke0_p = pad_zxy(dtke[..., tau]); dtke2_p = pad_zxy(dtke[..., taum1])

    fe_fac_p = pad_xy(fe_fac, 1.0)
    inv_cdxt_p = pad_xy(inv_cdxt, 1.0)
    forc_s_p = pad_xy(forc_tke_surface.astype(f32), 0.0)
    kbot_p = pad_xy(kbot.astype(jnp.int32), 0)

    args = (
        dzw_f, inv_dzw, inv_dzt,
        pad_row(fn_fac), pad_row(inv_cdyt), pad_row(cosu_row),
        halo2(fe_fac_p), halo2(inv_cdxt_p),
        core2(forc_s_p), core2(kbot_p),
        halo3(u_p), halo3(mU_p), halo3(mW_p), halo3(tke0_p),
        core3(v_p), core3(w_p), core3(mV_p), core3(kap_p), core3(mxl_p), core3(forc_p),
        core3(tke1_p), core3(dtke0_p), core3(dtke2_p),
    )

    smem = pl.BlockSpec(memory_space=pltpu.MemorySpace.SMEM)
    row_spec = pl.BlockSpec((1, Y_pad), lambda i: (0, 0))
    halo2_spec = pl.BlockSpec((WIN, Y_pad), lambda i: (i, 0))
    core2_spec = pl.BlockSpec((T, Y_pad), lambda i: (i, 0))
    halo3_spec = pl.BlockSpec((Z, WIN, Y_pad), lambda i: (0, i, 0))
    core3_spec = pl.BlockSpec((Z, T, Y_pad), lambda i: (0, i, 0))

    in_specs = [
        smem, smem, smem,
        row_spec, row_spec, row_spec,
        halo2_spec, halo2_spec,
        core2_spec, core2_spec,
        halo3_spec, halo3_spec, halo3_spec, halo3_spec,
        core3_spec, core3_spec, core3_spec, core3_spec, core3_spec, core3_spec,
        core3_spec, core3_spec, core3_spec,
    ]

    elems = Z * n * T * Y_pad
    bytes_in = sum(int(a.size) * a.dtype.itemsize for a in args)
    cost_est = pl.CostEstimate(
        flops=int(elems) * 160,
        transcendentals=int(elems) * 6,
        bytes_accessed=bytes_in + 2 * int(elems) * 4 + n * T * Y_pad * 4,
    )

    kernel = _make_kernel(Z=Z, T=T, X=X, Y=Y, Y_pad=Y_pad)
    tke1_new, dtke0_new, tsc = pl.pallas_call(
        kernel,
        grid=(n,),
        in_specs=in_specs,
        out_specs=(core3_spec, core3_spec, core2_spec),
        out_shape=(
            jax.ShapeDtypeStruct((Z, n * T, Y_pad), f32),
            jax.ShapeDtypeStruct((Z, n * T, Y_pad), f32),
            jax.ShapeDtypeStruct((n * T, Y_pad), f32),
        ),
        # tke[..., taup1] / dtke[..., tau] are updated "in place".
        input_output_aliases={20: 0, 21: 1},
        compiler_params=pltpu.CompilerParams(
            dimension_semantics=("parallel",),
            vmem_limit_bytes=48 * 1024 * 1024),
        cost_estimate=cost_est,
    )(*args)

    def from_core(a):  # (Z, nT, Ypad) -> (X, Y, Z)
        return jnp.transpose(a[:, :X, :Y], (1, 2, 0))

    tke_out = tke.astype(f32).at[..., taup1].set(from_core(tke1_new))
    dtke_out = dtke.astype(f32).at[..., tau].set(from_core(dtke0_new))
    tke_surf_corr = tsc[:X, :Y]
    return tke_out, dtke_out, tke_surf_corr


if __name__ == "__main__":
    X, Y, Z = 16, 16, 8
    f = jnp.float32
    keys = jax.random.split(jax.random.PRNGKey(0), 24)

    u = jax.random.normal(keys[0], (X, Y, Z, 3), f) * 0.1
    v = jax.random.normal(keys[1], (X, Y, Z, 3), f) * 0.1
    w = jax.random.normal(keys[2], (X, Y, Z, 3), f) * 0.1
    maskU = (jax.random.uniform(keys[3], (X, Y, Z)) < 0.8).astype(f)
    maskV = (jax.random.uniform(keys[4], (X, Y, Z)) < 0.8).astype(f)
    maskW = (jax.random.uniform(keys[5], (X, Y, Z)) < 0.8).astype(f)
    dxt = 1.0 + jax.random.uniform(keys[6], (X,), f)
    dxu = 1.0 + jax.random.uniform(keys[7], (X,), f)
    dyt = 1.0 + jax.random.uniform(keys[8], (Y,), f)
    dyu = 1.0 + jax.random.uniform(keys[9], (Y,), f)
    dzt = 1.0 + jax.random.uniform(keys[10], (Z,), f)
    dzw = 1.0 + jax.random.uniform(keys[11], (Z,), f)
    cost = 0.5 + jax.random.uniform(keys[12], (Y,), f)
    cosu = 0.5 + jax.random.uniform(keys[13], (Y,), f)
    kbot = jax.random.randint(keys[14], (X, Y), 0, Z, jnp.int32)
    kappaM = 0.1 + jax.random.uniform(keys[15], (X, Y, Z), f)
    mxl = 0.1 + jax.random.uniform(keys[16], (X, Y, Z), f)
    forc = jax.random.normal(keys[17], (X, Y, Z), f) * 1e-3
    forc_tke_surface = jax.random.normal(keys[18], (X, Y), f) * 1e-3
    tke = jax.random.uniform(keys[19], (X, Y, Z, 3), f)
    dtke = jax.random.normal(keys[20], (X, Y, Z, 3), f) * 1e-2

    # tile_x=8 -> 2-step X grid even at this toy size (exercises the tiling).
    fn = jax.jit(lambda *a: integrate_tke(*a, tile_x=8))
    tke_out, dtke_out, tke_surf_corr = fn(
        u, v, w, maskU, maskV, maskW, dxt, dxu, dyt, dyu, dzt, dzw,
        cost, cosu, kbot, kappaM, mxl, forc, forc_tke_surface, tke, dtke)
    jax.block_until_ready((tke_out, dtke_out, tke_surf_corr))

    finite = bool(jnp.isfinite(tke_out).all()
                  & jnp.isfinite(dtke_out).all()
                  & jnp.isfinite(tke_surf_corr).all())
    if finite:
        print("KERNEL_OK")
    else:
        print("NONFINITE_OUTPUT")
</pallas_src>

<mosaic_0001>
module attributes {stable_mosaic.version = 11 : i64} {
  func.func @kernel(%arg0: i32, %arg1: memref<8xf32, #tpu.memory_space<smem>>, %arg2: memref<8xf32, #tpu.memory_space<smem>>, %arg3: memref<8xf32, #tpu.memory_space<smem>>, %arg4: memref<1x128xf32, #tpu.memory_space<vmem>>, %arg5: memref<1x128xf32, #tpu.memory_space<vmem>>, %arg6: memref<1x128xf32, #tpu.memory_space<vmem>>, %arg7: memref<16x128xf32, #tpu.memory_space<vmem>>, %arg8: memref<16x128xf32, #tpu.memory_space<vmem>>, %arg9: memref<8x128xf32, #tpu.memory_space<vmem>>, %arg10: memref<8x128xi32, #tpu.memory_space<vmem>>, %arg11: memref<8x16x128xf32, #tpu.memory_space<vmem>>, %arg12: memref<8x16x128xf32, #tpu.memory_space<vmem>>, %arg13: memref<8x16x128xf32, #tpu.memory_space<vmem>>, %arg14: memref<8x16x128xf32, #tpu.memory_space<vmem>>, %arg15: memref<8x8x128xf32, #tpu.memory_space<vmem>>, %arg16: memref<8x8x128xf32, #tpu.memory_space<vmem>>, %arg17: memref<8x8x128xf32, #tpu.memory_space<vmem>>, %arg18: memref<8x8x128xf32, #tpu.memory_space<vmem>>, %arg19: memref<8x8x128xf32, #tpu.memory_space<vmem>>, %arg20: memref<8x8x128xf32, #tpu.memory_space<vmem>>, %arg21: memref<8x8x128xf32, #tpu.memory_space<vmem>>, %arg22: memref<8x8x128xf32, #tpu.memory_space<vmem>>, %arg23: memref<8x8x128xf32, #tpu.memory_space<vmem>>, %arg24: memref<8x8x128xf32, #tpu.memory_space<vmem>>, %arg25: memref<8x8x128xf32, #tpu.memory_space<vmem>>, %arg26: memref<8x128xf32, #tpu.memory_space<vmem>>) attributes {dimension_semantics = [#tpu.dimension_semantics<parallel>], iteration_bounds = array<i64: 2>, scalar_prefetch = 0 : i64, scratch_operands = 0 : i64, tpu.core_type = #tpu.core_type<tc>, window_params = [{transform_indices = @transform_0, window_bounds = array<i64: 8>}, {transform_indices = @transform_1, window_bounds = array<i64: 8>}, {transform_indices = @transform_2, window_bounds = array<i64: 8>}, {pipeline_mode = #tpu.pipeline_mode<synchronous>, transform_indices = @transform_3, window_bounds = array<i64: 1, 128>}, {pipeline_mode = #tpu.pipeline_mode<synchronous>, transform_indices = @transform_4, window_bounds = array<i64: 1, 128>}, {pipeline_mode = #tpu.pipeline_mode<synchronous>, transform_indices = @transform_5, window_bounds = array<i64: 1, 128>}, {transform_indices = @transform_6, window_bounds = array<i64: 16, 128>}, {transform_indices = @transform_7, window_bounds = array<i64: 16, 128>}, {transform_indices = @transform_8, window_bounds = array<i64: 8, 128>}, {transform_indices = @transform_9, window_bounds = array<i64: 8, 128>}, {transform_indices = @transform_10, window_bounds = array<i64: 8, 16, 128>}, {transform_indices = @transform_11, window_bounds = array<i64: 8, 16, 128>}, {transform_indices = @transform_12, window_bounds = array<i64: 8, 16, 128>}, {transform_indices = @transform_13, window_bounds = array<i64: 8, 16, 128>}, {transform_indices = @transform_14, window_bounds = array<i64: 8, 8, 128>}, {transform_indices = @transform_15, window_bounds = array<i64: 8, 8, 128>}, {transform_indices = @transform_16, window_bounds = array<i64: 8, 8, 128>}, {transform_indices = @transform_17, window_bounds = array<i64: 8, 8, 128>}, {transform_indices = @transform_18, window_bounds = array<i64: 8, 8, 128>}, {transform_indices = @transform_19, window_bounds = array<i64: 8, 8, 128>}, {transform_indices = @transform_20, window_bounds = array<i64: 8, 8, 128>}, {transform_indices = @transform_21, window_bounds = array<i64: 8, 8, 128>}, {transform_indices = @transform_22, window_bounds = array<i64: 8, 8, 128>}, {transform_indices = @transform_23, window_bounds = array<i64: 8, 8, 128>}, {transform_indices = @transform_24, window_bounds = array<i64: 8, 8, 128>}, {transform_indices = @transform_25, window_bounds = array<i64: 8, 128>}]} {
    %c8_i32 = arith.constant 8 : i32
    %0 = arith.muli %arg0, %c8_i32 : i32
    %1 = tpu.iota {dimensions = array<i32: 0>} : vector<8x128xi32>
    %2 = vector.broadcast %0 : i32 to vector<8x128xi32>
    %3 = arith.addi %1, %2 : vector<8x128xi32>
    %4 = tpu.iota {dimensions = array<i32: 1>} : vector<8x128xi32>
    %c2_i32 = arith.constant 2 : i32
    %5 = vector.broadcast %c2_i32 : i32 to vector<8x128xi32>
    %6 = arith.cmpi sge, %3, %5 : vector<8x128xi32>
    %c13_i32 = arith.constant 13 : i32
    %7 = vector.broadcast %c13_i32 : i32 to vector<8x128xi32>
    %8 = arith.cmpi sle, %3, %7 : vector<8x128xi32>
    %9 = arith.andi %6, %8 : vector<8x128xi1>
    %c2_i32_0 = arith.constant 2 : i32
    %10 = vector.broadcast %c2_i32_0 : i32 to vector<8x128xi32>
    %11 = arith.cmpi sge, %4, %10 : vector<8x128xi32>
    %12 = arith.andi %9, %11 : vector<8x128xi1>
    %c13_i32_1 = arith.constant 13 : i32
    %13 = vector.broadcast %c13_i32_1 : i32 to vector<8x128xi32>
    %14 = arith.cmpi sle, %4, %13 : vector<8x128xi32>
    %15 = arith.andi %12, %14 : vector<8x128xi1>
    %16 = vector.shape_cast %15 : vector<8x128xi1> to vector<1x8x128xi1>
    %c0 = arith.constant 0 : index
    %c0_2 = arith.constant 0 : index
    %c0_3 = arith.constant 0 : index
    %17 = vector.load %arg14[%c0, %c0_2, %c0_3] : memref<8x16x128xf32, #tpu.memory_space<vmem>>, vector<8x16x128xf32>
    %c0_4 = arith.constant 0 : index
    %c0_5 = arith.constant 0 : index
    %c0_6 = arith.constant 0 : index
    %18 = vector.load %arg13[%c0_4, %c0_5, %c0_6] : memref<8x16x128xf32, #tpu.memory_space<vmem>>, vector<8x16x128xf32>
    %c0_7 = arith.constant 0 : index
    %c0_8 = arith.constant 0 : index
    %c0_9 = arith.constant 0 : index
    %19 = vector.load %arg12[%c0_7, %c0_8, %c0_9] : memref<8x16x128xf32, #tpu.memory_space<vmem>>, vector<8x16x128xf32>
    %c0_10 = arith.constant 0 : index
    %c0_11 = arith.constant 0 : index
    %c0_12 = arith.constant 0 : index
    %20 = vector.load %arg11[%c0_10, %c0_11, %c0_12] : memref<8x16x128xf32, #tpu.memory_space<vmem>>, vector<8x16x128xf32>
    %c0_13 = arith.constant 0 : index
    %c0_14 = arith.constant 0 : index
    %21 = vector.load %arg7[%c0_13, %c0_14] : memref<16x128xf32, #tpu.memory_space<vmem>>, vector<16x128xf32>
    %c0_15 = arith.constant 0 : index
    %c0_16 = arith.constant 0 : index
    %22 = vector.load %arg8[%c0_15, %c0_16] : memref<16x128xf32, #tpu.memory_space<vmem>>, vector<16x128xf32>
    %23 = vector.extract_strided_slice %17 {offsets = [0, 4, 0], sizes = [8, 8, 128], strides = [1, 1, 1]} : vector<8x16x128xf32> to vector<8x8x128xf32>
    %24 = vector.extract_strided_slice %18 {offsets = [0, 4, 0], sizes = [8, 8, 128], strides = [1, 1, 1]} : vector<8x16x128xf32> to vector<8x8x128xf32>
    %25 = vector.extract_strided_slice %22 {offsets = [4, 0], sizes = [8, 128], strides = [1, 1]} : vector<16x128xf32> to vector<8x128xf32>
    %c0_17 = arith.constant 0 : index
    %c0_18 = arith.constant 0 : index
    %c0_19 = arith.constant 0 : index
    %26 = vector.load %arg15[%c0_17, %c0_18, %c0_19] : memref<8x8x128xf32, #tpu.memory_space<vmem>>, vector<8x8x128xf32>
    %c0_20 = arith.constant 0 : index
    %c0_21 = arith.constant 0 : index
    %c0_22 = arith.constant 0 : index
    %27 = vector.load %arg16[%c0_20, %c0_21, %c0_22] : memref<8x8x128xf32, #tpu.memory_space<vmem>>, vector<8x8x128xf32>
    %c0_23 = arith.constant 0 : index
    %c0_24 = arith.constant 0 : index
    %c0_25 = arith.constant 0 : index
    %28 = vector.load %arg17[%c0_23, %c0_24, %c0_25] : memref<8x8x128xf32, #tpu.memory_space<vmem>>, vector<8x8x128xf32>
    %c0_26 = arith.constant 0 : index
    %c0_27 = arith.constant 0 : index
    %c0_28 = arith.constant 0 : index
    %29 = vector.load %arg18[%c0_26, %c0_27, %c0_28] : memref<8x8x128xf32, #tpu.memory_space<vmem>>, vector<8x8x128xf32>
    %c0_29 = arith.constant 0 : index
    %c0_30 = arith.constant 0 : index
    %c0_31 = arith.constant 0 : index
    %30 = vector.load %arg19[%c0_29, %c0_30, %c0_31] : memref<8x8x128xf32, #tpu.memory_space<vmem>>, vector<8x8x128xf32>
    %c0_32 = arith.constant 0 : index
    %c0_33 = arith.constant 0 : index
    %c0_34 = arith.constant 0 : index
    %31 = vector.load %arg20[%c0_32, %c0_33, %c0_34] : memref<8x8x128xf32, #tpu.memory_space<vmem>>, vector<8x8x128xf32>
    %c0_35 = arith.constant 0 : index
    %c0_36 = arith.constant 0 : index
    %c0_37 = arith.constant 0 : index
    %32 = vector.load %arg21[%c0_35, %c0_36, %c0_37] : memref<8x8x128xf32, #tpu.memory_space<vmem>>, vector<8x8x128xf32>
    %c0_38 = arith.constant 0 : index
    %c0_39 = arith.constant 0 : index
    %c0_40 = arith.constant 0 : index
    %33 = vector.load %arg22[%c0_38, %c0_39, %c0_40] : memref<8x8x128xf32, #tpu.memory_space<vmem>>, vector<8x8x128xf32>
    %c0_41 = arith.constant 0 : index
    %c0_42 = arith.constant 0 : index
    %c0_43 = arith.constant 0 : index
    %34 = vector.load %arg23[%c0_41, %c0_42, %c0_43] : memref<8x8x128xf32, #tpu.memory_space<vmem>>, vector<8x8x128xf32>
    %c0_44 = arith.constant 0 : index
    %c0_45 = arith.constant 0 : index
    %35 = vector.load %arg9[%c0_44, %c0_45] : memref<8x128xf32, #tpu.memory_space<vmem>>, vector<8x128xf32>
    %c0_46 = arith.constant 0 : index
    %c0_47 = arith.constant 0 : index
    %36 = vector.load %arg10[%c0_46, %c0_47] : memref<8x128xi32, #tpu.memory_space<vmem>>, vector<8x128xi32>
    %c0_48 = arith.constant 0 : index
    %c0_49 = arith.constant 0 : index
    %37 = vector.load %arg4[%c0_48, %c0_49] : memref<1x128xf32, #tpu.memory_space<vmem>>, vector<1x128xf32>
    %c0_50 = arith.constant 0 : index
    %c0_51 = arith.constant 0 : index
    %38 = vector.load %arg5[%c0_50, %c0_51] : memref<1x128xf32, #tpu.memory_space<vmem>>, vector<1x128xf32>
    %c0_52 = arith.constant 0 : index
    %c0_53 = arith.constant 0 : index
    %39 = vector.load %arg6[%c0_52, %c0_53] : memref<1x128xf32, #tpu.memory_space<vmem>>, vector<1x128xf32>
    %c1_i32 = arith.constant 1 : i32
    %40 = vector.broadcast %c1_i32 : i32 to vector<8x128xi32>
    %41 = arith.subi %36, %40 : vector<8x128xi32>
    %c0_i32 = arith.constant 0 : i32
    %42 = vector.broadcast %c0_i32 : i32 to vector<8x128xi32>
    %43 = arith.cmpi sge, %41, %42 : vector<8x128xi32>
    %cst = arith.constant 0.000000e+00 : f32
    %44 = vector.broadcast %cst : f32 to vector<8x8x128xf32>
    %45 = arith.maximumf %23, %44 : vector<8x8x128xf32>
    %46 = math.sqrt %45 : vector<8x8x128xf32>
    %47 = vector.extract_strided_slice %46 {offsets = [0, 0, 0], sizes = [1, 8, 128], strides = [1, 1, 1]} : vector<8x8x128xf32> to vector<1x8x128xf32>
    %48 = vector.shape_cast %47 : vector<1x8x128xf32> to vector<8x128xf32>
    %cst_54 = arith.constant 0.699999988 : f32
    %49 = vector.broadcast %cst_54 : f32 to vector<8x128xf32>
    %50 = arith.mulf %49, %48 : vector<8x128xf32>
    %51 = vector.extract_strided_slice %30 {offsets = [0, 0, 0], sizes = [1, 8, 128], strides = [1, 1, 1]} : vector<8x8x128xf32> to vector<1x8x128xf32>
    %52 = vector.shape_cast %51 : vector<1x8x128xf32> to vector<8x128xf32>
    %53 = arith.divf %50, %52 : vector<8x128xf32>
    %54 = vector.extract_strided_slice %23 {offsets = [0, 0, 0], sizes = [1, 8, 128], strides = [1, 1, 1]} : vector<8x8x128xf32> to vector<1x8x128xf32>
    %55 = vector.shape_cast %54 : vector<1x8x128xf32> to vector<8x128xf32>
    %56 = vector.extract_strided_slice %31 {offsets = [0, 0, 0], sizes = [1, 8, 128], strides = [1, 1, 1]} : vector<8x8x128xf32> to vector<1x8x128xf32>
    %57 = vector.shape_cast %56 : vector<1x8x128xf32> to vector<8x128xf32>
    %cst_55 = arith.constant 1.000000e+00 : f32
    %58 = vector.broadcast %cst_55 : f32 to vector<8x128xf32>
    %59 = arith.mulf %58, %57 : vector<8x128xf32>
    %60 = arith.addf %55, %59 : vector<8x128xf32>
    %c1 = arith.constant 1 : index
    %61 = memref.load %arg3[%c1] : memref<8xf32, #tpu.memory_space<smem>>
    %cst_56 = arith.constant 5.000000e-01 : f32
    %62 = arith.mulf %cst_56, %61 : f32
    %63 = vector.extract_strided_slice %29 {offsets = [0, 0, 0], sizes = [1, 8, 128], strides = [1, 1, 1]} : vector<8x8x128xf32> to vector<1x8x128xf32>
    %64 = vector.shape_cast %63 : vector<1x8x128xf32> to vector<8x128xf32>
    %65 = vector.extract_strided_slice %29 {offsets = [1, 0, 0], sizes = [1, 8, 128], strides = [1, 1, 1]} : vector<8x8x128xf32> to vector<1x8x128xf32>
    %66 = vector.shape_cast %65 : vector<1x8x128xf32> to vector<8x128xf32>
    %67 = arith.addf %64, %66 : vector<8x128xf32>
    %68 = vector.broadcast %62 : f32 to vector<8x128xf32>
    %69 = arith.mulf %68, %67 : vector<8x128xf32>
    %c0_57 = arith.constant 0 : index
    %70 = memref.load %arg2[%c0_57] : memref<8xf32, #tpu.memory_space<smem>>
    %71 = vector.broadcast %70 : f32 to vector<8x128xf32>
    %72 = arith.mulf %69, %71 : vector<8x128xf32>
    %cst_58 = arith.constant 1.000000e+00 : f32
    %73 = vector.broadcast %cst_58 : f32 to vector<8x128xf32>
    %74 = arith.addf %73, %72 : vector<8x128xf32>
    %75 = arith.addf %74, %53 : vector<8x128xf32>
    %cst_59 = arith.constant 0.000000e+00 : f32
    %76 = vector.broadcast %cst_59 : f32 to vector<8x128xf32>
    %77 = arith.subf %76, %69 : vector<8x128xf32>
    %78 = vector.broadcast %70 : f32 to vector<8x128xf32>
    %79 = arith.mulf %77, %78 : vector<8x128xf32>
    %c0_i32_60 = arith.constant 0 : i32
    %80 = vector.broadcast %c0_i32_60 : i32 to vector<8x128xi32>
    %81 = arith.cmpi eq, %41, %80 : vector<8x128xi32>
    %82 = arith.andi %43, %81 : vector<8x128xi1>
    %c0_i32_61 = arith.constant 0 : i32
    %83 = vector.broadcast %c0_i32_61 : i32 to vector<8x128xi32>
    %84 = arith.cmpi sle, %41, %83 : vector<8x128xi32>
    %85 = arith.andi %43, %84 : vector<8x128xi1>
    %cst_62 = arith.constant 1.000000e+00 : f32
    %86 = vector.broadcast %cst_62 : f32 to vector<8x128xf32>
    %87 = arith.select %82, %75, %86 : vector<8x128xi1>, vector<8x128xf32>
    %cst_63 = arith.constant 0.000000e+00 : f32
    %88 = vector.broadcast %cst_63 : f32 to vector<8x128xf32>
    %89 = arith.select %85, %79, %88 : vector<8x128xi1>, vector<8x128xf32>
    %cst_64 = arith.constant 0.000000e+00 : f32
    %90 = vector.broadcast %cst_64 : f32 to vector<8x128xf32>
    %91 = arith.select %85, %60, %90 : vector<8x128xi1>, vector<8x128xf32>
    %92 = tpu.reciprocal %87 : vector<8x128xf32> -> vector<8x128xf32>
    %93 = arith.mulf %89, %92 : vector<8x128xf32>
    %94 = arith.mulf %91, %92 : vector<8x128xf32>
    %95 = vector.extract_strided_slice %46 {offsets = [1, 0, 0], sizes = [1, 8, 128], strides = [1, 1, 1]} : vector<8x8x128xf32> to vector<1x8x128xf32>
    %96 = vector.shape_cast %95 : vector<1x8x128xf32> to vector<8x128xf32>
    %cst_65 = arith.constant 0.699999988 : f32
    %97 = vector.broadcast %cst_65 : f32 to vector<8x128xf32>
    %98 = arith.mulf %97, %96 : vector<8x128xf32>
    %99 = vector.extract_strided_slice %30 {offsets = [1, 0, 0], sizes = [1, 8, 128], strides = [1, 1, 1]} : vector<8x8x128xf32> to vector<1x8x128xf32>
    %100 = vector.shape_cast %99 : vector<1x8x128xf32> to vector<8x128xf32>
    %101 = arith.divf %98, %100 : vector<8x128xf32>
    %102 = vector.extract_strided_slice %23 {offsets = [1, 0, 0], sizes = [1, 8, 128], strides = [1, 1, 1]} : vector<8x8x128xf32> to vector<1x8x128xf32>
    %103 = vector.shape_cast %102 : vector<1x8x128xf32> to vector<8x128xf32>
    %104 = vector.extract_strided_slice %31 {offsets = [1, 0, 0], sizes = [1, 8, 128], strides = [1, 1, 1]} : vector<8x8x128xf32> to vector<1x8x128xf32>
    %105 = vector.shape_cast %104 : vector<1x8x128xf32> to vector<8x128xf32>
    %cst_66 = arith.constant 1.000000e+00 : f32
    %106 = vector.broadcast %cst_66 : f32 to vector<8x128xf32>
    %107 = arith.mulf %106, %105 : vector<8x128xf32>
    %108 = arith.addf %103, %107 : vector<8x128xf32>
    %c2 = arith.constant 2 : index
    %109 = memref.load %arg3[%c2] : memref<8xf32, #tpu.memory_space<smem>>
    %cst_67 = arith.constant 5.000000e-01 : f32
    %110 = arith.mulf %cst_67, %109 : f32
    %111 = vector.extract_strided_slice %29 {offsets = [1, 0, 0], sizes = [1, 8, 128], strides = [1, 1, 1]} : vector<8x8x128xf32> to vector<1x8x128xf32>
    %112 = vector.shape_cast %111 : vector<1x8x128xf32> to vector<8x128xf32>
    %113 = vector.extract_strided_slice %29 {offsets = [2, 0, 0], sizes = [1, 8, 128], strides = [1, 1, 1]} : vector<8x8x128xf32> to vector<1x8x128xf32>
    %114 = vector.shape_cast %113 : vector<1x8x128xf32> to vector<8x128xf32>
    %115 = arith.addf %112, %114 : vector<8x128xf32>
    %116 = vector.broadcast %110 : f32 to vector<8x128xf32>
    %117 = arith.mulf %116, %115 : vector<8x128xf32>
    %c1_68 = arith.constant 1 : index
    %118 = memref.load %arg2[%c1_68] : memref<8xf32, #tpu.memory_space<smem>>
    %cst_69 = arith.constant 0.000000e+00 : f32
    %119 = vector.broadcast %cst_69 : f32 to vector<8x128xf32>
    %120 = arith.subf %119, %69 : vector<8x128xf32>
    %121 = vector.broadcast %118 : f32 to vector<8x128xf32>
    %122 = arith.mulf %120, %121 : vector<8x128xf32>
    %123 = arith.addf %117, %69 : vector<8x128xf32>
    %124 = vector.broadcast %118 : f32 to vector<8x128xf32>
    %125 = arith.mulf %123, %124 : vector<8x128xf32>
    %cst_70 = arith.constant 1.000000e+00 : f32
    %126 = vector.broadcast %cst_70 : f32 to vector<8x128xf32>
    %127 = arith.addf %126, %125 : vector<8x128xf32>
    %128 = arith.addf %127, %101 : vector<8x128xf32>
    %129 = vector.broadcast %118 : f32 to vector<8x128xf32>
    %130 = arith.mulf %117, %129 : vector<8x128xf32>
    %cst_71 = arith.constant 1.000000e+00 : f32
    %131 = vector.broadcast %cst_71 : f32 to vector<8x128xf32>
    %132 = arith.addf %131, %130 : vector<8x128xf32>
    %133 = arith.addf %132, %101 : vector<8x128xf32>
    %cst_72 = arith.constant 0.000000e+00 : f32
    %134 = vector.broadcast %cst_72 : f32 to vector<8x128xf32>
    %135 = arith.subf %134, %117 : vector<8x128xf32>
    %136 = vector.broadcast %118 : f32 to vector<8x128xf32>
    %137 = arith.mulf %135, %136 : vector<8x128xf32>
    %c1_i32_73 = arith.constant 1 : i32
    %138 = vector.broadcast %c1_i32_73 : i32 to vector<8x128xi32>
    %139 = arith.cmpi eq, %41, %138 : vector<8x128xi32>
    %140 = arith.andi %43, %139 : vector<8x128xi1>
    %c1_i32_74 = arith.constant 1 : i32
    %141 = vector.broadcast %c1_i32_74 : i32 to vector<8x128xi32>
    %142 = arith.cmpi sle, %41, %141 : vector<8x128xi32>
    %143 = arith.andi %43, %142 : vector<8x128xi1>
    %cst_75 = arith.constant 1.000000e+00 : f32
    %144 = vector.broadcast %cst_75 : f32 to vector<8x128xf32>
    %145 = arith.select %143, %128, %144 : vector<8x128xi1>, vector<8x128xf32>
    %146 = arith.select %140, %133, %145 : vector<8x128xi1>, vector<8x128xf32>
    %cst_76 = arith.constant 0.000000e+00 : f32
    %147 = vector.broadcast %cst_76 : f32 to vector<8x128xf32>
    %148 = arith.select %143, %137, %147 : vector<8x128xi1>, vector<8x128xf32>
    %cst_77 = arith.constant 0.000000e+00 : f32
    %149 = vector.broadcast %cst_77 : f32 to vector<8x128xf32>
    %150 = arith.select %143, %108, %149 : vector<8x128xi1>, vector<8x128xf32>
    %cst_78 = arith.constant dense<true> : vector<8x128xi1>
    %151 = arith.xori %140, %cst_78 : vector<8x128xi1>
    %152 = arith.andi %143, %151 : vector<8x128xi1>
    %cst_79 = arith.constant 0.000000e+00 : f32
    %153 = vector.broadcast %cst_79 : f32 to vector<8x128xf32>
    %154 = arith.select %152, %122, %153 : vector<8x128xi1>, vector<8x128xf32>
    %155 = arith.mulf %154, %93 : vector<8x128xf32>
    %156 = arith.subf %146, %155 : vector<8x128xf32>
    %157 = arith.mulf %154, %94 : vector<8x128xf32>
    %158 = arith.subf %150, %157 : vector<8x128xf32>
    %159 = tpu.reciprocal %156 : vector<8x128xf32> -> vector<8x128xf32>
    %160 = arith.mulf %148, %159 : vector<8x128xf32>
    %161 = arith.mulf %158, %159 : vector<8x128xf32>
    %162 = vector.extract_strided_slice %46 {offsets = [2, 0, 0], sizes = [1, 8, 128], strides = [1, 1, 1]} : vector<8x8x128xf32> to vector<1x8x128xf32>
    %163 = vector.shape_cast %162 : vector<1x8x128xf32> to vector<8x128xf32>
    %cst_80 = arith.constant 0.699999988 : f32
    %164 = vector.broadcast %cst_80 : f32 to vector<8x128xf32>
    %165 = arith.mulf %164, %163 : vector<8x128xf32>
    %166 = vector.extract_strided_slice %30 {offsets = [2, 0, 0], sizes = [1, 8, 128], strides = [1, 1, 1]} : vector<8x8x128xf32> to vector<1x8x128xf32>
    %167 = vector.shape_cast %166 : vector<1x8x128xf32> to vector<8x128xf32>
    %168 = arith.divf %165, %167 : vector<8x128xf32>
    %169 = vector.extract_strided_slice %23 {offsets = [2, 0, 0], sizes = [1, 8, 128], strides = [1, 1, 1]} : vector<8x8x128xf32> to vector<1x8x128xf32>
    %170 = vector.shape_cast %169 : vector<1x8x128xf32> to vector<8x128xf32>
    %171 = vector.extract_strided_slice %31 {offsets = [2, 0, 0], sizes = [1, 8, 128], strides = [1, 1, 1]} : vector<8x8x128xf32> to vector<1x8x128xf32>
    %172 = vector.shape_cast %171 : vector<1x8x128xf32> to vector<8x128xf32>
    %cst_81 = arith.constant 1.000000e+00 : f32
    %173 = vector.broadcast %cst_81 : f32 to vector<8x128xf32>
    %174 = arith.mulf %173, %172 : vector<8x128xf32>
    %175 = arith.addf %170, %174 : vector<8x128xf32>
    %c3 = arith.constant 3 : index
    %176 = memref.load %arg3[%c3] : memref<8xf32, #tpu.memory_space<smem>>
    %cst_82 = arith.constant 5.000000e-01 : f32
    %177 = arith.mulf %cst_82, %176 : f32
    %178 = vector.extract_strided_slice %29 {offsets = [2, 0, 0], sizes = [1, 8, 128], strides = [1, 1, 1]} : vector<8x8x128xf32> to vector<1x8x128xf32>
    %179 = vector.shape_cast %178 : vector<1x8x128xf32> to vector<8x128xf32>
    %180 = vector.extract_strided_slice %29 {offsets = [3, 0, 0], sizes = [1, 8, 128], strides = [1, 1, 1]} : vector<8x8x128xf32> to vector<1x8x128xf32>
    %181 = vector.shape_cast %180 : vector<1x8x128xf32> to vector<8x128xf32>
    %182 = arith.addf %179, %181 : vector<8x128xf32>
    %183 = vector.broadcast %177 : f32 to vector<8x128xf32>
    %184 = arith.mulf %183, %182 : vector<8x128xf32>
    %c2_83 = arith.constant 2 : index
    %185 = memref.load %arg2[%c2_83] : memref<8xf32, #tpu.memory_space<smem>>
    %cst_84 = arith.constant 0.000000e+00 : f32
    %186 = vector.broadcast %cst_84 : f32 to vector<8x128xf32>
    %187 = arith.subf %186, %117 : vector<8x128xf32>
    %188 = vector.broadcast %185 : f32 to vector<8x128xf32>
    %189 = arith.mulf %187, %188 : vector<8x128xf32>
    %190 = arith.addf %184, %117 : vector<8x128xf32>
    %191 = vector.broadcast %185 : f32 to vector<8x128xf32>
    %192 = arith.mulf %190, %191 : vector<8x128xf32>
    %cst_85 = arith.constant 1.000000e+00 : f32
    %193 = vector.broadcast %cst_85 : f32 to vector<8x128xf32>
    %194 = arith.addf %193, %192 : vector<8x128xf32>
    %195 = arith.addf %194, %168 : vector<8x128xf32>
    %196 = vector.broadcast %185 : f32 to vector<8x128xf32>
    %197 = arith.mulf %184, %196 : vector<8x128xf32>
    %cst_86 = arith.constant 1.000000e+00 : f32
    %198 = vector.broadcast %cst_86 : f32 to vector<8x128xf32>
    %199 = arith.addf %198, %197 : vector<8x128xf32>
    %200 = arith.addf %199, %168 : vector<8x128xf32>
    %cst_87 = arith.constant 0.000000e+00 : f32
    %201 = vector.broadcast %cst_87 : f32 to vector<8x128xf32>
    %202 = arith.subf %201, %184 : vector<8x128xf32>
    %203 = vector.broadcast %185 : f32 to vector<8x128xf32>
    %204 = arith.mulf %202, %203 : vector<8x128xf32>
    %c2_i32_88 = arith.constant 2 : i32
    %205 = vector.broadcast %c2_i32_88 : i32 to vector<8x128xi32>
    %206 = arith.cmpi eq, %41, %205 : vector<8x128xi32>
    %207 = arith.andi %43, %206 : vector<8x128xi1>
    %c2_i32_89 = arith.constant 2 : i32
    %208 = vector.broadcast %c2_i32_89 : i32 to vector<8x128xi32>
    %209 = arith.cmpi sle, %41, %208 : vector<8x128xi32>
    %210 = arith.andi %43, %209 : vector<8x128xi1>
    %cst_90 = arith.constant 1.000000e+00 : f32
    %211 = vector.broadcast %cst_90 : f32 to vector<8x128xf32>
    %212 = arith.select %210, %195, %211 : vector<8x128xi1>, vector<8x128xf32>
    %213 = arith.select %207, %200, %212 : vector<8x128xi1>, vector<8x128xf32>
    %cst_91 = arith.constant 0.000000e+00 : f32
    %214 = vector.broadcast %cst_91 : f32 to vector<8x128xf32>
    %215 = arith.select %210, %204, %214 : vector<8x128xi1>, vector<8x128xf32>
    %cst_92 = arith.constant 0.000000e+00 : f32
    %216 = vector.broadcast %cst_92 : f32 to vector<8x128xf32>
    %217 = arith.select %210, %175, %216 : vector<8x128xi1>, vector<8x128xf32>
    %cst_93 = arith.constant dense<true> : vector<8x128xi1>
    %218 = arith.xori %207, %cst_93 : vector<8x128xi1>
    %219 = arith.andi %210, %218 : vector<8x128xi1>
    %cst_94 = arith.constant 0.000000e+00 : f32
    %220 = vector.broadcast %cst_94 : f32 to vector<8x128xf32>
    %221 = arith.select %219, %189, %220 : vector<8x128xi1>, vector<8x128xf32>
    %222 = arith.mulf %221, %160 : vector<8x128xf32>
    %223 = arith.subf %213, %222 : vector<8x128xf32>
    %224 = arith.mulf %221, %161 : vector<8x128xf32>
    %225 = arith.subf %217, %224 : vector<8x128xf32>
    %226 = tpu.reciprocal %223 : vector<8x128xf32> -> vector<8x128xf32>
    %227 = arith.mulf %215, %226 : vector<8x128xf32>
    %228 = arith.mulf %225, %226 : vector<8x128xf32>
    %229 = vector.extract_strided_slice %46 {offsets = [3, 0, 0], sizes = [1, 8, 128], strides = [1, 1, 1]} : vector<8x8x128xf32> to vector<1x8x128xf32>
    %230 = vector.shape_cast %229 : vector<1x8x128xf32> to vector<8x128xf32>
    %cst_95 = arith.constant 0.699999988 : f32
    %231 = vector.broadcast %cst_95 : f32 to vector<8x128xf32>
    %232 = arith.mulf %231, %230 : vector<8x128xf32>
    %233 = vector.extract_strided_slice %30 {offsets = [3, 0, 0], sizes = [1, 8, 128], strides = [1, 1, 1]} : vector<8x8x128xf32> to vector<1x8x128xf32>
    %234 = vector.shape_cast %233 : vector<1x8x128xf32> to vector<8x128xf32>
    %235 = arith.divf %232, %234 : vector<8x128xf32>
    %236 = vector.extract_strided_slice %23 {offsets = [3, 0, 0], sizes = [1, 8, 128], strides = [1, 1, 1]} : vector<8x8x128xf32> to vector<1x8x128xf32>
    %237 = vector.shape_cast %236 : vector<1x8x128xf32> to vector<8x128xf32>
    %238 = vector.extract_strided_slice %31 {offsets = [3, 0, 0], sizes = [1, 8, 128], strides = [1, 1, 1]} : vector<8x8x128xf32> to vector<1x8x128xf32>
    %239 = vector.shape_cast %238 : vector<1x8x128xf32> to vector<8x128xf32>
    %cst_96 = arith.constant 1.000000e+00 : f32
    %240 = vector.broadcast %cst_96 : f32 to vector<8x128xf32>
    %241 = arith.mulf %240, %239 : vector<8x128xf32>
    %242 = arith.addf %237, %241 : vector<8x128xf32>
    %c4 = arith.constant 4 : index
    %243 = memref.load %arg3[%c4] : memref<8xf32, #tpu.memory_space<smem>>
    %cst_97 = arith.constant 5.000000e-01 : f32
    %244 = arith.mulf %cst_97, %243 : f32
    %245 = vector.extract_strided_slice %29 {offsets = [3, 0, 0], sizes = [1, 8, 128], strides = [1, 1, 1]} : vector<8x8x128xf32> to vector<1x8x128xf32>
    %246 = vector.shape_cast %245 : vector<1x8x128xf32> to vector<8x128xf32>
    %247 = vector.extract_strided_slice %29 {offsets = [4, 0, 0], sizes = [1, 8, 128], strides = [1, 1, 1]} : vector<8x8x128xf32> to vector<1x8x128xf32>
    %248 = vector.shape_cast %247 : vector<1x8x128xf32> to vector<8x128xf32>
    %249 = arith.addf %246, %248 : vector<8x128xf32>
    %250 = vector.broadcast %244 : f32 to vector<8x128xf32>
    %251 = arith.mulf %250, %249 : vector<8x128xf32>
    %c3_98 = arith.constant 3 : index
    %252 = memref.load %arg2[%c3_98] : memref<8xf32, #tpu.memory_space<smem>>
    %cst_99 = arith.constant 0.000000e+00 : f32
    %253 = vector.broadcast %cst_99 : f32 to vector<8x128xf32>
    %254 = arith.subf %253, %184 : vector<8x128xf32>
    %255 = vector.broadcast %252 : f32 to vector<8x128xf32>
    %256 = arith.mulf %254, %255 : vector<8x128xf32>
    %257 = arith.addf %251, %184 : vector<8x128xf32>
    %258 = vector.broadcast %252 : f32 to vector<8x128xf32>
    %259 = arith.mulf %257, %258 : vector<8x128xf32>
    %cst_100 = arith.constant 1.000000e+00 : f32
    %260 = vector.broadcast %cst_100 : f32 to vector<8x128xf32>
    %261 = arith.addf %260, %259 : vector<8x128xf32>
    %262 = arith.addf %261, %235 : vector<8x128xf32>
    %263 = vector.broadcast %252 : f32 to vector<8x128xf32>
    %264 = arith.mulf %251, %263 : vector<8x128xf32>
    %cst_101 = arith.constant 1.000000e+00 : f32
    %265 = vector.broadcast %cst_101 : f32 to vector<8x128xf32>
    %266 = arith.addf %265, %264 : vector<8x128xf32>
    %267 = arith.addf %266, %235 : vector<8x128xf32>
    %cst_102 = arith.constant 0.000000e+00 : f32
    %268 = vector.broadcast %cst_102 : f32 to vector<8x128xf32>
    %269 = arith.subf %268, %251 : vector<8x128xf32>
    %270 = vector.broadcast %252 : f32 to vector<8x128xf32>
    %271 = arith.mulf %269, %270 : vector<8x128xf32>
    %c3_i32 = arith.constant 3 : i32
    %272 = vector.broadcast %c3_i32 : i32 to vector<8x128xi32>
    %273 = arith.cmpi eq, %41, %272 : vector<8x128xi32>
    %274 = arith.andi %43, %273 : vector<8x128xi1>
    %c3_i32_103 = arith.constant 3 : i32
    %275 = vector.broadcast %c3_i32_103 : i32 to vector<8x128xi32>
    %276 = arith.cmpi sle, %41, %275 : vector<8x128xi32>
    %277 = arith.andi %43, %276 : vector<8x128xi1>
    %cst_104 = arith.constant 1.000000e+00 : f32
    %278 = vector.broadcast %cst_104 : f32 to vector<8x128xf32>
    %279 = arith.select %277, %262, %278 : vector<8x128xi1>, vector<8x128xf32>
    %280 = arith.select %274, %267, %279 : vector<8x128xi1>, vector<8x128xf32>
    %cst_105 = arith.constant 0.000000e+00 : f32
    %281 = vector.broadcast %cst_105 : f32 to vector<8x128xf32>
    %282 = arith.select %277, %271, %281 : vector<8x128xi1>, vector<8x128xf32>
    %cst_106 = arith.constant 0.000000e+00 : f32
    %283 = vector.broadcast %cst_106 : f32 to vector<8x128xf32>
    %284 = arith.select %277, %242, %283 : vector<8x128xi1>, vector<8x128xf32>
    %cst_107 = arith.constant dense<true> : vector<8x128xi1>
    %285 = arith.xori %274, %cst_107 : vector<8x128xi1>
    %286 = arith.andi %277, %285 : vector<8x128xi1>
    %cst_108 = arith.constant 0.000000e+00 : f32
    %287 = vector.broadcast %cst_108 : f32 to vector<8x128xf32>
    %288 = arith.select %286, %256, %287 : vector<8x128xi1>, vector<8x128xf32>
    %289 = arith.mulf %288, %227 : vector<8x128xf32>
    %290 = arith.subf %280, %289 : vector<8x128xf32>
    %291 = arith.mulf %288, %228 : vector<8x128xf32>
    %292 = arith.subf %284, %291 : vector<8x128xf32>
    %293 = tpu.reciprocal %290 : vector<8x128xf32> -> vector<8x128xf32>
    %294 = arith.mulf %282, %293 : vector<8x128xf32>
    %295 = arith.mulf %292, %293 : vector<8x128xf32>
    %296 = vector.extract_strided_slice %46 {offsets = [4, 0, 0], sizes = [1, 8, 128], strides = [1, 1, 1]} : vector<8x8x128xf32> to vector<1x8x128xf32>
    %297 = vector.shape_cast %296 : vector<1x8x128xf32> to vector<8x128xf32>
    %cst_109 = arith.constant 0.699999988 : f32
    %298 = vector.broadcast %cst_109 : f32 to vector<8x128xf32>
    %299 = arith.mulf %298, %297 : vector<8x128xf32>
    %300 = vector.extract_strided_slice %30 {offsets = [4, 0, 0], sizes = [1, 8, 128], strides = [1, 1, 1]} : vector<8x8x128xf32> to vector<1x8x128xf32>
    %301 = vector.shape_cast %300 : vector<1x8x128xf32> to vector<8x128xf32>
    %302 = arith.divf %299, %301 : vector<8x128xf32>
    %303 = vector.extract_strided_slice %23 {offsets = [4, 0, 0], sizes = [1, 8, 128], strides = [1, 1, 1]} : vector<8x8x128xf32> to vector<1x8x128xf32>
    %304 = vector.shape_cast %303 : vector<1x8x128xf32> to vector<8x128xf32>
    %305 = vector.extract_strided_slice %31 {offsets = [4, 0, 0], sizes = [1, 8, 128], strides = [1, 1, 1]} : vector<8x8x128xf32> to vector<1x8x128xf32>
    %306 = vector.shape_cast %305 : vector<1x8x128xf32> to vector<8x128xf32>
    %cst_110 = arith.constant 1.000000e+00 : f32
    %307 = vector.broadcast %cst_110 : f32 to vector<8x128xf32>
    %308 = arith.mulf %307, %306 : vector<8x128xf32>
    %309 = arith.addf %304, %308 : vector<8x128xf32>
    %c5 = arith.constant 5 : index
    %310 = memref.load %arg3[%c5] : memref<8xf32, #tpu.memory_space<smem>>
    %cst_111 = arith.constant 5.000000e-01 : f32
    %311 = arith.mulf %cst_111, %310 : f32
    %312 = vector.extract_strided_slice %29 {offsets = [4, 0, 0], sizes = [1, 8, 128], strides = [1, 1, 1]} : vector<8x8x128xf32> to vector<1x8x128xf32>
    %313 = vector.shape_cast %312 : vector<1x8x128xf32> to vector<8x128xf32>
    %314 = vector.extract_strided_slice %29 {offsets = [5, 0, 0], sizes = [1, 8, 128], strides = [1, 1, 1]} : vector<8x8x128xf32> to vector<1x8x128xf32>
    %315 = vector.shape_cast %314 : vector<1x8x128xf32> to vector<8x128xf32>
    %316 = arith.addf %313, %315 : vector<8x128xf32>
    %317 = vector.broadcast %311 : f32 to vector<8x128xf32>
    %318 = arith.mulf %317, %316 : vector<8x128xf32>
    %c4_112 = arith.constant 4 : index
    %319 = memref.load %arg2[%c4_112] : memref<8xf32, #tpu.memory_space<smem>>
    %cst_113 = arith.constant 0.000000e+00 : f32
    %320 = vector.broadcast %cst_113 : f32 to vector<8x128xf32>
    %321 = arith.subf %320, %251 : vector<8x128xf32>
    %322 = vector.broadcast %319 : f32 to vector<8x128xf32>
    %323 = arith.mulf %321, %322 : vector<8x128xf32>
    %324 = arith.addf %318, %251 : vector<8x128xf32>
    %325 = vector.broadcast %319 : f32 to vector<8x128xf32>
    %326 = arith.mulf %324, %325 : vector<8x128xf32>
    %cst_114 = arith.constant 1.000000e+00 : f32
    %327 = vector.broadcast %cst_114 : f32 to vector<8x128xf32>
    %328 = arith.addf %327, %326 : vector<8x128xf32>
    %329 = arith.addf %328, %302 : vector<8x128xf32>
    %330 = vector.broadcast %319 : f32 to vector<8x128xf32>
    %331 = arith.mulf %318, %330 : vector<8x128xf32>
    %cst_115 = arith.constant 1.000000e+00 : f32
    %332 = vector.broadcast %cst_115 : f32 to vector<8x128xf32>
    %333 = arith.addf %332, %331 : vector<8x128xf32>
    %334 = arith.addf %333, %302 : vector<8x128xf32>
    %cst_116 = arith.constant 0.000000e+00 : f32
    %335 = vector.broadcast %cst_116 : f32 to vector<8x128xf32>
    %336 = arith.subf %335, %318 : vector<8x128xf32>
    %337 = vector.broadcast %319 : f32 to vector<8x128xf32>
    %338 = arith.mulf %336, %337 : vector<8x128xf32>
    %c4_i32 = arith.constant 4 : i32
    %339 = vector.broadcast %c4_i32 : i32 to vector<8x128xi32>
    %340 = arith.cmpi eq, %41, %339 : vector<8x128xi32>
    %341 = arith.andi %43, %340 : vector<8x128xi1>
    %c4_i32_117 = arith.constant 4 : i32
    %342 = vector.broadcast %c4_i32_117 : i32 to vector<8x128xi32>
    %343 = arith.cmpi sle, %41, %342 : vector<8x128xi32>
    %344 = arith.andi %43, %343 : vector<8x128xi1>
    %cst_118 = arith.constant 1.000000e+00 : f32
    %345 = vector.broadcast %cst_118 : f32 to vector<8x128xf32>
    %346 = arith.select %344, %329, %345 : vector<8x128xi1>, vector<8x128xf32>
    %347 = arith.select %341, %334, %346 : vector<8x128xi1>, vector<8x128xf32>
    %cst_119 = arith.constant 0.000000e+00 : f32
    %348 = vector.broadcast %cst_119 : f32 to vector<8x128xf32>
    %349 = arith.select %344, %338, %348 : vector<8x128xi1>, vector<8x128xf32>
    %cst_120 = arith.constant 0.000000e+00 : f32
    %350 = vector.broadcast %cst_120 : f32 to vector<8x128xf32>
    %351 = arith.select %344, %309, %350 : vector<8x128xi1>, vector<8x128xf32>
    %cst_121 = arith.constant dense<true> : vector<8x128xi1>
    %352 = arith.xori %341, %cst_121 : vector<8x128xi1>
    %353 = arith.andi %344, %352 : vector<8x128xi1>
    %cst_122 = arith.constant 0.000000e+00 : f32
    %354 = vector.broadcast %cst_122 : f32 to vector<8x128xf32>
    %355 = arith.select %353, %323, %354 : vector<8x128xi1>, vector<8x128xf32>
    %356 = arith.mulf %355, %294 : vector<8x128xf32>
    %357 = arith.subf %347, %356 : vector<8x128xf32>
    %358 = arith.mulf %355, %295 : vector<8x128xf32>
    %359 = arith.subf %351, %358 : vector<8x128xf32>
    %360 = tpu.reciprocal %357 : vector<8x128xf32> -> vector<8x128xf32>
    %361 = arith.mulf %349, %360 : vector<8x128xf32>
    %362 = arith.mulf %359, %360 : vector<8x128xf32>
    %363 = vector.extract_strided_slice %46 {offsets = [5, 0, 0], sizes = [1, 8, 128], strides = [1, 1, 1]} : vector<8x8x128xf32> to vector<1x8x128xf32>
    %364 = vector.shape_cast %363 : vector<1x8x128xf32> to vector<8x128xf32>
    %cst_123 = arith.constant 0.699999988 : f32
    %365 = vector.broadcast %cst_123 : f32 to vector<8x128xf32>
    %366 = arith.mulf %365, %364 : vector<8x128xf32>
    %367 = vector.extract_strided_slice %30 {offsets = [5, 0, 0], sizes = [1, 8, 128], strides = [1, 1, 1]} : vector<8x8x128xf32> to vector<1x8x128xf32>
    %368 = vector.shape_cast %367 : vector<1x8x128xf32> to vector<8x128xf32>
    %369 = arith.divf %366, %368 : vector<8x128xf32>
    %370 = vector.extract_strided_slice %23 {offsets = [5, 0, 0], sizes = [1, 8, 128], strides = [1, 1, 1]} : vector<8x8x128xf32> to vector<1x8x128xf32>
    %371 = vector.shape_cast %370 : vector<1x8x128xf32> to vector<8x128xf32>
    %372 = vector.extract_strided_slice %31 {offsets = [5, 0, 0], sizes = [1, 8, 128], strides = [1, 1, 1]} : vector<8x8x128xf32> to vector<1x8x128xf32>
    %373 = vector.shape_cast %372 : vector<1x8x128xf32> to vector<8x128xf32>
    %cst_124 = arith.constant 1.000000e+00 : f32
    %374 = vector.broadcast %cst_124 : f32 to vector<8x128xf32>
    %375 = arith.mulf %374, %373 : vector<8x128xf32>
    %376 = arith.addf %371, %375 : vector<8x128xf32>
    %c6 = arith.constant 6 : index
    %377 = memref.load %arg3[%c6] : memref<8xf32, #tpu.memory_space<smem>>
    %cst_125 = arith.constant 5.000000e-01 : f32
    %378 = arith.mulf %cst_125, %377 : f32
    %379 = vector.extract_strided_slice %29 {offsets = [5, 0, 0], sizes = [1, 8, 128], strides = [1, 1, 1]} : vector<8x8x128xf32> to vector<1x8x128xf32>
    %380 = vector.shape_cast %379 : vector<1x8x128xf32> to vector<8x128xf32>
    %381 = vector.extract_strided_slice %29 {offsets = [6, 0, 0], sizes = [1, 8, 128], strides = [1, 1, 1]} : vector<8x8x128xf32> to vector<1x8x128xf32>
    %382 = vector.shape_cast %381 : vector<1x8x128xf32> to vector<8x128xf32>
    %383 = arith.addf %380, %382 : vector<8x128xf32>
    %384 = vector.broadcast %378 : f32 to vector<8x128xf32>
    %385 = arith.mulf %384, %383 : vector<8x128xf32>
    %c5_126 = arith.constant 5 : index
    %386 = memref.load %arg2[%c5_126] : memref<8xf32, #tpu.memory_space<smem>>
    %cst_127 = arith.constant 0.000000e+00 : f32
    %387 = vector.broadcast %cst_127 : f32 to vector<8x128xf32>
    %388 = arith.subf %387, %318 : vector<8x128xf32>
    %389 = vector.broadcast %386 : f32 to vector<8x128xf32>
    %390 = arith.mulf %388, %389 : vector<8x128xf32>
    %391 = arith.addf %385, %318 : vector<8x128xf32>
    %392 = vector.broadcast %386 : f32 to vector<8x128xf32>
    %393 = arith.mulf %391, %392 : vector<8x128xf32>
    %cst_128 = arith.constant 1.000000e+00 : f32
    %394 = vector.broadcast %cst_128 : f32 to vector<8x128xf32>
    %395 = arith.addf %394, %393 : vector<8x128xf32>
    %396 = arith.addf %395, %369 : vector<8x128xf32>
    %397 = vector.broadcast %386 : f32 to vector<8x128xf32>
    %398 = arith.mulf %385, %397 : vector<8x128xf32>
    %cst_129 = arith.constant 1.000000e+00 : f32
    %399 = vector.broadcast %cst_129 : f32 to vector<8x128xf32>
    %400 = arith.addf %399, %398 : vector<8x128xf32>
    %401 = arith.addf %400, %369 : vector<8x128xf32>
    %cst_130 = arith.constant 0.000000e+00 : f32
    %402 = vector.broadcast %cst_130 : f32 to vector<8x128xf32>
    %403 = arith.subf %402, %385 : vector<8x128xf32>
    %404 = vector.broadcast %386 : f32 to vector<8x128xf32>
    %405 = arith.mulf %403, %404 : vector<8x128xf32>
    %c5_i32 = arith.constant 5 : i32
    %406 = vector.broadcast %c5_i32 : i32 to vector<8x128xi32>
    %407 = arith.cmpi eq, %41, %406 : vector<8x128xi32>
    %408 = arith.andi %43, %407 : vector<8x128xi1>
    %c5_i32_131 = arith.constant 5 : i32
    %409 = vector.broadcast %c5_i32_131 : i32 to vector<8x128xi32>
    %410 = arith.cmpi sle, %41, %409 : vector<8x128xi32>
    %411 = arith.andi %43, %410 : vector<8x128xi1>
    %cst_132 = arith.constant 1.000000e+00 : f32
    %412 = vector.broadcast %cst_132 : f32 to vector<8x128xf32>
    %413 = arith.select %411, %396, %412 : vector<8x128xi1>, vector<8x128xf32>
    %414 = arith.select %408, %401, %413 : vector<8x128xi1>, vector<8x128xf32>
    %cst_133 = arith.constant 0.000000e+00 : f32
    %415 = vector.broadcast %cst_133 : f32 to vector<8x128xf32>
    %416 = arith.select %411, %405, %415 : vector<8x128xi1>, vector<8x128xf32>
    %cst_134 = arith.constant 0.000000e+00 : f32
    %417 = vector.broadcast %cst_134 : f32 to vector<8x128xf32>
    %418 = arith.select %411, %376, %417 : vector<8x128xi1>, vector<8x128xf32>
    %cst_135 = arith.constant dense<true> : vector<8x128xi1>
    %419 = arith.xori %408, %cst_135 : vector<8x128xi1>
    %420 = arith.andi %411, %419 : vector<8x128xi1>
    %cst_136 = arith.constant 0.000000e+00 : f32
    %421 = vector.broadcast %cst_136 : f32 to vector<8x128xf32>
    %422 = arith.select %420, %390, %421 : vector<8x128xi1>, vector<8x128xf32>
    %423 = arith.mulf %422, %361 : vector<8x128xf32>
    %424 = arith.subf %414, %423 : vector<8x128xf32>
    %425 = arith.mulf %422, %362 : vector<8x128xf32>
    %426 = arith.subf %418, %425 : vector<8x128xf32>
    %427 = tpu.reciprocal %424 : vector<8x128xf32> -> vector<8x128xf32>
    %428 = arith.mulf %416, %427 : vector<8x128xf32>
    %429 = arith.mulf %426, %427 : vector<8x128xf32>
    %430 = vector.extract_strided_slice %46 {offsets = [6, 0, 0], sizes = [1, 8, 128], strides = [1, 1, 1]} : vector<8x8x128xf32> to vector<1x8x128xf32>
    %431 = vector.shape_cast %430 : vector<1x8x128xf32> to vector<8x128xf32>
    %cst_137 = arith.constant 0.699999988 : f32
    %432 = vector.broadcast %cst_137 : f32 to vector<8x128xf32>
    %433 = arith.mulf %432, %431 : vector<8x128xf32>
    %434 = vector.extract_strided_slice %30 {offsets = [6, 0, 0], sizes = [1, 8, 128], strides = [1, 1, 1]} : vector<8x8x128xf32> to vector<1x8x128xf32>
    %435 = vector.shape_cast %434 : vector<1x8x128xf32> to vector<8x128xf32>
    %436 = arith.divf %433, %435 : vector<8x128xf32>
    %437 = vector.extract_strided_slice %23 {offsets = [6, 0, 0], sizes = [1, 8, 128], strides = [1, 1, 1]} : vector<8x8x128xf32> to vector<1x8x128xf32>
    %438 = vector.shape_cast %437 : vector<1x8x128xf32> to vector<8x128xf32>
    %439 = vector.extract_strided_slice %31 {offsets = [6, 0, 0], sizes = [1, 8, 128], strides = [1, 1, 1]} : vector<8x8x128xf32> to vector<1x8x128xf32>
    %440 = vector.shape_cast %439 : vector<1x8x128xf32> to vector<8x128xf32>
    %cst_138 = arith.constant 1.000000e+00 : f32
    %441 = vector.broadcast %cst_138 : f32 to vector<8x128xf32>
    %442 = arith.mulf %441, %440 : vector<8x128xf32>
    %443 = arith.addf %438, %442 : vector<8x128xf32>
    %c7 = arith.constant 7 : index
    %444 = memref.load %arg3[%c7] : memref<8xf32, #tpu.memory_space<smem>>
    %cst_139 = arith.constant 5.000000e-01 : f32
    %445 = arith.mulf %cst_139, %444 : f32
    %446 = vector.extract_strided_slice %29 {offsets = [6, 0, 0], sizes = [1, 8, 128], strides = [1, 1, 1]} : vector<8x8x128xf32> to vector<1x8x128xf32>
    %447 = vector.shape_cast %446 : vector<1x8x128xf32> to vector<8x128xf32>
    %448 = vector.extract_strided_slice %29 {offsets = [7, 0, 0], sizes = [1, 8, 128], strides = [1, 1, 1]} : vector<8x8x128xf32> to vector<1x8x128xf32>
    %449 = vector.shape_cast %448 : vector<1x8x128xf32> to vector<8x128xf32>
    %450 = arith.addf %447, %449 : vector<8x128xf32>
    %451 = vector.broadcast %445 : f32 to vector<8x128xf32>
    %452 = arith.mulf %451, %450 : vector<8x128xf32>
    %c6_140 = arith.constant 6 : index
    %453 = memref.load %arg2[%c6_140] : memref<8xf32, #tpu.memory_space<smem>>
    %cst_141 = arith.constant 0.000000e+00 : f32
    %454 = vector.broadcast %cst_141 : f32 to vector<8x128xf32>
    %455 = arith.subf %454, %385 : vector<8x128xf32>
    %456 = vector.broadcast %453 : f32 to vector<8x128xf32>
    %457 = arith.mulf %455, %456 : vector<8x128xf32>
    %458 = arith.addf %452, %385 : vector<8x128xf32>
    %459 = vector.broadcast %453 : f32 to vector<8x128xf32>
    %460 = arith.mulf %458, %459 : vector<8x128xf32>
    %cst_142 = arith.constant 1.000000e+00 : f32
    %461 = vector.broadcast %cst_142 : f32 to vector<8x128xf32>
    %462 = arith.addf %461, %460 : vector<8x128xf32>
    %463 = arith.addf %462, %436 : vector<8x128xf32>
    %464 = vector.broadcast %453 : f32 to vector<8x128xf32>
    %465 = arith.mulf %452, %464 : vector<8x128xf32>
    %cst_143 = arith.constant 1.000000e+00 : f32
    %466 = vector.broadcast %cst_143 : f32 to vector<8x128xf32>
    %467 = arith.addf %466, %465 : vector<8x128xf32>
    %468 = arith.addf %467, %436 : vector<8x128xf32>
    %cst_144 = arith.constant 0.000000e+00 : f32
    %469 = vector.broadcast %cst_144 : f32 to vector<8x128xf32>
    %470 = arith.subf %469, %452 : vector<8x128xf32>
    %471 = vector.broadcast %453 : f32 to vector<8x128xf32>
    %472 = arith.mulf %470, %471 : vector<8x128xf32>
    %c6_i32 = arith.constant 6 : i32
    %473 = vector.broadcast %c6_i32 : i32 to vector<8x128xi32>
    %474 = arith.cmpi eq, %41, %473 : vector<8x128xi32>
    %475 = arith.andi %43, %474 : vector<8x128xi1>
    %c6_i32_145 = arith.constant 6 : i32
    %476 = vector.broadcast %c6_i32_145 : i32 to vector<8x128xi32>
    %477 = arith.cmpi sle, %41, %476 : vector<8x128xi32>
    %478 = arith.andi %43, %477 : vector<8x128xi1>
    %cst_146 = arith.constant 1.000000e+00 : f32
    %479 = vector.broadcast %cst_146 : f32 to vector<8x128xf32>
    %480 = arith.select %478, %463, %479 : vector<8x128xi1>, vector<8x128xf32>
    %481 = arith.select %475, %468, %480 : vector<8x128xi1>, vector<8x128xf32>
    %cst_147 = arith.constant 0.000000e+00 : f32
    %482 = vector.broadcast %cst_147 : f32 to vector<8x128xf32>
    %483 = arith.select %478, %472, %482 : vector<8x128xi1>, vector<8x128xf32>
    %cst_148 = arith.constant 0.000000e+00 : f32
    %484 = vector.broadcast %cst_148 : f32 to vector<8x128xf32>
    %485 = arith.select %478, %443, %484 : vector<8x128xi1>, vector<8x128xf32>
    %cst_149 = arith.constant dense<true> : vector<8x128xi1>
    %486 = arith.xori %475, %cst_149 : vector<8x128xi1>
    %487 = arith.andi %478, %486 : vector<8x128xi1>
    %cst_150 = arith.constant 0.000000e+00 : f32
    %488 = vector.broadcast %cst_150 : f32 to vector<8x128xf32>
    %489 = arith.select %487, %457, %488 : vector<8x128xi1>, vector<8x128xf32>
    %490 = arith.mulf %489, %428 : vector<8x128xf32>
    %491 = arith.subf %481, %490 : vector<8x128xf32>
    %492 = arith.mulf %489, %429 : vector<8x128xf32>
    %493 = arith.subf %485, %492 : vector<8x128xf32>
    %494 = tpu.reciprocal %491 : vector<8x128xf32> -> vector<8x128xf32>
    %495 = arith.mulf %483, %494 : vector<8x128xf32>
    %496 = arith.mulf %493, %494 : vector<8x128xf32>
    %497 = vector.extract_strided_slice %46 {offsets = [7, 0, 0], sizes = [1, 8, 128], strides = [1, 1, 1]} : vector<8x8x128xf32> to vector<1x8x128xf32>
    %498 = vector.shape_cast %497 : vector<1x8x128xf32> to vector<8x128xf32>
    %cst_151 = arith.constant 0.699999988 : f32
    %499 = vector.broadcast %cst_151 : f32 to vector<8x128xf32>
    %500 = arith.mulf %499, %498 : vector<8x128xf32>
    %501 = vector.extract_strided_slice %30 {offsets = [7, 0, 0], sizes = [1, 8, 128], strides = [1, 1, 1]} : vector<8x8x128xf32> to vector<1x8x128xf32>
    %502 = vector.shape_cast %501 : vector<1x8x128xf32> to vector<8x128xf32>
    %503 = arith.divf %500, %502 : vector<8x128xf32>
    %504 = vector.extract_strided_slice %23 {offsets = [7, 0, 0], sizes = [1, 8, 128], strides = [1, 1, 1]} : vector<8x8x128xf32> to vector<1x8x128xf32>
    %505 = vector.shape_cast %504 : vector<1x8x128xf32> to vector<8x128xf32>
    %506 = vector.extract_strided_slice %31 {offsets = [7, 0, 0], sizes = [1, 8, 128], strides = [1, 1, 1]} : vector<8x8x128xf32> to vector<1x8x128xf32>
    %507 = vector.shape_cast %506 : vector<1x8x128xf32> to vector<8x128xf32>
    %cst_152 = arith.constant 1.000000e+00 : f32
    %508 = vector.broadcast %cst_152 : f32 to vector<8x128xf32>
    %509 = arith.mulf %508, %507 : vector<8x128xf32>
    %510 = arith.addf %505, %509 : vector<8x128xf32>
    %c7_153 = arith.constant 7 : index
    %511 = memref.load %arg2[%c7_153] : memref<8xf32, #tpu.memory_space<smem>>
    %cst_154 = arith.constant 2.000000e+00 : f32
    %512 = arith.mulf %cst_154, %511 : f32
    %cst_155 = arith.constant 0.000000e+00 : f32
    %513 = vector.broadcast %cst_155 : f32 to vector<8x128xf32>
    %514 = arith.subf %513, %452 : vector<8x128xf32>
    %515 = vector.broadcast %512 : f32 to vector<8x128xf32>
    %516 = arith.mulf %514, %515 : vector<8x128xf32>
    %517 = vector.broadcast %512 : f32 to vector<8x128xf32>
    %518 = arith.mulf %452, %517 : vector<8x128xf32>
    %cst_156 = arith.constant 1.000000e+00 : f32
    %519 = vector.broadcast %cst_156 : f32 to vector<8x128xf32>
    %520 = arith.addf %519, %518 : vector<8x128xf32>
    %521 = arith.addf %520, %503 : vector<8x128xf32>
    %cst_157 = arith.constant 1.000000e+00 : f32
    %522 = vector.broadcast %cst_157 : f32 to vector<8x128xf32>
    %523 = arith.addf %522, %503 : vector<8x128xf32>
    %cst_158 = arith.constant 1.000000e+00 : f32
    %524 = arith.mulf %cst_158, %512 : f32
    %525 = vector.broadcast %524 : f32 to vector<8x128xf32>
    %526 = arith.mulf %525, %35 : vector<8x128xf32>
    %527 = arith.addf %510, %526 : vector<8x128xf32>
    %c7_i32 = arith.constant 7 : i32
    %528 = vector.broadcast %c7_i32 : i32 to vector<8x128xi32>
    %529 = arith.cmpi eq, %41, %528 : vector<8x128xi32>
    %530 = arith.andi %43, %529 : vector<8x128xi1>
    %c7_i32_159 = arith.constant 7 : i32
    %531 = vector.broadcast %c7_i32_159 : i32 to vector<8x128xi32>
    %532 = arith.cmpi sle, %41, %531 : vector<8x128xi32>
    %533 = arith.andi %43, %532 : vector<8x128xi1>
    %cst_160 = arith.constant 1.000000e+00 : f32
    %534 = vector.broadcast %cst_160 : f32 to vector<8x128xf32>
    %535 = arith.select %533, %521, %534 : vector<8x128xi1>, vector<8x128xf32>
    %536 = arith.select %530, %523, %535 : vector<8x128xi1>, vector<8x128xf32>
    %cst_161 = arith.constant 0.000000e+00 : f32
    %537 = vector.broadcast %cst_161 : f32 to vector<8x128xf32>
    %538 = arith.select %533, %527, %537 : vector<8x128xi1>, vector<8x128xf32>
    %cst_162 = arith.constant dense<true> : vector<8x128xi1>
    %539 = arith.xori %530, %cst_162 : vector<8x128xi1>
    %540 = arith.andi %533, %539 : vector<8x128xi1>
    %cst_163 = arith.constant 0.000000e+00 : f32
    %541 = vector.broadcast %cst_163 : f32 to vector<8x128xf32>
    %542 = arith.select %540, %516, %541 : vector<8x128xi1>, vector<8x128xf32>
    %543 = arith.mulf %542, %495 : vector<8x128xf32>
    %544 = arith.subf %536, %543 : vector<8x128xf32>
    %545 = arith.mulf %542, %496 : vector<8x128xf32>
    %546 = arith.subf %538, %545 : vector<8x128xf32>
    %547 = tpu.reciprocal %544 : vector<8x128xf32> -> vector<8x128xf32>
    %548 = arith.mulf %546, %547 : vector<8x128xf32>
    %549 = arith.mulf %495, %548 : vector<8x128xf32>
    %550 = arith.subf %496, %549 : vector<8x128xf32>
    %551 = arith.mulf %428, %550 : vector<8x128xf32>
    %552 = arith.subf %429, %551 : vector<8x128xf32>
    %553 = arith.mulf %361, %552 : vector<8x128xf32>
    %554 = arith.subf %362, %553 : vector<8x128xf32>
    %555 = arith.mulf %294, %554 : vector<8x128xf32>
    %556 = arith.subf %295, %555 : vector<8x128xf32>
    %557 = arith.mulf %227, %556 : vector<8x128xf32>
    %558 = arith.subf %228, %557 : vector<8x128xf32>
    %559 = arith.mulf %160, %558 : vector<8x128xf32>
    %560 = arith.subf %161, %559 : vector<8x128xf32>
    %561 = arith.mulf %93, %560 : vector<8x128xf32>
    %562 = arith.subf %94, %561 : vector<8x128xf32>
    %563 = vector.shape_cast %562 : vector<8x128xf32> to vector<1x8x128xf32>
    %564 = vector.shape_cast %560 : vector<8x128xf32> to vector<1x8x128xf32>
    %565 = vector.shape_cast %558 : vector<8x128xf32> to vector<1x8x128xf32>
    %566 = vector.shape_cast %556 : vector<8x128xf32> to vector<1x8x128xf32>
    %567 = vector.shape_cast %554 : vector<8x128xf32> to vector<1x8x128xf32>
    %568 = vector.shape_cast %552 : vector<8x128xf32> to vector<1x8x128xf32>
    %569 = vector.shape_cast %550 : vector<8x128xf32> to vector<1x8x128xf32>
    %570 = vector.shape_cast %548 : vector<8x128xf32> to vector<1x8x128xf32>
    %571 = tpu.concatenate %563, %564, %565, %566, %567, %568, %569, %570 in 0 : vector<1x8x128xf32>, vector<1x8x128xf32>, vector<1x8x128xf32>, vector<1x8x128xf32>, vector<1x8x128xf32>, vector<1x8x128xf32>, vector<1x8x128xf32>, vector<1x8x128xf32> -> vector<8x8x128xf32>
    %572 = tpu.iota {dimensions = array<i32: 0>} : vector<8x8x128xi32>
    %573 = vector.shape_cast %43 : vector<8x128xi1> to vector<1x8x128xi1>
    %574 = vector.shape_cast %41 : vector<8x128xi32> to vector<1x8x128xi32>
    %575 = vector.broadcast %574 : vector<1x8x128xi32> to vector<8x8x128xi32>
    %576 = arith.cmpi sge, %572, %575 : vector<8x8x128xi32>
    %577 = vector.broadcast %573 : vector<1x8x128xi1> to vector<8x8x128xi1>
    %578 = arith.andi %577, %576 : vector<8x8x128xi1>
    %579 = vector.broadcast %16 : vector<1x8x128xi1> to vector<8x8x128xi1>
    %580 = arith.andi %579, %578 : vector<8x8x128xi1>
    %581 = arith.select %580, %571, %32 : vector<8x8x128xi1>, vector<8x8x128xf32>
    %582 = vector.extract_strided_slice %581 {offsets = [7, 0, 0], sizes = [1, 8, 128], strides = [1, 1, 1]} : vector<8x8x128xf32> to vector<1x8x128xf32>
    %583 = vector.shape_cast %582 : vector<1x8x128xf32> to vector<8x128xf32>
    %cst_164 = arith.constant 0.000000e+00 : f32
    %584 = vector.broadcast %cst_164 : f32 to vector<8x128xf32>
    %585 = arith.cmpf olt, %583, %584 : vector<8x128xf32>
    %cst_165 = arith.constant 0.000000e+00 : f32
    %586 = vector.broadcast %cst_165 : f32 to vector<8x128xf32>
    %587 = arith.subf %586, %583 : vector<8x128xf32>
    %c7_166 = arith.constant 7 : index
    %588 = memref.load %arg1[%c7_166] : memref<8xf32, #tpu.memory_space<smem>>
    %cst_167 = arith.constant 5.000000e-01 : f32
    %589 = arith.mulf %cst_167, %588 : f32
    %cst_168 = arith.constant 1.000000e+00 : f32
    %590 = arith.divf %589, %cst_168 : f32
    %591 = vector.broadcast %590 : f32 to vector<8x128xf32>
    %592 = arith.mulf %587, %591 : vector<8x128xf32>
    %cst_169 = arith.constant 0.000000e+00 : f32
    %593 = vector.broadcast %cst_169 : f32 to vector<8x128xf32>
    %594 = arith.select %585, %592, %593 : vector<8x128xi1>, vector<8x128xf32>
    %c7_i32_170 = arith.constant 7 : i32
    %595 = vector.broadcast %c7_i32_170 : i32 to vector<8x8x128xi32>
    %596 = arith.cmpi eq, %572, %595 : vector<8x8x128xi32>
    %cst_171 = arith.constant 0.000000e+00 : f32
    %597 = vector.broadcast %cst_171 : f32 to vector<8x8x128xf32>
    %598 = arith.maximumf %581, %597 : vector<8x8x128xf32>
    %599 = arith.select %596, %598, %581 : vector<8x8x128xi1>, vector<8x8x128xf32>
    %600 = vector.extract_strided_slice %17 {offsets = [0, 1, 0], sizes = [8, 15, 128], strides = [1, 1, 1]} : vector<8x16x128xf32> to vector<8x15x128xf32>
    %601 = vector.extract_strided_slice %17 {offsets = [0, 0, 0], sizes = [8, 15, 128], strides = [1, 1, 1]} : vector<8x16x128xf32> to vector<8x15x128xf32>
    %602 = arith.subf %600, %601 : vector<8x15x128xf32>
    %603 = vector.extract_strided_slice %21 {offsets = [3, 0], sizes = [9, 128], strides = [1, 1]} : vector<16x128xf32> to vector<9x128xf32>
    %604 = vector.extract_strided_slice %602 {offsets = [0, 3, 0], sizes = [8, 9, 128], strides = [1, 1, 1]} : vector<8x15x128xf32> to vector<8x9x128xf32>
    %605 = vector.shape_cast %603 : vector<9x128xf32> to vector<1x9x128xf32>
    %606 = vector.broadcast %605 : vector<1x9x128xf32> to vector<8x9x128xf32>
    %607 = arith.mulf %606, %604 : vector<8x9x128xf32>
    %608 = vector.extract_strided_slice %19 {offsets = [0, 3, 0], sizes = [8, 9, 128], strides = [1, 1, 1]} : vector<8x16x128xf32> to vector<8x9x128xf32>
    %609 = arith.mulf %607, %608 : vector<8x9x128xf32>
    %610 = vector.extract_strided_slice %609 {offsets = [0, 1, 0], sizes = [8, 8, 128], strides = [1, 1, 1]} : vector<8x9x128xf32> to vector<8x8x128xf32>
    %611 = vector.extract_strided_slice %609 {offsets = [0, 0, 0], sizes = [8, 8, 128], strides = [1, 1, 1]} : vector<8x9x128xf32> to vector<8x8x128xf32>
    %612 = arith.subf %610, %611 : vector<8x8x128xf32>
    %613 = vector.shape_cast %25 : vector<8x128xf32> to vector<1x8x128xf32>
    %614 = vector.broadcast %613 : vector<1x8x128xf32> to vector<8x8x128xf32>
    %615 = arith.mulf %612, %614 : vector<8x8x128xf32>
    %616 = vector.extract_strided_slice %602 {offsets = [0, 2, 0], sizes = [8, 11, 128], strides = [1, 1, 1]} : vector<8x15x128xf32> to vector<8x11x128xf32>
    %617 = vector.extract_strided_slice %18 {offsets = [0, 3, 0], sizes = [8, 11, 128], strides = [1, 1, 1]} : vector<8x16x128xf32> to vector<8x11x128xf32>
    %618 = arith.mulf %616, %617 : vector<8x11x128xf32>
    %619 = vector.extract_strided_slice %18 {offsets = [0, 2, 0], sizes = [8, 11, 128], strides = [1, 1, 1]} : vector<8x16x128xf32> to vector<8x11x128xf32>
    %620 = arith.mulf %618, %619 : vector<8x11x128xf32>
    %621 = vector.extract_strided_slice %20 {offsets = [0, 3, 0], sizes = [8, 9, 128], strides = [1, 1, 1]} : vector<8x16x128xf32> to vector<8x9x128xf32>
    %622 = math.absf %621 : vector<8x9x128xf32>
    %623 = vector.extract_strided_slice %22 {offsets = [3, 0], sizes = [9, 128], strides = [1, 1]} : vector<16x128xf32> to vector<9x128xf32>
    %cst_172 = arith.constant 1.000000e+00 : f32
    %624 = vector.broadcast %cst_172 : f32 to vector<9x128xf32>
    %625 = arith.mulf %624, %623 : vector<9x128xf32>
    %626 = vector.shape_cast %625 : vector<9x128xf32> to vector<1x9x128xf32>
    %627 = vector.broadcast %626 : vector<1x9x128xf32> to vector<8x9x128xf32>
    %628 = arith.mulf %622, %627 : vector<8x9x128xf32>
    %629 = vector.extract_strided_slice %620 {offsets = [0, 1, 0], sizes = [8, 9, 128], strides = [1, 1, 1]} : vector<8x11x128xf32> to vector<8x9x128xf32>
    %630 = vector.extract_strided_slice %620 {offsets = [0, 2, 0], sizes = [8, 9, 128], strides = [1, 1, 1]} : vector<8x11x128xf32> to vector<8x9x128xf32>
    %631 = vector.extract_strided_slice %620 {offsets = [0, 0, 0], sizes = [8, 9, 128], strides = [1, 1, 1]} : vector<8x11x128xf32> to vector<8x9x128xf32>
    %cst_173 = arith.constant 0.000000e+00 : f32
    %632 = vector.broadcast %cst_173 : f32 to vector<8x9x128xf32>
    %633 = arith.cmpf ogt, %621, %632 : vector<8x9x128xf32>
    %634 = arith.select %633, %631, %630 : vector<8x9x128xi1>, vector<8x9x128xf32>
    %635 = math.absf %629 : vector<8x9x128xf32>
    %cst_174 = arith.constant 9.99999968E-21 : f32
    %636 = vector.broadcast %cst_174 : f32 to vector<8x9x128xf32>
    %637 = arith.cmpf olt, %635, %636 : vector<8x9x128xf32>
    %cst_175 = arith.constant 9.99999968E-21 : f32
    %638 = vector.broadcast %cst_175 : f32 to vector<8x9x128xf32>
    %639 = arith.select %637, %638, %629 : vector<8x9x128xi1>, vector<8x9x128xf32>
    %640 = tpu.reciprocal %639 : vector<8x9x128xf32> -> vector<8x9x128xf32>
    %641 = arith.mulf %634, %640 : vector<8x9x128xf32>
    %cst_176 = arith.constant 2.000000e+00 : f32
    %642 = vector.broadcast %cst_176 : f32 to vector<8x9x128xf32>
    %643 = arith.mulf %642, %641 : vector<8x9x128xf32>
    %cst_177 = arith.constant 1.000000e+00 : f32
    %644 = vector.broadcast %cst_177 : f32 to vector<8x9x128xf32>
    %645 = arith.minimumf %644, %643 : vector<8x9x128xf32>
    %cst_178 = arith.constant 1.000000e+00 : f32
    %646 = vector.broadcast %cst_178 : f32 to vector<8x9x128xf32>
    %647 = arith.addf %646, %641 : vector<8x9x128xf32>
    %cst_179 = arith.constant 5.000000e-01 : f32
    %648 = vector.broadcast %cst_179 : f32 to vector<8x9x128xf32>
    %649 = arith.mulf %648, %647 : vector<8x9x128xf32>
    %cst_180 = arith.constant 2.000000e+00 : f32
    %650 = vector.broadcast %cst_180 : f32 to vector<8x9x128xf32>
    %651 = arith.minimumf %650, %649 : vector<8x9x128xf32>
    %652 = arith.maximumf %645, %651 : vector<8x9x128xf32>
    %cst_181 = arith.constant 0.000000e+00 : f32
    %653 = vector.broadcast %cst_181 : f32 to vector<8x9x128xf32>
    %654 = arith.maximumf %653, %652 : vector<8x9x128xf32>
    %655 = vector.extract_strided_slice %17 {offsets = [0, 4, 0], sizes = [8, 9, 128], strides = [1, 1, 1]} : vector<8x16x128xf32> to vector<8x9x128xf32>
    %656 = vector.extract_strided_slice %17 {offsets = [0, 3, 0], sizes = [8, 9, 128], strides = [1, 1, 1]} : vector<8x16x128xf32> to vector<8x9x128xf32>
    %657 = arith.addf %655, %656 : vector<8x9x128xf32>
    %658 = arith.mulf %621, %657 : vector<8x9x128xf32>
    %cst_182 = arith.constant 5.000000e-01 : f32
    %659 = vector.broadcast %cst_182 : f32 to vector<8x9x128xf32>
    %660 = arith.mulf %658, %659 : vector<8x9x128xf32>
    %661 = math.absf %621 : vector<8x9x128xf32>
    %cst_183 = arith.constant 1.000000e+00 : f32
    %662 = vector.broadcast %cst_183 : f32 to vector<8x9x128xf32>
    %663 = arith.subf %662, %654 : vector<8x9x128xf32>
    %664 = arith.mulf %628, %654 : vector<8x9x128xf32>
    %665 = arith.addf %663, %664 : vector<8x9x128xf32>
    %666 = arith.mulf %661, %665 : vector<8x9x128xf32>
    %667 = arith.mulf %666, %629 : vector<8x9x128xf32>
    %cst_184 = arith.constant 5.000000e-01 : f32
    %668 = vector.broadcast %cst_184 : f32 to vector<8x9x128xf32>
    %669 = arith.mulf %667, %668 : vector<8x9x128xf32>
    %670 = arith.subf %660, %669 : vector<8x9x128xf32>
    %671 = vector.extract_strided_slice %670 {offsets = [0, 1, 0], sizes = [8, 8, 128], strides = [1, 1, 1]} : vector<8x9x128xf32> to vector<8x8x128xf32>
    %672 = vector.extract_strided_slice %670 {offsets = [0, 0, 0], sizes = [8, 8, 128], strides = [1, 1, 1]} : vector<8x9x128xf32> to vector<8x8x128xf32>
    %673 = arith.subf %671, %672 : vector<8x8x128xf32>
    %674 = vector.shape_cast %25 : vector<8x128xf32> to vector<1x8x128xf32>
    %675 = vector.broadcast %674 : vector<1x8x128xf32> to vector<8x8x128xf32>
    %676 = arith.mulf %673, %675 : vector<8x8x128xf32>
    %c127_i32 = arith.constant 127 : i32
    %677 = tpu.dynamic_rotate %23 by %c127_i32 dim 2 : vector<8x8x128xf32>, i32 -> vector<8x8x128xf32>
    %678 = arith.subf %677, %23 : vector<8x8x128xf32>
    %679 = vector.shape_cast %37 : vector<1x128xf32> to vector<1x1x128xf32>
    %680 = vector.broadcast %679 : vector<1x1x128xf32> to vector<8x8x128xf32>
    %681 = arith.mulf %680, %678 : vector<8x8x128xf32>
    %682 = arith.mulf %681, %28 : vector<8x8x128xf32>
    %c1_i32_185 = arith.constant 1 : i32
    %683 = tpu.dynamic_rotate %682 by %c1_i32_185 dim 2 : vector<8x8x128xf32>, i32 -> vector<8x8x128xf32>
    %684 = arith.subf %682, %683 : vector<8x8x128xf32>
    %685 = vector.shape_cast %38 : vector<1x128xf32> to vector<1x1x128xf32>
    %686 = vector.broadcast %685 : vector<1x1x128xf32> to vector<8x8x128xf32>
    %687 = arith.mulf %684, %686 : vector<8x8x128xf32>
    %c127_i32_186 = arith.constant 127 : i32
    %688 = tpu.dynamic_rotate %24 by %c127_i32_186 dim 2 : vector<8x8x128xf32>, i32 -> vector<8x8x128xf32>
    %689 = arith.mulf %688, %24 : vector<8x8x128xf32>
    %690 = arith.mulf %678, %689 : vector<8x8x128xf32>
    %691 = vector.shape_cast %39 : vector<1x128xf32> to vector<1x1x128xf32>
    %692 = vector.broadcast %691 : vector<1x1x128xf32> to vector<8x8x128xf32>
    %693 = arith.mulf %692, %26 : vector<8x8x128xf32>
    %694 = math.absf %693 : vector<8x8x128xf32>
    %cst_187 = arith.constant 1.000000e+00 : f32
    %695 = vector.broadcast %cst_187 : f32 to vector<1x128xf32>
    %696 = arith.mulf %695, %38 : vector<1x128xf32>
    %697 = vector.shape_cast %696 : vector<1x128xf32> to vector<1x1x128xf32>
    %698 = vector.broadcast %697 : vector<1x1x128xf32> to vector<8x8x128xf32>
    %699 = arith.mulf %694, %698 : vector<8x8x128xf32>
    %c127_i32_188 = arith.constant 127 : i32
    %700 = tpu.dynamic_rotate %690 by %c127_i32_188 dim 2 : vector<8x8x128xf32>, i32 -> vector<8x8x128xf32>
    %c1_i32_189 = arith.constant 1 : i32
    %701 = tpu.dynamic_rotate %690 by %c1_i32_189 dim 2 : vector<8x8x128xf32>, i32 -> vector<8x8x128xf32>
    %cst_190 = arith.constant 0.000000e+00 : f32
    %702 = vector.broadcast %cst_190 : f32 to vector<8x8x128xf32>
    %703 = arith.cmpf ogt, %26, %702 : vector<8x8x128xf32>
    %704 = arith.select %703, %701, %700 : vector<8x8x128xi1>, vector<8x8x128xf32>
    %705 = math.absf %690 : vector<8x8x128xf32>
    %cst_191 = arith.constant 9.99999968E-21 : f32
    %706 = vector.broadcast %cst_191 : f32 to vector<8x8x128xf32>
    %707 = arith.cmpf olt, %705, %706 : vector<8x8x128xf32>
    %cst_192 = arith.constant 9.99999968E-21 : f32
    %708 = vector.broadcast %cst_192 : f32 to vector<8x8x128xf32>
    %709 = arith.select %707, %708, %690 : vector<8x8x128xi1>, vector<8x8x128xf32>
    %710 = tpu.reciprocal %709 : vector<8x8x128xf32> -> vector<8x8x128xf32>
    %711 = arith.mulf %704, %710 : vector<8x8x128xf32>
    %cst_193 = arith.constant 2.000000e+00 : f32
    %712 = vector.broadcast %cst_193 : f32 to vector<8x8x128xf32>
    %713 = arith.mulf %712, %711 : vector<8x8x128xf32>
    %cst_194 = arith.constant 1.000000e+00 : f32
    %714 = vector.broadcast %cst_194 : f32 to vector<8x8x128xf32>
    %715 = arith.minimumf %714, %713 : vector<8x8x128xf32>
    %cst_195 = arith.constant 1.000000e+00 : f32
    %716 = vector.broadcast %cst_195 : f32 to vector<8x8x128xf32>
    %717 = arith.addf %716, %711 : vector<8x8x128xf32>
    %cst_196 = arith.constant 5.000000e-01 : f32
    %718 = vector.broadcast %cst_196 : f32 to vector<8x8x128xf32>
    %719 = arith.mulf %718, %717 : vector<8x8x128xf32>
    %cst_197 = arith.constant 2.000000e+00 : f32
    %720 = vector.broadcast %cst_197 : f32 to vector<8x8x128xf32>
    %721 = arith.minimumf %720, %719 : vector<8x8x128xf32>
    %722 = arith.maximumf %715, %721 : vector<8x8x128xf32>
    %cst_198 = arith.constant 0.000000e+00 : f32
    %723 = vector.broadcast %cst_198 : f32 to vector<8x8x128xf32>
    %724 = arith.maximumf %723, %722 : vector<8x8x128xf32>
    %725 = arith.addf %677, %23 : vector<8x8x128xf32>
    %726 = arith.mulf %693, %725 : vector<8x8x128xf32>
    %cst_199 = arith.constant 5.000000e-01 : f32
    %727 = vector.broadcast %cst_199 : f32 to vector<8x8x128xf32>
    %728 = arith.mulf %726, %727 : vector<8x8x128xf32>
    %729 = math.absf %693 : vector<8x8x128xf32>
    %cst_200 = arith.constant 1.000000e+00 : f32
    %730 = vector.broadcast %cst_200 : f32 to vector<8x8x128xf32>
    %731 = arith.subf %730, %724 : vector<8x8x128xf32>
    %732 = arith.mulf %699, %724 : vector<8x8x128xf32>
    %733 = arith.addf %731, %732 : vector<8x8x128xf32>
    %734 = arith.mulf %729, %733 : vector<8x8x128xf32>
    %735 = arith.mulf %734, %690 : vector<8x8x128xf32>
    %cst_201 = arith.constant 5.000000e-01 : f32
    %736 = vector.broadcast %cst_201 : f32 to vector<8x8x128xf32>
    %737 = arith.mulf %735, %736 : vector<8x8x128xf32>
    %738 = arith.subf %728, %737 : vector<8x8x128xf32>
    %c1_i32_202 = arith.constant 1 : i32
    %739 = tpu.dynamic_rotate %738 by %c1_i32_202 dim 2 : vector<8x8x128xf32>, i32 -> vector<8x8x128xf32>
    %740 = arith.subf %738, %739 : vector<8x8x128xf32>
    %741 = vector.shape_cast %38 : vector<1x128xf32> to vector<1x1x128xf32>
    %742 = vector.broadcast %741 : vector<1x1x128xf32> to vector<8x8x128xf32>
    %743 = arith.mulf %740, %742 : vector<8x8x128xf32>
    %744 = vector.extract_strided_slice %23 {offsets = [1, 0, 0], sizes = [1, 8, 128], strides = [1, 1, 1]} : vector<8x8x128xf32> to vector<1x8x128xf32>
    %745 = vector.shape_cast %744 : vector<1x8x128xf32> to vector<8x128xf32>
    %746 = vector.extract_strided_slice %23 {offsets = [0, 0, 0], sizes = [1, 8, 128], strides = [1, 1, 1]} : vector<8x8x128xf32> to vector<1x8x128xf32>
    %747 = vector.shape_cast %746 : vector<1x8x128xf32> to vector<8x128xf32>
    %748 = arith.subf %745, %747 : vector<8x128xf32>
    %749 = vector.extract_strided_slice %24 {offsets = [1, 0, 0], sizes = [1, 8, 128], strides = [1, 1, 1]} : vector<8x8x128xf32> to vector<1x8x128xf32>
    %750 = vector.shape_cast %749 : vector<1x8x128xf32> to vector<8x128xf32>
    %751 = arith.mulf %748, %750 : vector<8x128xf32>
    %752 = vector.extract_strided_slice %24 {offsets = [0, 0, 0], sizes = [1, 8, 128], strides = [1, 1, 1]} : vector<8x8x128xf32> to vector<1x8x128xf32>
    %753 = vector.shape_cast %752 : vector<1x8x128xf32> to vector<8x128xf32>
    %754 = arith.mulf %751, %753 : vector<8x128xf32>
    %755 = vector.extract_strided_slice %23 {offsets = [2, 0, 0], sizes = [1, 8, 128], strides = [1, 1, 1]} : vector<8x8x128xf32> to vector<1x8x128xf32>
    %756 = vector.shape_cast %755 : vector<1x8x128xf32> to vector<8x128xf32>
    %757 = vector.extract_strided_slice %23 {offsets = [1, 0, 0], sizes = [1, 8, 128], strides = [1, 1, 1]} : vector<8x8x128xf32> to vector<1x8x128xf32>
    %758 = vector.shape_cast %757 : vector<1x8x128xf32> to vector<8x128xf32>
    %759 = arith.subf %756, %758 : vector<8x128xf32>
    %760 = vector.extract_strided_slice %24 {offsets = [2, 0, 0], sizes = [1, 8, 128], strides = [1, 1, 1]} : vector<8x8x128xf32> to vector<1x8x128xf32>
    %761 = vector.shape_cast %760 : vector<1x8x128xf32> to vector<8x128xf32>
    %762 = arith.mulf %759, %761 : vector<8x128xf32>
    %763 = vector.extract_strided_slice %24 {offsets = [1, 0, 0], sizes = [1, 8, 128], strides = [1, 1, 1]} : vector<8x8x128xf32> to vector<1x8x128xf32>
    %764 = vector.shape_cast %763 : vector<1x8x128xf32> to vector<8x128xf32>
    %765 = arith.mulf %762, %764 : vector<8x128xf32>
    %766 = vector.extract_strided_slice %23 {offsets = [3, 0, 0], sizes = [1, 8, 128], strides = [1, 1, 1]} : vector<8x8x128xf32> to vector<1x8x128xf32>
    %767 = vector.shape_cast %766 : vector<1x8x128xf32> to vector<8x128xf32>
    %768 = vector.extract_strided_slice %23 {offsets = [2, 0, 0], sizes = [1, 8, 128], strides = [1, 1, 1]} : vector<8x8x128xf32> to vector<1x8x128xf32>
    %769 = vector.shape_cast %768 : vector<1x8x128xf32> to vector<8x128xf32>
    %770 = arith.subf %767, %769 : vector<8x128xf32>
    %771 = vector.extract_strided_slice %24 {offsets = [3, 0, 0], sizes = [1, 8, 128], strides = [1, 1, 1]} : vector<8x8x128xf32> to vector<1x8x128xf32>
    %772 = vector.shape_cast %771 : vector<1x8x128xf32> to vector<8x128xf32>
    %773 = arith.mulf %770, %772 : vector<8x128xf32>
    %774 = vector.extract_strided_slice %24 {offsets = [2, 0, 0], sizes = [1, 8, 128], strides = [1, 1, 1]} : vector<8x8x128xf32> to vector<1x8x128xf32>
    %775 = vector.shape_cast %774 : vector<1x8x128xf32> to vector<8x128xf32>
    %776 = arith.mulf %773, %775 : vector<8x128xf32>
    %777 = vector.extract_strided_slice %23 {offsets = [4, 0, 0], sizes = [1, 8, 128], strides = [1, 1, 1]} : vector<8x8x128xf32> to vector<1x8x128xf32>
    %778 = vector.shape_cast %777 : vector<1x8x128xf32> to vector<8x128xf32>
    %779 = vector.extract_strided_slice %23 {offsets = [3, 0, 0], sizes = [1, 8, 128], strides = [1, 1, 1]} : vector<8x8x128xf32> to vector<1x8x128xf32>
    %780 = vector.shape_cast %779 : vector<1x8x128xf32> to vector<8x128xf32>
    %781 = arith.subf %778, %780 : vector<8x128xf32>
    %782 = vector.extract_strided_slice %24 {offsets = [4, 0, 0], sizes = [1, 8, 128], strides = [1, 1, 1]} : vector<8x8x128xf32> to vector<1x8x128xf32>
    %783 = vector.shape_cast %782 : vector<1x8x128xf32> to vector<8x128xf32>
    %784 = arith.mulf %781, %783 : vector<8x128xf32>
    %785 = vector.extract_strided_slice %24 {offsets = [3, 0, 0], sizes = [1, 8, 128], strides = [1, 1, 1]} : vector<8x8x128xf32> to vector<1x8x128xf32>
    %786 = vector.shape_cast %785 : vector<1x8x128xf32> to vector<8x128xf32>
    %787 = arith.mulf %784, %786 : vector<8x128xf32>
    %788 = vector.extract_strided_slice %23 {offsets = [5, 0, 0], sizes = [1, 8, 128], strides = [1, 1, 1]} : vector<8x8x128xf32> to vector<1x8x128xf32>
    %789 = vector.shape_cast %788 : vector<1x8x128xf32> to vector<8x128xf32>
    %790 = vector.extract_strided_slice %23 {offsets = [4, 0, 0], sizes = [1, 8, 128], strides = [1, 1, 1]} : vector<8x8x128xf32> to vector<1x8x128xf32>
    %791 = vector.shape_cast %790 : vector<1x8x128xf32> to vector<8x128xf32>
    %792 = arith.subf %789, %791 : vector<8x128xf32>
    %793 = vector.extract_strided_slice %24 {offsets = [5, 0, 0], sizes = [1, 8, 128], strides = [1, 1, 1]} : vector<8x8x128xf32> to vector<1x8x128xf32>
    %794 = vector.shape_cast %793 : vector<1x8x128xf32> to vector<8x128xf32>
    %795 = arith.mulf %792, %794 : vector<8x128xf32>
    %796 = vector.extract_strided_slice %24 {offsets = [4, 0, 0], sizes = [1, 8, 128], strides = [1, 1, 1]} : vector<8x8x128xf32> to vector<1x8x128xf32>
    %797 = vector.shape_cast %796 : vector<1x8x128xf32> to vector<8x128xf32>
    %798 = arith.mulf %795, %797 : vector<8x128xf32>
    %799 = vector.extract_strided_slice %23 {offsets = [6, 0, 0], sizes = [1, 8, 128], strides = [1, 1, 1]} : vector<8x8x128xf32> to vector<1x8x128xf32>
    %800 = vector.shape_cast %799 : vector<1x8x128xf32> to vector<8x128xf32>
    %801 = vector.extract_strided_slice %23 {offsets = [5, 0, 0], sizes = [1, 8, 128], strides = [1, 1, 1]} : vector<8x8x128xf32> to vector<1x8x128xf32>
    %802 = vector.shape_cast %801 : vector<1x8x128xf32> to vector<8x128xf32>
    %803 = arith.subf %800, %802 : vector<8x128xf32>
    %804 = vector.extract_strided_slice %24 {offsets = [6, 0, 0], sizes = [1, 8, 128], strides = [1, 1, 1]} : vector<8x8x128xf32> to vector<1x8x128xf32>
    %805 = vector.shape_cast %804 : vector<1x8x128xf32> to vector<8x128xf32>
    %806 = arith.mulf %803, %805 : vector<8x128xf32>
    %807 = vector.extract_strided_slice %24 {offsets = [5, 0, 0], sizes = [1, 8, 128], strides = [1, 1, 1]} : vector<8x8x128xf32> to vector<1x8x128xf32>
    %808 = vector.shape_cast %807 : vector<1x8x128xf32> to vector<8x128xf32>
    %809 = arith.mulf %806, %808 : vector<8x128xf32>
    %810 = vector.extract_strided_slice %23 {offsets = [7, 0, 0], sizes = [1, 8, 128], strides = [1, 1, 1]} : vector<8x8x128xf32> to vector<1x8x128xf32>
    %811 = vector.shape_cast %810 : vector<1x8x128xf32> to vector<8x128xf32>
    %812 = vector.extract_strided_slice %23 {offsets = [6, 0, 0], sizes = [1, 8, 128], strides = [1, 1, 1]} : vector<8x8x128xf32> to vector<1x8x128xf32>
    %813 = vector.shape_cast %812 : vector<1x8x128xf32> to vector<8x128xf32>
    %814 = arith.subf %811, %813 : vector<8x128xf32>
    %815 = vector.extract_strided_slice %24 {offsets = [7, 0, 0], sizes = [1, 8, 128], strides = [1, 1, 1]} : vector<8x8x128xf32> to vector<1x8x128xf32>
    %816 = vector.shape_cast %815 : vector<1x8x128xf32> to vector<8x128xf32>
    %817 = arith.mulf %814, %816 : vector<8x128xf32>
    %818 = vector.extract_strided_slice %24 {offsets = [6, 0, 0], sizes = [1, 8, 128], strides = [1, 1, 1]} : vector<8x8x128xf32> to vector<1x8x128xf32>
    %819 = vector.shape_cast %818 : vector<1x8x128xf32> to vector<8x128xf32>
    %820 = arith.mulf %817, %819 : vector<8x128xf32>
    %cst_203 = arith.constant 0.000000e+00 : f32
    %821 = vector.broadcast %cst_203 : f32 to vector<8x128xf32>
    %822 = vector.extract_strided_slice %27 {offsets = [0, 0, 0], sizes = [1, 8, 128], strides = [1, 1, 1]} : vector<8x8x128xf32> to vector<1x8x128xf32>
    %823 = vector.shape_cast %822 : vector<1x8x128xf32> to vector<8x128xf32>
    %824 = math.absf %823 : vector<8x128xf32>
    %c0_204 = arith.constant 0 : index
    %825 = memref.load %arg2[%c0_204] : memref<8xf32, #tpu.memory_space<smem>>
    %cst_205 = arith.constant 1.000000e+00 : f32
    %826 = arith.mulf %cst_205, %825 : f32
    %827 = vector.broadcast %826 : f32 to vector<8x128xf32>
    %828 = arith.mulf %824, %827 : vector<8x128xf32>
    %cst_206 = arith.constant 0.000000e+00 : f32
    %829 = vector.broadcast %cst_206 : f32 to vector<8x128xf32>
    %830 = arith.cmpf ogt, %823, %829 : vector<8x128xf32>
    %831 = arith.select %830, %821, %765 : vector<8x128xi1>, vector<8x128xf32>
    %832 = math.absf %754 : vector<8x128xf32>
    %cst_207 = arith.constant 9.99999968E-21 : f32
    %833 = vector.broadcast %cst_207 : f32 to vector<8x128xf32>
    %834 = arith.cmpf olt, %832, %833 : vector<8x128xf32>
    %cst_208 = arith.constant 9.99999968E-21 : f32
    %835 = vector.broadcast %cst_208 : f32 to vector<8x128xf32>
    %836 = arith.select %834, %835, %754 : vector<8x128xi1>, vector<8x128xf32>
    %837 = tpu.reciprocal %836 : vector<8x128xf32> -> vector<8x128xf32>
    %838 = arith.mulf %831, %837 : vector<8x128xf32>
    %cst_209 = arith.constant 2.000000e+00 : f32
    %839 = vector.broadcast %cst_209 : f32 to vector<8x128xf32>
    %840 = arith.mulf %839, %838 : vector<8x128xf32>
    %cst_210 = arith.constant 1.000000e+00 : f32
    %841 = vector.broadcast %cst_210 : f32 to vector<8x128xf32>
    %842 = arith.minimumf %841, %840 : vector<8x128xf32>
    %cst_211 = arith.constant 1.000000e+00 : f32
    %843 = vector.broadcast %cst_211 : f32 to vector<8x128xf32>
    %844 = arith.addf %843, %838 : vector<8x128xf32>
    %cst_212 = arith.constant 5.000000e-01 : f32
    %845 = vector.broadcast %cst_212 : f32 to vector<8x128xf32>
    %846 = arith.mulf %845, %844 : vector<8x128xf32>
    %cst_213 = arith.constant 2.000000e+00 : f32
    %847 = vector.broadcast %cst_213 : f32 to vector<8x128xf32>
    %848 = arith.minimumf %847, %846 : vector<8x128xf32>
    %849 = arith.maximumf %842, %848 : vector<8x128xf32>
    %cst_214 = arith.constant 0.000000e+00 : f32
    %850 = vector.broadcast %cst_214 : f32 to vector<8x128xf32>
    %851 = arith.maximumf %850, %849 : vector<8x128xf32>
    %852 = vector.extract_strided_slice %23 {offsets = [1, 0, 0], sizes = [1, 8, 128], strides = [1, 1, 1]} : vector<8x8x128xf32> to vector<1x8x128xf32>
    %853 = vector.shape_cast %852 : vector<1x8x128xf32> to vector<8x128xf32>
    %854 = vector.extract_strided_slice %23 {offsets = [0, 0, 0], sizes = [1, 8, 128], strides = [1, 1, 1]} : vector<8x8x128xf32> to vector<1x8x128xf32>
    %855 = vector.shape_cast %854 : vector<1x8x128xf32> to vector<8x128xf32>
    %856 = arith.addf %853, %855 : vector<8x128xf32>
    %857 = arith.mulf %823, %856 : vector<8x128xf32>
    %cst_215 = arith.constant 5.000000e-01 : f32
    %858 = vector.broadcast %cst_215 : f32 to vector<8x128xf32>
    %859 = arith.mulf %857, %858 : vector<8x128xf32>
    %860 = math.absf %823 : vector<8x128xf32>
    %cst_216 = arith.constant 1.000000e+00 : f32
    %861 = vector.broadcast %cst_216 : f32 to vector<8x128xf32>
    %862 = arith.subf %861, %851 : vector<8x128xf32>
    %863 = arith.mulf %828, %851 : vector<8x128xf32>
    %864 = arith.addf %862, %863 : vector<8x128xf32>
    %865 = arith.mulf %860, %864 : vector<8x128xf32>
    %866 = arith.mulf %865, %754 : vector<8x128xf32>
    %cst_217 = arith.constant 5.000000e-01 : f32
    %867 = vector.broadcast %cst_217 : f32 to vector<8x128xf32>
    %868 = arith.mulf %866, %867 : vector<8x128xf32>
    %869 = arith.subf %859, %868 : vector<8x128xf32>
    %870 = vector.extract_strided_slice %27 {offsets = [1, 0, 0], sizes = [1, 8, 128], strides = [1, 1, 1]} : vector<8x8x128xf32> to vector<1x8x128xf32>
    %871 = vector.shape_cast %870 : vector<1x8x128xf32> to vector<8x128xf32>
    %872 = math.absf %871 : vector<8x128xf32>
    %c1_218 = arith.constant 1 : index
    %873 = memref.load %arg2[%c1_218] : memref<8xf32, #tpu.memory_space<smem>>
    %cst_219 = arith.constant 1.000000e+00 : f32
    %874 = arith.mulf %cst_219, %873 : f32
    %875 = vector.broadcast %874 : f32 to vector<8x128xf32>
    %876 = arith.mulf %872, %875 : vector<8x128xf32>
    %cst_220 = arith.constant 0.000000e+00 : f32
    %877 = vector.broadcast %cst_220 : f32 to vector<8x128xf32>
    %878 = arith.cmpf ogt, %871, %877 : vector<8x128xf32>
    %879 = arith.select %878, %754, %776 : vector<8x128xi1>, vector<8x128xf32>
    %880 = math.absf %765 : vector<8x128xf32>
    %cst_221 = arith.constant 9.99999968E-21 : f32
    %881 = vector.broadcast %cst_221 : f32 to vector<8x128xf32>
    %882 = arith.cmpf olt, %880, %881 : vector<8x128xf32>
    %cst_222 = arith.constant 9.99999968E-21 : f32
    %883 = vector.broadcast %cst_222 : f32 to vector<8x128xf32>
    %884 = arith.select %882, %883, %765 : vector<8x128xi1>, vector<8x128xf32>
    %885 = tpu.reciprocal %884 : vector<8x128xf32> -> vector<8x128xf32>
    %886 = arith.mulf %879, %885 : vector<8x128xf32>
    %cst_223 = arith.constant 2.000000e+00 : f32
    %887 = vector.broadcast %cst_223 : f32 to vector<8x128xf32>
    %888 = arith.mulf %887, %886 : vector<8x128xf32>
    %cst_224 = arith.constant 1.000000e+00 : f32
    %889 = vector.broadcast %cst_224 : f32 to vector<8x128xf32>
    %890 = arith.minimumf %889, %888 : vector<8x128xf32>
    %cst_225 = arith.constant 1.000000e+00 : f32
    %891 = vector.broadcast %cst_225 : f32 to vector<8x128xf32>
    %892 = arith.addf %891, %886 : vector<8x128xf32>
    %cst_226 = arith.constant 5.000000e-01 : f32
    %893 = vector.broadcast %cst_226 : f32 to vector<8x128xf32>
    %894 = arith.mulf %893, %892 : vector<8x128xf32>
    %cst_227 = arith.constant 2.000000e+00 : f32
    %895 = vector.broadcast %cst_227 : f32 to vector<8x128xf32>
    %896 = arith.minimumf %895, %894 : vector<8x128xf32>
    %897 = arith.maximumf %890, %896 : vector<8x128xf32>
    %cst_228 = arith.constant 0.000000e+00 : f32
    %898 = vector.broadcast %cst_228 : f32 to vector<8x128xf32>
    %899 = arith.maximumf %898, %897 : vector<8x128xf32>
    %900 = vector.extract_strided_slice %23 {offsets = [2, 0, 0], sizes = [1, 8, 128], strides = [1, 1, 1]} : vector<8x8x128xf32> to vector<1x8x128xf32>
    %901 = vector.shape_cast %900 : vector<1x8x128xf32> to vector<8x128xf32>
    %902 = vector.extract_strided_slice %23 {offsets = [1, 0, 0], sizes = [1, 8, 128], strides = [1, 1, 1]} : vector<8x8x128xf32> to vector<1x8x128xf32>
    %903 = vector.shape_cast %902 : vector<1x8x128xf32> to vector<8x128xf32>
    %904 = arith.addf %901, %903 : vector<8x128xf32>
    %905 = arith.mulf %871, %904 : vector<8x128xf32>
    %cst_229 = arith.constant 5.000000e-01 : f32
    %906 = vector.broadcast %cst_229 : f32 to vector<8x128xf32>
    %907 = arith.mulf %905, %906 : vector<8x128xf32>
    %908 = math.absf %871 : vector<8x128xf32>
    %cst_230 = arith.constant 1.000000e+00 : f32
    %909 = vector.broadcast %cst_230 : f32 to vector<8x128xf32>
    %910 = arith.subf %909, %899 : vector<8x128xf32>
    %911 = arith.mulf %876, %899 : vector<8x128xf32>
    %912 = arith.addf %910, %911 : vector<8x128xf32>
    %913 = arith.mulf %908, %912 : vector<8x128xf32>
    %914 = arith.mulf %913, %765 : vector<8x128xf32>
    %cst_231 = arith.constant 5.000000e-01 : f32
    %915 = vector.broadcast %cst_231 : f32 to vector<8x128xf32>
    %916 = arith.mulf %914, %915 : vector<8x128xf32>
    %917 = arith.subf %907, %916 : vector<8x128xf32>
    %918 = vector.extract_strided_slice %27 {offsets = [2, 0, 0], sizes = [1, 8, 128], strides = [1, 1, 1]} : vector<8x8x128xf32> to vector<1x8x128xf32>
    %919 = vector.shape_cast %918 : vector<1x8x128xf32> to vector<8x128xf32>
    %920 = math.absf %919 : vector<8x128xf32>
    %c2_232 = arith.constant 2 : index
    %921 = memref.load %arg2[%c2_232] : memref<8xf32, #tpu.memory_space<smem>>
    %cst_233 = arith.constant 1.000000e+00 : f32
    %922 = arith.mulf %cst_233, %921 : f32
    %923 = vector.broadcast %922 : f32 to vector<8x128xf32>
    %924 = arith.mulf %920, %923 : vector<8x128xf32>
    %cst_234 = arith.constant 0.000000e+00 : f32
    %925 = vector.broadcast %cst_234 : f32 to vector<8x128xf32>
    %926 = arith.cmpf ogt, %919, %925 : vector<8x128xf32>
    %927 = arith.select %926, %765, %787 : vector<8x128xi1>, vector<8x128xf32>
    %928 = math.absf %776 : vector<8x128xf32>
    %cst_235 = arith.constant 9.99999968E-21 : f32
    %929 = vector.broadcast %cst_235 : f32 to vector<8x128xf32>
    %930 = arith.cmpf olt, %928, %929 : vector<8x128xf32>
    %cst_236 = arith.constant 9.99999968E-21 : f32
    %931 = vector.broadcast %cst_236 : f32 to vector<8x128xf32>
    %932 = arith.select %930, %931, %776 : vector<8x128xi1>, vector<8x128xf32>
    %933 = tpu.reciprocal %932 : vector<8x128xf32> -> vector<8x128xf32>
    %934 = arith.mulf %927, %933 : vector<8x128xf32>
    %cst_237 = arith.constant 2.000000e+00 : f32
    %935 = vector.broadcast %cst_237 : f32 to vector<8x128xf32>
    %936 = arith.mulf %935, %934 : vector<8x128xf32>
    %cst_238 = arith.constant 1.000000e+00 : f32
    %937 = vector.broadcast %cst_238 : f32 to vector<8x128xf32>
    %938 = arith.minimumf %937, %936 : vector<8x128xf32>
    %cst_239 = arith.constant 1.000000e+00 : f32
    %939 = vector.broadcast %cst_239 : f32 to vector<8x128xf32>
    %940 = arith.addf %939, %934 : vector<8x128xf32>
    %cst_240 = arith.constant 5.000000e-01 : f32
    %941 = vector.broadcast %cst_240 : f32 to vector<8x128xf32>
    %942 = arith.mulf %941, %940 : vector<8x128xf32>
    %cst_241 = arith.constant 2.000000e+00 : f32
    %943 = vector.broadcast %cst_241 : f32 to vector<8x128xf32>
    %944 = arith.minimumf %943, %942 : vector<8x128xf32>
    %945 = arith.maximumf %938, %944 : vector<8x128xf32>
    %cst_242 = arith.constant 0.000000e+00 : f32
    %946 = vector.broadcast %cst_242 : f32 to vector<8x128xf32>
    %947 = arith.maximumf %946, %945 : vector<8x128xf32>
    %948 = vector.extract_strided_slice %23 {offsets = [3, 0, 0], sizes = [1, 8, 128], strides = [1, 1, 1]} : vector<8x8x128xf32> to vector<1x8x128xf32>
    %949 = vector.shape_cast %948 : vector<1x8x128xf32> to vector<8x128xf32>
    %950 = vector.extract_strided_slice %23 {offsets = [2, 0, 0], sizes = [1, 8, 128], strides = [1, 1, 1]} : vector<8x8x128xf32> to vector<1x8x128xf32>
    %951 = vector.shape_cast %950 : vector<1x8x128xf32> to vector<8x128xf32>
    %952 = arith.addf %949, %951 : vector<8x128xf32>
    %953 = arith.mulf %919, %952 : vector<8x128xf32>
    %cst_243 = arith.constant 5.000000e-01 : f32
    %954 = vector.broadcast %cst_243 : f32 to vector<8x128xf32>
    %955 = arith.mulf %953, %954 : vector<8x128xf32>
    %956 = math.absf %919 : vector<8x128xf32>
    %cst_244 = arith.constant 1.000000e+00 : f32
    %957 = vector.broadcast %cst_244 : f32 to vector<8x128xf32>
    %958 = arith.subf %957, %947 : vector<8x128xf32>
    %959 = arith.mulf %924, %947 : vector<8x128xf32>
    %960 = arith.addf %958, %959 : vector<8x128xf32>
    %961 = arith.mulf %956, %960 : vector<8x128xf32>
    %962 = arith.mulf %961, %776 : vector<8x128xf32>
    %cst_245 = arith.constant 5.000000e-01 : f32
    %963 = vector.broadcast %cst_245 : f32 to vector<8x128xf32>
    %964 = arith.mulf %962, %963 : vector<8x128xf32>
    %965 = arith.subf %955, %964 : vector<8x128xf32>
    %966 = vector.extract_strided_slice %27 {offsets = [3, 0, 0], sizes = [1, 8, 128], strides = [1, 1, 1]} : vector<8x8x128xf32> to vector<1x8x128xf32>
    %967 = vector.shape_cast %966 : vector<1x8x128xf32> to vector<8x128xf32>
    %968 = math.absf %967 : vector<8x128xf32>
    %c3_246 = arith.constant 3 : index
    %969 = memref.load %arg2[%c3_246] : memref<8xf32, #tpu.memory_space<smem>>
    %cst_247 = arith.constant 1.000000e+00 : f32
    %970 = arith.mulf %cst_247, %969 : f32
    %971 = vector.broadcast %970 : f32 to vector<8x128xf32>
    %972 = arith.mulf %968, %971 : vector<8x128xf32>
    %cst_248 = arith.constant 0.000000e+00 : f32
    %973 = vector.broadcast %cst_248 : f32 to vector<8x128xf32>
    %974 = arith.cmpf ogt, %967, %973 : vector<8x128xf32>
    %975 = arith.select %974, %776, %798 : vector<8x128xi1>, vector<8x128xf32>
    %976 = math.absf %787 : vector<8x128xf32>
    %cst_249 = arith.constant 9.99999968E-21 : f32
    %977 = vector.broadcast %cst_249 : f32 to vector<8x128xf32>
    %978 = arith.cmpf olt, %976, %977 : vector<8x128xf32>
    %cst_250 = arith.constant 9.99999968E-21 : f32
    %979 = vector.broadcast %cst_250 : f32 to vector<8x128xf32>
    %980 = arith.select %978, %979, %787 : vector<8x128xi1>, vector<8x128xf32>
    %981 = tpu.reciprocal %980 : vector<8x128xf32> -> vector<8x128xf32>
    %982 = arith.mulf %975, %981 : vector<8x128xf32>
    %cst_251 = arith.constant 2.000000e+00 : f32
    %983 = vector.broadcast %cst_251 : f32 to vector<8x128xf32>
    %984 = arith.mulf %983, %982 : vector<8x128xf32>
    %cst_252 = arith.constant 1.000000e+00 : f32
    %985 = vector.broadcast %cst_252 : f32 to vector<8x128xf32>
    %986 = arith.minimumf %985, %984 : vector<8x128xf32>
    %cst_253 = arith.constant 1.000000e+00 : f32
    %987 = vector.broadcast %cst_253 : f32 to vector<8x128xf32>
    %988 = arith.addf %987, %982 : vector<8x128xf32>
    %cst_254 = arith.constant 5.000000e-01 : f32
    %989 = vector.broadcast %cst_254 : f32 to vector<8x128xf32>
    %990 = arith.mulf %989, %988 : vector<8x128xf32>
    %cst_255 = arith.constant 2.000000e+00 : f32
    %991 = vector.broadcast %cst_255 : f32 to vector<8x128xf32>
    %992 = arith.minimumf %991, %990 : vector<8x128xf32>
    %993 = arith.maximumf %986, %992 : vector<8x128xf32>
    %cst_256 = arith.constant 0.000000e+00 : f32
    %994 = vector.broadcast %cst_256 : f32 to vector<8x128xf32>
    %995 = arith.maximumf %994, %993 : vector<8x128xf32>
    %996 = vector.extract_strided_slice %23 {offsets = [4, 0, 0], sizes = [1, 8, 128], strides = [1, 1, 1]} : vector<8x8x128xf32> to vector<1x8x128xf32>
    %997 = vector.shape_cast %996 : vector<1x8x128xf32> to vector<8x128xf32>
    %998 = vector.extract_strided_slice %23 {offsets = [3, 0, 0], sizes = [1, 8, 128], strides = [1, 1, 1]} : vector<8x8x128xf32> to vector<1x8x128xf32>
    %999 = vector.shape_cast %998 : vector<1x8x128xf32> to vector<8x128xf32>
    %1000 = arith.addf %997, %999 : vector<8x128xf32>
    %1001 = arith.mulf %967, %1000 : vector<8x128xf32>
    %cst_257 = arith.constant 5.000000e-01 : f32
    %1002 = vector.broadcast %cst_257 : f32 to vector<8x128xf32>
    %1003 = arith.mulf %1001, %1002 : vector<8x128xf32>
    %1004 = math.absf %967 : vector<8x128xf32>
    %cst_258 = arith.constant 1.000000e+00 : f32
    %1005 = vector.broadcast %cst_258 : f32 to vector<8x128xf32>
    %1006 = arith.subf %1005, %995 : vector<8x128xf32>
    %1007 = arith.mulf %972, %995 : vector<8x128xf32>
    %1008 = arith.addf %1006, %1007 : vector<8x128xf32>
    %1009 = arith.mulf %1004, %1008 : vector<8x128xf32>
    %1010 = arith.mulf %1009, %787 : vector<8x128xf32>
    %cst_259 = arith.constant 5.000000e-01 : f32
    %1011 = vector.broadcast %cst_259 : f32 to vector<8x128xf32>
    %1012 = arith.mulf %1010, %1011 : vector<8x128xf32>
    %1013 = arith.subf %1003, %1012 : vector<8x128xf32>
    %1014 = vector.extract_strided_slice %27 {offsets = [4, 0, 0], sizes = [1, 8, 128], strides = [1, 1, 1]} : vector<8x8x128xf32> to vector<1x8x128xf32>
    %1015 = vector.shape_cast %1014 : vector<1x8x128xf32> to vector<8x128xf32>
    %1016 = math.absf %1015 : vector<8x128xf32>
    %c4_260 = arith.constant 4 : index
    %1017 = memref.load %arg2[%c4_260] : memref<8xf32, #tpu.memory_space<smem>>
    %cst_261 = arith.constant 1.000000e+00 : f32
    %1018 = arith.mulf %cst_261, %1017 : f32
    %1019 = vector.broadcast %1018 : f32 to vector<8x128xf32>
    %1020 = arith.mulf %1016, %1019 : vector<8x128xf32>
    %cst_262 = arith.constant 0.000000e+00 : f32
    %1021 = vector.broadcast %cst_262 : f32 to vector<8x128xf32>
    %1022 = arith.cmpf ogt, %1015, %1021 : vector<8x128xf32>
    %1023 = arith.select %1022, %787, %809 : vector<8x128xi1>, vector<8x128xf32>
    %1024 = math.absf %798 : vector<8x128xf32>
    %cst_263 = arith.constant 9.99999968E-21 : f32
    %1025 = vector.broadcast %cst_263 : f32 to vector<8x128xf32>
    %1026 = arith.cmpf olt, %1024, %1025 : vector<8x128xf32>
    %cst_264 = arith.constant 9.99999968E-21 : f32
    %1027 = vector.broadcast %cst_264 : f32 to vector<8x128xf32>
    %1028 = arith.select %1026, %1027, %798 : vector<8x128xi1>, vector<8x128xf32>
    %1029 = tpu.reciprocal %1028 : vector<8x128xf32> -> vector<8x128xf32>
    %1030 = arith.mulf %1023, %1029 : vector<8x128xf32>
    %cst_265 = arith.constant 2.000000e+00 : f32
    %1031 = vector.broadcast %cst_265 : f32 to vector<8x128xf32>
    %1032 = arith.mulf %1031, %1030 : vector<8x128xf32>
    %cst_266 = arith.constant 1.000000e+00 : f32
    %1033 = vector.broadcast %cst_266 : f32 to vector<8x128xf32>
    %1034 = arith.minimumf %1033, %1032 : vector<8x128xf32>
    %cst_267 = arith.constant 1.000000e+00 : f32
    %1035 = vector.broadcast %cst_267 : f32 to vector<8x128xf32>
    %1036 = arith.addf %1035, %1030 : vector<8x128xf32>
    %cst_268 = arith.constant 5.000000e-01 : f32
    %1037 = vector.broadcast %cst_268 : f32 to vector<8x128xf32>
    %1038 = arith.mulf %1037, %1036 : vector<8x128xf32>
    %cst_269 = arith.constant 2.000000e+00 : f32
    %1039 = vector.broadcast %cst_269 : f32 to vector<8x128xf32>
    %1040 = arith.minimumf %1039, %1038 : vector<8x128xf32>
    %1041 = arith.maximumf %1034, %1040 : vector<8x128xf32>
    %cst_270 = arith.constant 0.000000e+00 : f32
    %1042 = vector.broadcast %cst_270 : f32 to vector<8x128xf32>
    %1043 = arith.maximumf %1042, %1041 : vector<8x128xf32>
    %1044 = vector.extract_strided_slice %23 {offsets = [5, 0, 0], sizes = [1, 8, 128], strides = [1, 1, 1]} : vector<8x8x128xf32> to vector<1x8x128xf32>
    %1045 = vector.shape_cast %1044 : vector<1x8x128xf32> to vector<8x128xf32>
    %1046 = vector.extract_strided_slice %23 {offsets = [4, 0, 0], sizes = [1, 8, 128], strides = [1, 1, 1]} : vector<8x8x128xf32> to vector<1x8x128xf32>
    %1047 = vector.shape_cast %1046 : vector<1x8x128xf32> to vector<8x128xf32>
    %1048 = arith.addf %1045, %1047 : vector<8x128xf32>
    %1049 = arith.mulf %1015, %1048 : vector<8x128xf32>
    %cst_271 = arith.constant 5.000000e-01 : f32
    %1050 = vector.broadcast %cst_271 : f32 to vector<8x128xf32>
    %1051 = arith.mulf %1049, %1050 : vector<8x128xf32>
    %1052 = math.absf %1015 : vector<8x128xf32>
    %cst_272 = arith.constant 1.000000e+00 : f32
    %1053 = vector.broadcast %cst_272 : f32 to vector<8x128xf32>
    %1054 = arith.subf %1053, %1043 : vector<8x128xf32>
    %1055 = arith.mulf %1020, %1043 : vector<8x128xf32>
    %1056 = arith.addf %1054, %1055 : vector<8x128xf32>
    %1057 = arith.mulf %1052, %1056 : vector<8x128xf32>
    %1058 = arith.mulf %1057, %798 : vector<8x128xf32>
    %cst_273 = arith.constant 5.000000e-01 : f32
    %1059 = vector.broadcast %cst_273 : f32 to vector<8x128xf32>
    %1060 = arith.mulf %1058, %1059 : vector<8x128xf32>
    %1061 = arith.subf %1051, %1060 : vector<8x128xf32>
    %1062 = vector.extract_strided_slice %27 {offsets = [5, 0, 0], sizes = [1, 8, 128], strides = [1, 1, 1]} : vector<8x8x128xf32> to vector<1x8x128xf32>
    %1063 = vector.shape_cast %1062 : vector<1x8x128xf32> to vector<8x128xf32>
    %1064 = math.absf %1063 : vector<8x128xf32>
    %c5_274 = arith.constant 5 : index
    %1065 = memref.load %arg2[%c5_274] : memref<8xf32, #tpu.memory_space<smem>>
    %cst_275 = arith.constant 1.000000e+00 : f32
    %1066 = arith.mulf %cst_275, %1065 : f32
    %1067 = vector.broadcast %1066 : f32 to vector<8x128xf32>
    %1068 = arith.mulf %1064, %1067 : vector<8x128xf32>
    %cst_276 = arith.constant 0.000000e+00 : f32
    %1069 = vector.broadcast %cst_276 : f32 to vector<8x128xf32>
    %1070 = arith.cmpf ogt, %1063, %1069 : vector<8x128xf32>
    %1071 = arith.select %1070, %798, %820 : vector<8x128xi1>, vector<8x128xf32>
    %1072 = math.absf %809 : vector<8x128xf32>
    %cst_277 = arith.constant 9.99999968E-21 : f32
    %1073 = vector.broadcast %cst_277 : f32 to vector<8x128xf32>
    %1074 = arith.cmpf olt, %1072, %1073 : vector<8x128xf32>
    %cst_278 = arith.constant 9.99999968E-21 : f32
    %1075 = vector.broadcast %cst_278 : f32 to vector<8x128xf32>
    %1076 = arith.select %1074, %1075, %809 : vector<8x128xi1>, vector<8x128xf32>
    %1077 = tpu.reciprocal %1076 : vector<8x128xf32> -> vector<8x128xf32>
    %1078 = arith.mulf %1071, %1077 : vector<8x128xf32>
    %cst_279 = arith.constant 2.000000e+00 : f32
    %1079 = vector.broadcast %cst_279 : f32 to vector<8x128xf32>
    %1080 = arith.mulf %1079, %1078 : vector<8x128xf32>
    %cst_280 = arith.constant 1.000000e+00 : f32
    %1081 = vector.broadcast %cst_280 : f32 to vector<8x128xf32>
    %1082 = arith.minimumf %1081, %1080 : vector<8x128xf32>
    %cst_281 = arith.constant 1.000000e+00 : f32
    %1083 = vector.broadcast %cst_281 : f32 to vector<8x128xf32>
    %1084 = arith.addf %1083, %1078 : vector<8x128xf32>
    %cst_282 = arith.constant 5.000000e-01 : f32
    %1085 = vector.broadcast %cst_282 : f32 to vector<8x128xf32>
    %1086 = arith.mulf %1085, %1084 : vector<8x128xf32>
    %cst_283 = arith.constant 2.000000e+00 : f32
    %1087 = vector.broadcast %cst_283 : f32 to vector<8x128xf32>
    %1088 = arith.minimumf %1087, %1086 : vector<8x128xf32>
    %1089 = arith.maximumf %1082, %1088 : vector<8x128xf32>
    %cst_284 = arith.constant 0.000000e+00 : f32
    %1090 = vector.broadcast %cst_284 : f32 to vector<8x128xf32>
    %1091 = arith.maximumf %1090, %1089 : vector<8x128xf32>
    %1092 = vector.extract_strided_slice %23 {offsets = [6, 0, 0], sizes = [1, 8, 128], strides = [1, 1, 1]} : vector<8x8x128xf32> to vector<1x8x128xf32>
    %1093 = vector.shape_cast %1092 : vector<1x8x128xf32> to vector<8x128xf32>
    %1094 = vector.extract_strided_slice %23 {offsets = [5, 0, 0], sizes = [1, 8, 128], strides = [1, 1, 1]} : vector<8x8x128xf32> to vector<1x8x128xf32>
    %1095 = vector.shape_cast %1094 : vector<1x8x128xf32> to vector<8x128xf32>
    %1096 = arith.addf %1093, %1095 : vector<8x128xf32>
    %1097 = arith.mulf %1063, %1096 : vector<8x128xf32>
    %cst_285 = arith.constant 5.000000e-01 : f32
    %1098 = vector.broadcast %cst_285 : f32 to vector<8x128xf32>
    %1099 = arith.mulf %1097, %1098 : vector<8x128xf32>
    %1100 = math.absf %1063 : vector<8x128xf32>
    %cst_286 = arith.constant 1.000000e+00 : f32
    %1101 = vector.broadcast %cst_286 : f32 to vector<8x128xf32>
    %1102 = arith.subf %1101, %1091 : vector<8x128xf32>
    %1103 = arith.mulf %1068, %1091 : vector<8x128xf32>
    %1104 = arith.addf %1102, %1103 : vector<8x128xf32>
    %1105 = arith.mulf %1100, %1104 : vector<8x128xf32>
    %1106 = arith.mulf %1105, %809 : vector<8x128xf32>
    %cst_287 = arith.constant 5.000000e-01 : f32
    %1107 = vector.broadcast %cst_287 : f32 to vector<8x128xf32>
    %1108 = arith.mulf %1106, %1107 : vector<8x128xf32>
    %1109 = arith.subf %1099, %1108 : vector<8x128xf32>
    %cst_288 = arith.constant 0.000000e+00 : f32
    %1110 = vector.broadcast %cst_288 : f32 to vector<8x128xf32>
    %1111 = vector.extract_strided_slice %27 {offsets = [6, 0, 0], sizes = [1, 8, 128], strides = [1, 1, 1]} : vector<8x8x128xf32> to vector<1x8x128xf32>
    %1112 = vector.shape_cast %1111 : vector<1x8x128xf32> to vector<8x128xf32>
    %1113 = math.absf %1112 : vector<8x128xf32>
    %c6_289 = arith.constant 6 : index
    %1114 = memref.load %arg2[%c6_289] : memref<8xf32, #tpu.memory_space<smem>>
    %cst_290 = arith.constant 1.000000e+00 : f32
    %1115 = arith.mulf %cst_290, %1114 : f32
    %1116 = vector.broadcast %1115 : f32 to vector<8x128xf32>
    %1117 = arith.mulf %1113, %1116 : vector<8x128xf32>
    %cst_291 = arith.constant 0.000000e+00 : f32
    %1118 = vector.broadcast %cst_291 : f32 to vector<8x128xf32>
    %1119 = arith.cmpf ogt, %1112, %1118 : vector<8x128xf32>
    %1120 = arith.select %1119, %809, %1110 : vector<8x128xi1>, vector<8x128xf32>
    %1121 = math.absf %820 : vector<8x128xf32>
    %cst_292 = arith.constant 9.99999968E-21 : f32
    %1122 = vector.broadcast %cst_292 : f32 to vector<8x128xf32>
    %1123 = arith.cmpf olt, %1121, %1122 : vector<8x128xf32>
    %cst_293 = arith.constant 9.99999968E-21 : f32
    %1124 = vector.broadcast %cst_293 : f32 to vector<8x128xf32>
    %1125 = arith.select %1123, %1124, %820 : vector<8x128xi1>, vector<8x128xf32>
    %1126 = tpu.reciprocal %1125 : vector<8x128xf32> -> vector<8x128xf32>
    %1127 = arith.mulf %1120, %1126 : vector<8x128xf32>
    %cst_294 = arith.constant 2.000000e+00 : f32
    %1128 = vector.broadcast %cst_294 : f32 to vector<8x128xf32>
    %1129 = arith.mulf %1128, %1127 : vector<8x128xf32>
    %cst_295 = arith.constant 1.000000e+00 : f32
    %1130 = vector.broadcast %cst_295 : f32 to vector<8x128xf32>
    %1131 = arith.minimumf %1130, %1129 : vector<8x128xf32>
    %cst_296 = arith.constant 1.000000e+00 : f32
    %1132 = vector.broadcast %cst_296 : f32 to vector<8x128xf32>
    %1133 = arith.addf %1132, %1127 : vector<8x128xf32>
    %cst_297 = arith.constant 5.000000e-01 : f32
    %1134 = vector.broadcast %cst_297 : f32 to vector<8x128xf32>
    %1135 = arith.mulf %1134, %1133 : vector<8x128xf32>
    %cst_298 = arith.constant 2.000000e+00 : f32
    %1136 = vector.broadcast %cst_298 : f32 to vector<8x128xf32>
    %1137 = arith.minimumf %1136, %1135 : vector<8x128xf32>
    %1138 = arith.maximumf %1131, %1137 : vector<8x128xf32>
    %cst_299 = arith.constant 0.000000e+00 : f32
    %1139 = vector.broadcast %cst_299 : f32 to vector<8x128xf32>
    %1140 = arith.maximumf %1139, %1138 : vector<8x128xf32>
    %1141 = vector.extract_strided_slice %23 {offsets = [7, 0, 0], sizes = [1, 8, 128], strides = [1, 1, 1]} : vector<8x8x128xf32> to vector<1x8x128xf32>
    %1142 = vector.shape_cast %1141 : vector<1x8x128xf32> to vector<8x128xf32>
    %1143 = vector.extract_strided_slice %23 {offsets = [6, 0, 0], sizes = [1, 8, 128], strides = [1, 1, 1]} : vector<8x8x128xf32> to vector<1x8x128xf32>
    %1144 = vector.shape_cast %1143 : vector<1x8x128xf32> to vector<8x128xf32>
    %1145 = arith.addf %1142, %1144 : vector<8x128xf32>
    %1146 = arith.mulf %1112, %1145 : vector<8x128xf32>
    %cst_300 = arith.constant 5.000000e-01 : f32
    %1147 = vector.broadcast %cst_300 : f32 to vector<8x128xf32>
    %1148 = arith.mulf %1146, %1147 : vector<8x128xf32>
    %1149 = math.absf %1112 : vector<8x128xf32>
    %cst_301 = arith.constant 1.000000e+00 : f32
    %1150 = vector.broadcast %cst_301 : f32 to vector<8x128xf32>
    %1151 = arith.subf %1150, %1140 : vector<8x128xf32>
    %1152 = arith.mulf %1117, %1140 : vector<8x128xf32>
    %1153 = arith.addf %1151, %1152 : vector<8x128xf32>
    %1154 = arith.mulf %1149, %1153 : vector<8x128xf32>
    %1155 = arith.mulf %1154, %820 : vector<8x128xf32>
    %cst_302 = arith.constant 5.000000e-01 : f32
    %1156 = vector.broadcast %cst_302 : f32 to vector<8x128xf32>
    %1157 = arith.mulf %1155, %1156 : vector<8x128xf32>
    %1158 = arith.subf %1148, %1157 : vector<8x128xf32>
    %cst_303 = arith.constant 0.000000e+00 : f32
    %1159 = vector.broadcast %cst_303 : f32 to vector<8x128xf32>
    %1160 = arith.subf %1159, %869 : vector<8x128xf32>
    %c0_304 = arith.constant 0 : index
    %1161 = memref.load %arg2[%c0_304] : memref<8xf32, #tpu.memory_space<smem>>
    %1162 = vector.broadcast %1161 : f32 to vector<8x128xf32>
    %1163 = arith.mulf %1160, %1162 : vector<8x128xf32>
    %1164 = arith.subf %917, %869 : vector<8x128xf32>
    %cst_305 = arith.constant 0.000000e+00 : f32
    %1165 = vector.broadcast %cst_305 : f32 to vector<8x128xf32>
    %1166 = arith.subf %1165, %1164 : vector<8x128xf32>
    %c1_306 = arith.constant 1 : index
    %1167 = memref.load %arg2[%c1_306] : memref<8xf32, #tpu.memory_space<smem>>
    %1168 = vector.broadcast %1167 : f32 to vector<8x128xf32>
    %1169 = arith.mulf %1166, %1168 : vector<8x128xf32>
    %1170 = arith.subf %965, %917 : vector<8x128xf32>
    %cst_307 = arith.constant 0.000000e+00 : f32
    %1171 = vector.broadcast %cst_307 : f32 to vector<8x128xf32>
    %1172 = arith.subf %1171, %1170 : vector<8x128xf32>
    %c2_308 = arith.constant 2 : index
    %1173 = memref.load %arg2[%c2_308] : memref<8xf32, #tpu.memory_space<smem>>
    %1174 = vector.broadcast %1173 : f32 to vector<8x128xf32>
    %1175 = arith.mulf %1172, %1174 : vector<8x128xf32>
    %1176 = arith.subf %1013, %965 : vector<8x128xf32>
    %cst_309 = arith.constant 0.000000e+00 : f32
    %1177 = vector.broadcast %cst_309 : f32 to vector<8x128xf32>
    %1178 = arith.subf %1177, %1176 : vector<8x128xf32>
    %c3_310 = arith.constant 3 : index
    %1179 = memref.load %arg2[%c3_310] : memref<8xf32, #tpu.memory_space<smem>>
    %1180 = vector.broadcast %1179 : f32 to vector<8x128xf32>
    %1181 = arith.mulf %1178, %1180 : vector<8x128xf32>
    %1182 = arith.subf %1061, %1013 : vector<8x128xf32>
    %cst_311 = arith.constant 0.000000e+00 : f32
    %1183 = vector.broadcast %cst_311 : f32 to vector<8x128xf32>
    %1184 = arith.subf %1183, %1182 : vector<8x128xf32>
    %c4_312 = arith.constant 4 : index
    %1185 = memref.load %arg2[%c4_312] : memref<8xf32, #tpu.memory_space<smem>>
    %1186 = vector.broadcast %1185 : f32 to vector<8x128xf32>
    %1187 = arith.mulf %1184, %1186 : vector<8x128xf32>
    %1188 = arith.subf %1109, %1061 : vector<8x128xf32>
    %cst_313 = arith.constant 0.000000e+00 : f32
    %1189 = vector.broadcast %cst_313 : f32 to vector<8x128xf32>
    %1190 = arith.subf %1189, %1188 : vector<8x128xf32>
    %c5_314 = arith.constant 5 : index
    %1191 = memref.load %arg2[%c5_314] : memref<8xf32, #tpu.memory_space<smem>>
    %1192 = vector.broadcast %1191 : f32 to vector<8x128xf32>
    %1193 = arith.mulf %1190, %1192 : vector<8x128xf32>
    %1194 = arith.subf %1158, %1109 : vector<8x128xf32>
    %cst_315 = arith.constant 0.000000e+00 : f32
    %1195 = vector.broadcast %cst_315 : f32 to vector<8x128xf32>
    %1196 = arith.subf %1195, %1194 : vector<8x128xf32>
    %c6_316 = arith.constant 6 : index
    %1197 = memref.load %arg2[%c6_316] : memref<8xf32, #tpu.memory_space<smem>>
    %1198 = vector.broadcast %1197 : f32 to vector<8x128xf32>
    %1199 = arith.mulf %1196, %1198 : vector<8x128xf32>
    %c7_317 = arith.constant 7 : index
    %1200 = memref.load %arg2[%c7_317] : memref<8xf32, #tpu.memory_space<smem>>
    %cst_318 = arith.constant 2.000000e+00 : f32
    %1201 = arith.mulf %cst_318, %1200 : f32
    %1202 = vector.broadcast %1201 : f32 to vector<8x128xf32>
    %1203 = arith.mulf %1158, %1202 : vector<8x128xf32>
    %1204 = vector.shape_cast %1163 : vector<8x128xf32> to vector<1x8x128xf32>
    %1205 = vector.shape_cast %1169 : vector<8x128xf32> to vector<1x8x128xf32>
    %1206 = vector.shape_cast %1175 : vector<8x128xf32> to vector<1x8x128xf32>
    %1207 = vector.shape_cast %1181 : vector<8x128xf32> to vector<1x8x128xf32>
    %1208 = vector.shape_cast %1187 : vector<8x128xf32> to vector<1x8x128xf32>
    %1209 = vector.shape_cast %1193 : vector<8x128xf32> to vector<1x8x128xf32>
    %1210 = vector.shape_cast %1199 : vector<8x128xf32> to vector<1x8x128xf32>
    %1211 = vector.shape_cast %1203 : vector<8x128xf32> to vector<1x8x128xf32>
    %1212 = tpu.concatenate %1204, %1205, %1206, %1207, %1208, %1209, %1210, %1211 in 0 : vector<1x8x128xf32>, vector<1x8x128xf32>, vector<1x8x128xf32>, vector<1x8x128xf32>, vector<1x8x128xf32>, vector<1x8x128xf32>, vector<1x8x128xf32>, vector<1x8x128xf32> -> vector<8x8x128xf32>
    %cst_319 = arith.constant 1.000000e+00 : f32
    %1213 = vector.broadcast %cst_319 : f32 to vector<8x8x128xf32>
    %1214 = arith.mulf %1213, %24 : vector<8x8x128xf32>
    %1215 = arith.addf %615, %687 : vector<8x8x128xf32>
    %1216 = arith.mulf %1214, %1215 : vector<8x8x128xf32>
    %cst_320 = arith.constant 0.000000e+00 : f32
    %1217 = vector.broadcast %cst_320 : f32 to vector<8x8x128xf32>
    %1218 = arith.subf %1217, %676 : vector<8x8x128xf32>
    %1219 = arith.subf %1218, %743 : vector<8x8x128xf32>
    %1220 = arith.mulf %24, %1219 : vector<8x8x128xf32>
    %1221 = arith.addf %1220, %1212 : vector<8x8x128xf32>
    %1222 = vector.shape_cast %16 : vector<1x8x128xi1> to vector<1x8x128xi1>
    %1223 = vector.broadcast %1222 : vector<1x8x128xi1> to vector<8x8x128xi1>
    %1224 = arith.select %1223, %1221, %33 : vector<8x8x128xi1>, vector<8x8x128xf32>
    %cst_321 = arith.constant 0.000000e+00 : f32
    %1225 = vector.shape_cast %16 : vector<1x8x128xi1> to vector<1x8x128xi1>
    %1226 = vector.broadcast %1225 : vector<1x8x128xi1> to vector<8x8x128xi1>
    %1227 = vector.broadcast %cst_321 : f32 to vector<8x8x128xf32>
    %1228 = arith.select %1226, %1216, %1227 : vector<8x8x128xi1>, vector<8x8x128xf32>
    %1229 = arith.addf %599, %1228 : vector<8x8x128xf32>
    %cst_322 = arith.constant 1.600000e+00 : f32
    %1230 = vector.broadcast %cst_322 : f32 to vector<8x8x128xf32>
    %1231 = arith.mulf %1230, %1224 : vector<8x8x128xf32>
    %cst_323 = arith.constant 6.000000e-01 : f32
    %1232 = vector.broadcast %cst_323 : f32 to vector<8x8x128xf32>
    %1233 = arith.mulf %1232, %34 : vector<8x8x128xf32>
    %1234 = arith.subf %1231, %1233 : vector<8x8x128xf32>
    %cst_324 = arith.constant 1.000000e+00 : f32
    %1235 = vector.broadcast %cst_324 : f32 to vector<8x8x128xf32>
    %1236 = arith.mulf %1235, %1234 : vector<8x8x128xf32>
    %1237 = arith.addf %1229, %1236 : vector<8x8x128xf32>
    %c0_325 = arith.constant 0 : index
    %c0_326 = arith.constant 0 : index
    %c0_327 = arith.constant 0 : index
    %1238 = vector.load %arg24[%c0_325, %c0_326, %c0_327] : memref<8x8x128xf32, #tpu.memory_space<vmem>>, vector<8x8x128xf32>
    tpu.vector_store %arg24[%c0_325, %c0_326, %c0_327], %1237 {strides = array<i32>} : memref<8x8x128xf32, #tpu.memory_space<vmem>>, vector<8x8x128xf32>,
    %c0_328 = arith.constant 0 : index
    %c0_329 = arith.constant 0 : index
    %c0_330 = arith.constant 0 : index
    %1239 = vector.load %arg25[%c0_328, %c0_329, %c0_330] : memref<8x8x128xf32, #tpu.memory_space<vmem>>, vector<8x8x128xf32>
    tpu.vector_store %arg25[%c0_328, %c0_329, %c0_330], %1224 {strides = array<i32>} : memref<8x8x128xf32, #tpu.memory_space<vmem>>, vector<8x8x128xf32>,
    %c0_331 = arith.constant 0 : index
    %c0_332 = arith.constant 0 : index
    %1240 = vector.load %arg26[%c0_331, %c0_332] : memref<8x128xf32, #tpu.memory_space<vmem>>, vector<8x128xf32>
    tpu.vector_store %arg26[%c0_331, %c0_332], %594 {strides = array<i32>} : memref<8x128xf32, #tpu.memory_space<vmem>>, vector<8x128xf32>,
    return
  }
  func.func @transform_0(%arg0: i32) -> i32 {
    %c0_i32 = arith.constant 0 : i32
    %c0_i32_0 = arith.constant 0 : i32
    return %c0_i32 : i32
  }
  func.func @transform_1(%arg0: i32) -> i32 {
    %c0_i32 = arith.constant 0 : i32
    %c0_i32_0 = arith.constant 0 : i32
    return %c0_i32 : i32
  }
  func.func @transform_2(%arg0: i32) -> i32 {
    %c0_i32 = arith.constant 0 : i32
    %c0_i32_0 = arith.constant 0 : i32
    return %c0_i32 : i32
  }
  func.func @transform_3(%arg0: i32) -> (i32, i32) {
    %c0_i32 = arith.constant 0 : i32
    %c0_i32_0 = arith.constant 0 : i32
    %c0_i32_1 = arith.constant 0 : i32
    return %c0_i32, %c0_i32_0 : i32, i32
  }
  func.func @transform_4(%arg0: i32) -> (i32, i32) {
    %c0_i32 = arith.constant 0 : i32
    %c0_i32_0 = arith.constant 0 : i32
    %c0_i32_1 = arith.constant 0 : i32
    return %c0_i32, %c0_i32_0 : i32, i32
  }
  func.func @transform_5(%arg0: i32) -> (i32, i32) {
    %c0_i32 = arith.constant 0 : i32
    %c0_i32_0 = arith.constant 0 : i32
    %c0_i32_1 = arith.constant 0 : i32
    return %c0_i32, %c0_i32_0 : i32, i32
  }
  func.func @transform_6(%arg0: i32) -> (i32, i32) {
    %c0_i32 = arith.constant 0 : i32
    %c0_i32_0 = arith.constant 0 : i32
    return %arg0, %c0_i32 : i32, i32
  }
  func.func @transform_7(%arg0: i32) -> (i32, i32) {
    %c0_i32 = arith.constant 0 : i32
    %c0_i32_0 = arith.constant 0 : i32
    return %arg0, %c0_i32 : i32, i32
  }
  func.func @transform_8(%arg0: i32) -> (i32, i32) {
    %c0_i32 = arith.constant 0 : i32
    %c0_i32_0 = arith.constant 0 : i32
    return %arg0, %c0_i32 : i32, i32
  }
  func.func @transform_9(%arg0: i32) -> (i32, i32) {
    %c0_i32 = arith.constant 0 : i32
    %c0_i32_0 = arith.constant 0 : i32
    return %arg0, %c0_i32 : i32, i32
  }
  func.func @transform_10(%arg0: i32) -> (i32, i32, i32) {
    %c0_i32 = arith.constant 0 : i32
    %c0_i32_0 = arith.constant 0 : i32
    %c0_i32_1 = arith.constant 0 : i32
    return %c0_i32, %arg0, %c0_i32_0 : i32, i32, i32
  }
  func.func @transform_11(%arg0: i32) -> (i32, i32, i32) {
    %c0_i32 = arith.constant 0 : i32
    %c0_i32_0 = arith.constant 0 : i32
    %c0_i32_1 = arith.constant 0 : i32
    return %c0_i32, %arg0, %c0_i32_0 : i32, i32, i32
  }
  func.func @transform_12(%arg0: i32) -> (i32, i32, i32) {
    %c0_i32 = arith.constant 0 : i32
    %c0_i32_0 = arith.constant 0 : i32
    %c0_i32_1 = arith.constant 0 : i32
    return %c0_i32, %arg0, %c0_i32_0 : i32, i32, i32
  }
  func.func @transform_13(%arg0: i32) -> (i32, i32, i32) {
    %c0_i32 = arith.constant 0 : i32
    %c0_i32_0 = arith.constant 0 : i32
    %c0_i32_1 = arith.constant 0 : i32
    return %c0_i32, %arg0, %c0_i32_0 : i32, i32, i32
  }
  func.func @transform_14(%arg0: i32) -> (i32, i32, i32) {
    %c0_i32 = arith.constant 0 : i32
    %c0_i32_0 = arith.constant 0 : i32
    %c0_i32_1 = arith.constant 0 : i32
    return %c0_i32, %arg0, %c0_i32_0 : i32, i32, i32
  }
  func.func @transform_15(%arg0: i32) -> (i32, i32, i32) {
    %c0_i32 = arith.constant 0 : i32
    %c0_i32_0 = arith.constant 0 : i32
    %c0_i32_1 = arith.constant 0 : i32
    return %c0_i32, %arg0, %c0_i32_0 : i32, i32, i32
  }
  func.func @transform_16(%arg0: i32) -> (i32, i32, i32) {
    %c0_i32 = arith.constant 0 : i32
    %c0_i32_0 = arith.constant 0 : i32
    %c0_i32_1 = arith.constant 0 : i32
    return %c0_i32, %arg0, %c0_i32_0 : i32, i32, i32
  }
  func.func @transform_17(%arg0: i32) -> (i32, i32, i32) {
    %c0_i32 = arith.constant 0 : i32
    %c0_i32_0 = arith.constant 0 : i32
    %c0_i32_1 = arith.constant 0 : i32
    return %c0_i32, %arg0, %c0_i32_0 : i32, i32, i32
  }
  func.func @transform_18(%arg0: i32) -> (i32, i32, i32) {
    %c0_i32 = arith.constant 0 : i32
    %c0_i32_0 = arith.constant 0 : i32
    %c0_i32_1 = arith.constant 0 : i32
    return %c0_i32, %arg0, %c0_i32_0 : i32, i32, i32
  }
  func.func @transform_19(%arg0: i32) -> (i32, i32, i32) {
    %c0_i32 = arith.constant 0 : i32
    %c0_i32_0 = arith.constant 0 : i32
    %c0_i32_1 = arith.constant 0 : i32
    return %c0_i32, %arg0, %c0_i32_0 : i32, i32, i32
  }
  func.func @transform_20(%arg0: i32) -> (i32, i32, i32) {
    %c0_i32 = arith.constant 0 : i32
    %c0_i32_0 = arith.constant 0 : i32
    %c0_i32_1 = arith.constant 0 : i32
    return %c0_i32, %arg0, %c0_i32_0 : i32, i32, i32
  }
  func.func @transform_21(%arg0: i32) -> (i32, i32, i32) {
    %c0_i32 = arith.constant 0 : i32
    %c0_i32_0 = arith.constant 0 : i32
    %c0_i32_1 = arith.constant 0 : i32
    return %c0_i32, %arg0, %c0_i32_0 : i32, i32, i32
  }
  func.func @transform_22(%arg0: i32) -> (i32, i32, i32) {
    %c0_i32 = arith.constant 0 : i32
    %c0_i32_0 = arith.constant 0 : i32
    %c0_i32_1 = arith.constant 0 : i32
    return %c0_i32, %arg0, %c0_i32_0 : i32, i32, i32
  }
  func.func @transform_23(%arg0: i32) -> (i32, i32, i32) {
    %c0_i32 = arith.constant 0 : i32
    %c0_i32_0 = arith.constant 0 : i32
    %c0_i32_1 = arith.constant 0 : i32
    return %c0_i32, %arg0, %c0_i32_0 : i32, i32, i32
  }
  func.func @transform_24(%arg0: i32) -> (i32, i32, i32) {
    %c0_i32 = arith.constant 0 : i32
    %c0_i32_0 = arith.constant 0 : i32
    %c0_i32_1 = arith.constant 0 : i32
    return %c0_i32, %arg0, %c0_i32_0 : i32, i32, i32
  }
  func.func @transform_25(%arg0: i32) -> (i32, i32) {
    %c0_i32 = arith.constant 0 : i32
    %c0_i32_0 = arith.constant 0 : i32
    return %arg0, %c0_i32 : i32, i32
  }
}

</mosaic_0001>

<llo_original>
// kernel: _lambda_.1
$region0: #{_lambda_.1}
  #allocation0 [shape = 'u32[]', space=smem, size = 0x4, offset = 0x4, fixed_abs, tag = 'smem constant byte address 0x4 - core index']
  #allocation1 [shape = 'u32[144,128]{1,0:T(1,128)}', space=vmem, size = 0x12000, scoped, tag = 'internal scratch']
  %s0 = inlined_call_operand.vmem [shape: f32[8], index: 0, kind: input, shape index: {}]
  %s1 = inlined_call_operand.vmem [shape: f32[8], index: 1, kind: input, shape index: {}]
  %s2 = inlined_call_operand.vmem [shape: f32[8], index: 2, kind: input, shape index: {}]
  %s3 = inlined_call_operand.vmem [shape: f32[1,128], index: 3, kind: input, shape index: {}]
  %s4 = inlined_call_operand.vmem [shape: f32[1,128], index: 4, kind: input, shape index: {}]
  %s5 = inlined_call_operand.vmem [shape: f32[1,128], index: 5, kind: input, shape index: {}]
  %s6 = inlined_call_operand.vmem [shape: f32[32,128], index: 6, kind: input, shape index: {}]
  %s7 = inlined_call_operand.vmem [shape: f32[32,128], index: 7, kind: input, shape index: {}]
  %s8 = inlined_call_operand.vmem [shape: f32[16,128], index: 8, kind: input, shape index: {}]
  %s9 = inlined_call_operand.vmem [shape: s32[16,128], index: 9, kind: input, shape index: {}]
  %s10 = inlined_call_operand.vmem [shape: f32[8,32,128], index: 10, kind: input, shape index: {}]
  %s11 = inlined_call_operand.vmem [shape: f32[8,32,128], index: 11, kind: input, shape index: {}]
  %s12 = inlined_call_operand.vmem [shape: f32[8,32,128], index: 12, kind: input, shape index: {}]
  %s13 = inlined_call_operand.vmem [shape: f32[8,32,128], index: 13, kind: input, shape index: {}]
  %s14 = inlined_call_operand.vmem [shape: f32[8,16,128], index: 14, kind: input, shape index: {}]
  %s15 = inlined_call_operand.vmem [shape: f32[8,16,128], index: 15, kind: input, shape index: {}]
  %s16 = inlined_call_operand.vmem [shape: f32[8,16,128], index: 16, kind: input, shape index: {}]
  %s17 = inlined_call_operand.vmem [shape: f32[8,16,128], index: 17, kind: input, shape index: {}]
  %s18 = inlined_call_operand.vmem [shape: f32[8,16,128], index: 18, kind: input, shape index: {}]
  %s19 = inlined_call_operand.vmem [shape: f32[8,16,128], index: 19, kind: input, shape index: {}]
  %s20 = inlined_call_operand.vmem [shape: f32[8,16,128], index: 20, kind: input, shape index: {}, may-alias: {20,23}]
  %s21 = inlined_call_operand.vmem [shape: f32[8,16,128], index: 21, kind: input, shape index: {}, may-alias: {21,24}]
  %s22 = inlined_call_operand.vmem [shape: f32[8,16,128], index: 22, kind: input, shape index: {}]
  %s23 = inlined_call_operand.vmem [shape: f32[8,16,128], index: 23, kind: output, shape index: {0}, may-alias: {20,23}]
  %s24 = inlined_call_operand.vmem [shape: f32[8,16,128], index: 24, kind: output, shape index: {1}, may-alias: {21,24}]
  %s25 = inlined_call_operand.hbm [shape: f32[16,128], index: 25, kind: output, shape index: {2}]
  %26 = xla_tuple %s23, %s24, %s25
  %s27 = sld [smem:[#allocation0]]
  $region715: #{_lambda_.1} parent=0
    _
  %s29 = ssub.s32 1, %s27
  %s30 = scalar_select 0, %s29, %s27
  $region1: #{_lambda_.1} parent=0
    #allocation2 [shape = 'u8[512]{0}', space=smem, size = 0x200, scoped, tag = 'input window, operand 0, single buffered']
    #allocation3 [shape = 's32[2]{0}', space=sflag, size = 0x8, scoped, tag = 'scoped memory for _lambda_.1']
    #allocation4 [shape = 's32[2]{0}', space=sflag, size = 0x8, scoped, tag = 'scoped memory for _lambda_.1']
    #allocation5 [shape = 'u8[512]{0}', space=smem, size = 0x200, scoped, tag = 'input window, operand 1, single buffered']
    #allocation6 [shape = 's32[1]{0}', space=sflag, size = 0x4, scoped, tag = 'scoped memory for _lambda_.1']
    #allocation7 [shape = 'u8[512]{0}', space=smem, size = 0x200, scoped, tag = 'input window, operand 2, single buffered']
    #allocation8 [shape = 'u8[131072]{0}', space=vmem, size = 0x20000, scoped, tag = 'input window, operand 10']
    #allocation9 [shape = 'u8[131072]{0}', space=vmem, size = 0x20000, scoped, tag = 'input window, operand 11']
    #allocation10 [shape = 'u8[131072]{0}', space=vmem, size = 0x20000, scoped, tag = 'input window, operand 12']
    #allocation11 [shape = 'u8[131072]{0}', space=vmem, size = 0x20000, scoped, tag = 'input window, operand 13']
    #allocation12 [shape = 'u8[65536]{0}', space=vmem, size = 0x10000, scoped, tag = 'input window, operand 14']
    #allocation13 [shape = 'u8[65536]{0}', space=vmem, size = 0x10000, scoped, tag = 'input window, operand 15']
    #allocation14 [shape = 'u8[65536]{0}', space=vmem, size = 0x10000, scoped, tag = 'input window, operand 16']
    #allocation15 [shape = 'u8[65536]{0}', space=vmem, size = 0x10000, scoped, tag = 'input window, operand 17']
    #allocation16 [shape = 'u8[65536]{0}', space=vmem, size = 0x10000, scoped, tag = 'input window, operand 18']
    #allocation17 [shape = 'u8[65536]{0}', space=vmem, size = 0x10000, scoped, tag = 'input window, operand 19']
    #allocation18 [shape = 'u8[65536]{0}', space=vmem, size = 0x10000, scoped, tag = 'input window, operand 20']
    #allocation19 [shape = 'u8[65536]{0}', space=vmem, size = 0x10000, scoped, tag = 'input window, operand 21']
    #allocation20 [shape = 'u8[65536]{0}', space=vmem, size = 0x10000, scoped, tag = 'input window, operand 22']
    #allocation21 [shape = 'u8[65536]{0}', space=vmem, size = 0x10000, scoped, tag = 'output window, operand 0']
    #allocation22 [shape = 'u8[65536]{0}', space=vmem, size = 0x10000, scoped, tag = 'output window, operand 1']
    #allocation23 [shape = 'u8[8192]{0}', space=vmem, size = 0x2000, scoped, tag = 'output window, operand 2']
    %31 = vsyncpa [#allocation4], 0
    %32 = vsyncpa [#allocation6], 0
    %33 = vsyncpa [#allocation3], 0
    %s34 = scalar_lea.sflag [#allocation3], 1
    %35 = vsyncpa %s34, 0
    loop: start=0, step=1, limit=4
    $region2: #{_lambda_.1} parent=1 // loop_pre_header
      _
    $region3: #{_lambda_.1} parent=1 // loop_header
      %s37 = sphi 0, %s41
      %p38 = scmp.ge.s32.totalorder %s37, 4
      %s45 = sphi 0, %s45
      %s47 = sphi 0, %s45
      %s48 = sphi 0, %s47
      %s62 = sphi 0, %s48
      %s66 = sphi 0, %s66
      %s68 = sphi 0, %s66
      %s69 = sphi 0, %s68
      %s83 = sphi 0, %s69
      %s87 = sphi 0, %s87
      %s89 = sphi 0, %s87
      %s90 = sphi 0, %s89
      %s104 = sphi 0, %s90
      %s108 = sphi 0, %s108
      %s110 = sphi 0, %s108
      %s111 = sphi 0, %s110
      %s125 = sphi 0, %s111
      %s129 = sphi 0, %s129
      %s131 = sphi 0, %s129
      %s132 = sphi 0, %s131
      %s146 = sphi 0, %s132
      %s150 = sphi 0, %s150
      %s152 = sphi 0, %s150
      %s153 = sphi 0, %s152
      %s167 = sphi 0, %s153
      %s173 = sphi 0, %s175
      %s176 = sphi 0, %s173
      %s177 = sphi 0, %s176
      %s193 = sphi 0, %s177
      %s199 = sphi 0, %s201
      %s202 = sphi 0, %s199
      %s203 = sphi 0, %s202
      %s219 = sphi 0, %s203
      %s225 = sphi 0, %s227
      %s228 = sphi 0, %s225
      %s229 = sphi 0, %s228
      %s245 = sphi 0, %s229
      %s251 = sphi 0, %s253
      %s254 = sphi 0, %s251
      %s255 = sphi 0, %s254
      %s271 = sphi 0, %s255
      %s277 = sphi 0, %s279
      %s280 = sphi 0, %s277
      %s281 = sphi 0, %s280
      %s297 = sphi 0, %s281
      %s303 = sphi 0, %s305
      %s306 = sphi 0, %s303
      %s307 = sphi 0, %s306
      %s323 = sphi 0, %s307
      %s329 = sphi 0, %s331
      %s332 = sphi 0, %s329
      %s333 = sphi 0, %s332
      %s349 = sphi 0, %s333
      %s355 = sphi 0, %s357
      %s358 = sphi 0, %s355
      %s359 = sphi 0, %s358
      %s375 = sphi 0, %s359
      %s381 = sphi 0, %s383
      %s384 = sphi 0, %s381
      %s385 = sphi 0, %s384
      %s401 = sphi 0, %s385
      %s407 = sphi 0, %s409
      %s410 = sphi 0, %s407
      %s411 = sphi 0, %s410
      %s427 = sphi 0, %s411
      %s433 = sphi 0, %s435
      %s436 = sphi 0, %s433
      %s437 = sphi 0, %s436
      %s453 = sphi 0, %s437
      %s459 = sphi 0, %s461
      %s462 = sphi 0, %s459
      %s463 = sphi 0, %s462
      %s479 = sphi 0, %s463
      %s485 = sphi 0, %s487
      %s488 = sphi 0, %s485
      %s489 = sphi 0, %s488
      %s505 = sphi 0, %s489
      %s511 = sphi 0, %s513
      %s514 = sphi 0, %s511
      %s515 = sphi 0, %s514
      %s531 = sphi 0, %s515
      %s537 = sphi 0, %s539
      %s540 = sphi 0, %s537
      %s541 = sphi 0, %s540
      %s557 = sphi 0, %s541
      %s563 = sphi 0, %s565
      %s566 = sphi 0, %s563
      %s567 = sphi 0, %s566
      %s583 = sphi 0, %s567
      %s589 = sphi 0, %s591
      %s592 = sphi 0, %s589
      %s593 = sphi 0, %s592
      %s609 = sphi 0, %s593
      %s615 = sphi 0, %s617
      %s618 = sphi 0, %s615
      %s619 = sphi 0, %s618
      %s635 = sphi 0, %s619
      %s641 = sphi 0, %s643
      %s644 = sphi 0, %s641
      %s645 = sphi 0, %s644
      %s661 = sphi 0, %s645
      %s667 = sphi 0, %s669
      %s670 = sphi 0, %s667
      %s671 = sphi 0, %s670
      %s687 = sphi 0, %s671
    $region4: #{_lambda_.1} parent=1 // loop_header_branch
      %40 = sbr.rel (%p38) target = $region8
    $region5: #{_lambda_.1} parent=1 // loop_body
      %s42 = ssub.s32 %s37, 1
      %s43 = ssub.s32 %s37, 2
      %s44 = sadd.s32 %s37, 1
      %s46 = sadd.s32 %s45, 1
      %p49 = scmp.eq.s32.totalorder %s37, 1
      %p50 = scmp.ne.s32.totalorder %s45, %s47
      %p51 = scmp.eq.s32.totalorder %s37, 0
      %p52 = por %p50, %p51
      %p53 = scmp.ne.s32.totalorder %s45, %s47
      %p54 = scmp.eq.s32.totalorder %s42, 1
      %p55 = por %p53, %p54
      %p56 = scmp.ne.s32.totalorder %s47, %s48
      %p57 = scmp.eq.s32.totalorder %s42, 0
      %p58 = por %p56, %p57
      %p59 = scmp.ne.s32.totalorder %s47, %s48
      %p60 = scmp.eq.s32.totalorder %s43, 1
      %p61 = por %p59, %p60
      %p63 = scmp.ne.s32.totalorder %s48, %s62
      %p64 = scmp.eq.s32.totalorder %s43, 0
      %p65 = por %p63, %p64
      %s67 = sadd.s32 %s66, 1
      %p70 = scmp.eq.s32.totalorder %s37, 1
      %p71 = scmp.ne.s32.totalorder %s66, %s68
      %p72 = scmp.eq.s32.totalorder %s37, 0
      %p73 = por %p71, %p72
      %p74 = scmp.ne.s32.totalorder %s66, %s68
      %p75 = scmp.eq.s32.totalorder %s42, 1
      %p76 = por %p74, %p75
      %p77 = scmp.ne.s32.totalorder %s68, %s69
      %p78 = scmp.eq.s32.totalorder %s42, 0
      %p79 = por %p77, %p78
      %p80 = scmp.ne.s32.totalorder %s68, %s69
      %p81 = scmp.eq.s32.totalorder %s43, 1
      %p82 = por %p80, %p81
      %p84 = scmp.ne.s32.totalorder %s69, %s83
      %p85 = scmp.eq.s32.totalorder %s43, 0
      %p86 = por %p84, %p85
      %s88 = sadd.s32 %s87, 1
      %p91 = scmp.eq.s32.totalorder %s37, 1
      %p92 = scmp.ne.s32.totalorder %s87, %s89
      %p93 = scmp.eq.s32.totalorder %s37, 0
      %p94 = por %p92, %p93
      %p95 = scmp.ne.s32.totalorder %s87, %s89
      %p96 = scmp.eq.s32.totalorder %s42, 1
      %p97 = por %p95, %p96
      %p98 = scmp.ne.s32.totalorder %s89, %s90
      %p99 = scmp.eq.s32.totalorder %s42, 0
      %p100 = por %p98, %p99
      %p101 = scmp.ne.s32.totalorder %s89, %s90
      %p102 = scmp.eq.s32.totalorder %s43, 1
      %p103 = por %p101, %p102
      %p105 = scmp.ne.s32.totalorder %s90, %s104
      %p106 = scmp.eq.s32.totalorder %s43, 0
      %p107 = por %p105, %p106
      %s109 = sadd.s32 %s108, 1
      %p112 = scmp.eq.s32.totalorder %s37, 1
      %p113 = scmp.ne.s32.totalorder %s108, %s110
      %p114 = scmp.eq.s32.totalorder %s37, 0
      %p115 = por %p113, %p114
      %p116 = scmp.ne.s32.totalorder %s108, %s110
      %p117 = scmp.eq.s32.totalorder %s42, 1
      %p118 = por %p116, %p117
      %p119 = scmp.ne.s32.totalorder %s110, %s111
      %p120 = scmp.eq.s32.totalorder %s42, 0
      %p121 = por %p119, %p120
      %p122 = scmp.ne.s32.totalorder %s110, %s111
      %p123 = scmp.eq.s32.totalorder %s43, 1
      %p124 = por %p122, %p123
      %p126 = scmp.ne.s32.totalorder %s111, %s125
      %p127 = scmp.eq.s32.totalorder %s43, 0
      %p128 = por %p126, %p127
      %s130 = sadd.s32 %s129, 1
      %p133 = scmp.eq.s32.totalorder %s37, 1
      %p134 = scmp.ne.s32.totalorder %s129, %s131
      %p135 = scmp.eq.s32.totalorder %s37, 0
      %p136 = por %p134, %p135
      %p137 = scmp.ne.s32.totalorder %s129, %s131
      %p138 = scmp.eq.s32.totalorder %s42, 1
      %p139 = por %p137, %p138
      %p140 = scmp.ne.s32.totalorder %s131, %s132
      %p141 = scmp.eq.s32.totalorder %s42, 0
      %p142 = por %p140, %p141
      %p143 = scmp.ne.s32.totalorder %s131, %s132
      %p144 = scmp.eq.s32.totalorder %s43, 1
      %p145 = por %p143, %p144
      %p147 = scmp.ne.s32.totalorder %s132, %s146
      %p148 = scmp.eq.s32.totalorder %s43, 0
      %p149 = por %p147, %p148
      %s151 = sadd.s32 %s150, 1
      %p154 = scmp.eq.s32.totalorder %s37, 1
      %p155 = scmp.ne.s32.totalorder %s150, %s152
      %p156 = scmp.eq.s32.totalorder %s37, 0
      %p157 = por %p155, %p156
      %p158 = scmp.ne.s32.totalorder %s150, %s152
      %p159 = scmp.eq.s32.totalorder %s42, 1
      %p160 = por %p158, %p159
      %p161 = scmp.ne.s32.totalorder %s152, %s153
      %p162 = scmp.eq.s32.totalorder %s42, 0
      %p163 = por %p161, %p162
      %p164 = scmp.ne.s32.totalorder %s152, %s153
      %p165 = scmp.eq.s32.totalorder %s43, 1
      %p166 = por %p164, %p165
      %p168 = scmp.ne.s32.totalorder %s153, %s167
      %p169 = scmp.eq.s32.totalorder %s43, 0
      %p170 = por %p168, %p169
      %s171 = ssub.s32 %s37, %s44
      %p172 = scmp.eq.s32.totalorder %s171, 0
      %s174 = sadd.s32 %s173, 1
      %s175 = scalar_select %p172, %s173, %s174
      %p178 = pneg %p172
      %p179 = scmp.eq.s32.totalorder %s37, 1
      %p180 = por %p178, %p179
      %p181 = scmp.ne.s32.totalorder %s173, %s176
      %p182 = scmp.eq.s32.totalorder %s37, 0
      %p183 = por %p181, %p182
      %p184 = scmp.ne.s32.totalorder %s173, %s176
      %p185 = scmp.eq.s32.totalorder %s42, 1
      %p186 = por %p184, %p185
      %p187 = scmp.ne.s32.totalorder %s176, %s177
      %p188 = scmp.eq.s32.totalorder %s42, 0
      %p189 = por %p187, %p188
      %p190 = scmp.ne.s32.totalorder %s176, %s177
      %p191 = scmp.eq.s32.totalorder %s43, 1
      %p192 = por %p190, %p191
      %p194 = scmp.ne.s32.totalorder %s177, %s193
      %p195 = scmp.eq.s32.totalorder %s43, 0
      %p196 = por %p194, %p195
      %s197 = ssub.s32 %s37, %s44
      %p198 = scmp.eq.s32.totalorder %s197, 0
      %s200 = sadd.s32 %s199, 1
      %s201 = scalar_select %p198, %s199, %s200
      %p204 = pneg %p198
      %p205 = scmp.eq.s32.totalorder %s37, 1
      %p206 = por %p204, %p205
      %p207 = scmp.ne.s32.totalorder %s199, %s202
      %p208 = scmp.eq.s32.totalorder %s37, 0
      %p209 = por %p207, %p208
      %p210 = scmp.ne.s32.totalorder %s199, %s202
      %p211 = scmp.eq.s32.totalorder %s42, 1
      %p212 = por %p210, %p211
      %p213 = scmp.ne.s32.totalorder %s202, %s203
      %p214 = scmp.eq.s32.totalorder %s42, 0
      %p215 = por %p213, %p214
      %p216 = scmp.ne.s32.totalorder %s202, %s203
      %p217 = scmp.eq.s32.totalorder %s43, 1
      %p218 = por %p216, %p217
      %p220 = scmp.ne.s32.totalorder %s203, %s219
      %p221 = scmp.eq.s32.totalorder %s43, 0
      %p222 = por %p220, %p221
      %s223 = ssub.s32 %s37, %s44
      %p224 = scmp.eq.s32.totalorder %s223, 0
      %s226 = sadd.s32 %s225, 1
      %s227 = scalar_select %p224, %s225, %s226
      %p230 = pneg %p224
      %p231 = scmp.eq.s32.totalorder %s37, 1
      %p232 = por %p230, %p231
      %p233 = scmp.ne.s32.totalorder %s225, %s228
      %p234 = scmp.eq.s32.totalorder %s37, 0
      %p235 = por %p233, %p234
      %p236 = scmp.ne.s32.totalorder %s225, %s228
      %p237 = scmp.eq.s32.totalorder %s42, 1
      %p238 = por %p236, %p237
      %p239 = scmp.ne.s32.totalorder %s228, %s229
      %p240 = scmp.eq.s32.totalorder %s42, 0
      %p241 = por %p239, %p240
      %p242 = scmp.ne.s32.totalorder %s228, %s229
      %p243 = scmp.eq.s32.totalorder %s43, 1
      %p244 = por %p242, %p243
      %p246 = scmp.ne.s32.totalorder %s229, %s245
      %p247 = scmp.eq.s32.totalorder %s43, 0
      %p248 = por %p246, %p247
      %s249 = ssub.s32 %s37, %s44
      %p250 = scmp.eq.s32.totalorder %s249, 0
      %s252 = sadd.s32 %s251, 1
      %s253 = scalar_select %p250, %s251, %s252
      %p256 = pneg %p250
      %p257 = scmp.eq.s32.totalorder %s37, 1
      %p258 = por %p256, %p257
      %p259 = scmp.ne.s32.totalorder %s251, %s254
      %p260 = scmp.eq.s32.totalorder %s37, 0
      %p261 = por %p259, %p260
      %p262 = scmp.ne.s32.totalorder %s251, %s254
      %p263 = scmp.eq.s32.totalorder %s42, 1
      %p264 = por %p262, %p263
      %p265 = scmp.ne.s32.totalorder %s254, %s255
      %p266 = scmp.eq.s32.totalorder %s42, 0
      %p267 = por %p265, %p266
      %p268 = scmp.ne.s32.totalorder %s254, %s255
      %p269 = scmp.eq.s32.totalorder %s43, 1
      %p270 = por %p268, %p269
      %p272 = scmp.ne.s32.totalorder %s255, %s271
      %p273 = scmp.eq.s32.totalorder %s43, 0
      %p274 = por %p272, %p273
      %s275 = ssub.s32 %s37, %s44
      %p276 = scmp.eq.s32.totalorder %s275, 0
      %s278 = sadd.s32 %s277, 1
      %s279 = scalar_select %p276, %s277, %s278
      %p282 = pneg %p276
      %p283 = scmp.eq.s32.totalorder %s37, 1
      %p284 = por %p282, %p283
      %p285 = scmp.ne.s32.totalorder %s277, %s280
      %p286 = scmp.eq.s32.totalorder %s37, 0
      %p287 = por %p285, %p286
      %p288 = scmp.ne.s32.totalorder %s277, %s280
      %p289 = scmp.eq.s32.totalorder %s42, 1
      %p290 = por %p288, %p289
      %p291 = scmp.ne.s32.totalorder %s280, %s281
      %p292 = scmp.eq.s32.totalorder %s42, 0
      %p293 = por %p291, %p292
      %p294 = scmp.ne.s32.totalorder %s280, %s281
      %p295 = scmp.eq.s32.totalorder %s43, 1
      %p296 = por %p294, %p295
      %p298 = scmp.ne.s32.totalorder %s281, %s297
      %p299 = scmp.eq.s32.totalorder %s43, 0
      %p300 = por %p298, %p299
      %s301 = ssub.s32 %s37, %s44
      %p302 = scmp.eq.s32.totalorder %s301, 0
      %s304 = sadd.s32 %s303, 1
      %s305 = scalar_select %p302, %s303, %s304
      %p308 = pneg %p302
      %p309 = scmp.eq.s32.totalorder %s37, 1
      %p310 = por %p308, %p309
      %p311 = scmp.ne.s32.totalorder %s303, %s306
      %p312 = scmp.eq.s32.totalorder %s37, 0
      %p313 = por %p311, %p312
      %p314 = scmp.ne.s32.totalorder %s303, %s306
      %p315 = scmp.eq.s32.totalorder %s42, 1
      %p316 = por %p314, %p315
      %p317 = scmp.ne.s32.totalorder %s306, %s307
      %p318 = scmp.eq.s32.totalorder %s42, 0
      %p319 = por %p317, %p318
      %p320 = scmp.ne.s32.totalorder %s306, %s307
      %p321 = scmp.eq.s32.totalorder %s43, 1
      %p322 = por %p320, %p321
      %p324 = scmp.ne.s32.totalorder %s307, %s323
      %p325 = scmp.eq.s32.totalorder %s43, 0
      %p326 = por %p324, %p325
      %s327 = ssub.s32 %s37, %s44
      %p328 = scmp.eq.s32.totalorder %s327, 0
      %s330 = sadd.s32 %s329, 1
      %s331 = scalar_select %p328, %s329, %s330
      %p334 = pneg %p328
      %p335 = scmp.eq.s32.totalorder %s37, 1
      %p336 = por %p334, %p335
      %p337 = scmp.ne.s32.totalorder %s329, %s332
      %p338 = scmp.eq.s32.totalorder %s37, 0
      %p339 = por %p337, %p338
      %p340 = scmp.ne.s32.totalorder %s329, %s332
      %p341 = scmp.eq.s32.totalorder %s42, 1
      %p342 = por %p340, %p341
      %p343 = scmp.ne.s32.totalorder %s332, %s333
      %p344 = scmp.eq.s32.totalorder %s42, 0
      %p345 = por %p343, %p344
      %p346 = scmp.ne.s32.totalorder %s332, %s333
      %p347 = scmp.eq.s32.totalorder %s43, 1
      %p348 = por %p346, %p347
      %p350 = scmp.ne.s32.totalorder %s333, %s349
      %p351 = scmp.eq.s32.totalorder %s43, 0
      %p352 = por %p350, %p351
      %s353 = ssub.s32 %s37, %s44
      %p354 = scmp.eq.s32.totalorder %s353, 0
      %s356 = sadd.s32 %s355, 1
      %s357 = scalar_select %p354, %s355, %s356
      %p360 = pneg %p354
      %p361 = scmp.eq.s32.totalorder %s37, 1
      %p362 = por %p360, %p361
      %p363 = scmp.ne.s32.totalorder %s355, %s358
      %p364 = scmp.eq.s32.totalorder %s37, 0
      %p365 = por %p363, %p364
      %p366 = scmp.ne.s32.totalorder %s355, %s358
      %p367 = scmp.eq.s32.totalorder %s42, 1
      %p368 = por %p366, %p367
      %p369 = scmp.ne.s32.totalorder %s358, %s359
      %p370 = scmp.eq.s32.totalorder %s42, 0
      %p371 = por %p369, %p370
      %p372 = scmp.ne.s32.totalorder %s358, %s359
      %p373 = scmp.eq.s32.totalorder %s43, 1
      %p374 = por %p372, %p373
      %p376 = scmp.ne.s32.totalorder %s359, %s375
      %p377 = scmp.eq.s32.totalorder %s43, 0
      %p378 = por %p376, %p377
      %s379 = ssub.s32 %s37, %s44
      %p380 = scmp.eq.s32.totalorder %s379, 0
      %s382 = sadd.s32 %s381, 1
      %s383 = scalar_select %p380, %s381, %s382
      %p386 = pneg %p380
      %p387 = scmp.eq.s32.totalorder %s37, 1
      %p388 = por %p386, %p387
      %p389 = scmp.ne.s32.totalorder %s381, %s384
      %p390 = scmp.eq.s32.totalorder %s37, 0
      %p391 = por %p389, %p390
      %p392 = scmp.ne.s32.totalorder %s381, %s384
      %p393 = scmp.eq.s32.totalorder %s42, 1
      %p394 = por %p392, %p393
      %p395 = scmp.ne.s32.totalorder %s384, %s385
      %p396 = scmp.eq.s32.totalorder %s42, 0
      %p397 = por %p395, %p396
      %p398 = scmp.ne.s32.totalorder %s384, %s385
      %p399 = scmp.eq.s32.totalorder %s43, 1
      %p400 = por %p398, %p399
      %p402 = scmp.ne.s32.totalorder %s385, %s401
      %p403 = scmp.eq.s32.totalorder %s43, 0
      %p404 = por %p402, %p403
      %s405 = ssub.s32 %s37, %s44
      %p406 = scmp.eq.s32.totalorder %s405, 0
      %s408 = sadd.s32 %s407, 1
      %s409 = scalar_select %p406, %s407, %s408
      %p412 = pneg %p406
      %p413 = scmp.eq.s32.totalorder %s37, 1
      %p414 = por %p412, %p413
      %p415 = scmp.ne.s32.totalorder %s407, %s410
      %p416 = scmp.eq.s32.totalorder %s37, 0
      %p417 = por %p415, %p416
      %p418 = scmp.ne.s32.totalorder %s407, %s410
      %p419 = scmp.eq.s32.totalorder %s42, 1
      %p420 = por %p418, %p419
      %p421 = scmp.ne.s32.totalorder %s410, %s411
      %p422 = scmp.eq.s32.totalorder %s42, 0
      %p423 = por %p421, %p422
      %p424 = scmp.ne.s32.totalorder %s410, %s411
      %p425 = scmp.eq.s32.totalorder %s43, 1
      %p426 = por %p424, %p425
      %p428 = scmp.ne.s32.totalorder %s411, %s427
      %p429 = scmp.eq.s32.totalorder %s43, 0
      %p430 = por %p428, %p429
      %s431 = ssub.s32 %s37, %s44
      %p432 = scmp.eq.s32.totalorder %s431, 0
      %s434 = sadd.s32 %s433, 1
      %s435 = scalar_select %p432, %s433, %s434
      %p438 = pneg %p432
      %p439 = scmp.eq.s32.totalorder %s37, 1
      %p440 = por %p438, %p439
      %p441 = scmp.ne.s32.totalorder %s433, %s436
      %p442 = scmp.eq.s32.totalorder %s37, 0
      %p443 = por %p441, %p442
      %p444 = scmp.ne.s32.totalorder %s433, %s436
      %p445 = scmp.eq.s32.totalorder %s42, 1
      %p446 = por %p444, %p445
      %p447 = scmp.ne.s32.totalorder %s436, %s437
      %p448 = scmp.eq.s32.totalorder %s42, 0
      %p449 = por %p447, %p448
      %p450 = scmp.ne.s32.totalorder %s436, %s437
      %p451 = scmp.eq.s32.totalorder %s43, 1
      %p452 = por %p450, %p451
      %p454 = scmp.ne.s32.totalorder %s437, %s453
      %p455 = scmp.eq.s32.totalorder %s43, 0
      %p456 = por %p454, %p455
      %s457 = ssub.s32 %s37, %s44
      %p458 = scmp.eq.s32.totalorder %s457, 0
      %s460 = sadd.s32 %s459, 1
      %s461 = scalar_select %p458, %s459, %s460
      %p464 = pneg %p458
      %p465 = scmp.eq.s32.totalorder %s37, 1
      %p466 = por %p464, %p465
      %p467 = scmp.ne.s32.totalorder %s459, %s462
      %p468 = scmp.eq.s32.totalorder %s37, 0
      %p469 = por %p467, %p468
      %p470 = scmp.ne.s32.totalorder %s459, %s462
      %p471 = scmp.eq.s32.totalorder %s42, 1
      %p472 = por %p470, %p471
      %p473 = scmp.ne.s32.totalorder %s462, %s463
      %p474 = scmp.eq.s32.totalorder %s42, 0
      %p475 = por %p473, %p474
      %p476 = scmp.ne.s32.totalorder %s462, %s463
      %p477 = scmp.eq.s32.totalorder %s43, 1
      %p478 = por %p476, %p477
      %p480 = scmp.ne.s32.totalorder %s463, %s479
      %p481 = scmp.eq.s32.totalorder %s43, 0
      %p482 = por %p480, %p481
      %s483 = ssub.s32 %s37, %s44
      %p484 = scmp.eq.s32.totalorder %s483, 0
      %s486 = sadd.s32 %s485, 1
      %s487 = scalar_select %p484, %s485, %s486
      %p490 = pneg %p484
      %p491 = scmp.eq.s32.totalorder %s37, 1
      %p492 = por %p490, %p491
      %p493 = scmp.ne.s32.totalorder %s485, %s488
      %p494 = scmp.eq.s32.totalorder %s37, 0
      %p495 = por %p493, %p494
      %p496 = scmp.ne.s32.totalorder %s485, %s488
      %p497 = scmp.eq.s32.totalorder %s42, 1
      %p498 = por %p496, %p497
      %p499 = scmp.ne.s32.totalorder %s488, %s489
      %p500 = scmp.eq.s32.totalorder %s42, 0
      %p501 = por %p499, %p500
      %p502 = scmp.ne.s32.totalorder %s488, %s489
      %p503 = scmp.eq.s32.totalorder %s43, 1
      %p504 = por %p502, %p503
      %p506 = scmp.ne.s32.totalorder %s489, %s505
      %p507 = scmp.eq.s32.totalorder %s43, 0
      %p508 = por %p506, %p507
      %s509 = ssub.s32 %s37, %s44
      %p510 = scmp.eq.s32.totalorder %s509, 0
      %s512 = sadd.s32 %s511, 1
      %s513 = scalar_select %p510, %s511, %s512
      %p516 = pneg %p510
      %p517 = scmp.eq.s32.totalorder %s37, 1
      %p518 = por %p516, %p517
      %p519 = scmp.ne.s32.totalorder %s511, %s514
      %p520 = scmp.eq.s32.totalorder %s37, 0
      %p521 = por %p519, %p520
      %p522 = scmp.ne.s32.totalorder %s511, %s514
      %p523 = scmp.eq.s32.totalorder %s42, 1
      %p524 = por %p522, %p523
      %p525 = scmp.ne.s32.totalorder %s514, %s515
      %p526 = scmp.eq.s32.totalorder %s42, 0
      %p527 = por %p525, %p526
      %p528 = scmp.ne.s32.totalorder %s514, %s515
      %p529 = scmp.eq.s32.totalorder %s43, 1
      %p530 = por %p528, %p529
      %p532 = scmp.ne.s32.totalorder %s515, %s531
      %p533 = scmp.eq.s32.totalorder %s43, 0
      %p534 = por %p532, %p533
      %s535 = ssub.s32 %s37, %s44
      %p536 = scmp.eq.s32.totalorder %s535, 0
      %s538 = sadd.s32 %s537, 1
      %s539 = scalar_select %p536, %s537, %s538
      %p542 = pneg %p536
      %p543 = scmp.eq.s32.totalorder %s37, 1
      %p544 = por %p542, %p543
      %p545 = scmp.ne.s32.totalorder %s537, %s540
      %p546 = scmp.eq.s32.totalorder %s37, 0
      %p547 = por %p545, %p546
      %p548 = scmp.ne.s32.totalorder %s537, %s540
      %p549 = scmp.eq.s32.totalorder %s42, 1
      %p550 = por %p548, %p549
      %p551 = scmp.ne.s32.totalorder %s540, %s541
      %p552 = scmp.eq.s32.totalorder %s42, 0
      %p553 = por %p551, %p552
      %p554 = scmp.ne.s32.totalorder %s540, %s541
      %p555 = scmp.eq.s32.totalorder %s43, 1
      %p556 = por %p554, %p555
      %p558 = scmp.ne.s32.totalorder %s541, %s557
      %p559 = scmp.eq.s32.totalorder %s43, 0
      %p560 = por %p558, %p559
      %s561 = ssub.s32 %s37, %s44
      %p562 = scmp.eq.s32.totalorder %s561, 0
      %s564 = sadd.s32 %s563, 1
      %s565 = scalar_select %p562, %s563, %s564
      %p568 = pneg %p562
      %p569 = scmp.eq.s32.totalorder %s37, 1
      %p570 = por %p568, %p569
      %p571 = scmp.ne.s32.totalorder %s563, %s566
      %p572 = scmp.eq.s32.totalorder %s37, 0
      %p573 = por %p571, %p572
      %p574 = scmp.ne.s32.totalorder %s563, %s566
      %p575 = scmp.eq.s32.totalorder %s42, 1
      %p576 = por %p574, %p575
      %p577 = scmp.ne.s32.totalorder %s566, %s567
      %p578 = scmp.eq.s32.totalorder %s42, 0
      %p579 = por %p577, %p578
      %p580 = scmp.ne.s32.totalorder %s566, %s567
      %p581 = scmp.eq.s32.totalorder %s43, 1
      %p582 = por %p580, %p581
      %p584 = scmp.ne.s32.totalorder %s567, %s583
      %p585 = scmp.eq.s32.totalorder %s43, 0
      %p586 = por %p584, %p585
      %s587 = ssub.s32 %s37, %s44
      %p588 = scmp.eq.s32.totalorder %s587, 0
      %s590 = sadd.s32 %s589, 1
      %s591 = scalar_select %p588, %s589, %s590
      %p594 = pneg %p588
      %p595 = scmp.eq.s32.totalorder %s37, 1
      %p596 = por %p594, %p595
      %p597 = scmp.ne.s32.totalorder %s589, %s592
      %p598 = scmp.eq.s32.totalorder %s37, 0
      %p599 = por %p597, %p598
      %p600 = scmp.ne.s32.totalorder %s589, %s592
      %p601 = scmp.eq.s32.totalorder %s42, 1
      %p602 = por %p600, %p601
      %p603 = scmp.ne.s32.totalorder %s592, %s593
      %p604 = scmp.eq.s32.totalorder %s42, 0
      %p605 = por %p603, %p604
      %p606 = scmp.ne.s32.totalorder %s592, %s593
      %p607 = scmp.eq.s32.totalorder %s43, 1
      %p608 = por %p606, %p607
      %p610 = scmp.ne.s32.totalorder %s593, %s609
      %p611 = scmp.eq.s32.totalorder %s43, 0
      %p612 = por %p610, %p611
      %s613 = ssub.s32 %s37, %s44
      %p614 = scmp.eq.s32.totalorder %s613, 0
      %s616 = sadd.s32 %s615, 1
      %s617 = scalar_select %p614, %s615, %s616
      %p620 = pneg %p614
      %p621 = scmp.eq.s32.totalorder %s37, 1
      %p622 = por %p620, %p621
      %p623 = scmp.ne.s32.totalorder %s615, %s618
      %p624 = scmp.eq.s32.totalorder %s37, 0
      %p625 = por %p623, %p624
      %p626 = scmp.ne.s32.totalorder %s615, %s618
      %p627 = scmp.eq.s32.totalorder %s42, 1
      %p628 = por %p626, %p627
      %p629 = scmp.ne.s32.totalorder %s618, %s619
      %p630 = scmp.eq.s32.totalorder %s42, 0
      %p631 = por %p629, %p630
      %p632 = scmp.ne.s32.totalorder %s618, %s619
      %p633 = scmp.eq.s32.totalorder %s43, 1
      %p634 = por %p632, %p633
      %p636 = scmp.ne.s32.totalorder %s619, %s635
      %p637 = scmp.eq.s32.totalorder %s43, 0
      %p638 = por %p636, %p637
      %s639 = ssub.s32 %s37, %s44
      %p640 = scmp.eq.s32.totalorder %s639, 0
      %s642 = sadd.s32 %s641, 1
      %s643 = scalar_select %p640, %s641, %s642
      %p646 = pneg %p640
      %p647 = scmp.eq.s32.totalorder %s37, 1
      %p648 = por %p646, %p647
      %p649 = scmp.ne.s32.totalorder %s641, %s644
      %p650 = scmp.eq.s32.totalorder %s37, 0
      %p651 = por %p649, %p650
      %p652 = scmp.ne.s32.totalorder %s641, %s644
      %p653 = scmp.eq.s32.totalorder %s42, 1
      %p654 = por %p652, %p653
      %p655 = scmp.ne.s32.totalorder %s644, %s645
      %p656 = scmp.eq.s32.totalorder %s42, 0
      %p657 = por %p655, %p656
      %p658 = scmp.ne.s32.totalorder %s644, %s645
      %p659 = scmp.eq.s32.totalorder %s43, 1
      %p660 = por %p658, %p659
      %p662 = scmp.ne.s32.totalorder %s645, %s661
      %p663 = scmp.eq.s32.totalorder %s43, 0
      %p664 = por %p662, %p663
      %s665 = ssub.s32 %s37, %s44
      %p666 = scmp.eq.s32.totalorder %s665, 0
      %s668 = sadd.s32 %s667, 1
      %s669 = scalar_select %p666, %s667, %s668
      %p672 = pneg %p666
      %p673 = scmp.eq.s32.totalorder %s37, 1
      %p674 = por %p672, %p673
      %p675 = scmp.ne.s32.totalorder %s667, %s670
      %p676 = scmp.eq.s32.totalorder %s37, 0
      %p677 = por %p675, %p676
      %p678 = scmp.ne.s32.totalorder %s667, %s670
      %p679 = scmp.eq.s32.totalorder %s42, 1
      %p680 = por %p678, %p679
      %p681 = scmp.ne.s32.totalorder %s670, %s671
      %p682 = scmp.eq.s32.totalorder %s42, 0
      %p683 = por %p681, %p682
      %p684 = scmp.ne.s32.totalorder %s670, %s671
      %p685 = scmp.eq.s32.totalorder %s43, 1
      %p686 = por %p684, %p685
      %p688 = scmp.ne.s32.totalorder %s671, %s687
      %p689 = scmp.eq.s32.totalorder %s43, 0
      %p690 = por %p688, %p689
      %p691 = scmp.le.s32.totalorder 1, %s37
      %p692 = scmp.lt.s32.totalorder %s37, 3
      %p693 = pnand %p691, %p692
      %p694 = pneg %p693
      // Predicated region
      $region9: #{_lambda_.1} parent=5 // pred_check
        _
      $region10: #{_lambda_.1} parent=5 // pred_check_branch
        %696 = sbr.rel (%p693) target = $region12
      $region11: #{_lambda_.1} parent=5 // pred_region
        %s697 = ssub.s32 %s37, 1
        // Predicated region
        $region13: #{_lambda_.1} parent=11 // pred_check
          %p698 = pneg %p58
        $region14: #{_lambda_.1} parent=11 // pred_check_branch
          %700 = sbr.rel (%p698) target = $region16
        $region15: #{_lambda_.1} parent=11 // pred_region
          %s702 = ssub.s32 16, 16
          %703 = vsyncadd [#allocation4], %s702
          %s705 = sshll.u32 %s0, 4
          %s706 = int_to_ptr.vmem [resolvable:$true] %s705
          %708 = dma.vmem_to_smem %s706, 16, [#allocation2], [#allocation4]
        $region16: #{_lambda_.1} parent=11 // pred_fallthru
          _
        // Predicated region
        $region17: #{_lambda_.1} parent=11 // pred_check
          %p709 = pneg %p79
        $region18: #{_lambda_.1} parent=11 // pred_check_branch
          %711 = sbr.rel (%p709) target = $region20
        $region19: #{_lambda_.1} parent=11 // pred_region
          %s713 = ssub.s32 16, 16
          %714 = vsyncadd [#allocation6], %s713
          %s716 = sshll.u32 %s1, 4
          %s717 = int_to_ptr.vmem [resolvable:$true] %s716
          %719 = dma.vmem_to_smem %s717, 16, [#allocation5], [#allocation6]
        $region20: #{_lambda_.1} parent=11 // pred_fallthru
          _
        // Predicated region
        $region21: #{_lambda_.1} parent=11 // pred_check
          %p720 = pneg %p100
        $region22: #{_lambda_.1} parent=11 // pred_check_branch
          %722 = sbr.rel (%p720) target = $region24
        $region23: #{_lambda_.1} parent=11 // pred_region
          %s724 = ssub.s32 16, 16
          %725 = vsyncadd [#allocation6], %s724
          %s727 = sshll.u32 %s2, 4
          %s728 = int_to_ptr.vmem [resolvable:$true] %s727
          %730 = dma.vmem_to_smem %s728, 16, [#allocation7], [#allocation6]
        $region24: #{_lambda_.1} parent=11 // pred_fallthru
          _
        // Predicated region
        $region25: #{_lambda_.1} parent=11 // pred_check
          %p731 = pneg %p121
        $region26: #{_lambda_.1} parent=11 // pred_check_branch
          %733 = sbr.rel (%p731) target = $region28
        $region27: #{_lambda_.1} parent=11 // pred_region
          _
        $region28: #{_lambda_.1} parent=11 // pred_fallthru
          _
        // Predicated region
        $region29: #{_lambda_.1} parent=11 // pred_check
          %p734 = pneg %p142
        $region30: #{_lambda_.1} parent=11 // pred_check_branch
          %736 = sbr.rel (%p734) target = $region32
        $region31: #{_lambda_.1} parent=11 // pred_region
          _
        $region32: #{_lambda_.1} parent=11 // pred_fallthru
          _
        // Predicated region
        $region33: #{_lambda_.1} parent=11 // pred_check
          %p737 = pneg %p163
        $region34: #{_lambda_.1} parent=11 // pred_check_branch
          %739 = sbr.rel (%p737) target = $region36
        $region35: #{_lambda_.1} parent=11 // pred_region
          _
        $region36: #{_lambda_.1} parent=11 // pred_fallthru
          _
      $region12: #{_lambda_.1} parent=5 // pred_fallthru
        _
      %p740 = scmp.lt.s32.totalorder %s37, 2
      // Predicated region
      $region37: #{_lambda_.1} parent=5 // pred_check
        %p741 = pneg %p740
      $region38: #{_lambda_.1} parent=5 // pred_check_branch
        %743 = sbr.rel (%p741) target = $region40
      $region39: #{_lambda_.1} parent=5 // pred_region
        // Predicated region
        $region41: #{_lambda_.1} parent=39 // pred_check
          %p744 = pneg %p183
        $region42: #{_lambda_.1} parent=39 // pred_check_branch
          %746 = sbr.rel (%p744) target = $region44
        $region43: #{_lambda_.1} parent=39 // pred_region
          %s747 = smul.u32 2, %s37
          %p748 = scmp.lt.s32.totalorder %s747, 3
          %s749 = scalar_select %p748, %s747, 3
          %s750 = smul.addr %s749, 8
          %s751 = scalar_lea.vmem %s6, %s750
          %s752 = smul.u32 2, %s37
        $region44: #{_lambda_.1} parent=39 // pred_fallthru
          _
        // Predicated region
        $region45: #{_lambda_.1} parent=39 // pred_check
          %p753 = pneg %p209
        $region46: #{_lambda_.1} parent=39 // pred_check_branch
          %755 = sbr.rel (%p753) target = $region48
        $region47: #{_lambda_.1} parent=39 // pred_region
          %s756 = smul.u32 2, %s37
          %p757 = scmp.lt.s32.totalorder %s756, 3
          %s758 = scalar_select %p757, %s756, 3
          %s759 = smul.addr %s758, 8
          %s760 = scalar_lea.vmem %s7, %s759
          %s761 = smul.u32 2, %s37
        $region48: #{_lambda_.1} parent=39 // pred_fallthru
          _
        // Predicated region
        $region49: #{_lambda_.1} parent=39 // pred_check
          %p762 = pneg %p235
        $region50: #{_lambda_.1} parent=39 // pred_check_branch
          %764 = sbr.rel (%p762) target = $region52
        $region51: #{_lambda_.1} parent=39 // pred_region
          %p765 = scmp.lt.s32.totalorder %s37, 1
          %s766 = scalar_select %p765, %s37, 1
          %s767 = smul.addr %s766, 8
          %s768 = scalar_lea.vmem %s8, %s767
        $region52: #{_lambda_.1} parent=39 // pred_fallthru
          _
        // Predicated region
        $region53: #{_lambda_.1} parent=39 // pred_check
          %p769 = pneg %p261
        $region54: #{_lambda_.1} parent=39 // pred_check_branch
          %771 = sbr.rel (%p769) target = $region56
        $region55: #{_lambda_.1} parent=39 // pred_region
          %p772 = scmp.lt.s32.totalorder %s37, 1
          %s773 = scalar_select %p772, %s37, 1
          %s774 = smul.addr %s773, 8
          %s775 = scalar_lea.vmem %s9, %s774
        $region56: #{_lambda_.1} parent=39 // pred_fallthru
          _
        // Predicated region
        $region57: #{_lambda_.1} parent=39 // pred_check
          %p776 = pneg %p287
        $region58: #{_lambda_.1} parent=39 // pred_check_branch
          %778 = sbr.rel (%p776) target = $region60
        $region59: #{_lambda_.1} parent=39 // pred_region
          %s779 = sand.u32 %s277, 1
          %s780 = sand.u32 %s277, 1
          %s781 = smul.addr %s780, 128
          %s782 = scalar_lea.vmem [#allocation8], %s781
          %s783 = smul.u32 2, %s37
          %s784 = smul.addr %s783, 8
          %s785 = scalar_lea.vmem %s10, %s784
          // Predicated region
          $region61: #{_lambda_.1} parent=59 // pred_check
            _
          $region62: #{_lambda_.1} parent=59 // pred_check_branch
            %787 = sbr.rel (0) target = $region64
          $region63: #{_lambda_.1} parent=59 // pred_region
            // Predicated region
            $region65: #{_lambda_.1} parent=63 // pred_check
              _
            $region66: #{_lambda_.1} parent=63 // pred_check_branch
              %789 = sbr.rel (0) target = $region68
            $region67: #{_lambda_.1} parent=63 // pred_region
              // Predicated region
              $region80: #{_lambda_.1} parent=67 // pred_check
                _
              $region81: #{_lambda_.1} parent=67 // pred_check_branch
                %834 = sbr.rel (0) target = $region83
              $region82: #{_lambda_.1} parent=67 // pred_region
                loop: start=0, step=1, limit=1
                $region84: #{_lambda_.1} parent=82 // loop_pre_header
                  _
                $region85: #{_lambda_.1} parent=82 // loop_header
                  %s836 = sphi 0, %s840
                  %p837 = scmp.ge.s32.totalorder %s836, 1
                  %s841 = sphi %s785, %s785
                  %s842 = sphi %s782, %s782
                $region86: #{_lambda_.1} parent=82 // loop_header_branch
                  %839 = sbr.rel (%p837) target = $region90
                $region87: #{_lambda_.1} parent=82 // loop_body
                  %v843 = vld [vmem:[%s841] sm:$0xff]
                  %844 = vst [vmem:[%s842] sm:$0xff] %v843
                  %v845 = vld [vmem:[%s841 + $0x8] sm:$0xff]
                  %846 = vst [vmem:[%s842 + $0x8] sm:$0xff] %v845
                  %v847 = vld [vmem:[%s841 + $0x20] sm:$0xff]
                  %848 = vst [vmem:[%s842 + $0x10] sm:$0xff] %v847
                  %v849 = vld [vmem:[%s841 + $0x28] sm:$0xff]
                  %850 = vst [vmem:[%s842 + $0x18] sm:$0xff] %v849
                  %v851 = vld [vmem:[%s841 + $0x40] sm:$0xff]
                  %852 = vst [vmem:[%s842 + $0x20] sm:$0xff] %v851
                  %v853 = vld [vmem:[%s841 + $0x48] sm:$0xff]
                  %854 = vst [vmem:[%s842 + $0x28] sm:$0xff] %v853
                  %v855 = vld [vmem:[%s841 + $0x60] sm:$0xff]
                  %856 = vst [vmem:[%s842 + $0x30] sm:$0xff] %v855
                  %v857 = vld [vmem:[%s841 + $0x68] sm:$0xff]
                  %858 = vst [vmem:[%s842 + $0x38] sm:$0xff] %v857
                  %v859 = vld [vmem:[%s841 + $0x80] sm:$0xff]
                  %860 = vst [vmem:[%s842 + $0x40] sm:$0xff] %v859
                  %v861 = vld [vmem:[%s841 + $0x88] sm:$0xff]
                  %862 = vst [vmem:[%s842 + $0x48] sm:$0xff] %v861
                  %v863 = vld [vmem:[%s841 + $0xa0] sm:$0xff]
                  %864 = vst [vmem:[%s842 + $0x50] sm:$0xff] %v863
                  %v865 = vld [vmem:[%s841 + $0xa8] sm:$0xff]
                  %866 = vst [vmem:[%s842 + $0x58] sm:$0xff] %v865
                  %v867 = vld [vmem:[%s841 + $0xc0] sm:$0xff]
                  %868 = vst [vmem:[%s842 + $0x60] sm:$0xff] %v867
                  %v869 = vld [vmem:[%s841 + $0xc8] sm:$0xff]
                  %870 = vst [vmem:[%s842 + $0x68] sm:$0xff] %v869
                  %v871 = vld [vmem:[%s841 + $0xe0] sm:$0xff]
                  %872 = vst [vmem:[%s842 + $0x70] sm:$0xff] %v871
                  %v873 = vld [vmem:[%s841 + $0xe8] sm:$0xff]
                  %874 = vst [vmem:[%s842 + $0x78] sm:$0xff] %v873
                $region88: #{_lambda_.1} parent=82 // loop_footer
                  %s840 = sadd.s32 1, %s836
                $region89: #{_lambda_.1} parent=82 // loop_footer_branch
                  %835 = sbr.rel target = $region85
                $region90: #{_lambda_.1} parent=82 // loop_exit
                  _
              $region83: #{_lambda_.1} parent=67 // pred_fallthru
                _
              // Predicated region
              $region91: #{_lambda_.1} parent=67 // pred_check
                _
              $region92: #{_lambda_.1} parent=67 // pred_check_branch
                %876 = sbr.rel target = $region94
              $region93: #{_lambda_.1} parent=67 // pred_region
                _
              $region94: #{_lambda_.1} parent=67 // pred_fallthru
                _
            $region68: #{_lambda_.1} parent=63 // pred_fallthru
              _
            // Predicated region
            $region69: #{_lambda_.1} parent=63 // pred_check
              _
            $region70: #{_lambda_.1} parent=63 // pred_check_branch
              %791 = sbr.rel target = $region72
            $region71: #{_lambda_.1} parent=63 // pred_region
              loop: start=0, step=1, limit=1
              $region73: #{_lambda_.1} parent=71 // loop_pre_header
                _
              $region74: #{_lambda_.1} parent=71 // loop_header
                %s794 = sphi 0, %s798
                %p795 = scmp.ge.s32.totalorder %s794, 1
                %s799 = sphi %s785, %s785
                %s800 = sphi %s782, %s782
              $region75: #{_lambda_.1} parent=71 // loop_header_branch
                %797 = sbr.rel (%p795) target = $region79
              $region76: #{_lambda_.1} parent=71 // loop_body
                %v801 = vld [vmem:[%s799] sm:$0xff]
                %802 = vst [vmem:[%s800] sm:$0xff] %v801
                %v803 = vld [vmem:[%s799 + $0x8] sm:$0xff]
                %804 = vst [vmem:[%s800 + $0x8] sm:$0xff] %v803
                %v805 = vld [vmem:[%s799 + $0x20] sm:$0xff]
                %806 = vst [vmem:[%s800 + $0x10] sm:$0xff] %v805
                %v807 = vld [vmem:[%s799 + $0x28] sm:$0xff]
                %808 = vst [vmem:[%s800 + $0x18] sm:$0xff] %v807
                %v809 = vld [vmem:[%s799 + $0x40] sm:$0xff]
                %810 = vst [vmem:[%s800 + $0x20] sm:$0xff] %v809
                %v811 = vld [vmem:[%s799 + $0x48] sm:$0xff]
                %812 = vst [vmem:[%s800 + $0x28] sm:$0xff] %v811
                %v813 = vld [vmem:[%s799 + $0x60] sm:$0xff]
                %814 = vst [vmem:[%s800 + $0x30] sm:$0xff] %v813
                %v815 = vld [vmem:[%s799 + $0x68] sm:$0xff]
                %816 = vst [vmem:[%s800 + $0x38] sm:$0xff] %v815
                %v817 = vld [vmem:[%s799 + $0x80] sm:$0xff]
                %818 = vst [vmem:[%s800 + $0x40] sm:$0xff] %v817
                %v819 = vld [vmem:[%s799 + $0x88] sm:$0xff]
                %820 = vst [vmem:[%s800 + $0x48] sm:$0xff] %v819
                %v821 = vld [vmem:[%s799 + $0xa0] sm:$0xff]
                %822 = vst [vmem:[%s800 + $0x50] sm:$0xff] %v821
                %v823 = vld [vmem:[%s799 + $0xa8] sm:$0xff]
                %824 = vst [vmem:[%s800 + $0x58] sm:$0xff] %v823
                %v825 = vld [vmem:[%s799 + $0xc0] sm:$0xff]
                %826 = vst [vmem:[%s800 + $0x60] sm:$0xff] %v825
                %v827 = vld [vmem:[%s799 + $0xc8] sm:$0xff]
                %828 = vst [vmem:[%s800 + $0x68] sm:$0xff] %v827
                %v829 = vld [vmem:[%s799 + $0xe0] sm:$0xff]
                %830 = vst [vmem:[%s800 + $0x70] sm:$0xff] %v829
                %v831 = vld [vmem:[%s799 + $0xe8] sm:$0xff]
                %832 = vst [vmem:[%s800 + $0x78] sm:$0xff] %v831
              $region77: #{_lambda_.1} parent=71 // loop_footer
                %s798 = sadd.s32 1, %s794
              $region78: #{_lambda_.1} parent=71 // loop_footer_branch
                %793 = sbr.rel target = $region74
              $region79: #{_lambda_.1} parent=71 // loop_exit
                _
            $region72: #{_lambda_.1} parent=63 // pred_fallthru
              _
          $region64: #{_lambda_.1} parent=59 // pred_fallthru
            _
          %877 = vnop
        $region60: #{_lambda_.1} parent=39 // pred_fallthru
          _
        // Predicated region
        $region95: #{_lambda_.1} parent=39 // pred_check
          %p878 = pneg %p313
        $region96: #{_lambda_.1} parent=39 // pred_check_branch
          %880 = sbr.rel (%p878) target = $region98
        $region97: #{_lambda_.1} parent=39 // pred_region
          %s881 = sand.u32 %s303, 1
          %s882 = sand.u32 %s303, 1
          %s883 = smul.addr %s882, 128
          %s884 = scalar_lea.vmem [#allocation9], %s883
          %s885 = smul.u32 2, %s37
          %s886 = smul.addr %s885, 8
          %s887 = scalar_lea.vmem %s11, %s886
          // Predicated region
          $region99: #{_lambda_.1} parent=97 // pred_check
            _
          $region100: #{_lambda_.1} parent=97 // pred_check_branch
            %889 = sbr.rel (0) target = $region102
          $region101: #{_lambda_.1} parent=97 // pred_region
            // Predicated region
            $region103: #{_lambda_.1} parent=101 // pred_check
              _
            $region104: #{_lambda_.1} parent=101 // pred_check_branch
              %891 = sbr.rel (0) target = $region106
            $region105: #{_lambda_.1} parent=101 // pred_region
              // Predicated region
              $region118: #{_lambda_.1} parent=105 // pred_check
                _
              $region119: #{_lambda_.1} parent=105 // pred_check_branch
                %936 = sbr.rel (0) target = $region121
              $region120: #{_lambda_.1} parent=105 // pred_region
                loop: start=0, step=1, limit=1
                $region122: #{_lambda_.1} parent=120 // loop_pre_header
                  _
                $region123: #{_lambda_.1} parent=120 // loop_header
                  %s938 = sphi 0, %s942
                  %p939 = scmp.ge.s32.totalorder %s938, 1
                  %s943 = sphi %s887, %s887
                  %s944 = sphi %s884, %s884
                $region124: #{_lambda_.1} parent=120 // loop_header_branch
                  %941 = sbr.rel (%p939) target = $region128
                $region125: #{_lambda_.1} parent=120 // loop_body
                  %v945 = vld [vmem:[%s943] sm:$0xff]
                  %946 = vst [vmem:[%s944] sm:$0xff] %v945
                  %v947 = vld [vmem:[%s943 + $0x8] sm:$0xff]
                  %948 = vst [vmem:[%s944 + $0x8] sm:$0xff] %v947
                  %v949 = vld [vmem:[%s943 + $0x20] sm:$0xff]
                  %950 = vst [vmem:[%s944 + $0x10] sm:$0xff] %v949
                  %v951 = vld [vmem:[%s943 + $0x28] sm:$0xff]
                  %952 = vst [vmem:[%s944 + $0x18] sm:$0xff] %v951
                  %v953 = vld [vmem:[%s943 + $0x40] sm:$0xff]
                  %954 = vst [vmem:[%s944 + $0x20] sm:$0xff] %v953
                  %v955 = vld [vmem:[%s943 + $0x48] sm:$0xff]
                  %956 = vst [vmem:[%s944 + $0x28] sm:$0xff] %v955
                  %v957 = vld [vmem:[%s943 + $0x60] sm:$0xff]
                  %958 = vst [vmem:[%s944 + $0x30] sm:$0xff] %v957
                  %v959 = vld [vmem:[%s943 + $0x68] sm:$0xff]
                  %960 = vst [vmem:[%s944 + $0x38] sm:$0xff] %v959
                  %v961 = vld [vmem:[%s943 + $0x80] sm:$0xff]
                  %962 = vst [vmem:[%s944 + $0x40] sm:$0xff] %v961
                  %v963 = vld [vmem:[%s943 + $0x88] sm:$0xff]
                  %964 = vst [vmem:[%s944 + $0x48] sm:$0xff] %v963
                  %v965 = vld [vmem:[%s943 + $0xa0] sm:$0xff]
                  %966 = vst [vmem:[%s944 + $0x50] sm:$0xff] %v965
                  %v967 = vld [vmem:[%s943 + $0xa8] sm:$0xff]
                  %968 = vst [vmem:[%s944 + $0x58] sm:$0xff] %v967
                  %v969 = vld [vmem:[%s943 + $0xc0] sm:$0xff]
                  %970 = vst [vmem:[%s944 + $0x60] sm:$0xff] %v969
                  %v971 = vld [vmem:[%s943 + $0xc8] sm:$0xff]
                  %972 = vst [vmem:[%s944 + $0x68] sm:$0xff] %v971
                  %v973 = vld [vmem:[%s943 + $0xe0] sm:$0xff]
                  %974 = vst [vmem:[%s944 + $0x70] sm:$0xff] %v973
                  %v975 = vld [vmem:[%s943 + $0xe8] sm:$0xff]
                  %976 = vst [vmem:[%s944 + $0x78] sm:$0xff] %v975
                $region126: #{_lambda_.1} parent=120 // loop_footer
                  %s942 = sadd.s32 1, %s938
                $region127: #{_lambda_.1} parent=120 // loop_footer_branch
                  %937 = sbr.rel target = $region123
                $region128: #{_lambda_.1} parent=120 // loop_exit
                  _
              $region121: #{_lambda_.1} parent=105 // pred_fallthru
                _
              // Predicated region
              $region129: #{_lambda_.1} parent=105 // pred_check
                _
              $region130: #{_lambda_.1} parent=105 // pred_check_branch
                %978 = sbr.rel target = $region132
              $region131: #{_lambda_.1} parent=105 // pred_region
                _
              $region132: #{_lambda_.1} parent=105 // pred_fallthru
                _
            $region106: #{_lambda_.1} parent=101 // pred_fallthru
              _
            // Predicated region
            $region107: #{_lambda_.1} parent=101 // pred_check
              _
            $region108: #{_lambda_.1} parent=101 // pred_check_branch
              %893 = sbr.rel target = $region110
            $region109: #{_lambda_.1} parent=101 // pred_region
              loop: start=0, step=1, limit=1
              $region111: #{_lambda_.1} parent=109 // loop_pre_header
                _
              $region112: #{_lambda_.1} parent=109 // loop_header
                %s896 = sphi 0, %s900
                %p897 = scmp.ge.s32.totalorder %s896, 1
                %s901 = sphi %s887, %s887
                %s902 = sphi %s884, %s884
              $region113: #{_lambda_.1} parent=109 // loop_header_branch
                %899 = sbr.rel (%p897) target = $region117
              $region114: #{_lambda_.1} parent=109 // loop_body
                %v903 = vld [vmem:[%s901] sm:$0xff]
                %904 = vst [vmem:[%s902] sm:$0xff] %v903
                %v905 = vld [vmem:[%s901 + $0x8] sm:$0xff]
                %906 = vst [vmem:[%s902 + $0x8] sm:$0xff] %v905
                %v907 = vld [vmem:[%s901 + $0x20] sm:$0xff]
                %908 = vst [vmem:[%s902 + $0x10] sm:$0xff] %v907
                %v909 = vld [vmem:[%s901 + $0x28] sm:$0xff]
                %910 = vst [vmem:[%s902 + $0x18] sm:$0xff] %v909
                %v911 = vld [vmem:[%s901 + $0x40] sm:$0xff]
                %912 = vst [vmem:[%s902 + $0x20] sm:$0xff] %v911
                %v913 = vld [vmem:[%s901 + $0x48] sm:$0xff]
                %914 = vst [vmem:[%s902 + $0x28] sm:$0xff] %v913
                %v915 = vld [vmem:[%s901 + $0x60] sm:$0xff]
                %916 = vst [vmem:[%s902 + $0x30] sm:$0xff] %v915
                %v917 = vld [vmem:[%s901 + $0x68] sm:$0xff]
                %918 = vst [vmem:[%s902 + $0x38] sm:$0xff] %v917
                %v919 = vld [vmem:[%s901 + $0x80] sm:$0xff]
                %920 = vst [vmem:[%s902 + $0x40] sm:$0xff] %v919
                %v921 = vld [vmem:[%s901 + $0x88] sm:$0xff]
                %922 = vst [vmem:[%s902 + $0x48] sm:$0xff] %v921
                %v923 = vld [vmem:[%s901 + $0xa0] sm:$0xff]
                %924 = vst [vmem:[%s902 + $0x50] sm:$0xff] %v923
                %v925 = vld [vmem:[%s901 + $0xa8] sm:$0xff]
                %926 = vst [vmem:[%s902 + $0x58] sm:$0xff] %v925
                %v927 = vld [vmem:[%s901 + $0xc0] sm:$0xff]
                %928 = vst [vmem:[%s902 + $0x60] sm:$0xff] %v927
                %v929 = vld [vmem:[%s901 + $0xc8] sm:$0xff]
                %930 = vst [vmem:[%s902 + $0x68] sm:$0xff] %v929
                %v931 = vld [vmem:[%s901 + $0xe0] sm:$0xff]
                %932 = vst [vmem:[%s902 + $0x70] sm:$0xff] %v931
                %v933 = vld [vmem:[%s901 + $0xe8] sm:$0xff]
                %934 = vst [vmem:[%s902 + $0x78] sm:$0xff] %v933
              $region115: #{_lambda_.1} parent=109 // loop_footer
                %s900 = sadd.s32 1, %s896
              $region116: #{_lambda_.1} parent=109 // loop_footer_branch
                %895 = sbr.rel target = $region112
              $region117: #{_lambda_.1} parent=109 // loop_exit
                _
            $region110: #{_lambda_.1} parent=101 // pred_fallthru
              _
          $region102: #{_lambda_.1} parent=97 // pred_fallthru
            _
          %979 = vnop
        $region98: #{_lambda_.1} parent=39 // pred_fallthru
          _
        // Predicated region
        $region133: #{_lambda_.1} parent=39 // pred_check
          %p980 = pneg %p339
        $region134: #{_lambda_.1} parent=39 // pred_check_branch
          %982 = sbr.rel (%p980) target = $region136
        $region135: #{_lambda_.1} parent=39 // pred_region
          %s983 = sand.u32 %s329, 1
          %s984 = sand.u32 %s329, 1
          %s985 = smul.addr %s984, 128
          %s986 = scalar_lea.vmem [#allocation10], %s985
          %s987 = smul.u32 2, %s37
          %s988 = smul.addr %s987, 8
          %s989 = scalar_lea.vmem %s12, %s988
          // Predicated region
          $region137: #{_lambda_.1} parent=135 // pred_check
            _
          $region138: #{_lambda_.1} parent=135 // pred_check_branch
            %991 = sbr.rel (0) target = $region140
          $region139: #{_lambda_.1} parent=135 // pred_region
            // Predicated region
            $region141: #{_lambda_.1} parent=139 // pred_check
              _
            $region142: #{_lambda_.1} parent=139 // pred_check_branch
              %993 = sbr.rel (0) target = $region144
            $region143: #{_lambda_.1} parent=139 // pred_region
              // Predicated region
              $region156: #{_lambda_.1} parent=143 // pred_check
                _
              $region157: #{_lambda_.1} parent=143 // pred_check_branch
                %1038 = sbr.rel (0) target = $region159
              $region158: #{_lambda_.1} parent=143 // pred_region
                loop: start=0, step=1, limit=1
                $region160: #{_lambda_.1} parent=158 // loop_pre_header
                  _
                $region161: #{_lambda_.1} parent=158 // loop_header
                  %s1040 = sphi 0, %s1044
                  %p1041 = scmp.ge.s32.totalorder %s1040, 1
                  %s1045 = sphi %s989, %s989
                  %s1046 = sphi %s986, %s986
                $region162: #{_lambda_.1} parent=158 // loop_header_branch
                  %1043 = sbr.rel (%p1041) target = $region166
                $region163: #{_lambda_.1} parent=158 // loop_body
                  %v1047 = vld [vmem:[%s1045] sm:$0xff]
                  %1048 = vst [vmem:[%s1046] sm:$0xff] %v1047
                  %v1049 = vld [vmem:[%s1045 + $0x8] sm:$0xff]
                  %1050 = vst [vmem:[%s1046 + $0x8] sm:$0xff] %v1049
                  %v1051 = vld [vmem:[%s1045 + $0x20] sm:$0xff]
                  %1052 = vst [vmem:[%s1046 + $0x10] sm:$0xff] %v1051
                  %v1053 = vld [vmem:[%s1045 + $0x28] sm:$0xff]
                  %1054 = vst [vmem:[%s1046 + $0x18] sm:$0xff] %v1053
                  %v1055 = vld [vmem:[%s1045 + $0x40] sm:$0xff]
                  %1056 = vst [vmem:[%s1046 + $0x20] sm:$0xff] %v1055
                  %v1057 = vld [vmem:[%s1045 + $0x48] sm:$0xff]
                  %1058 = vst [vmem:[%s1046 + $0x28] sm:$0xff] %v1057
                  %v1059 = vld [vmem:[%s1045 + $0x60] sm:$0xff]
                  %1060 = vst [vmem:[%s1046 + $0x30] sm:$0xff] %v1059
                  %v1061 = vld [vmem:[%s1045 + $0x68] sm:$0xff]
                  %1062 = vst [vmem:[%s1046 + $0x38] sm:$0xff] %v1061
                  %v1063 = vld [vmem:[%s1045 + $0x80] sm:$0xff]
                  %1064 = vst [vmem:[%s1046 + $0x40] sm:$0xff] %v1063
                  %v1065 = vld [vmem:[%s1045 + $0x88] sm:$0xff]
                  %1066 = vst [vmem:[%s1046 + $0x48] sm:$0xff] %v1065
                  %v1067 = vld [vmem:[%s1045 + $0xa0] sm:$0xff]
                  %1068 = vst [vmem:[%s1046 + $0x50] sm:$0xff] %v1067
                  %v1069 = vld [vmem:[%s1045 + $0xa8] sm:$0xff]
                  %1070 = vst [vmem:[%s1046 + $0x58] sm:$0xff] %v1069
                  %v1071 = vld [vmem:[%s1045 + $0xc0] sm:$0xff]
                  %1072 = vst [vmem:[%s1046 + $0x60] sm:$0xff] %v1071
                  %v1073 = vld [vmem:[%s1045 + $0xc8] sm:$0xff]
                  %1074 = vst [vmem:[%s1046 + $0x68] sm:$0xff] %v1073
                  %v1075 = vld [vmem:[%s1045 + $0xe0] sm:$0xff]
                  %1076 = vst [vmem:[%s1046 + $0x70] sm:$0xff] %v1075
                  %v1077 = vld [vmem:[%s1045 + $0xe8] sm:$0xff]
                  %1078 = vst [vmem:[%s1046 + $0x78] sm:$0xff] %v1077
                $region164: #{_lambda_.1} parent=158 // loop_footer
                  %s1044 = sadd.s32 1, %s1040
                $region165: #{_lambda_.1} parent=158 // loop_footer_branch
                  %1039 = sbr.rel target = $region161
                $region166: #{_lambda_.1} parent=158 // loop_exit
                  _
              $region159: #{_lambda_.1} parent=143 // pred_fallthru
                _
              // Predicated region
              $region167: #{_lambda_.1} parent=143 // pred_check
                _
              $region168: #{_lambda_.1} parent=143 // pred_check_branch
                %1080 = sbr.rel target = $region170
              $region169: #{_lambda_.1} parent=143 // pred_region
                _
              $region170: #{_lambda_.1} parent=143 // pred_fallthru
                _
            $region144: #{_lambda_.1} parent=139 // pred_fallthru
              _
            // Predicated region
            $region145: #{_lambda_.1} parent=139 // pred_check
              _
            $region146: #{_lambda_.1} parent=139 // pred_check_branch
              %995 = sbr.rel target = $region148
            $region147: #{_lambda_.1} parent=139 // pred_region
              loop: start=0, step=1, limit=1
              $region149: #{_lambda_.1} parent=147 // loop_pre_header
                _
              $region150: #{_lambda_.1} parent=147 // loop_header
                %s998 = sphi 0, %s1002
                %p999 = scmp.ge.s32.totalorder %s998, 1
                %s1003 = sphi %s989, %s989
                %s1004 = sphi %s986, %s986
              $region151: #{_lambda_.1} parent=147 // loop_header_branch
                %1001 = sbr.rel (%p999) target = $region155
              $region152: #{_lambda_.1} parent=147 // loop_body
                %v1005 = vld [vmem:[%s1003] sm:$0xff]
                %1006 = vst [vmem:[%s1004] sm:$0xff] %v1005
                %v1007 = vld [vmem:[%s1003 + $0x8] sm:$0xff]
                %1008 = vst [vmem:[%s1004 + $0x8] sm:$0xff] %v1007
                %v1009 = vld [vmem:[%s1003 + $0x20] sm:$0xff]
                %1010 = vst [vmem:[%s1004 + $0x10] sm:$0xff] %v1009
                %v1011 = vld [vmem:[%s1003 + $0x28] sm:$0xff]
                %1012 = vst [vmem:[%s1004 + $0x18] sm:$0xff] %v1011
                %v1013 = vld [vmem:[%s1003 + $0x40] sm:$0xff]
                %1014 = vst [vmem:[%s1004 + $0x20] sm:$0xff] %v1013
                %v1015 = vld [vmem:[%s1003 + $0x48] sm:$0xff]
                %1016 = vst [vmem:[%s1004 + $0x28] sm:$0xff] %v1015
                %v1017 = vld [vmem:[%s1003 + $0x60] sm:$0xff]
                %1018 = vst [vmem:[%s1004 + $0x30] sm:$0xff] %v1017
                %v1019 = vld [vmem:[%s1003 + $0x68] sm:$0xff]
                %1020 = vst [vmem:[%s1004 + $0x38] sm:$0xff] %v1019
                %v1021 = vld [vmem:[%s1003 + $0x80] sm:$0xff]
                %1022 = vst [vmem:[%s1004 + $0x40] sm:$0xff] %v1021
                %v1023 = vld [vmem:[%s1003 + $0x88] sm:$0xff]
                %1024 = vst [vmem:[%s1004 + $0x48] sm:$0xff] %v1023
                %v1025 = vld [vmem:[%s1003 + $0xa0] sm:$0xff]
                %1026 = vst [vmem:[%s1004 + $0x50] sm:$0xff] %v1025
                %v1027 = vld [vmem:[%s1003 + $0xa8] sm:$0xff]
                %1028 = vst [vmem:[%s1004 + $0x58] sm:$0xff] %v1027
                %v1029 = vld [vmem:[%s1003 + $0xc0] sm:$0xff]
                %1030 = vst [vmem:[%s1004 + $0x60] sm:$0xff] %v1029
                %v1031 = vld [vmem:[%s1003 + $0xc8] sm:$0xff]
                %1032 = vst [vmem:[%s1004 + $0x68] sm:$0xff] %v1031
                %v1033 = vld [vmem:[%s1003 + $0xe0] sm:$0xff]
                %1034 = vst [vmem:[%s1004 + $0x70] sm:$0xff] %v1033
                %v1035 = vld [vmem:[%s1003 + $0xe8] sm:$0xff]
                %1036 = vst [vmem:[%s1004 + $0x78] sm:$0xff] %v1035
              $region153: #{_lambda_.1} parent=147 // loop_footer
                %s1002 = sadd.s32 1, %s998
              $region154: #{_lambda_.1} parent=147 // loop_footer_branch
                %997 = sbr.rel target = $region150
              $region155: #{_lambda_.1} parent=147 // loop_exit
                _
            $region148: #{_lambda_.1} parent=139 // pred_fallthru
              _
          $region140: #{_lambda_.1} parent=135 // pred_fallthru
            _
          %1081 = vnop
        $region136: #{_lambda_.1} parent=39 // pred_fallthru
          _
        // Predicated region
        $region171: #{_lambda_.1} parent=39 // pred_check
          %p1082 = pneg %p365
        $region172: #{_lambda_.1} parent=39 // pred_check_branch
          %1084 = sbr.rel (%p1082) target = $region174
        $region173: #{_lambda_.1} parent=39 // pred_region
          %s1085 = sand.u32 %s355, 1
          %s1086 = sand.u32 %s355, 1
          %s1087 = smul.addr %s1086, 128
          %s1088 = scalar_lea.vmem [#allocation11], %s1087
          %s1089 = smul.u32 2, %s37
          %s1090 = smul.addr %s1089, 8
          %s1091 = scalar_lea.vmem %s13, %s1090
          // Predicated region
          $region175: #{_lambda_.1} parent=173 // pred_check
            _
          $region176: #{_lambda_.1} parent=173 // pred_check_branch
            %1093 = sbr.rel (0) target = $region178
          $region177: #{_lambda_.1} parent=173 // pred_region
            // Predicated region
            $region179: #{_lambda_.1} parent=177 // pred_check
              _
            $region180: #{_lambda_.1} parent=177 // pred_check_branch
              %1095 = sbr.rel (0) target = $region182
            $region181: #{_lambda_.1} parent=177 // pred_region
              // Predicated region
              $region194: #{_lambda_.1} parent=181 // pred_check
                _
              $region195: #{_lambda_.1} parent=181 // pred_check_branch
                %1140 = sbr.rel (0) target = $region197
              $region196: #{_lambda_.1} parent=181 // pred_region
                loop: start=0, step=1, limit=1
                $region198: #{_lambda_.1} parent=196 // loop_pre_header
                  _
                $region199: #{_lambda_.1} parent=196 // loop_header
                  %s1142 = sphi 0, %s1146
                  %p1143 = scmp.ge.s32.totalorder %s1142, 1
                  %s1147 = sphi %s1091, %s1091
                  %s1148 = sphi %s1088, %s1088
                $region200: #{_lambda_.1} parent=196 // loop_header_branch
                  %1145 = sbr.rel (%p1143) target = $region204
                $region201: #{_lambda_.1} parent=196 // loop_body
                  %v1149 = vld [vmem:[%s1147] sm:$0xff]
                  %1150 = vst [vmem:[%s1148] sm:$0xff] %v1149
                  %v1151 = vld [vmem:[%s1147 + $0x8] sm:$0xff]
                  %1152 = vst [vmem:[%s1148 + $0x8] sm:$0xff] %v1151
                  %v1153 = vld [vmem:[%s1147 + $0x20] sm:$0xff]
                  %1154 = vst [vmem:[%s1148 + $0x10] sm:$0xff] %v1153
                  %v1155 = vld [vmem:[%s1147 + $0x28] sm:$0xff]
                  %1156 = vst [vmem:[%s1148 + $0x18] sm:$0xff] %v1155
                  %v1157 = vld [vmem:[%s1147 + $0x40] sm:$0xff]
                  %1158 = vst [vmem:[%s1148 + $0x20] sm:$0xff] %v1157
                  %v1159 = vld [vmem:[%s1147 + $0x48] sm:$0xff]
                  %1160 = vst [vmem:[%s1148 + $0x28] sm:$0xff] %v1159
                  %v1161 = vld [vmem:[%s1147 + $0x60] sm:$0xff]
                  %1162 = vst [vmem:[%s1148 + $0x30] sm:$0xff] %v1161
                  %v1163 = vld [vmem:[%s1147 + $0x68] sm:$0xff]
                  %1164 = vst [vmem:[%s1148 + $0x38] sm:$0xff] %v1163
                  %v1165 = vld [vmem:[%s1147 + $0x80] sm:$0xff]
                  %1166 = vst [vmem:[%s1148 + $0x40] sm:$0xff] %v1165
                  %v1167 = vld [vmem:[%s1147 + $0x88] sm:$0xff]
                  %1168 = vst [vmem:[%s1148 + $0x48] sm:$0xff] %v1167
                  %v1169 = vld [vmem:[%s1147 + $0xa0] sm:$0xff]
                  %1170 = vst [vmem:[%s1148 + $0x50] sm:$0xff] %v1169
                  %v1171 = vld [vmem:[%s1147 + $0xa8] sm:$0xff]
                  %1172 = vst [vmem:[%s1148 + $0x58] sm:$0xff] %v1171
                  %v1173 = vld [vmem:[%s1147 + $0xc0] sm:$0xff]
                  %1174 = vst [vmem:[%s1148 + $0x60] sm:$0xff] %v1173
                  %v1175 = vld [vmem:[%s1147 + $0xc8] sm:$0xff]
                  %1176 = vst [vmem:[%s1148 + $0x68] sm:$0xff] %v1175
                  %v1177 = vld [vmem:[%s1147 + $0xe0] sm:$0xff]
                  %1178 = vst [vmem:[%s1148 + $0x70] sm:$0xff] %v1177
                  %v1179 = vld [vmem:[%s1147 + $0xe8] sm:$0xff]
                  %1180 = vst [vmem:[%s1148 + $0x78] sm:$0xff] %v1179
                $region202: #{_lambda_.1} parent=196 // loop_footer
                  %s1146 = sadd.s32 1, %s1142
                $region203: #{_lambda_.1} parent=196 // loop_footer_branch
                  %1141 = sbr.rel target = $region199
                $region204: #{_lambda_.1} parent=196 // loop_exit
                  _
              $region197: #{_lambda_.1} parent=181 // pred_fallthru
                _
              // Predicated region
              $region205: #{_lambda_.1} parent=181 // pred_check
                _
              $region206: #{_lambda_.1} parent=181 // pred_check_branch
                %1182 = sbr.rel target = $region208
              $region207: #{_lambda_.1} parent=181 // pred_region
                _
              $region208: #{_lambda_.1} parent=181 // pred_fallthru
                _
            $region182: #{_lambda_.1} parent=177 // pred_fallthru
              _
            // Predicated region
            $region183: #{_lambda_.1} parent=177 // pred_check
              _
            $region184: #{_lambda_.1} parent=177 // pred_check_branch
              %1097 = sbr.rel target = $region186
            $region185: #{_lambda_.1} parent=177 // pred_region
              loop: start=0, step=1, limit=1
              $region187: #{_lambda_.1} parent=185 // loop_pre_header
                _
              $region188: #{_lambda_.1} parent=185 // loop_header
                %s1100 = sphi 0, %s1104
                %p1101 = scmp.ge.s32.totalorder %s1100, 1
                %s1105 = sphi %s1091, %s1091
                %s1106 = sphi %s1088, %s1088
              $region189: #{_lambda_.1} parent=185 // loop_header_branch
                %1103 = sbr.rel (%p1101) target = $region193
              $region190: #{_lambda_.1} parent=185 // loop_body
                %v1107 = vld [vmem:[%s1105] sm:$0xff]
                %1108 = vst [vmem:[%s1106] sm:$0xff] %v1107
                %v1109 = vld [vmem:[%s1105 + $0x8] sm:$0xff]
                %1110 = vst [vmem:[%s1106 + $0x8] sm:$0xff] %v1109
                %v1111 = vld [vmem:[%s1105 + $0x20] sm:$0xff]
                %1112 = vst [vmem:[%s1106 + $0x10] sm:$0xff] %v1111
                %v1113 = vld [vmem:[%s1105 + $0x28] sm:$0xff]
                %1114 = vst [vmem:[%s1106 + $0x18] sm:$0xff] %v1113
                %v1115 = vld [vmem:[%s1105 + $0x40] sm:$0xff]
                %1116 = vst [vmem:[%s1106 + $0x20] sm:$0xff] %v1115
                %v1117 = vld [vmem:[%s1105 + $0x48] sm:$0xff]
                %1118 = vst [vmem:[%s1106 + $0x28] sm:$0xff] %v1117
                %v1119 = vld [vmem:[%s1105 + $0x60] sm:$0xff]
                %1120 = vst [vmem:[%s1106 + $0x30] sm:$0xff] %v1119
                %v1121 = vld [vmem:[%s1105 + $0x68] sm:$0xff]
                %1122 = vst [vmem:[%s1106 + $0x38] sm:$0xff] %v1121
                %v1123 = vld [vmem:[%s1105 + $0x80] sm:$0xff]
                %1124 = vst [vmem:[%s1106 + $0x40] sm:$0xff] %v1123
                %v1125 = vld [vmem:[%s1105 + $0x88] sm:$0xff]
                %1126 = vst [vmem:[%s1106 + $0x48] sm:$0xff] %v1125
                %v1127 = vld [vmem:[%s1105 + $0xa0] sm:$0xff]
                %1128 = vst [vmem:[%s1106 + $0x50] sm:$0xff] %v1127
                %v1129 = vld [vmem:[%s1105 + $0xa8] sm:$0xff]
                %1130 = vst [vmem:[%s1106 + $0x58] sm:$0xff] %v1129
                %v1131 = vld [vmem:[%s1105 + $0xc0] sm:$0xff]
                %1132 = vst [vmem:[%s1106 + $0x60] sm:$0xff] %v1131
                %v1133 = vld [vmem:[%s1105 + $0xc8] sm:$0xff]
                %1134 = vst [vmem:[%s1106 + $0x68] sm:$0xff] %v1133
                %v1135 = vld [vmem:[%s1105 + $0xe0] sm:$0xff]
                %1136 = vst [vmem:[%s1106 + $0x70] sm:$0xff] %v1135
                %v1137 = vld [vmem:[%s1105 + $0xe8] sm:$0xff]
                %1138 = vst [vmem:[%s1106 + $0x78] sm:$0xff] %v1137
              $region191: #{_lambda_.1} parent=185 // loop_footer
                %s1104 = sadd.s32 1, %s1100
              $region192: #{_lambda_.1} parent=185 // loop_footer_branch
                %1099 = sbr.rel target = $region188
              $region193: #{_lambda_.1} parent=185 // loop_exit
                _
            $region186: #{_lambda_.1} parent=177 // pred_fallthru
              _
          $region178: #{_lambda_.1} parent=173 // pred_fallthru
            _
          %1183 = vnop
        $region174: #{_lambda_.1} parent=39 // pred_fallthru
          _
        // Predicated region
        $region209: #{_lambda_.1} parent=39 // pred_check
          %p1184 = pneg %p391
        $region210: #{_lambda_.1} parent=39 // pred_check_branch
          %1186 = sbr.rel (%p1184) target = $region212
        $region211: #{_lambda_.1} parent=39 // pred_region
          %s1187 = sand.u32 %s381, 1
          %s1188 = sand.u32 %s381, 1
          %s1189 = smul.addr %s1188, 64
          %s1190 = scalar_lea.vmem [#allocation12], %s1189
          %s1191 = smul.addr %s37, 8
          %s1192 = scalar_lea.vmem %s14, %s1191
          // Predicated region
          $region213: #{_lambda_.1} parent=211 // pred_check
            _
          $region214: #{_lambda_.1} parent=211 // pred_check_branch
            %1194 = sbr.rel (0) target = $region216
          $region215: #{_lambda_.1} parent=211 // pred_region
            // Predicated region
            $region217: #{_lambda_.1} parent=215 // pred_check
              _
            $region218: #{_lambda_.1} parent=215 // pred_check_branch
              %1196 = sbr.rel (0) target = $region220
            $region219: #{_lambda_.1} parent=215 // pred_region
              // Predicated region
              $region232: #{_lambda_.1} parent=219 // pred_check
                _
              $region233: #{_lambda_.1} parent=219 // pred_check_branch
                %1225 = sbr.rel (0) target = $region235
              $region234: #{_lambda_.1} parent=219 // pred_region
                loop: start=0, step=1, limit=1
                $region236: #{_lambda_.1} parent=234 // loop_pre_header
                  _
                $region237: #{_lambda_.1} parent=234 // loop_header
                  %s1227 = sphi 0, %s1231
                  %p1228 = scmp.ge.s32.totalorder %s1227, 1
                  %s1232 = sphi %s1192, %s1192
                  %s1233 = sphi %s1190, %s1190
                $region238: #{_lambda_.1} parent=234 // loop_header_branch
                  %1230 = sbr.rel (%p1228) target = $region242
                $region239: #{_lambda_.1} parent=234 // loop_body
                  %v1234 = vld [vmem:[%s1232] sm:$0xff]
                  %1235 = vst [vmem:[%s1233] sm:$0xff] %v1234
                  %v1236 = vld [vmem:[%s1232 + $0x10] sm:$0xff]
                  %1237 = vst [vmem:[%s1233 + $0x8] sm:$0xff] %v1236
                  %v1238 = vld [vmem:[%s1232 + $0x20] sm:$0xff]
                  %1239 = vst [vmem:[%s1233 + $0x10] sm:$0xff] %v1238
                  %v1240 = vld [vmem:[%s1232 + $0x30] sm:$0xff]
                  %1241 = vst [vmem:[%s1233 + $0x18] sm:$0xff] %v1240
                  %v1242 = vld [vmem:[%s1232 + $0x40] sm:$0xff]
                  %1243 = vst [vmem:[%s1233 + $0x20] sm:$0xff] %v1242
                  %v1244 = vld [vmem:[%s1232 + $0x50] sm:$0xff]
                  %1245 = vst [vmem:[%s1233 + $0x28] sm:$0xff] %v1244
                  %v1246 = vld [vmem:[%s1232 + $0x60] sm:$0xff]
                  %1247 = vst [vmem:[%s1233 + $0x30] sm:$0xff] %v1246
                  %v1248 = vld [vmem:[%s1232 + $0x70] sm:$0xff]
                  %1249 = vst [vmem:[%s1233 + $0x38] sm:$0xff] %v1248
                $region240: #{_lambda_.1} parent=234 // loop_footer
                  %s1231 = sadd.s32 1, %s1227
                $region241: #{_lambda_.1} parent=234 // loop_footer_branch
                  %1226 = sbr.rel target = $region237
                $region242: #{_lambda_.1} parent=234 // loop_exit
                  _
              $region235: #{_lambda_.1} parent=219 // pred_fallthru
                _
              // Predicated region
              $region243: #{_lambda_.1} parent=219 // pred_check
                _
              $region244: #{_lambda_.1} parent=219 // pred_check_branch
                %1251 = sbr.rel target = $region246
              $region245: #{_lambda_.1} parent=219 // pred_region
                _
              $region246: #{_lambda_.1} parent=219 // pred_fallthru
                _
            $region220: #{_lambda_.1} parent=215 // pred_fallthru
              _
            // Predicated region
            $region221: #{_lambda_.1} parent=215 // pred_check
              _
            $region222: #{_lambda_.1} parent=215 // pred_check_branch
              %1198 = sbr.rel target = $region224
            $region223: #{_lambda_.1} parent=215 // pred_region
              loop: start=0, step=1, limit=1
              $region225: #{_lambda_.1} parent=223 // loop_pre_header
                _
              $region226: #{_lambda_.1} parent=223 // loop_header
                %s1201 = sphi 0, %s1205
                %p1202 = scmp.ge.s32.totalorder %s1201, 1
                %s1206 = sphi %s1192, %s1192
                %s1207 = sphi %s1190, %s1190
              $region227: #{_lambda_.1} parent=223 // loop_header_branch
                %1204 = sbr.rel (%p1202) target = $region231
              $region228: #{_lambda_.1} parent=223 // loop_body
                %v1208 = vld [vmem:[%s1206] sm:$0xff]
                %1209 = vst [vmem:[%s1207] sm:$0xff] %v1208
                %v1210 = vld [vmem:[%s1206 + $0x10] sm:$0xff]
                %1211 = vst [vmem:[%s1207 + $0x8] sm:$0xff] %v1210
                %v1212 = vld [vmem:[%s1206 + $0x20] sm:$0xff]
                %1213 = vst [vmem:[%s1207 + $0x10] sm:$0xff] %v1212
                %v1214 = vld [vmem:[%s1206 + $0x30] sm:$0xff]
                %1215 = vst [vmem:[%s1207 + $0x18] sm:$0xff] %v1214
                %v1216 = vld [vmem:[%s1206 + $0x40] sm:$0xff]
                %1217 = vst [vmem:[%s1207 + $0x20] sm:$0xff] %v1216
                %v1218 = vld [vmem:[%s1206 + $0x50] sm:$0xff]
                %1219 = vst [vmem:[%s1207 + $0x28] sm:$0xff] %v1218
                %v1220 = vld [vmem:[%s1206 + $0x60] sm:$0xff]
                %1221 = vst [vmem:[%s1207 + $0x30] sm:$0xff] %v1220
                %v1222 = vld [vmem:[%s1206 + $0x70] sm:$0xff]
                %1223 = vst [vmem:[%s1207 + $0x38] sm:$0xff] %v1222
              $region229: #{_lambda_.1} parent=223 // loop_footer
                %s1205 = sadd.s32 1, %s1201
              $region230: #{_lambda_.1} parent=223 // loop_footer_branch
                %1200 = sbr.rel target = $region226
              $region231: #{_lambda_.1} parent=223 // loop_exit
                _
            $region224: #{_lambda_.1} parent=215 // pred_fallthru
              _
          $region216: #{_lambda_.1} parent=211 // pred_fallthru
            _
          %1252 = vnop
        $region212: #{_lambda_.1} parent=39 // pred_fallthru
          _
        // Predicated region
        $region247: #{_lambda_.1} parent=39 // pred_check
          %p1253 = pneg %p417
        $region248: #{_lambda_.1} parent=39 // pred_check_branch
          %1255 = sbr.rel (%p1253) target = $region250
        $region249: #{_lambda_.1} parent=39 // pred_region
          %s1256 = sand.u32 %s407, 1
          %s1257 = sand.u32 %s407, 1
          %s1258 = smul.addr %s1257, 64
          %s1259 = scalar_lea.vmem [#allocation13], %s1258
          %s1260 = smul.addr %s37, 8
          %s1261 = scalar_lea.vmem %s15, %s1260
          // Predicated region
          $region251: #{_lambda_.1} parent=249 // pred_check
            _
          $region252: #{_lambda_.1} parent=249 // pred_check_branch
            %1263 = sbr.rel (0) target = $region254
          $region253: #{_lambda_.1} parent=249 // pred_region
            // Predicated region
            $region255: #{_lambda_.1} parent=253 // pred_check
              _
            $region256: #{_lambda_.1} parent=253 // pred_check_branch
              %1265 = sbr.rel (0) target = $region258
            $region257: #{_lambda_.1} parent=253 // pred_region
              // Predicated region
              $region270: #{_lambda_.1} parent=257 // pred_check
                _
              $region271: #{_lambda_.1} parent=257 // pred_check_branch
                %1294 = sbr.rel (0) target = $region273
              $region272: #{_lambda_.1} parent=257 // pred_region
                loop: start=0, step=1, limit=1
                $region274: #{_lambda_.1} parent=272 // loop_pre_header
                  _
                $region275: #{_lambda_.1} parent=272 // loop_header
                  %s1296 = sphi 0, %s1300
                  %p1297 = scmp.ge.s32.totalorder %s1296, 1
                  %s1301 = sphi %s1261, %s1261
                  %s1302 = sphi %s1259, %s1259
                $region276: #{_lambda_.1} parent=272 // loop_header_branch
                  %1299 = sbr.rel (%p1297) target = $region280
                $region277: #{_lambda_.1} parent=272 // loop_body
                  %v1303 = vld [vmem:[%s1301] sm:$0xff]
                  %1304 = vst [vmem:[%s1302] sm:$0xff] %v1303
                  %v1305 = vld [vmem:[%s1301 + $0x10] sm:$0xff]
                  %1306 = vst [vmem:[%s1302 + $0x8] sm:$0xff] %v1305
                  %v1307 = vld [vmem:[%s1301 + $0x20] sm:$0xff]
                  %1308 = vst [vmem:[%s1302 + $0x10] sm:$0xff] %v1307
                  %v1309 = vld [vmem:[%s1301 + $0x30] sm:$0xff]
                  %1310 = vst [vmem:[%s1302 + $0x18] sm:$0xff] %v1309
                  %v1311 = vld [vmem:[%s1301 + $0x40] sm:$0xff]
                  %1312 = vst [vmem:[%s1302 + $0x20] sm:$0xff] %v1311
                  %v1313 = vld [vmem:[%s1301 + $0x50] sm:$0xff]
                  %1314 = vst [vmem:[%s1302 + $0x28] sm:$0xff] %v1313
                  %v1315 = vld [vmem:[%s1301 + $0x60] sm:$0xff]
                  %1316 = vst [vmem:[%s1302 + $0x30] sm:$0xff] %v1315
                  %v1317 = vld [vmem:[%s1301 + $0x70] sm:$0xff]
                  %1318 = vst [vmem:[%s1302 + $0x38] sm:$0xff] %v1317
                $region278: #{_lambda_.1} parent=272 // loop_footer
                  %s1300 = sadd.s32 1, %s1296
                $region279: #{_lambda_.1} parent=272 // loop_footer_branch
                  %1295 = sbr.rel target = $region275
                $region280: #{_lambda_.1} parent=272 // loop_exit
                  _
              $region273: #{_lambda_.1} parent=257 // pred_fallthru
                _
              // Predicated region
              $region281: #{_lambda_.1} parent=257 // pred_check
                _
              $region282: #{_lambda_.1} parent=257 // pred_check_branch
                %1320 = sbr.rel target = $region284
              $region283: #{_lambda_.1} parent=257 // pred_region
                _
              $region284: #{_lambda_.1} parent=257 // pred_fallthru
                _
            $region258: #{_lambda_.1} parent=253 // pred_fallthru
              _
            // Predicated region
            $region259: #{_lambda_.1} parent=253 // pred_check
              _
            $region260: #{_lambda_.1} parent=253 // pred_check_branch
              %1267 = sbr.rel target = $region262
            $region261: #{_lambda_.1} parent=253 // pred_region
              loop: start=0, step=1, limit=1
              $region263: #{_lambda_.1} parent=261 // loop_pre_header
                _
              $region264: #{_lambda_.1} parent=261 // loop_header
                %s1270 = sphi 0, %s1274
                %p1271 = scmp.ge.s32.totalorder %s1270, 1
                %s1275 = sphi %s1261, %s1261
                %s1276 = sphi %s1259, %s1259
              $region265: #{_lambda_.1} parent=261 // loop_header_branch
                %1273 = sbr.rel (%p1271) target = $region269
              $region266: #{_lambda_.1} parent=261 // loop_body
                %v1277 = vld [vmem:[%s1275] sm:$0xff]
                %1278 = vst [vmem:[%s1276] sm:$0xff] %v1277
                %v1279 = vld [vmem:[%s1275 + $0x10] sm:$0xff]
                %1280 = vst [vmem:[%s1276 + $0x8] sm:$0xff] %v1279
                %v1281 = vld [vmem:[%s1275 + $0x20] sm:$0xff]
                %1282 = vst [vmem:[%s1276 + $0x10] sm:$0xff] %v1281
                %v1283 = vld [vmem:[%s1275 + $0x30] sm:$0xff]
                %1284 = vst [vmem:[%s1276 + $0x18] sm:$0xff] %v1283
                %v1285 = vld [vmem:[%s1275 + $0x40] sm:$0xff]
                %1286 = vst [vmem:[%s1276 + $0x20] sm:$0xff] %v1285
                %v1287 = vld [vmem:[%s1275 + $0x50] sm:$0xff]
                %1288 = vst [vmem:[%s1276 + $0x28] sm:$0xff] %v1287
                %v1289 = vld [vmem:[%s1275 + $0x60] sm:$0xff]
                %1290 = vst [vmem:[%s1276 + $0x30] sm:$0xff] %v1289
                %v1291 = vld [vmem:[%s1275 + $0x70] sm:$0xff]
                %1292 = vst [vmem:[%s1276 + $0x38] sm:$0xff] %v1291
              $region267: #{_lambda_.1} parent=261 // loop_footer
                %s1274 = sadd.s32 1, %s1270
              $region268: #{_lambda_.1} parent=261 // loop_footer_branch
                %1269 = sbr.rel target = $region264
              $region269: #{_lambda_.1} parent=261 // loop_exit
                _
            $region262: #{_lambda_.1} parent=253 // pred_fallthru
              _
          $region254: #{_lambda_.1} parent=249 // pred_fallthru
            _
          %1321 = vnop
        $region250: #{_lambda_.1} parent=39 // pred_fallthru
          _
        // Predicated region
        $region285: #{_lambda_.1} parent=39 // pred_check
          %p1322 = pneg %p443
        $region286: #{_lambda_.1} parent=39 // pred_check_branch
          %1324 = sbr.rel (%p1322) target = $region288
        $region287: #{_lambda_.1} parent=39 // pred_region
          %s1325 = sand.u32 %s433, 1
          %s1326 = sand.u32 %s433, 1
          %s1327 = smul.addr %s1326, 64
          %s1328 = scalar_lea.vmem [#allocation14], %s1327
          %s1329 = smul.addr %s37, 8
          %s1330 = scalar_lea.vmem %s16, %s1329
          // Predicated region
          $region289: #{_lambda_.1} parent=287 // pred_check
            _
          $region290: #{_lambda_.1} parent=287 // pred_check_branch
            %1332 = sbr.rel (0) target = $region292
          $region291: #{_lambda_.1} parent=287 // pred_region
            // Predicated region
            $region293: #{_lambda_.1} parent=291 // pred_check
              _
            $region294: #{_lambda_.1} parent=291 // pred_check_branch
              %1334 = sbr.rel (0) target = $region296
            $region295: #{_lambda_.1} parent=291 // pred_region
              // Predicated region
              $region308: #{_lambda_.1} parent=295 // pred_check
                _
              $region309: #{_lambda_.1} parent=295 // pred_check_branch
                %1363 = sbr.rel (0) target = $region311
              $region310: #{_lambda_.1} parent=295 // pred_region
                loop: start=0, step=1, limit=1
                $region312: #{_lambda_.1} parent=310 // loop_pre_header
                  _
                $region313: #{_lambda_.1} parent=310 // loop_header
                  %s1365 = sphi 0, %s1369
                  %p1366 = scmp.ge.s32.totalorder %s1365, 1
                  %s1370 = sphi %s1330, %s1330
                  %s1371 = sphi %s1328, %s1328
                $region314: #{_lambda_.1} parent=310 // loop_header_branch
                  %1368 = sbr.rel (%p1366) target = $region318
                $region315: #{_lambda_.1} parent=310 // loop_body
                  %v1372 = vld [vmem:[%s1370] sm:$0xff]
                  %1373 = vst [vmem:[%s1371] sm:$0xff] %v1372
                  %v1374 = vld [vmem:[%s1370 + $0x10] sm:$0xff]
                  %1375 = vst [vmem:[%s1371 + $0x8] sm:$0xff] %v1374
                  %v1376 = vld [vmem:[%s1370 + $0x20] sm:$0xff]
                  %1377 = vst [vmem:[%s1371 + $0x10] sm:$0xff] %v1376
                  %v1378 = vld [vmem:[%s1370 + $0x30] sm:$0xff]
                  %1379 = vst [vmem:[%s1371 + $0x18] sm:$0xff] %v1378
                  %v1380 = vld [vmem:[%s1370 + $0x40] sm:$0xff]
                  %1381 = vst [vmem:[%s1371 + $0x20] sm:$0xff] %v1380
                  %v1382 = vld [vmem:[%s1370 + $0x50] sm:$0xff]
                  %1383 = vst [vmem:[%s1371 + $0x28] sm:$0xff] %v1382
                  %v1384 = vld [vmem:[%s1370 + $0x60] sm:$0xff]
                  %1385 = vst [vmem:[%s1371 + $0x30] sm:$0xff] %v1384
                  %v1386 = vld [vmem:[%s1370 + $0x70] sm:$0xff]
                  %1387 = vst [vmem:[%s1371 + $0x38] sm:$0xff] %v1386
                $region316: #{_lambda_.1} parent=310 // loop_footer
                  %s1369 = sadd.s32 1, %s1365
                $region317: #{_lambda_.1} parent=310 // loop_footer_branch
                  %1364 = sbr.rel target = $region313
                $region318: #{_lambda_.1} parent=310 // loop_exit
                  _
              $region311: #{_lambda_.1} parent=295 // pred_fallthru
                _
              // Predicated region
              $region319: #{_lambda_.1} parent=295 // pred_check
                _
              $region320: #{_lambda_.1} parent=295 // pred_check_branch
                %1389 = sbr.rel target = $region322
              $region321: #{_lambda_.1} parent=295 // pred_region
                _
              $region322: #{_lambda_.1} parent=295 // pred_fallthru
                _
            $region296: #{_lambda_.1} parent=291 // pred_fallthru
              _
            // Predicated region
            $region297: #{_lambda_.1} parent=291 // pred_check
              _
            $region298: #{_lambda_.1} parent=291 // pred_check_branch
              %1336 = sbr.rel target = $region300
            $region299: #{_lambda_.1} parent=291 // pred_region
              loop: start=0, step=1, limit=1
              $region301: #{_lambda_.1} parent=299 // loop_pre_header
                _
              $region302: #{_lambda_.1} parent=299 // loop_header
                %s1339 = sphi 0, %s1343
                %p1340 = scmp.ge.s32.totalorder %s1339, 1
                %s1344 = sphi %s1330, %s1330
                %s1345 = sphi %s1328, %s1328
              $region303: #{_lambda_.1} parent=299 // loop_header_branch
                %1342 = sbr.rel (%p1340) target = $region307
              $region304: #{_lambda_.1} parent=299 // loop_body
                %v1346 = vld [vmem:[%s1344] sm:$0xff]
                %1347 = vst [vmem:[%s1345] sm:$0xff] %v1346
                %v1348 = vld [vmem:[%s1344 + $0x10] sm:$0xff]
                %1349 = vst [vmem:[%s1345 + $0x8] sm:$0xff] %v1348
                %v1350 = vld [vmem:[%s1344 + $0x20] sm:$0xff]
                %1351 = vst [vmem:[%s1345 + $0x10] sm:$0xff] %v1350
                %v1352 = vld [vmem:[%s1344 + $0x30] sm:$0xff]
                %1353 = vst [vmem:[%s1345 + $0x18] sm:$0xff] %v1352
                %v1354 = vld [vmem:[%s1344 + $0x40] sm:$0xff]
                %1355 = vst [vmem:[%s1345 + $0x20] sm:$0xff] %v1354
                %v1356 = vld [vmem:[%s1344 + $0x50] sm:$0xff]
                %1357 = vst [vmem:[%s1345 + $0x28] sm:$0xff] %v1356
                %v1358 = vld [vmem:[%s1344 + $0x60] sm:$0xff]
                %1359 = vst [vmem:[%s1345 + $0x30] sm:$0xff] %v1358
                %v1360 = vld [vmem:[%s1344 + $0x70] sm:$0xff]
                %1361 = vst [vmem:[%s1345 + $0x38] sm:$0xff] %v1360
              $region305: #{_lambda_.1} parent=299 // loop_footer
                %s1343 = sadd.s32 1, %s1339
              $region306: #{_lambda_.1} parent=299 // loop_footer_branch
                %1338 = sbr.rel target = $region302
              $region307: #{_lambda_.1} parent=299 // loop_exit
                _
            $region300: #{_lambda_.1} parent=291 // pred_fallthru
              _
          $region292: #{_lambda_.1} parent=287 // pred_fallthru
            _
          %1390 = vnop
        $region288: #{_lambda_.1} parent=39 // pred_fallthru
          _
        // Predicated region
        $region323: #{_lambda_.1} parent=39 // pred_check
          %p1391 = pneg %p469
        $region324: #{_lambda_.1} parent=39 // pred_check_branch
          %1393 = sbr.rel (%p1391) target = $region326
        $region325: #{_lambda_.1} parent=39 // pred_region
          %s1394 = sand.u32 %s459, 1
          %s1395 = sand.u32 %s459, 1
          %s1396 = smul.addr %s1395, 64
          %s1397 = scalar_lea.vmem [#allocation15], %s1396
          %s1398 = smul.addr %s37, 8
          %s1399 = scalar_lea.vmem %s17, %s1398
          // Predicated region
          $region327: #{_lambda_.1} parent=325 // pred_check
            _
          $region328: #{_lambda_.1} parent=325 // pred_check_branch
            %1401 = sbr.rel (0) target = $region330
          $region329: #{_lambda_.1} parent=325 // pred_region
            // Predicated region
            $region331: #{_lambda_.1} parent=329 // pred_check
              _
            $region332: #{_lambda_.1} parent=329 // pred_check_branch
              %1403 = sbr.rel (0) target = $region334
            $region333: #{_lambda_.1} parent=329 // pred_region
              // Predicated region
              $region346: #{_lambda_.1} parent=333 // pred_check
                _
              $region347: #{_lambda_.1} parent=333 // pred_check_branch
                %1432 = sbr.rel (0) target = $region349
              $region348: #{_lambda_.1} parent=333 // pred_region
                loop: start=0, step=1, limit=1
                $region350: #{_lambda_.1} parent=348 // loop_pre_header
                  _
                $region351: #{_lambda_.1} parent=348 // loop_header
                  %s1434 = sphi 0, %s1438
                  %p1435 = scmp.ge.s32.totalorder %s1434, 1
                  %s1439 = sphi %s1399, %s1399
                  %s1440 = sphi %s1397, %s1397
                $region352: #{_lambda_.1} parent=348 // loop_header_branch
                  %1437 = sbr.rel (%p1435) target = $region356
                $region353: #{_lambda_.1} parent=348 // loop_body
                  %v1441 = vld [vmem:[%s1439] sm:$0xff]
                  %1442 = vst [vmem:[%s1440] sm:$0xff] %v1441
                  %v1443 = vld [vmem:[%s1439 + $0x10] sm:$0xff]
                  %1444 = vst [vmem:[%s1440 + $0x8] sm:$0xff] %v1443
                  %v1445 = vld [vmem:[%s1439 + $0x20] sm:$0xff]
                  %1446 = vst [vmem:[%s1440 + $0x10] sm:$0xff] %v1445
                  %v1447 = vld [vmem:[%s1439 + $0x30] sm:$0xff]
                  %1448 = vst [vmem:[%s1440 + $0x18] sm:$0xff] %v1447
                  %v1449 = vld [vmem:[%s1439 + $0x40] sm:$0xff]
                  %1450 = vst [vmem:[%s1440 + $0x20] sm:$0xff] %v1449
                  %v1451 = vld [vmem:[%s1439 + $0x50] sm:$0xff]
                  %1452 = vst [vmem:[%s1440 + $0x28] sm:$0xff] %v1451
                  %v1453 = vld [vmem:[%s1439 + $0x60] sm:$0xff]
                  %1454 = vst [vmem:[%s1440 + $0x30] sm:$0xff] %v1453
                  %v1455 = vld [vmem:[%s1439 + $0x70] sm:$0xff]
                  %1456 = vst [vmem:[%s1440 + $0x38] sm:$0xff] %v1455
                $region354: #{_lambda_.1} parent=348 // loop_footer
                  %s1438 = sadd.s32 1, %s1434
                $region355: #{_lambda_.1} parent=348 // loop_footer_branch
                  %1433 = sbr.rel target = $region351
                $region356: #{_lambda_.1} parent=348 // loop_exit
                  _
              $region349: #{_lambda_.1} parent=333 // pred_fallthru
                _
              // Predicated region
              $region357: #{_lambda_.1} parent=333 // pred_check
                _
              $region358: #{_lambda_.1} parent=333 // pred_check_branch
                %1458 = sbr.rel target = $region360
              $region359: #{_lambda_.1} parent=333 // pred_region
                _
              $region360: #{_lambda_.1} parent=333 // pred_fallthru
                _
            $region334: #{_lambda_.1} parent=329 // pred_fallthru
              _
            // Predicated region
            $region335: #{_lambda_.1} parent=329 // pred_check
              _
            $region336: #{_lambda_.1} parent=329 // pred_check_branch
              %1405 = sbr.rel target = $region338
            $region337: #{_lambda_.1} parent=329 // pred_region
              loop: start=0, step=1, limit=1
              $region339: #{_lambda_.1} parent=337 // loop_pre_header
                _
              $region340: #{_lambda_.1} parent=337 // loop_header
                %s1408 = sphi 0, %s1412
                %p1409 = scmp.ge.s32.totalorder %s1408, 1
                %s1413 = sphi %s1399, %s1399
                %s1414 = sphi %s1397, %s1397
              $region341: #{_lambda_.1} parent=337 // loop_header_branch
                %1411 = sbr.rel (%p1409) target = $region345
              $region342: #{_lambda_.1} parent=337 // loop_body
                %v1415 = vld [vmem:[%s1413] sm:$0xff]
                %1416 = vst [vmem:[%s1414] sm:$0xff] %v1415
                %v1417 = vld [vmem:[%s1413 + $0x10] sm:$0xff]
                %1418 = vst [vmem:[%s1414 + $0x8] sm:$0xff] %v1417
                %v1419 = vld [vmem:[%s1413 + $0x20] sm:$0xff]
                %1420 = vst [vmem:[%s1414 + $0x10] sm:$0xff] %v1419
                %v1421 = vld [vmem:[%s1413 + $0x30] sm:$0xff]
                %1422 = vst [vmem:[%s1414 + $0x18] sm:$0xff] %v1421
                %v1423 = vld [vmem:[%s1413 + $0x40] sm:$0xff]
                %1424 = vst [vmem:[%s1414 + $0x20] sm:$0xff] %v1423
                %v1425 = vld [vmem:[%s1413 + $0x50] sm:$0xff]
                %1426 = vst [vmem:[%s1414 + $0x28] sm:$0xff] %v1425
                %v1427 = vld [vmem:[%s1413 + $0x60] sm:$0xff]
                %1428 = vst [vmem:[%s1414 + $0x30] sm:$0xff] %v1427
                %v1429 = vld [vmem:[%s1413 + $0x70] sm:$0xff]
                %1430 = vst [vmem:[%s1414 + $0x38] sm:$0xff] %v1429
              $region343: #{_lambda_.1} parent=337 // loop_footer
                %s1412 = sadd.s32 1, %s1408
              $region344: #{_lambda_.1} parent=337 // loop_footer_branch
                %1407 = sbr.rel target = $region340
              $region345: #{_lambda_.1} parent=337 // loop_exit
                _
            $region338: #{_lambda_.1} parent=329 // pred_fallthru
              _
          $region330: #{_lambda_.1} parent=325 // pred_fallthru
            _
          %1459 = vnop
        $region326: #{_lambda_.1} parent=39 // pred_fallthru
          _
        // Predicated region
        $region361: #{_lambda_.1} parent=39 // pred_check
          %p1460 = pneg %p495
        $region362: #{_lambda_.1} parent=39 // pred_check_branch
          %1462 = sbr.rel (%p1460) target = $region364
        $region363: #{_lambda_.1} parent=39 // pred_region
          %s1463 = sand.u32 %s485, 1
          %s1464 = sand.u32 %s485, 1
          %s1465 = smul.addr %s1464, 64
          %s1466 = scalar_lea.vmem [#allocation16], %s1465
          %s1467 = smul.addr %s37, 8
          %s1468 = scalar_lea.vmem %s18, %s1467
          // Predicated region
          $region365: #{_lambda_.1} parent=363 // pred_check
            _
          $region366: #{_lambda_.1} parent=363 // pred_check_branch
            %1470 = sbr.rel (0) target = $region368
          $region367: #{_lambda_.1} parent=363 // pred_region
            // Predicated region
            $region369: #{_lambda_.1} parent=367 // pred_check
              _
            $region370: #{_lambda_.1} parent=367 // pred_check_branch
              %1472 = sbr.rel (0) target = $region372
            $region371: #{_lambda_.1} parent=367 // pred_region
              // Predicated region
              $region384: #{_lambda_.1} parent=371 // pred_check
                _
              $region385: #{_lambda_.1} parent=371 // pred_check_branch
                %1501 = sbr.rel (0) target = $region387
              $region386: #{_lambda_.1} parent=371 // pred_region
                loop: start=0, step=1, limit=1
                $region388: #{_lambda_.1} parent=386 // loop_pre_header
                  _
                $region389: #{_lambda_.1} parent=386 // loop_header
                  %s1503 = sphi 0, %s1507
                  %p1504 = scmp.ge.s32.totalorder %s1503, 1
                  %s1508 = sphi %s1468, %s1468
                  %s1509 = sphi %s1466, %s1466
                $region390: #{_lambda_.1} parent=386 // loop_header_branch
                  %1506 = sbr.rel (%p1504) target = $region394
                $region391: #{_lambda_.1} parent=386 // loop_body
                  %v1510 = vld [vmem:[%s1508] sm:$0xff]
                  %1511 = vst [vmem:[%s1509] sm:$0xff] %v1510
                  %v1512 = vld [vmem:[%s1508 + $0x10] sm:$0xff]
                  %1513 = vst [vmem:[%s1509 + $0x8] sm:$0xff] %v1512
                  %v1514 = vld [vmem:[%s1508 + $0x20] sm:$0xff]
                  %1515 = vst [vmem:[%s1509 + $0x10] sm:$0xff] %v1514
                  %v1516 = vld [vmem:[%s1508 + $0x30] sm:$0xff]
                  %1517 = vst [vmem:[%s1509 + $0x18] sm:$0xff] %v1516
                  %v1518 = vld [vmem:[%s1508 + $0x40] sm:$0xff]
                  %1519 = vst [vmem:[%s1509 + $0x20] sm:$0xff] %v1518
                  %v1520 = vld [vmem:[%s1508 + $0x50] sm:$0xff]
                  %1521 = vst [vmem:[%s1509 + $0x28] sm:$0xff] %v1520
                  %v1522 = vld [vmem:[%s1508 + $0x60] sm:$0xff]
                  %1523 = vst [vmem:[%s1509 + $0x30] sm:$0xff] %v1522
                  %v1524 = vld [vmem:[%s1508 + $0x70] sm:$0xff]
                  %1525 = vst [vmem:[%s1509 + $0x38] sm:$0xff] %v1524
                $region392: #{_lambda_.1} parent=386 // loop_footer
                  %s1507 = sadd.s32 1, %s1503
                $region393: #{_lambda_.1} parent=386 // loop_footer_branch
                  %1502 = sbr.rel target = $region389
                $region394: #{_lambda_.1} parent=386 // loop_exit
                  _
              $region387: #{_lambda_.1} parent=371 // pred_fallthru
                _
              // Predicated region
              $region395: #{_lambda_.1} parent=371 // pred_check
                _
              $region396: #{_lambda_.1} parent=371 // pred_check_branch
                %1527 = sbr.rel target = $region398
              $region397: #{_lambda_.1} parent=371 // pred_region
                _
              $region398: #{_lambda_.1} parent=371 // pred_fallthru
                _
            $region372: #{_lambda_.1} parent=367 // pred_fallthru
              _
            // Predicated region
            $region373: #{_lambda_.1} parent=367 // pred_check
              _
            $region374: #{_lambda_.1} parent=367 // pred_check_branch
              %1474 = sbr.rel target = $region376
            $region375: #{_lambda_.1} parent=367 // pred_region
              loop: start=0, step=1, limit=1
              $region377: #{_lambda_.1} parent=375 // loop_pre_header
                _
              $region378: #{_lambda_.1} parent=375 // loop_header
                %s1477 = sphi 0, %s1481
                %p1478 = scmp.ge.s32.totalorder %s1477, 1
                %s1482 = sphi %s1468, %s1468
                %s1483 = sphi %s1466, %s1466
              $region379: #{_lambda_.1} parent=375 // loop_header_branch
                %1480 = sbr.rel (%p1478) target = $region383
              $region380: #{_lambda_.1} parent=375 // loop_body
                %v1484 = vld [vmem:[%s1482] sm:$0xff]
                %1485 = vst [vmem:[%s1483] sm:$0xff] %v1484
                %v1486 = vld [vmem:[%s1482 + $0x10] sm:$0xff]
                %1487 = vst [vmem:[%s1483 + $0x8] sm:$0xff] %v1486
                %v1488 = vld [vmem:[%s1482 + $0x20] sm:$0xff]
                %1489 = vst [vmem:[%s1483 + $0x10] sm:$0xff] %v1488
                %v1490 = vld [vmem:[%s1482 + $0x30] sm:$0xff]
                %1491 = vst [vmem:[%s1483 + $0x18] sm:$0xff] %v1490
                %v1492 = vld [vmem:[%s1482 + $0x40] sm:$0xff]
                %1493 = vst [vmem:[%s1483 + $0x20] sm:$0xff] %v1492
                %v1494 = vld [vmem:[%s1482 + $0x50] sm:$0xff]
                %1495 = vst [vmem:[%s1483 + $0x28] sm:$0xff] %v1494
                %v1496 = vld [vmem:[%s1482 + $0x60] sm:$0xff]
                %1497 = vst [vmem:[%s1483 + $0x30] sm:$0xff] %v1496
                %v1498 = vld [vmem:[%s1482 + $0x70] sm:$0xff]
                %1499 = vst [vmem:[%s1483 + $0x38] sm:$0xff] %v1498
              $region381: #{_lambda_.1} parent=375 // loop_footer
                %s1481 = sadd.s32 1, %s1477
              $region382: #{_lambda_.1} parent=375 // loop_footer_branch
                %1476 = sbr.rel target = $region378
              $region383: #{_lambda_.1} parent=375 // loop_exit
                _
            $region376: #{_lambda_.1} parent=367 // pred_fallthru
              _
          $region368: #{_lambda_.1} parent=363 // pred_fallthru
            _
          %1528 = vnop
        $region364: #{_lambda_.1} parent=39 // pred_fallthru
          _
        // Predicated region
        $region399: #{_lambda_.1} parent=39 // pred_check
          %p1529 = pneg %p521
        $region400: #{_lambda_.1} parent=39 // pred_check_branch
          %1531 = sbr.rel (%p1529) target = $region402
        $region401: #{_lambda_.1} parent=39 // pred_region
          %s1532 = sand.u32 %s511, 1
          %s1533 = sand.u32 %s511, 1
          %s1534 = smul.addr %s1533, 64
          %s1535 = scalar_lea.vmem [#allocation17], %s1534
          %s1536 = smul.addr %s37, 8
          %s1537 = scalar_lea.vmem %s19, %s1536
          // Predicated region
          $region403: #{_lambda_.1} parent=401 // pred_check
            _
          $region404: #{_lambda_.1} parent=401 // pred_check_branch
            %1539 = sbr.rel (0) target = $region406
          $region405: #{_lambda_.1} parent=401 // pred_region
            // Predicated region
            $region407: #{_lambda_.1} parent=405 // pred_check
              _
            $region408: #{_lambda_.1} parent=405 // pred_check_branch
              %1541 = sbr.rel (0) target = $region410
            $region409: #{_lambda_.1} parent=405 // pred_region
              // Predicated region
              $region422: #{_lambda_.1} parent=409 // pred_check
                _
              $region423: #{_lambda_.1} parent=409 // pred_check_branch
                %1570 = sbr.rel (0) target = $region425
              $region424: #{_lambda_.1} parent=409 // pred_region
                loop: start=0, step=1, limit=1
                $region426: #{_lambda_.1} parent=424 // loop_pre_header
                  _
                $region427: #{_lambda_.1} parent=424 // loop_header
                  %s1572 = sphi 0, %s1576
                  %p1573 = scmp.ge.s32.totalorder %s1572, 1
                  %s1577 = sphi %s1537, %s1537
                  %s1578 = sphi %s1535, %s1535
                $region428: #{_lambda_.1} parent=424 // loop_header_branch
                  %1575 = sbr.rel (%p1573) target = $region432
                $region429: #{_lambda_.1} parent=424 // loop_body
                  %v1579 = vld [vmem:[%s1577] sm:$0xff]
                  %1580 = vst [vmem:[%s1578] sm:$0xff] %v1579
                  %v1581 = vld [vmem:[%s1577 + $0x10] sm:$0xff]
                  %1582 = vst [vmem:[%s1578 + $0x8] sm:$0xff] %v1581
                  %v1583 = vld [vmem:[%s1577 + $0x20] sm:$0xff]
                  %1584 = vst [vmem:[%s1578 + $0x10] sm:$0xff] %v1583
                  %v1585 = vld [vmem:[%s1577 + $0x30] sm:$0xff]
                  %1586 = vst [vmem:[%s1578 + $0x18] sm:$0xff] %v1585
                  %v1587 = vld [vmem:[%s1577 + $0x40] sm:$0xff]
                  %1588 = vst [vmem:[%s1578 + $0x20] sm:$0xff] %v1587
                  %v1589 = vld [vmem:[%s1577 + $0x50] sm:$0xff]
                  %1590 = vst [vmem:[%s1578 + $0x28] sm:$0xff] %v1589
                  %v1591 = vld [vmem:[%s1577 + $0x60] sm:$0xff]
                  %1592 = vst [vmem:[%s1578 + $0x30] sm:$0xff] %v1591
                  %v1593 = vld [vmem:[%s1577 + $0x70] sm:$0xff]
                  %1594 = vst [vmem:[%s1578 + $0x38] sm:$0xff] %v1593
                $region430: #{_lambda_.1} parent=424 // loop_footer
                  %s1576 = sadd.s32 1, %s1572
                $region431: #{_lambda_.1} parent=424 // loop_footer_branch
                  %1571 = sbr.rel target = $region427
                $region432: #{_lambda_.1} parent=424 // loop_exit
                  _
              $region425: #{_lambda_.1} parent=409 // pred_fallthru
                _
              // Predicated region
              $region433: #{_lambda_.1} parent=409 // pred_check
                _
              $region434: #{_lambda_.1} parent=409 // pred_check_branch
                %1596 = sbr.rel target = $region436
              $region435: #{_lambda_.1} parent=409 // pred_region
                _
              $region436: #{_lambda_.1} parent=409 // pred_fallthru
                _
            $region410: #{_lambda_.1} parent=405 // pred_fallthru
              _
            // Predicated region
            $region411: #{_lambda_.1} parent=405 // pred_check
              _
            $region412: #{_lambda_.1} parent=405 // pred_check_branch
              %1543 = sbr.rel target = $region414
            $region413: #{_lambda_.1} parent=405 // pred_region
              loop: start=0, step=1, limit=1
              $region415: #{_lambda_.1} parent=413 // loop_pre_header
                _
              $region416: #{_lambda_.1} parent=413 // loop_header
                %s1546 = sphi 0, %s1550
                %p1547 = scmp.ge.s32.totalorder %s1546, 1
                %s1551 = sphi %s1537, %s1537
                %s1552 = sphi %s1535, %s1535
              $region417: #{_lambda_.1} parent=413 // loop_header_branch
                %1549 = sbr.rel (%p1547) target = $region421
              $region418: #{_lambda_.1} parent=413 // loop_body
                %v1553 = vld [vmem:[%s1551] sm:$0xff]
                %1554 = vst [vmem:[%s1552] sm:$0xff] %v1553
                %v1555 = vld [vmem:[%s1551 + $0x10] sm:$0xff]
                %1556 = vst [vmem:[%s1552 + $0x8] sm:$0xff] %v1555
                %v1557 = vld [vmem:[%s1551 + $0x20] sm:$0xff]
                %1558 = vst [vmem:[%s1552 + $0x10] sm:$0xff] %v1557
                %v1559 = vld [vmem:[%s1551 + $0x30] sm:$0xff]
                %1560 = vst [vmem:[%s1552 + $0x18] sm:$0xff] %v1559
                %v1561 = vld [vmem:[%s1551 + $0x40] sm:$0xff]
                %1562 = vst [vmem:[%s1552 + $0x20] sm:$0xff] %v1561
                %v1563 = vld [vmem:[%s1551 + $0x50] sm:$0xff]
                %1564 = vst [vmem:[%s1552 + $0x28] sm:$0xff] %v1563
                %v1565 = vld [vmem:[%s1551 + $0x60] sm:$0xff]
                %1566 = vst [vmem:[%s1552 + $0x30] sm:$0xff] %v1565
                %v1567 = vld [vmem:[%s1551 + $0x70] sm:$0xff]
                %1568 = vst [vmem:[%s1552 + $0x38] sm:$0xff] %v1567
              $region419: #{_lambda_.1} parent=413 // loop_footer
                %s1550 = sadd.s32 1, %s1546
              $region420: #{_lambda_.1} parent=413 // loop_footer_branch
                %1545 = sbr.rel target = $region416
              $region421: #{_lambda_.1} parent=413 // loop_exit
                _
            $region414: #{_lambda_.1} parent=405 // pred_fallthru
              _
          $region406: #{_lambda_.1} parent=401 // pred_fallthru
            _
          %1597 = vnop
        $region402: #{_lambda_.1} parent=39 // pred_fallthru
          _
        // Predicated region
        $region437: #{_lambda_.1} parent=39 // pred_check
          %p1598 = pneg %p547
        $region438: #{_lambda_.1} parent=39 // pred_check_branch
          %1600 = sbr.rel (%p1598) target = $region440
        $region439: #{_lambda_.1} parent=39 // pred_region
          %s1601 = sand.u32 %s537, 1
          %s1602 = sand.u32 %s537, 1
          %s1603 = smul.addr %s1602, 64
          %s1604 = scalar_lea.vmem [#allocation18], %s1603
          %s1605 = smul.addr %s37, 8
          %s1606 = scalar_lea.vmem %s20, %s1605
          // Predicated region
          $region441: #{_lambda_.1} parent=439 // pred_check
            _
          $region442: #{_lambda_.1} parent=439 // pred_check_branch
            %1608 = sbr.rel (0) target = $region444
          $region443: #{_lambda_.1} parent=439 // pred_region
            // Predicated region
            $region445: #{_lambda_.1} parent=443 // pred_check
              _
            $region446: #{_lambda_.1} parent=443 // pred_check_branch
              %1610 = sbr.rel (0) target = $region448
            $region447: #{_lambda_.1} parent=443 // pred_region
              // Predicated region
              $region460: #{_lambda_.1} parent=447 // pred_check
                _
              $region461: #{_lambda_.1} parent=447 // pred_check_branch
                %1639 = sbr.rel (0) target = $region463
              $region462: #{_lambda_.1} parent=447 // pred_region
                loop: start=0, step=1, limit=1
                $region464: #{_lambda_.1} parent=462 // loop_pre_header
                  _
                $region465: #{_lambda_.1} parent=462 // loop_header
                  %s1641 = sphi 0, %s1645
                  %p1642 = scmp.ge.s32.totalorder %s1641, 1
                  %s1646 = sphi %s1606, %s1606
                  %s1647 = sphi %s1604, %s1604
                $region466: #{_lambda_.1} parent=462 // loop_header_branch
                  %1644 = sbr.rel (%p1642) target = $region470
                $region467: #{_lambda_.1} parent=462 // loop_body
                  %v1648 = vld [vmem:[%s1646] sm:$0xff]
                  %1649 = vst [vmem:[%s1647] sm:$0xff] %v1648
                  %v1650 = vld [vmem:[%s1646 + $0x10] sm:$0xff]
                  %1651 = vst [vmem:[%s1647 + $0x8] sm:$0xff] %v1650
                  %v1652 = vld [vmem:[%s1646 + $0x20] sm:$0xff]
                  %1653 = vst [vmem:[%s1647 + $0x10] sm:$0xff] %v1652
                  %v1654 = vld [vmem:[%s1646 + $0x30] sm:$0xff]
                  %1655 = vst [vmem:[%s1647 + $0x18] sm:$0xff] %v1654
                  %v1656 = vld [vmem:[%s1646 + $0x40] sm:$0xff]
                  %1657 = vst [vmem:[%s1647 + $0x20] sm:$0xff] %v1656
                  %v1658 = vld [vmem:[%s1646 + $0x50] sm:$0xff]
                  %1659 = vst [vmem:[%s1647 + $0x28] sm:$0xff] %v1658
                  %v1660 = vld [vmem:[%s1646 + $0x60] sm:$0xff]
                  %1661 = vst [vmem:[%s1647 + $0x30] sm:$0xff] %v1660
                  %v1662 = vld [vmem:[%s1646 + $0x70] sm:$0xff]
                  %1663 = vst [vmem:[%s1647 + $0x38] sm:$0xff] %v1662
                $region468: #{_lambda_.1} parent=462 // loop_footer
                  %s1645 = sadd.s32 1, %s1641
                $region469: #{_lambda_.1} parent=462 // loop_footer_branch
                  %1640 = sbr.rel target = $region465
                $region470: #{_lambda_.1} parent=462 // loop_exit
                  _
              $region463: #{_lambda_.1} parent=447 // pred_fallthru
                _
              // Predicated region
              $region471: #{_lambda_.1} parent=447 // pred_check
                _
              $region472: #{_lambda_.1} parent=447 // pred_check_branch
                %1665 = sbr.rel target = $region474
              $region473: #{_lambda_.1} parent=447 // pred_region
                _
              $region474: #{_lambda_.1} parent=447 // pred_fallthru
                _
            $region448: #{_lambda_.1} parent=443 // pred_fallthru
              _
            // Predicated region
            $region449: #{_lambda_.1} parent=443 // pred_check
              _
            $region450: #{_lambda_.1} parent=443 // pred_check_branch
              %1612 = sbr.rel target = $region452
            $region451: #{_lambda_.1} parent=443 // pred_region
              loop: start=0, step=1, limit=1
              $region453: #{_lambda_.1} parent=451 // loop_pre_header
                _
              $region454: #{_lambda_.1} parent=451 // loop_header
                %s1615 = sphi 0, %s1619
                %p1616 = scmp.ge.s32.totalorder %s1615, 1
                %s1620 = sphi %s1606, %s1606
                %s1621 = sphi %s1604, %s1604
              $region455: #{_lambda_.1} parent=451 // loop_header_branch
                %1618 = sbr.rel (%p1616) target = $region459
              $region456: #{_lambda_.1} parent=451 // loop_body
                %v1622 = vld [vmem:[%s1620] sm:$0xff]
                %1623 = vst [vmem:[%s1621] sm:$0xff] %v1622
                %v1624 = vld [vmem:[%s1620 + $0x10] sm:$0xff]
                %1625 = vst [vmem:[%s1621 + $0x8] sm:$0xff] %v1624
                %v1626 = vld [vmem:[%s1620 + $0x20] sm:$0xff]
                %1627 = vst [vmem:[%s1621 + $0x10] sm:$0xff] %v1626
                %v1628 = vld [vmem:[%s1620 + $0x30] sm:$0xff]
                %1629 = vst [vmem:[%s1621 + $0x18] sm:$0xff] %v1628
                %v1630 = vld [vmem:[%s1620 + $0x40] sm:$0xff]
                %1631 = vst [vmem:[%s1621 + $0x20] sm:$0xff] %v1630
                %v1632 = vld [vmem:[%s1620 + $0x50] sm:$0xff]
                %1633 = vst [vmem:[%s1621 + $0x28] sm:$0xff] %v1632
                %v1634 = vld [vmem:[%s1620 + $0x60] sm:$0xff]
                %1635 = vst [vmem:[%s1621 + $0x30] sm:$0xff] %v1634
                %v1636 = vld [vmem:[%s1620 + $0x70] sm:$0xff]
                %1637 = vst [vmem:[%s1621 + $0x38] sm:$0xff] %v1636
              $region457: #{_lambda_.1} parent=451 // loop_footer
                %s1619 = sadd.s32 1, %s1615
              $region458: #{_lambda_.1} parent=451 // loop_footer_branch
                %1614 = sbr.rel target = $region454
              $region459: #{_lambda_.1} parent=451 // loop_exit
                _
            $region452: #{_lambda_.1} parent=443 // pred_fallthru
              _
          $region444: #{_lambda_.1} parent=439 // pred_fallthru
            _
          %1666 = vnop
        $region440: #{_lambda_.1} parent=39 // pred_fallthru
          _
        // Predicated region
        $region475: #{_lambda_.1} parent=39 // pred_check
          %p1667 = pneg %p573
        $region476: #{_lambda_.1} parent=39 // pred_check_branch
          %1669 = sbr.rel (%p1667) target = $region478
        $region477: #{_lambda_.1} parent=39 // pred_region
          %s1670 = sand.u32 %s563, 1
          %s1671 = sand.u32 %s563, 1
          %s1672 = smul.addr %s1671, 64
          %s1673 = scalar_lea.vmem [#allocation19], %s1672
          %s1674 = smul.addr %s37, 8
          %s1675 = scalar_lea.vmem %s21, %s1674
          // Predicated region
          $region479: #{_lambda_.1} parent=477 // pred_check
            _
          $region480: #{_lambda_.1} parent=477 // pred_check_branch
            %1677 = sbr.rel (0) target = $region482
          $region481: #{_lambda_.1} parent=477 // pred_region
            // Predicated region
            $region483: #{_lambda_.1} parent=481 // pred_check
              _
            $region484: #{_lambda_.1} parent=481 // pred_check_branch
              %1679 = sbr.rel (0) target = $region486
            $region485: #{_lambda_.1} parent=481 // pred_region
              // Predicated region
              $region498: #{_lambda_.1} parent=485 // pred_check
                _
              $region499: #{_lambda_.1} parent=485 // pred_check_branch
                %1708 = sbr.rel (0) target = $region501
              $region500: #{_lambda_.1} parent=485 // pred_region
                loop: start=0, step=1, limit=1
                $region502: #{_lambda_.1} parent=500 // loop_pre_header
                  _
                $region503: #{_lambda_.1} parent=500 // loop_header
                  %s1710 = sphi 0, %s1714
                  %p1711 = scmp.ge.s32.totalorder %s1710, 1
                  %s1715 = sphi %s1675, %s1675
                  %s1716 = sphi %s1673, %s1673
                $region504: #{_lambda_.1} parent=500 // loop_header_branch
                  %1713 = sbr.rel (%p1711) target = $region508
                $region505: #{_lambda_.1} parent=500 // loop_body
                  %v1717 = vld [vmem:[%s1715] sm:$0xff]
                  %1718 = vst [vmem:[%s1716] sm:$0xff] %v1717
                  %v1719 = vld [vmem:[%s1715 + $0x10] sm:$0xff]
                  %1720 = vst [vmem:[%s1716 + $0x8] sm:$0xff] %v1719
                  %v1721 = vld [vmem:[%s1715 + $0x20] sm:$0xff]
                  %1722 = vst [vmem:[%s1716 + $0x10] sm:$0xff] %v1721
                  %v1723 = vld [vmem:[%s1715 + $0x30] sm:$0xff]
                  %1724 = vst [vmem:[%s1716 + $0x18] sm:$0xff] %v1723
                  %v1725 = vld [vmem:[%s1715 + $0x40] sm:$0xff]
                  %1726 = vst [vmem:[%s1716 + $0x20] sm:$0xff] %v1725
                  %v1727 = vld [vmem:[%s1715 + $0x50] sm:$0xff]
                  %1728 = vst [vmem:[%s1716 + $0x28] sm:$0xff] %v1727
                  %v1729 = vld [vmem:[%s1715 + $0x60] sm:$0xff]
                  %1730 = vst [vmem:[%s1716 + $0x30] sm:$0xff] %v1729
                  %v1731 = vld [vmem:[%s1715 + $0x70] sm:$0xff]
                  %1732 = vst [vmem:[%s1716 + $0x38] sm:$0xff] %v1731
                $region506: #{_lambda_.1} parent=500 // loop_footer
                  %s1714 = sadd.s32 1, %s1710
                $region507: #{_lambda_.1} parent=500 // loop_footer_branch
                  %1709 = sbr.rel target = $region503
                $region508: #{_lambda_.1} parent=500 // loop_exit
                  _
              $region501: #{_lambda_.1} parent=485 // pred_fallthru
                _
              // Predicated region
              $region509: #{_lambda_.1} parent=485 // pred_check
                _
              $region510: #{_lambda_.1} parent=485 // pred_check_branch
                %1734 = sbr.rel target = $region512
              $region511: #{_lambda_.1} parent=485 // pred_region
                _
              $region512: #{_lambda_.1} parent=485 // pred_fallthru
                _
            $region486: #{_lambda_.1} parent=481 // pred_fallthru
              _
            // Predicated region
            $region487: #{_lambda_.1} parent=481 // pred_check
              _
            $region488: #{_lambda_.1} parent=481 // pred_check_branch
              %1681 = sbr.rel target = $region490
            $region489: #{_lambda_.1} parent=481 // pred_region
              loop: start=0, step=1, limit=1
              $region491: #{_lambda_.1} parent=489 // loop_pre_header
                _
              $region492: #{_lambda_.1} parent=489 // loop_header
                %s1684 = sphi 0, %s1688
                %p1685 = scmp.ge.s32.totalorder %s1684, 1
                %s1689 = sphi %s1675, %s1675
                %s1690 = sphi %s1673, %s1673
              $region493: #{_lambda_.1} parent=489 // loop_header_branch
                %1687 = sbr.rel (%p1685) target = $region497
              $region494: #{_lambda_.1} parent=489 // loop_body
                %v1691 = vld [vmem:[%s1689] sm:$0xff]
                %1692 = vst [vmem:[%s1690] sm:$0xff] %v1691
                %v1693 = vld [vmem:[%s1689 + $0x10] sm:$0xff]
                %1694 = vst [vmem:[%s1690 + $0x8] sm:$0xff] %v1693
                %v1695 = vld [vmem:[%s1689 + $0x20] sm:$0xff]
                %1696 = vst [vmem:[%s1690 + $0x10] sm:$0xff] %v1695
                %v1697 = vld [vmem:[%s1689 + $0x30] sm:$0xff]
                %1698 = vst [vmem:[%s1690 + $0x18] sm:$0xff] %v1697
                %v1699 = vld [vmem:[%s1689 + $0x40] sm:$0xff]
                %1700 = vst [vmem:[%s1690 + $0x20] sm:$0xff] %v1699
                %v1701 = vld [vmem:[%s1689 + $0x50] sm:$0xff]
                %1702 = vst [vmem:[%s1690 + $0x28] sm:$0xff] %v1701
                %v1703 = vld [vmem:[%s1689 + $0x60] sm:$0xff]
                %1704 = vst [vmem:[%s1690 + $0x30] sm:$0xff] %v1703
                %v1705 = vld [vmem:[%s1689 + $0x70] sm:$0xff]
                %1706 = vst [vmem:[%s1690 + $0x38] sm:$0xff] %v1705
              $region495: #{_lambda_.1} parent=489 // loop_footer
                %s1688 = sadd.s32 1, %s1684
              $region496: #{_lambda_.1} parent=489 // loop_footer_branch
                %1683 = sbr.rel target = $region492
              $region497: #{_lambda_.1} parent=489 // loop_exit
                _
            $region490: #{_lambda_.1} parent=481 // pred_fallthru
              _
          $region482: #{_lambda_.1} parent=477 // pred_fallthru
            _
          %1735 = vnop
        $region478: #{_lambda_.1} parent=39 // pred_fallthru
          _
        // Predicated region
        $region513: #{_lambda_.1} parent=39 // pred_check
          %p1736 = pneg %p599
        $region514: #{_lambda_.1} parent=39 // pred_check_branch
          %1738 = sbr.rel (%p1736) target = $region516
        $region515: #{_lambda_.1} parent=39 // pred_region
          %s1739 = sand.u32 %s589, 1
          %s1740 = sand.u32 %s589, 1
          %s1741 = smul.addr %s1740, 64
          %s1742 = scalar_lea.vmem [#allocation20], %s1741
          %s1743 = smul.addr %s37, 8
          %s1744 = scalar_lea.vmem %s22, %s1743
          // Predicated region
          $region517: #{_lambda_.1} parent=515 // pred_check
            _
          $region518: #{_lambda_.1} parent=515 // pred_check_branch
            %1746 = sbr.rel (0) target = $region520
          $region519: #{_lambda_.1} parent=515 // pred_region
            // Predicated region
            $region521: #{_lambda_.1} parent=519 // pred_check
              _
            $region522: #{_lambda_.1} parent=519 // pred_check_branch
              %1748 = sbr.rel (0) target = $region524
            $region523: #{_lambda_.1} parent=519 // pred_region
              // Predicated region
              $region536: #{_lambda_.1} parent=523 // pred_check
                _
              $region537: #{_lambda_.1} parent=523 // pred_check_branch
                %1777 = sbr.rel (0) target = $region539
              $region538: #{_lambda_.1} parent=523 // pred_region
                loop: start=0, step=1, limit=1
                $region540: #{_lambda_.1} parent=538 // loop_pre_header
                  _
                $region541: #{_lambda_.1} parent=538 // loop_header
                  %s1779 = sphi 0, %s1783
                  %p1780 = scmp.ge.s32.totalorder %s1779, 1
                  %s1784 = sphi %s1744, %s1744
                  %s1785 = sphi %s1742, %s1742
                $region542: #{_lambda_.1} parent=538 // loop_header_branch
                  %1782 = sbr.rel (%p1780) target = $region546
                $region543: #{_lambda_.1} parent=538 // loop_body
                  %v1786 = vld [vmem:[%s1784] sm:$0xff]
                  %1787 = vst [vmem:[%s1785] sm:$0xff] %v1786
                  %v1788 = vld [vmem:[%s1784 + $0x10] sm:$0xff]
                  %1789 = vst [vmem:[%s1785 + $0x8] sm:$0xff] %v1788
                  %v1790 = vld [vmem:[%s1784 + $0x20] sm:$0xff]
                  %1791 = vst [vmem:[%s1785 + $0x10] sm:$0xff] %v1790
                  %v1792 = vld [vmem:[%s1784 + $0x30] sm:$0xff]
                  %1793 = vst [vmem:[%s1785 + $0x18] sm:$0xff] %v1792
                  %v1794 = vld [vmem:[%s1784 + $0x40] sm:$0xff]
                  %1795 = vst [vmem:[%s1785 + $0x20] sm:$0xff] %v1794
                  %v1796 = vld [vmem:[%s1784 + $0x50] sm:$0xff]
                  %1797 = vst [vmem:[%s1785 + $0x28] sm:$0xff] %v1796
                  %v1798 = vld [vmem:[%s1784 + $0x60] sm:$0xff]
                  %1799 = vst [vmem:[%s1785 + $0x30] sm:$0xff] %v1798
                  %v1800 = vld [vmem:[%s1784 + $0x70] sm:$0xff]
                  %1801 = vst [vmem:[%s1785 + $0x38] sm:$0xff] %v1800
                $region544: #{_lambda_.1} parent=538 // loop_footer
                  %s1783 = sadd.s32 1, %s1779
                $region545: #{_lambda_.1} parent=538 // loop_footer_branch
                  %1778 = sbr.rel target = $region541
                $region546: #{_lambda_.1} parent=538 // loop_exit
                  _
              $region539: #{_lambda_.1} parent=523 // pred_fallthru
                _
              // Predicated region
              $region547: #{_lambda_.1} parent=523 // pred_check
                _
              $region548: #{_lambda_.1} parent=523 // pred_check_branch
                %1803 = sbr.rel target = $region550
              $region549: #{_lambda_.1} parent=523 // pred_region
                _
              $region550: #{_lambda_.1} parent=523 // pred_fallthru
                _
            $region524: #{_lambda_.1} parent=519 // pred_fallthru
              _
            // Predicated region
            $region525: #{_lambda_.1} parent=519 // pred_check
              _
            $region526: #{_lambda_.1} parent=519 // pred_check_branch
              %1750 = sbr.rel target = $region528
            $region527: #{_lambda_.1} parent=519 // pred_region
              loop: start=0, step=1, limit=1
              $region529: #{_lambda_.1} parent=527 // loop_pre_header
                _
              $region530: #{_lambda_.1} parent=527 // loop_header
                %s1753 = sphi 0, %s1757
                %p1754 = scmp.ge.s32.totalorder %s1753, 1
                %s1758 = sphi %s1744, %s1744
                %s1759 = sphi %s1742, %s1742
              $region531: #{_lambda_.1} parent=527 // loop_header_branch
                %1756 = sbr.rel (%p1754) target = $region535
              $region532: #{_lambda_.1} parent=527 // loop_body
                %v1760 = vld [vmem:[%s1758] sm:$0xff]
                %1761 = vst [vmem:[%s1759] sm:$0xff] %v1760
                %v1762 = vld [vmem:[%s1758 + $0x10] sm:$0xff]
                %1763 = vst [vmem:[%s1759 + $0x8] sm:$0xff] %v1762
                %v1764 = vld [vmem:[%s1758 + $0x20] sm:$0xff]
                %1765 = vst [vmem:[%s1759 + $0x10] sm:$0xff] %v1764
                %v1766 = vld [vmem:[%s1758 + $0x30] sm:$0xff]
                %1767 = vst [vmem:[%s1759 + $0x18] sm:$0xff] %v1766
                %v1768 = vld [vmem:[%s1758 + $0x40] sm:$0xff]
                %1769 = vst [vmem:[%s1759 + $0x20] sm:$0xff] %v1768
                %v1770 = vld [vmem:[%s1758 + $0x50] sm:$0xff]
                %1771 = vst [vmem:[%s1759 + $0x28] sm:$0xff] %v1770
                %v1772 = vld [vmem:[%s1758 + $0x60] sm:$0xff]
                %1773 = vst [vmem:[%s1759 + $0x30] sm:$0xff] %v1772
                %v1774 = vld [vmem:[%s1758 + $0x70] sm:$0xff]
                %1775 = vst [vmem:[%s1759 + $0x38] sm:$0xff] %v1774
              $region533: #{_lambda_.1} parent=527 // loop_footer
                %s1757 = sadd.s32 1, %s1753
              $region534: #{_lambda_.1} parent=527 // loop_footer_branch
                %1752 = sbr.rel target = $region530
              $region535: #{_lambda_.1} parent=527 // loop_exit
                _
            $region528: #{_lambda_.1} parent=519 // pred_fallthru
              _
          $region520: #{_lambda_.1} parent=515 // pred_fallthru
            _
          %1804 = vnop
        $region516: #{_lambda_.1} parent=39 // pred_fallthru
          _
      $region40: #{_lambda_.1} parent=5 // pred_fallthru
        _
      %p1805 = scmp.le.s32.totalorder 1, %s37
      %p1806 = scmp.lt.s32.totalorder %s37, 3
      %p1807 = pnand %p1805, %p1806
      %p1808 = pneg %p1807
      // Predicated region
      $region551: #{_lambda_.1} parent=5 // pred_check
        _
      $region552: #{_lambda_.1} parent=5 // pred_check_branch
        %1810 = sbr.rel (%p1807) target = $region554
      $region553: #{_lambda_.1} parent=5 // pred_region
        %s1811 = ssub.s32 %s37, 1
        // Predicated region
        $region555: #{_lambda_.1} parent=553 // pred_check
          %p1812 = pneg %p58
        $region556: #{_lambda_.1} parent=553 // pred_check_branch
          %1814 = sbr.rel (%p1812) target = $region558
        $region557: #{_lambda_.1} parent=553 // pred_region
          %1815 = dma.done [#allocation4], 16
        $region558: #{_lambda_.1} parent=553 // pred_fallthru
          _
        // Predicated region
        $region559: #{_lambda_.1} parent=553 // pred_check
          %p1816 = pneg %p79
        $region560: #{_lambda_.1} parent=553 // pred_check_branch
          %1818 = sbr.rel (%p1816) target = $region562
        $region561: #{_lambda_.1} parent=553 // pred_region
          %1819 = dma.done [#allocation6], 16
        $region562: #{_lambda_.1} parent=553 // pred_fallthru
          _
        // Predicated region
        $region563: #{_lambda_.1} parent=553 // pred_check
          %p1820 = pneg %p100
        $region564: #{_lambda_.1} parent=553 // pred_check_branch
          %1822 = sbr.rel (%p1820) target = $region566
        $region565: #{_lambda_.1} parent=553 // pred_region
          %1823 = dma.done [#allocation6], 16
        $region566: #{_lambda_.1} parent=553 // pred_fallthru
          _
        %s1824 = sand.u32 %s280, 1
        %s1825 = sand.u32 %s280, 1
        %s1826 = smul.addr %s1825, 128
        %s1827 = scalar_lea.vmem [#allocation8], %s1826
        // Predicated region
        $region567: #{_lambda_.1} parent=553 // pred_check
          %p1828 = pneg %p293
        $region568: #{_lambda_.1} parent=553 // pred_check_branch
          %1830 = sbr.rel (%p1828) target = $region570
        $region569: #{_lambda_.1} parent=553 // pred_region
          _
        $region570: #{_lambda_.1} parent=553 // pred_fallthru
          _
        %s1831 = sand.u32 %s306, 1
        %s1832 = sand.u32 %s306, 1
        %s1833 = smul.addr %s1832, 128
        %s1834 = scalar_lea.vmem [#allocation9], %s1833
        // Predicated region
        $region571: #{_lambda_.1} parent=553 // pred_check
          %p1835 = pneg %p319
        $region572: #{_lambda_.1} parent=553 // pred_check_branch
          %1837 = sbr.rel (%p1835) target = $region574
        $region573: #{_lambda_.1} parent=553 // pred_region
          _
        $region574: #{_lambda_.1} parent=553 // pred_fallthru
          _
        %s1838 = sand.u32 %s332, 1
        %s1839 = sand.u32 %s332, 1
        %s1840 = smul.addr %s1839, 128
        %s1841 = scalar_lea.vmem [#allocation10], %s1840
        // Predicated region
        $region575: #{_lambda_.1} parent=553 // pred_check
          %p1842 = pneg %p345
        $region576: #{_lambda_.1} parent=553 // pred_check_branch
          %1844 = sbr.rel (%p1842) target = $region578
        $region577: #{_lambda_.1} parent=553 // pred_region
          _
        $region578: #{_lambda_.1} parent=553 // pred_fallthru
          _
        %s1845 = sand.u32 %s358, 1
        %s1846 = sand.u32 %s358, 1
        %s1847 = smul.addr %s1846, 128
        %s1848 = scalar_lea.vmem [#allocation11], %s1847
        // Predicated region
        $region579: #{_lambda_.1} parent=553 // pred_check
          %p1849 = pneg %p371
        $region580: #{_lambda_.1} parent=553 // pred_check_branch
          %1851 = sbr.rel (%p1849) target = $region582
        $region581: #{_lambda_.1} parent=553 // pred_region
          _
        $region582: #{_lambda_.1} parent=553 // pred_fallthru
          _
        %s1852 = sand.u32 %s384, 1
        %s1853 = sand.u32 %s384, 1
        %s1854 = smul.addr %s1853, 64
        %s1855 = scalar_lea.vmem [#allocation12], %s1854
        // Predicated region
        $region583: #{_lambda_.1} parent=553 // pred_check
          %p1856 = pneg %p397
        $region584: #{_lambda_.1} parent=553 // pred_check_branch
          %1858 = sbr.rel (%p1856) target = $region586
        $region585: #{_lambda_.1} parent=553 // pred_region
          _
        $region586: #{_lambda_.1} parent=553 // pred_fallthru
          _
        %s1859 = sand.u32 %s410, 1
        %s1860 = sand.u32 %s410, 1
        %s1861 = smul.addr %s1860, 64
        %s1862 = scalar_lea.vmem [#allocation13], %s1861
        // Predicated region
        $region587: #{_lambda_.1} parent=553 // pred_check
          %p1863 = pneg %p423
        $region588: #{_lambda_.1} parent=553 // pred_check_branch
          %1865 = sbr.rel (%p1863) target = $region590
        $region589: #{_lambda_.1} parent=553 // pred_region
          _
        $region590: #{_lambda_.1} parent=553 // pred_fallthru
          _
        %s1866 = sand.u32 %s436, 1
        %s1867 = sand.u32 %s436, 1
        %s1868 = smul.addr %s1867, 64
        %s1869 = scalar_lea.vmem [#allocation14], %s1868
        // Predicated region
        $region591: #{_lambda_.1} parent=553 // pred_check
          %p1870 = pneg %p449
        $region592: #{_lambda_.1} parent=553 // pred_check_branch
          %1872 = sbr.rel (%p1870) target = $region594
        $region593: #{_lambda_.1} parent=553 // pred_region
          _
        $region594: #{_lambda_.1} parent=553 // pred_fallthru
          _
        %s1873 = sand.u32 %s462, 1
        %s1874 = sand.u32 %s462, 1
        %s1875 = smul.addr %s1874, 64
        %s1876 = scalar_lea.vmem [#allocation15], %s1875
        // Predicated region
        $region595: #{_lambda_.1} parent=553 // pred_check
          %p1877 = pneg %p475
        $region596: #{_lambda_.1} parent=553 // pred_check_branch
          %1879 = sbr.rel (%p1877) target = $region598
        $region597: #{_lambda_.1} parent=553 // pred_region
          _
        $region598: #{_lambda_.1} parent=553 // pred_fallthru
          _
        %s1880 = sand.u32 %s488, 1
        %s1881 = sand.u32 %s488, 1
        %s1882 = smul.addr %s1881, 64
        %s1883 = scalar_lea.vmem [#allocation16], %s1882
        // Predicated region
        $region599: #{_lambda_.1} parent=553 // pred_check
          %p1884 = pneg %p501
        $region600: #{_lambda_.1} parent=553 // pred_check_branch
          %1886 = sbr.rel (%p1884) target = $region602
        $region601: #{_lambda_.1} parent=553 // pred_region
          _
        $region602: #{_lambda_.1} parent=553 // pred_fallthru
          _
        %s1887 = sand.u32 %s514, 1
        %s1888 = sand.u32 %s514, 1
        %s1889 = smul.addr %s1888, 64
        %s1890 = scalar_lea.vmem [#allocation17], %s1889
        // Predicated region
        $region603: #{_lambda_.1} parent=553 // pred_check
          %p1891 = pneg %p527
        $region604: #{_lambda_.1} parent=553 // pred_check_branch
          %1893 = sbr.rel (%p1891) target = $region606
        $region605: #{_lambda_.1} parent=553 // pred_region
          _
        $region606: #{_lambda_.1} parent=553 // pred_fallthru
          _
        %s1894 = sand.u32 %s540, 1
        %s1895 = sand.u32 %s540, 1
        %s1896 = smul.addr %s1895, 64
        %s1897 = scalar_lea.vmem [#allocation18], %s1896
        // Predicated region
        $region607: #{_lambda_.1} parent=553 // pred_check
          %p1898 = pneg %p553
        $region608: #{_lambda_.1} parent=553 // pred_check_branch
          %1900 = sbr.rel (%p1898) target = $region610
        $region609: #{_lambda_.1} parent=553 // pred_region
          _
        $region610: #{_lambda_.1} parent=553 // pred_fallthru
          _
        %s1901 = sand.u32 %s566, 1
        %s1902 = sand.u32 %s566, 1
        %s1903 = smul.addr %s1902, 64
        %s1904 = scalar_lea.vmem [#allocation19], %s1903
        // Predicated region
        $region611: #{_lambda_.1} parent=553 // pred_check
          %p1905 = pneg %p579
        $region612: #{_lambda_.1} parent=553 // pred_check_branch
          %1907 = sbr.rel (%p1905) target = $region614
        $region613: #{_lambda_.1} parent=553 // pred_region
          _
        $region614: #{_lambda_.1} parent=553 // pred_fallthru
          _
        %s1908 = sand.u32 %s592, 1
        %s1909 = sand.u32 %s592, 1
        %s1910 = smul.addr %s1909, 64
        %s1911 = scalar_lea.vmem [#allocation20], %s1910
        // Predicated region
        $region615: #{_lambda_.1} parent=553 // pred_check
          %p1912 = pneg %p605
        $region616: #{_lambda_.1} parent=553 // pred_check_branch
          %1914 = sbr.rel (%p1912) target = $region618
        $region617: #{_lambda_.1} parent=553 // pred_region
          _
        $region618: #{_lambda_.1} parent=553 // pred_fallthru
          _
        %1915 = sfence
        %p1916 = pneg %p58
        %p1917 = pneg %p55
        %p1918 = pneg %p79
        %p1919 = pneg %p76
        %p1920 = pneg %p100
        %p1921 = pneg %p97
        %p1922 = pneg %p121
        %p1923 = pneg %p118
        %p1924 = pneg %p142
        %p1925 = pneg %p139
        %p1926 = pneg %p163
        %p1927 = pneg %p160
        %s1928 = smul.u32 2, %s42
        %p1929 = scmp.lt.s32.totalorder %s1928, 3
        %s1930 = scalar_select %p1929, %s1928, 3
        %s1931 = smul.addr %s1930, 8
        %s1932 = scalar_lea.vmem %s6, %s1931
        %p1933 = pneg %p189
        %p1934 = pneg %p186
        %s1935 = smul.u32 2, %s42
        %p1936 = scmp.lt.s32.totalorder %s1935, 3
        %s1937 = scalar_select %p1936, %s1935, 3
        %s1938 = smul.addr %s1937, 8
        %s1939 = scalar_lea.vmem %s7, %s1938
        %p1940 = pneg %p215
        %p1941 = pneg %p212
        %p1942 = scmp.lt.s32.totalorder %s42, 1
        %s1943 = scalar_select %p1942, %s42, 1
        %s1944 = smul.addr %s1943, 8
        %s1945 = scalar_lea.vmem %s8, %s1944
        %p1946 = pneg %p241
        %p1947 = pneg %p238
        %p1948 = scmp.lt.s32.totalorder %s42, 1
        %s1949 = scalar_select %p1948, %s42, 1
        %s1950 = smul.addr %s1949, 8
        %s1951 = scalar_lea.vmem %s9, %s1950
        %p1952 = pneg %p267
        %p1953 = pneg %p264
        %s1954 = sand.u32 %s280, 1
        %s1955 = sand.u32 %s280, 1
        %s1956 = smul.addr %s1955, 128
        %s1957 = scalar_lea.vmem [#allocation8], %s1956
        %p1958 = pneg %p293
        %p1959 = pneg %p290
        %s1960 = sand.u32 %s306, 1
        %s1961 = sand.u32 %s306, 1
        %s1962 = smul.addr %s1961, 128
        %s1963 = scalar_lea.vmem [#allocation9], %s1962
        %p1964 = pneg %p319
        %p1965 = pneg %p316
        %s1966 = sand.u32 %s332, 1
        %s1967 = sand.u32 %s332, 1
        %s1968 = smul.addr %s1967, 128
        %s1969 = scalar_lea.vmem [#allocation10], %s1968
        %p1970 = pneg %p345
        %p1971 = pneg %p342
        %s1972 = sand.u32 %s358, 1
        %s1973 = sand.u32 %s358, 1
        %s1974 = smul.addr %s1973, 128
        %s1975 = scalar_lea.vmem [#allocation11], %s1974
        %p1976 = pneg %p371
        %p1977 = pneg %p368
        %s1978 = sand.u32 %s384, 1
        %s1979 = sand.u32 %s384, 1
        %s1980 = smul.addr %s1979, 64
        %s1981 = scalar_lea.vmem [#allocation12], %s1980
        %p1982 = pneg %p397
        %p1983 = pneg %p394
        %s1984 = sand.u32 %s410, 1
        %s1985 = sand.u32 %s410, 1
        %s1986 = smul.addr %s1985, 64
        %s1987 = scalar_lea.vmem [#allocation13], %s1986
        %p1988 = pneg %p423
        %p1989 = pneg %p420
        %s1990 = sand.u32 %s436, 1
        %s1991 = sand.u32 %s436, 1
        %s1992 = smul.addr %s1991, 64
        %s1993 = scalar_lea.vmem [#allocation14], %s1992
        %p1994 = pneg %p449
        %p1995 = pneg %p446
        %s1996 = sand.u32 %s462, 1
        %s1997 = sand.u32 %s462, 1
        %s1998 = smul.addr %s1997, 64
        %s1999 = scalar_lea.vmem [#allocation15], %s1998
        %p2000 = pneg %p475
        %p2001 = pneg %p472
        %s2002 = sand.u32 %s488, 1
        %s2003 = sand.u32 %s488, 1
        %s2004 = smul.addr %s2003, 64
        %s2005 = scalar_lea.vmem [#allocation16], %s2004
        %p2006 = pneg %p501
        %p2007 = pneg %p498
        %s2008 = sand.u32 %s514, 1
        %s2009 = sand.u32 %s514, 1
        %s2010 = smul.addr %s2009, 64
        %s2011 = scalar_lea.vmem [#allocation17], %s2010
        %p2012 = pneg %p527
        %p2013 = pneg %p524
        %s2014 = sand.u32 %s540, 1
        %s2015 = sand.u32 %s540, 1
        %s2016 = smul.addr %s2015, 64
        %s2017 = scalar_lea.vmem [#allocation18], %s2016
        %p2018 = pneg %p553
        %p2019 = pneg %p550
        %s2020 = sand.u32 %s566, 1
        %s2021 = sand.u32 %s566, 1
        %s2022 = smul.addr %s2021, 64
        %s2023 = scalar_lea.vmem [#allocation19], %s2022
        %p2024 = pneg %p579
        %p2025 = pneg %p576
        %s2026 = sand.u32 %s592, 1
        %s2027 = sand.u32 %s592, 1
        %s2028 = smul.addr %s2027, 64
        %s2029 = scalar_lea.vmem [#allocation20], %s2028
        %p2030 = pneg %p605
        %p2031 = pneg %p602
        %p2032 = pneg %p631
        %p2033 = pneg %p628
        %s2034 = sand.u32 %s618, 1
        %s2035 = sand.u32 %s618, 1
        %s2036 = smul.addr %s2035, 64
        %s2037 = scalar_lea.vmem [#allocation21], %s2036
        %p2038 = pneg %p657
        %p2039 = pneg %p654
        %s2040 = sand.u32 %s644, 1
        %s2041 = sand.u32 %s644, 1
        %s2042 = smul.addr %s2041, 64
        %s2043 = scalar_lea.vmem [#allocation22], %s2042
        %p2044 = pneg %p683
        %p2045 = pneg %p680
        %s2046 = sand.u32 %s670, 1
        %s2047 = scalar_lea.sflag [#allocation3], %s2046
        %s2048 = sand.u32 %s670, 1
        %s2049 = smul.addr %s2048, 8
        %s2050 = scalar_lea.vmem [#allocation23], %s2049
        %s2051 = smul.u32 2, %s42
        %p2052 = scmp.lt.s32.totalorder %s2051, 3
        %s2053 = scalar_select %p2052, %s2051, 3
        %s2054 = smul.addr %s2053, 8
        %s2055 = scalar_lea.vmem %s6, %s2054
        %s2056 = smul.u32 2, %s42
        %s2057 = smul.u32 2, %s42
        %p2058 = scmp.lt.s32.totalorder %s2057, 3
        %s2059 = scalar_select %p2058, %s2057, 3
        %s2060 = smul.addr %s2059, 8
        %s2061 = scalar_lea.vmem %s7, %s2060
        %s2062 = smul.u32 2, %s42
        %p2063 = scmp.lt.s32.totalorder %s42, 1
        %s2064 = scalar_select %p2063, %s42, 1
        %s2065 = smul.addr %s2064, 8
        %s2066 = scalar_lea.vmem %s8, %s2065
        %p2067 = scmp.lt.s32.totalorder %s42, 1
        %s2068 = scalar_select %p2067, %s42, 1
        %s2069 = smul.addr %s2068, 8
        %s2070 = scalar_lea.vmem %s9, %s2069
        %s2071 = smul.u32 2, %s42
        %s2072 = smul.u32 2, %s42
        %s2073 = smul.u32 2, %s42
        %s2074 = smul.u32 2, %s42
        %s2075 = smul.u32 %s42, 8
        %v2076 = vlaneseq
        %v2077 = vshrl.u32 %v2076, 7
        %v2078 = vstv %s2075
        %v2079 = vadd.s32 %v2077, %v2078
        %v2080 = vlaneseq
        %v2081 = vand.u32 %v2080, 127
        %vm2082 = vcmp.ge.s32.totalorder %v2079, 2
        %vm2083 = vcmp.le.s32.totalorder %v2079, 13
        %vm2084 = vmand %vm2082, %vm2083
        %vm2085 = vcmp.ge.s32.totalorder %v2081, 2
        %vm2086 = vmand %vm2084, %vm2085
        %vm2087 = vcmp.le.s32.totalorder %v2081, 13
        %vm2088 = vmand %vm2086, %vm2087
        %v2089 = vld [vmem:[%s1848] sm:$0xff]
        %v2090 = vld [vmem:[%s1848 + $0x8] sm:$0xff]
        %v2091 = vld [vmem:[%s1848 + $0x10] sm:$0xff]
        %v2092 = vld [vmem:[%s1848 + $0x18] sm:$0xff]
        %v2093 = vld [vmem:[%s1848 + $0x20] sm:$0xff]
        %v2094 = vld [vmem:[%s1848 + $0x28] sm:$0xff]
        %v2095 = vld [vmem:[%s1848 + $0x30] sm:$0xff]
        %v2096 = vld [vmem:[%s1848 + $0x38] sm:$0xff]
        %v2097 = vld [vmem:[%s1848 + $0x40] sm:$0xff]
        %v2098 = vld [vmem:[%s1848 + $0x48] sm:$0xff]
        %v2099 = vld [vmem:[%s1848 + $0x50] sm:$0xff]
        %v2100 = vld [vmem:[%s1848 + $0x58] sm:$0xff]
        %v2101 = vld [vmem:[%s1848 + $0x60] sm:$0xff]
        %v2102 = vld [vmem:[%s1848 + $0x68] sm:$0xff]
        %v2103 = vld [vmem:[%s1848 + $0x70] sm:$0xff]
        %v2104 = vld [vmem:[%s1848 + $0x78] sm:$0xff]
        %v2105 = vld [vmem:[%s1841] sm:$0xff]
        %v2106 = vld [vmem:[%s1841 + $0x8] sm:$0xff]
        %v2107 = vld [vmem:[%s1841 + $0x10] sm:$0xff]
        %v2108 = vld [vmem:[%s1841 + $0x18] sm:$0xff]
        %v2109 = vld [vmem:[%s1841 + $0x20] sm:$0xff]
        %v2110 = vld [vmem:[%s1841 + $0x28] sm:$0xff]
        %v2111 = vld [vmem:[%s1841 + $0x30] sm:$0xff]
        %v2112 = vld [vmem:[%s1841 + $0x38] sm:$0xff]
        %v2113 = vld [vmem:[%s1841 + $0x40] sm:$0xff]
        %v2114 = vld [vmem:[%s1841 + $0x48] sm:$0xff]
        %v2115 = vld [vmem:[%s1841 + $0x50] sm:$0xff]
        %v2116 = vld [vmem:[%s1841 + $0x58] sm:$0xff]
        %v2117 = vld [vmem:[%s1841 + $0x60] sm:$0xff]
        %v2118 = vld [vmem:[%s1841 + $0x68] sm:$0xff]
        %v2119 = vld [vmem:[%s1841 + $0x70] sm:$0xff]
        %v2120 = vld [vmem:[%s1841 + $0x78] sm:$0xff]
        %v2121 = vld [vmem:[%s1834] sm:$0xff]
        %v2122 = vld [vmem:[%s1834 + $0x8] sm:$0xff]
        %v2123 = vld [vmem:[%s1834 + $0x10] sm:$0xff]
        %v2124 = vld [vmem:[%s1834 + $0x18] sm:$0xff]
        %v2125 = vld [vmem:[%s1834 + $0x20] sm:$0xff]
        %v2126 = vld [vmem:[%s1834 + $0x28] sm:$0xff]
        %v2127 = vld [vmem:[%s1834 + $0x30] sm:$0xff]
        %v2128 = vld [vmem:[%s1834 + $0x38] sm:$0xff]
        %v2129 = vld [vmem:[%s1834 + $0x40] sm:$0xff]
        %v2130 = vld [vmem:[%s1834 + $0x48] sm:$0xff]
        %v2131 = vld [vmem:[%s1834 + $0x50] sm:$0xff]
        %v2132 = vld [vmem:[%s1834 + $0x58] sm:$0xff]
        %v2133 = vld [vmem:[%s1834 + $0x60] sm:$0xff]
        %v2134 = vld [vmem:[%s1834 + $0x68] sm:$0xff]
        %v2135 = vld [vmem:[%s1834 + $0x70] sm:$0xff]
        %v2136 = vld [vmem:[%s1834 + $0x78] sm:$0xff]
        %v2137 = vld [vmem:[%s1827] sm:$0xff]
        %v2138 = vld [vmem:[%s1827 + $0x8] sm:$0xff]
        %v2139 = vld [vmem:[%s1827 + $0x10] sm:$0xff]
        %v2140 = vld [vmem:[%s1827 + $0x18] sm:$0xff]
        %v2141 = vld [vmem:[%s1827 + $0x20] sm:$0xff]
        %v2142 = vld [vmem:[%s1827 + $0x28] sm:$0xff]
        %v2143 = vld [vmem:[%s1827 + $0x30] sm:$0xff]
        %v2144 = vld [vmem:[%s1827 + $0x38] sm:$0xff]
        %v2145 = vld [vmem:[%s1827 + $0x40] sm:$0xff]
        %v2146 = vld [vmem:[%s1827 + $0x48] sm:$0xff]
        %v2147 = vld [vmem:[%s1827 + $0x50] sm:$0xff]
        %v2148 = vld [vmem:[%s1827 + $0x58] sm:$0xff]
        %v2149 = vld [vmem:[%s1827 + $0x60] sm:$0xff]
        %v2150 = vld [vmem:[%s1827 + $0x68] sm:$0xff]
        %v2151 = vld [vmem:[%s1827 + $0x70] sm:$0xff]
        %v2152 = vld [vmem:[%s1827 + $0x78] sm:$0xff]
        %v2153 = vld [vmem:[%s2055] sm:$0xff]
        %v2154 = vld [vmem:[%s2055 + $0x8] sm:$0xff]
        %v2155 = vld [vmem:[%s2061] sm:$0xff]
        %v2156 = vld [vmem:[%s2061 + $0x8] sm:$0xff]
        %v2157 = vld [vmem:[%s1855] sm:$0xff]
        %v2158 = vld [vmem:[%s1855 + $0x8] sm:$0xff]
        %v2159 = vld [vmem:[%s1855 + $0x10] sm:$0xff]
        %v2160 = vld [vmem:[%s1855 + $0x18] sm:$0xff]
        %v2161 = vld [vmem:[%s1855 + $0x20] sm:$0xff]
        %v2162 = vld [vmem:[%s1855 + $0x28] sm:$0xff]
        %v2163 = vld [vmem:[%s1855 + $0x30] sm:$0xff]
        %v2164 = vld [vmem:[%s1855 + $0x38] sm:$0xff]
        %v2165 = vld [vmem:[%s1862] sm:$0xff]
        %v2166 = vld [vmem:[%s1862 + $0x8] sm:$0xff]
        %v2167 = vld [vmem:[%s1862 + $0x10] sm:$0xff]
        %v2168 = vld [vmem:[%s1862 + $0x18] sm:$0xff]
        %v2169 = vld [vmem:[%s1862 + $0x20] sm:$0xff]
        %v2170 = vld [vmem:[%s1862 + $0x28] sm:$0xff]
        %v2171 = vld [vmem:[%s1862 + $0x30] sm:$0xff]
        %v2172 = vld [vmem:[%s1869] sm:$0xff]
        %v2173 = vld [vmem:[%s1869 + $0x8] sm:$0xff]
        %v2174 = vld [vmem:[%s1869 + $0x10] sm:$0xff]
        %v2175 = vld [vmem:[%s1869 + $0x18] sm:$0xff]
        %v2176 = vld [vmem:[%s1869 + $0x20] sm:$0xff]
        %v2177 = vld [vmem:[%s1869 + $0x28] sm:$0xff]
        %v2178 = vld [vmem:[%s1869 + $0x30] sm:$0xff]
        %v2179 = vld [vmem:[%s1869 + $0x38] sm:$0xff]
        %v2180 = vld [vmem:[%s1876] sm:$0xff]
        %v2181 = vld [vmem:[%s1876 + $0x8] sm:$0xff]
        %v2182 = vld [vmem:[%s1876 + $0x10] sm:$0xff]
        %v2183 = vld [vmem:[%s1876 + $0x18] sm:$0xff]
        %v2184 = vld [vmem:[%s1876 + $0x20] sm:$0xff]
        %v2185 = vld [vmem:[%s1876 + $0x28] sm:$0xff]
        %v2186 = vld [vmem:[%s1876 + $0x30] sm:$0xff]
        %v2187 = vld [vmem:[%s1876 + $0x38] sm:$0xff]
        %v2188 = vld [vmem:[%s1883] sm:$0xff]
        %v2189 = vld [vmem:[%s1883 + $0x8] sm:$0xff]
        %v2190 = vld [vmem:[%s1883 + $0x10] sm:$0xff]
        %v2191 = vld [vmem:[%s1883 + $0x18] sm:$0xff]
        %v2192 = vld [vmem:[%s1883 + $0x20] sm:$0xff]
        %v2193 = vld [vmem:[%s1883 + $0x28] sm:$0xff]
        %v2194 = vld [vmem:[%s1883 + $0x30] sm:$0xff]
        %v2195 = vld [vmem:[%s1883 + $0x38] sm:$0xff]
        %v2196 = vld [vmem:[%s1890] sm:$0xff]
        %v2197 = vld [vmem:[%s1890 + $0x8] sm:$0xff]
        %v2198 = vld [vmem:[%s1890 + $0x10] sm:$0xff]
        %v2199 = vld [vmem:[%s1890 + $0x18] sm:$0xff]
        %v2200 = vld [vmem:[%s1890 + $0x20] sm:$0xff]
        %v2201 = vld [vmem:[%s1890 + $0x28] sm:$0xff]
        %v2202 = vld [vmem:[%s1890 + $0x30] sm:$0xff]
        %v2203 = vld [vmem:[%s1890 + $0x38] sm:$0xff]
        %v2204 = vld [vmem:[%s1897] sm:$0xff]
        %v2205 = vld [vmem:[%s1897 + $0x8] sm:$0xff]
        %v2206 = vld [vmem:[%s1897 + $0x10] sm:$0xff]
        %v2207 = vld [vmem:[%s1897 + $0x18] sm:$0xff]
        %v2208 = vld [vmem:[%s1897 + $0x20] sm:$0xff]
        %v2209 = vld [vmem:[%s1897 + $0x28] sm:$0xff]
        %v2210 = vld [vmem:[%s1897 + $0x30] sm:$0xff]
        %v2211 = vld [vmem:[%s1897 + $0x38] sm:$0xff]
        %v2212 = vld [vmem:[%s1904] sm:$0xff]
        %v2213 = vld [vmem:[%s1904 + $0x8] sm:$0xff]
        %v2214 = vld [vmem:[%s1904 + $0x10] sm:$0xff]
        %v2215 = vld [vmem:[%s1904 + $0x18] sm:$0xff]
        %v2216 = vld [vmem:[%s1904 + $0x20] sm:$0xff]
        %v2217 = vld [vmem:[%s1904 + $0x28] sm:$0xff]
        %v2218 = vld [vmem:[%s1904 + $0x30] sm:$0xff]
        %v2219 = vld [vmem:[%s1904 + $0x38] sm:$0xff]
        %v2220 = vld [vmem:[%s1911] sm:$0xff]
        %v2221 = vld [vmem:[%s1911 + $0x8] sm:$0xff]
        %v2222 = vld [vmem:[%s1911 + $0x10] sm:$0xff]
        %v2223 = vld [vmem:[%s1911 + $0x18] sm:$0xff]
        %v2224 = vld [vmem:[%s1911 + $0x20] sm:$0xff]
        %v2225 = vld [vmem:[%s1911 + $0x28] sm:$0xff]
        %v2226 = vld [vmem:[%s1911 + $0x30] sm:$0xff]
        %v2227 = vld [vmem:[%s1911 + $0x38] sm:$0xff]
        %v2228 = vld [vmem:[%s2066] sm:$0xff]
        %v2229 = vld [vmem:[%s2070] sm:$0xff]
        %v2230 = vld [vmem:[%s3] sm:$0x1]
        %v2231 = vld [vmem:[%s4] sm:$0x1]
        %v2232 = vld [vmem:[%s5] sm:$0x1]
        %v2233 = vsub.s32 %v2229, 1
        %vm2234 = vcmp.ge.s32.totalorder %v2233, 0
        %v2235 = vmax.f32 %v2089, 0.0
        %v2236 = vmax.f32 %v2090, 0.0
        %v2237 = vmax.f32 %v2091, 0.0
        %v2238 = vmax.f32 %v2092, 0.0
        %v2239 = vmax.f32 %v2093, 0.0
        %v2240 = vmax.f32 %v2094, 0.0
        %v2241 = vmax.f32 %v2095, 0.0
        %v2242 = vmax.f32 %v2096, 0.0
        %v2243 = vmax.f32 %v2097, 0.0
        %v2244 = vmax.f32 %v2098, 0.0
        %v2245 = vmax.f32 %v2099, 0.0
        %v2246 = vmax.f32 %v2100, 0.0
        %v2247 = vmax.f32 %v2101, 0.0
        %v2248 = vmax.f32 %v2102, 0.0
        %v2249 = vmax.f32 %v2103, 0.0
        %v2250 = vmax.f32 %v2104, 0.0
        %v2251 = vrsqrt.pop %v2235
        %v2252 = vmul.f32 %v2235, %v2251
        %vm2253 = vcmp.eq.f32.partialorder %v2235, inf
        %v2254 = vsel %vm2253, %v2235, %v2252
        %vm2255 = vcmp.eq.f32.partialorder %v2235, 0.0
        %v2256 = vand.u32 %v2235, 2147483648
        %v2257 = vsel %vm2255, %v2256, %v2254
        %v2258 = vrsqrt.pop %v2236
        %v2259 = vmul.f32 %v2236, %v2258
        %vm2260 = vcmp.eq.f32.partialorder %v2236, inf
        %v2261 = vsel %vm2260, %v2236, %v2259
        %vm2262 = vcmp.eq.f32.partialorder %v2236, 0.0
        %v2263 = vand.u32 %v2236, 2147483648
        %v2264 = vsel %vm2262, %v2263, %v2261
        %v2265 = vrsqrt.pop %v2237
        %v2266 = vmul.f32 %v2237, %v2265
        %vm2267 = vcmp.eq.f32.partialorder %v2237, inf
        %v2268 = vsel %vm2267, %v2237, %v2266
        %vm2269 = vcmp.eq.f32.partialorder %v2237, 0.0
        %v2270 = vand.u32 %v2237, 2147483648
        %v2271 = vsel %vm2269, %v2270, %v2268
        %v2272 = vrsqrt.pop %v2238
        %v2273 = vmul.f32 %v2238, %v2272
        %vm2274 = vcmp.eq.f32.partialorder %v2238, inf
        %v2275 = vsel %vm2274, %v2238, %v2273
        %vm2276 = vcmp.eq.f32.partialorder %v2238, 0.0
        %v2277 = vand.u32 %v2238, 2147483648
        %v2278 = vsel %vm2276, %v2277, %v2275
        %v2279 = vrsqrt.pop %v2239
        %v2280 = vmul.f32 %v2239, %v2279
        %vm2281 = vcmp.eq.f32.partialorder %v2239, inf
        %v2282 = vsel %vm2281, %v2239, %v2280
        %vm2283 = vcmp.eq.f32.partialorder %v2239, 0.0
        %v2284 = vand.u32 %v2239, 2147483648
        %v2285 = vsel %vm2283, %v2284, %v2282
        %v2286 = vrsqrt.pop %v2240
        %v2287 = vmul.f32 %v2240, %v2286
        %vm2288 = vcmp.eq.f32.partialorder %v2240, inf
        %v2289 = vsel %vm2288, %v2240, %v2287
        %vm2290 = vcmp.eq.f32.partialorder %v2240, 0.0
        %v2291 = vand.u32 %v2240, 2147483648
        %v2292 = vsel %vm2290, %v2291, %v2289
        %v2293 = vrsqrt.pop %v2241
        %v2294 = vmul.f32 %v2241, %v2293
        %vm2295 = vcmp.eq.f32.partialorder %v2241, inf
        %v2296 = vsel %vm2295, %v2241, %v2294
        %vm2297 = vcmp.eq.f32.partialorder %v2241, 0.0
        %v2298 = vand.u32 %v2241, 2147483648
        %v2299 = vsel %vm2297, %v2298, %v2296
        %v2300 = vrsqrt.pop %v2242
        %v2301 = vmul.f32 %v2242, %v2300
        %vm2302 = vcmp.eq.f32.partialorder %v2242, inf
        %v2303 = vsel %vm2302, %v2242, %v2301
        %vm2304 = vcmp.eq.f32.partialorder %v2242, 0.0
        %v2305 = vand.u32 %v2242, 2147483648
        %v2306 = vsel %vm2304, %v2305, %v2303
        %v2307 = vrsqrt.pop %v2243
        %v2308 = vmul.f32 %v2243, %v2307
        %vm2309 = vcmp.eq.f32.partialorder %v2243, inf
        %v2310 = vsel %vm2309, %v2243, %v2308
        %vm2311 = vcmp.eq.f32.partialorder %v2243, 0.0
        %v2312 = vand.u32 %v2243, 2147483648
        %v2313 = vsel %vm2311, %v2312, %v2310
        %v2314 = vrsqrt.pop %v2244
        %v2315 = vmul.f32 %v2244, %v2314
        %vm2316 = vcmp.eq.f32.partialorder %v2244, inf
        %v2317 = vsel %vm2316, %v2244, %v2315
        %vm2318 = vcmp.eq.f32.partialorder %v2244, 0.0
        %v2319 = vand.u32 %v2244, 2147483648
        %v2320 = vsel %vm2318, %v2319, %v2317
        %v2321 = vrsqrt.pop %v2245
        %v2322 = vmul.f32 %v2245, %v2321
        %vm2323 = vcmp.eq.f32.partialorder %v2245, inf
        %v2324 = vsel %vm2323, %v2245, %v2322
        %vm2325 = vcmp.eq.f32.partialorder %v2245, 0.0
        %v2326 = vand.u32 %v2245, 2147483648
        %v2327 = vsel %vm2325, %v2326, %v2324
        %v2328 = vrsqrt.pop %v2246
        %v2329 = vmul.f32 %v2246, %v2328
        %vm2330 = vcmp.eq.f32.partialorder %v2246, inf
        %v2331 = vsel %vm2330, %v2246, %v2329
        %vm2332 = vcmp.eq.f32.partialorder %v2246, 0.0
        %v2333 = vand.u32 %v2246, 2147483648
        %v2334 = vsel %vm2332, %v2333, %v2331
        %v2335 = vrsqrt.pop %v2247
        %v2336 = vmul.f32 %v2247, %v2335
        %vm2337 = vcmp.eq.f32.partialorder %v2247, inf
        %v2338 = vsel %vm2337, %v2247, %v2336
        %vm2339 = vcmp.eq.f32.partialorder %v2247, 0.0
        %v2340 = vand.u32 %v2247, 2147483648
        %v2341 = vsel %vm2339, %v2340, %v2338
        %v2342 = vrsqrt.pop %v2248
        %v2343 = vmul.f32 %v2248, %v2342
        %vm2344 = vcmp.eq.f32.partialorder %v2248, inf
        %v2345 = vsel %vm2344, %v2248, %v2343
        %vm2346 = vcmp.eq.f32.partialorder %v2248, 0.0
        %v2347 = vand.u32 %v2248, 2147483648
        %v2348 = vsel %vm2346, %v2347, %v2345
        %v2349 = vrsqrt.pop %v2249
        %v2350 = vmul.f32 %v2249, %v2349
        %vm2351 = vcmp.eq.f32.partialorder %v2249, inf
        %v2352 = vsel %vm2351, %v2249, %v2350
        %vm2353 = vcmp.eq.f32.partialorder %v2249, 0.0
        %v2354 = vand.u32 %v2249, 2147483648
        %v2355 = vsel %vm2353, %v2354, %v2352
        %v2356 = vrsqrt.pop %v2250
        %v2357 = vmul.f32 %v2250, %v2356
        %vm2358 = vcmp.eq.f32.partialorder %v2250, inf
        %v2359 = vsel %vm2358, %v2250, %v2357
        %vm2360 = vcmp.eq.f32.partialorder %v2250, 0.0
        %v2361 = vand.u32 %v2250, 2147483648
        %v2362 = vsel %vm2360, %v2361, %v2359
        %v2363 = vmul.f32 %v2257, 0.7
        %v2364 = vmul.f32 %v2264, 0.7
        %v2366 = vrot.slane %v2188, 4
        %v2368 = vrcp.pop %v2366
        %v2369 = vmul.f32 %v2363, %v2368
        %v2370 = vmul.f32 %v2364, %v2368
        %v2372 = vrot.slane %v2196, 4
        %v2374 = vadd.f32 %v2089, %v2372
        %v2375 = vadd.f32 %v2090, %v2372
        %s2376 = sld [smem:[#allocation7 + $0x1]]
        %s2377 = smul.f32 %s2376, 0.5
        %v2378 = vadd.f32 %v2180, %v2181
        %v2379 = vstv %s2377
        %v2380 = vmul.f32 %v2379, %v2378
        %s2381 = sld [smem:[#allocation5]]
        %v2382 = vstv %s2381
        %v2383 = vmul.f32 %v2380, %v2382
        %v2384 = vadd.f32 %v2383, 1.0
        %vm2387 = vcmask 1043456
        %v2388 = vrot.slane %v2369, 4
        %v2389 = vrot.slane %v2370, 4
        %v2390 = vsel %vm2387, %v2388, %v2389
        %v2392 = vadd.f32 %v2384, %v2390
        %v2393 = vsub.f32 0.0, %v2380
        %v2394 = vmul.f32 %v2393, %v2382
        %vm2395 = vcmp.eq.s32.totalorder %v2233, 0
        %vm2396 = vmand %vm2234, %vm2395
        %vm2397 = vcmp.le.s32.totalorder %v2233, 0
        %vm2398 = vmand %vm2234, %vm2397
        %v2399 = vsel %vm2396, %v2392, 1.0
        %v2400 = vsel %vm2398, %v2394, 0.0
        %v2403 = vrot.slane %v2374, 4
        %v2404 = vrot.slane %v2375, 4
        %v2405 = vsel %vm2387, %v2403, %v2404
        %v2407 = vsel %vm2398, %v2405, 0.0
        %v2408 = vrcp.pop %v2399
        %v2409 = vmul.f32 %v2400, %v2408
        %v2410 = vmul.f32 %v2407, %v2408
        %v2411 = vmul.f32 %v2271, 0.7
        %v2412 = vmul.f32 %v2278, 0.7
        %v2414 = vrot.slane %v2189, 4
        %v2416 = vrcp.pop %v2414
        %v2417 = vmul.f32 %v2411, %v2416
        %v2418 = vmul.f32 %v2412, %v2416
        %v2420 = vrot.slane %v2197, 4
        %v2422 = vadd.f32 %v2091, %v2420
        %v2423 = vadd.f32 %v2092, %v2420
        %s2424 = sld [smem:[#allocation7 + $0x2]]
        %s2425 = smul.f32 %s2424, 0.5
        %v2426 = vadd.f32 %v2181, %v2182
        %v2427 = vstv %s2425
        %v2428 = vmul.f32 %v2427, %v2426
        %s2429 = sld [smem:[#allocation5 + $0x1]]
        %v2430 = vstv %s2429
        %v2431 = vmul.f32 %v2393, %v2430
        %v2432 = vadd.f32 %v2428, %v2380
        %v2433 = vmul.f32 %v2432, %v2430
        %v2434 = vadd.f32 %v2433, 1.0
        %v2437 = vrot.slane %v2417, 4
        %v2438 = vrot.slane %v2418, 4
        %v2439 = vsel %vm2387, %v2437, %v2438
        %v2441 = vadd.f32 %v2434, %v2439
        %v2442 = vmul.f32 %v2428, %v2430
        %v2443 = vadd.f32 %v2442, 1.0
        %v2444 = vadd.f32 %v2443, %v2439
        %v2445 = vsub.f32 0.0, %v2428
        %v2446 = vmul.f32 %v2445, %v2430
        %vm2447 = vcmp.eq.s32.totalorder %v2233, 1
        %vm2448 = vmand %vm2234, %vm2447
        %vm2449 = vcmp.le.s32.totalorder %v2233, 1
        %vm2450 = vmand %vm2234, %vm2449
        %v2451 = vsel %vm2450, %v2441, 1.0
        %v2452 = vsel %vm2448, %v2444, %v2451
        %v2453 = vsel %vm2450, %v2446, 0.0
        %v2456 = vrot.slane %v2422, 4
        %v2457 = vrot.slane %v2423, 4
        %v2458 = vsel %vm2387, %v2456, %v2457
        %v2460 = vsel %vm2450, %v2458, 0.0
        %vm2461 = vmxor %vm2448, 1
        %vm2462 = vmand %vm2450, %vm2461
        %v2463 = vsel %vm2462, %v2431, 0.0
        %v2464 = vmul.f32 %v2463, %v2409
        %v2465 = vsub.f32 %v2452, %v2464
        %v2466 = vmul.f32 %v2463, %v2410
        %v2467 = vsub.f32 %v2460, %v2466
        %v2468 = vrcp.pop %v2465
        %v2469 = vmul.f32 %v2453, %v2468
        %v2470 = vmul.f32 %v2467, %v2468
        %v2471 = vmul.f32 %v2285, 0.7
        %v2472 = vmul.f32 %v2292, 0.7
        %v2474 = vrot.slane %v2190, 4
        %v2476 = vrcp.pop %v2474
        %v2477 = vmul.f32 %v2471, %v2476
        %v2478 = vmul.f32 %v2472, %v2476
        %v2480 = vrot.slane %v2198, 4
        %v2482 = vadd.f32 %v2093, %v2480
        %v2483 = vadd.f32 %v2094, %v2480
        %s2484 = sld [smem:[#allocation7 + $0x3]]
        %s2485 = smul.f32 %s2484, 0.5
        %v2486 = vadd.f32 %v2182, %v2183
        %v2487 = vstv %s2485
        %v2488 = vmul.f32 %v2487, %v2486
        %s2489 = sld [smem:[#allocation5 + $0x2]]
        %v2490 = vstv %s2489
        %v2491 = vmul.f32 %v2445, %v2490
        %v2492 = vadd.f32 %v2488, %v2428
        %v2493 = vmul.f32 %v2492, %v2490
        %v2494 = vadd.f32 %v2493, 1.0
        %v2497 = vrot.slane %v2477, 4
        %v2498 = vrot.slane %v2478, 4
        %v2499 = vsel %vm2387, %v2497, %v2498
        %v2501 = vadd.f32 %v2494, %v2499
        %v2502 = vmul.f32 %v2488, %v2490
        %v2503 = vadd.f32 %v2502, 1.0
        %v2504 = vadd.f32 %v2503, %v2499
        %v2505 = vsub.f32 0.0, %v2488
        %v2506 = vmul.f32 %v2505, %v2490
        %vm2507 = vcmp.eq.s32.totalorder %v2233, 2
        %vm2508 = vmand %vm2234, %vm2507
        %vm2509 = vcmp.le.s32.totalorder %v2233, 2
        %vm2510 = vmand %vm2234, %vm2509
        %v2511 = vsel %vm2510, %v2501, 1.0
        %v2512 = vsel %vm2508, %v2504, %v2511
        %v2513 = vsel %vm2510, %v2506, 0.0
        %v2516 = vrot.slane %v2482, 4
        %v2517 = vrot.slane %v2483, 4
        %v2518 = vsel %vm2387, %v2516, %v2517
        %v2520 = vsel %vm2510, %v2518, 0.0
        %vm2521 = vmxor %vm2508, 1
        %vm2522 = vmand %vm2510, %vm2521
        %v2523 = vsel %vm2522, %v2491, 0.0
        %v2524 = vmul.f32 %v2523, %v2469
        %v2525 = vsub.f32 %v2512, %v2524
        %v2526 = vmul.f32 %v2523, %v2470
        %v2527 = vsub.f32 %v2520, %v2526
        %v2528 = vrcp.pop %v2525
        %v2529 = vmul.f32 %v2513, %v2528
        %v2530 = vmul.f32 %v2527, %v2528
        %v2531 = vmul.f32 %v2299, 0.7
        %v2532 = vmul.f32 %v2306, 0.7
        %v2534 = vrot.slane %v2191, 4
        %v2536 = vrcp.pop %v2534
        %v2537 = vmul.f32 %v2531, %v2536
        %v2538 = vmul.f32 %v2532, %v2536
        %v2540 = vrot.slane %v2199, 4
        %v2542 = vadd.f32 %v2095, %v2540
        %v2543 = vadd.f32 %v2096, %v2540
        %s2544 = sld [smem:[#allocation7 + $0x4]]
        %s2545 = smul.f32 %s2544, 0.5
        %v2546 = vadd.f32 %v2183, %v2184
        %v2547 = vstv %s2545
        %v2548 = vmul.f32 %v2547, %v2546
        %s2549 = sld [smem:[#allocation5 + $0x3]]
        %v2550 = vstv %s2549
        %v2551 = vmul.f32 %v2505, %v2550
        %v2552 = vadd.f32 %v2548, %v2488
        %v2553 = vmul.f32 %v2552, %v2550
        %v2554 = vadd.f32 %v2553, 1.0
        %v2557 = vrot.slane %v2537, 4
        %v2558 = vrot.slane %v2538, 4
        %v2559 = vsel %vm2387, %v2557, %v2558
        %v2561 = vadd.f32 %v2554, %v2559
        %v2562 = vmul.f32 %v2548, %v2550
        %v2563 = vadd.f32 %v2562, 1.0
        %v2564 = vadd.f32 %v2563, %v2559
        %v2565 = vsub.f32 0.0, %v2548
        %v2566 = vmul.f32 %v2565, %v2550
        %vm2567 = vcmp.eq.s32.totalorder %v2233, 3
        %vm2568 = vmand %vm2234, %vm2567
        %vm2569 = vcmp.le.s32.totalorder %v2233, 3
        %vm2570 = vmand %vm2234, %vm2569
        %v2571 = vsel %vm2570, %v2561, 1.0
        %v2572 = vsel %vm2568, %v2564, %v2571
        %v2573 = vsel %vm2570, %v2566, 0.0
        %v2576 = vrot.slane %v2542, 4
        %v2577 = vrot.slane %v2543, 4
        %v2578 = vsel %vm2387, %v2576, %v2577
        %v2580 = vsel %vm2570, %v2578, 0.0
        %vm2581 = vmxor %vm2568, 1
        %vm2582 = vmand %vm2570, %vm2581
        %v2583 = vsel %vm2582, %v2551, 0.0
        %v2584 = vmul.f32 %v2583, %v2529
        %v2585 = vsub.f32 %v2572, %v2584
        %v2586 = vmul.f32 %v2583, %v2530
        %v2587 = vsub.f32 %v2580, %v2586
        %v2588 = vrcp.pop %v2585
        %v2589 = vmul.f32 %v2573, %v2588
        %v2590 = vmul.f32 %v2587, %v2588
        %v2591 = vmul.f32 %v2313, 0.7
        %v2592 = vmul.f32 %v2320, 0.7
        %v2594 = vrot.slane %v2192, 4
        %v2596 = vrcp.pop %v2594
        %v2597 = vmul.f32 %v2591, %v2596
        %v2598 = vmul.f32 %v2592, %v2596
        %v2600 = vrot.slane %v2200, 4
        %v2602 = vadd.f32 %v2097, %v2600
        %v2603 = vadd.f32 %v2098, %v2600
        %s2604 = sld [smem:[#allocation7 + $0x5]]
        %s2605 = smul.f32 %s2604, 0.5
        %v2606 = vadd.f32 %v2184, %v2185
        %v2607 = vstv %s2605
        %v2608 = vmul.f32 %v2607, %v2606
        %s2609 = sld [smem:[#allocation5 + $0x4]]
        %v2610 = vstv %s2609
        %v2611 = vmul.f32 %v2565, %v2610
        %v2612 = vadd.f32 %v2608, %v2548
        %v2613 = vmul.f32 %v2612, %v2610
        %v2614 = vadd.f32 %v2613, 1.0
        %v2617 = vrot.slane %v2597, 4
        %v2618 = vrot.slane %v2598, 4
        %v2619 = vsel %vm2387, %v2617, %v2618
        %v2621 = vadd.f32 %v2614, %v2619
        %v2622 = vmul.f32 %v2608, %v2610
        %v2623 = vadd.f32 %v2622, 1.0
        %v2624 = vadd.f32 %v2623, %v2619
        %v2625 = vsub.f32 0.0, %v2608
        %v2626 = vmul.f32 %v2625, %v2610
        %vm2627 = vcmp.eq.s32.totalorder %v2233, 4
        %vm2628 = vmand %vm2234, %vm2627
        %vm2629 = vcmp.le.s32.totalorder %v2233, 4
        %vm2630 = vmand %vm2234, %vm2629
        %v2631 = vsel %vm2630, %v2621, 1.0
        %v2632 = vsel %vm2628, %v2624, %v2631
        %v2633 = vsel %vm2630, %v2626, 0.0
        %v2636 = vrot.slane %v2602, 4
        %v2637 = vrot.slane %v2603, 4
        %v2638 = vsel %vm2387, %v2636, %v2637
        %v2640 = vsel %vm2630, %v2638, 0.0
        %vm2641 = vmxor %vm2628, 1
        %vm2642 = vmand %vm2630, %vm2641
        %v2643 = vsel %vm2642, %v2611, 0.0
        %v2644 = vmul.f32 %v2643, %v2589
        %v2645 = vsub.f32 %v2632, %v2644
        %v2646 = vmul.f32 %v2643, %v2590
        %v2647 = vsub.f32 %v2640, %v2646
        %v2648 = vrcp.pop %v2645
        %v2649 = vmul.f32 %v2633, %v2648
        %v2650 = vmul.f32 %v2647, %v2648
        %v2651 = vmul.f32 %v2327, 0.7
        %v2652 = vmul.f32 %v2334, 0.7
        %v2654 = vrot.slane %v2193, 4
        %v2656 = vrcp.pop %v2654
        %v2657 = vmul.f32 %v2651, %v2656
        %v2658 = vmul.f32 %v2652, %v2656
        %v2660 = vrot.slane %v2201, 4
        %v2662 = vadd.f32 %v2099, %v2660
        %v2663 = vadd.f32 %v2100, %v2660
        %s2664 = sld [smem:[#allocation7 + $0x6]]
        %s2665 = smul.f32 %s2664, 0.5
        %v2666 = vadd.f32 %v2185, %v2186
        %v2667 = vstv %s2665
        %v2668 = vmul.f32 %v2667, %v2666
        %s2669 = sld [smem:[#allocation5 + $0x5]]
        %v2670 = vstv %s2669
        %v2671 = vmul.f32 %v2625, %v2670
        %v2672 = vadd.f32 %v2668, %v2608
        %v2673 = vmul.f32 %v2672, %v2670
        %v2674 = vadd.f32 %v2673, 1.0
        %v2677 = vrot.slane %v2657, 4
        %v2678 = vrot.slane %v2658, 4
        %v2679 = vsel %vm2387, %v2677, %v2678
        %v2681 = vadd.f32 %v2674, %v2679
        %v2682 = vmul.f32 %v2668, %v2670
        %v2683 = vadd.f32 %v2682, 1.0
        %v2684 = vadd.f32 %v2683, %v2679
        %v2685 = vsub.f32 0.0, %v2668
        %v2686 = vmul.f32 %v2685, %v2670
        %vm2687 = vcmp.eq.s32.totalorder %v2233, 5
        %vm2688 = vmand %vm2234, %vm2687
        %vm2689 = vcmp.le.s32.totalorder %v2233, 5
        %vm2690 = vmand %vm2234, %vm2689
        %v2691 = vsel %vm2690, %v2681, 1.0
        %v2692 = vsel %vm2688, %v2684, %v2691
        %v2693 = vsel %vm2690, %v2686, 0.0
        %v2696 = vrot.slane %v2662, 4
        %v2697 = vrot.slane %v2663, 4
        %v2698 = vsel %vm2387, %v2696, %v2697
        %v2700 = vsel %vm2690, %v2698, 0.0
        %vm2701 = vmxor %vm2688, 1
        %vm2702 = vmand %vm2690, %vm2701
        %v2703 = vsel %vm2702, %v2671, 0.0
        %v2704 = vmul.f32 %v2703, %v2649
        %v2705 = vsub.f32 %v2692, %v2704
        %v2706 = vmul.f32 %v2703, %v2650
        %v2707 = vsub.f32 %v2700, %v2706
        %v2708 = vrcp.pop %v2705
        %v2709 = vmul.f32 %v2693, %v2708
        %v2710 = vmul.f32 %v2707, %v2708
        %v2711 = vmul.f32 %v2341, 0.7
        %v2712 = vmul.f32 %v2348, 0.7
        %v2714 = vrot.slane %v2194, 4
        %v2716 = vrcp.pop %v2714
        %v2717 = vmul.f32 %v2711, %v2716
        %v2718 = vmul.f32 %v2712, %v2716
        %v2720 = vrot.slane %v2202, 4
        %v2722 = vadd.f32 %v2101, %v2720
        %v2723 = vadd.f32 %v2102, %v2720
        %s2724 = sld [smem:[#allocation7 + $0x7]]
        %s2725 = smul.f32 %s2724, 0.5
        %v2726 = vadd.f32 %v2186, %v2187
        %v2727 = vstv %s2725
        %v2728 = vmul.f32 %v2727, %v2726
        %s2729 = sld [smem:[#allocation5 + $0x6]]
        %v2730 = vstv %s2729
        %v2731 = vmul.f32 %v2685, %v2730
        %v2732 = vadd.f32 %v2728, %v2668
        %v2733 = vmul.f32 %v2732, %v2730
        %v2734 = vadd.f32 %v2733, 1.0
        %v2737 = vrot.slane %v2717, 4
        %v2738 = vrot.slane %v2718, 4
        %v2739 = vsel %vm2387, %v2737, %v2738
        %v2741 = vadd.f32 %v2734, %v2739
        %v2742 = vmul.f32 %v2728, %v2730
        %v2743 = vadd.f32 %v2742, 1.0
        %v2744 = vadd.f32 %v2743, %v2739
        %v2745 = vsub.f32 0.0, %v2728
        %v2746 = vmul.f32 %v2745, %v2730
        %vm2747 = vcmp.eq.s32.totalorder %v2233, 6
        %vm2748 = vmand %vm2234, %vm2747
        %vm2749 = vcmp.le.s32.totalorder %v2233, 6
        %vm2750 = vmand %vm2234, %vm2749
        %v2751 = vsel %vm2750, %v2741, 1.0
        %v2752 = vsel %vm2748, %v2744, %v2751
        %v2753 = vsel %vm2750, %v2746, 0.0
        %v2756 = vrot.slane %v2722, 4
        %v2757 = vrot.slane %v2723, 4
        %v2758 = vsel %vm2387, %v2756, %v2757
        %v2760 = vsel %vm2750, %v2758, 0.0
        %vm2761 = vmxor %vm2748, 1
        %vm2762 = vmand %vm2750, %vm2761
        %v2763 = vsel %vm2762, %v2731, 0.0
        %v2764 = vmul.f32 %v2763, %v2709
        %v2765 = vsub.f32 %v2752, %v2764
        %v2766 = vmul.f32 %v2763, %v2710
        %v2767 = vsub.f32 %v2760, %v2766
        %v2768 = vrcp.pop %v2765
        %v2769 = vmul.f32 %v2753, %v2768
        %v2770 = vmul.f32 %v2767, %v2768
        %v2771 = vmul.f32 %v2355, 0.7
        %v2772 = vmul.f32 %v2362, 0.7
        %v2774 = vrot.slane %v2195, 4
        %v2776 = vrcp.pop %v2774
        %v2777 = vmul.f32 %v2771, %v2776
        %v2778 = vmul.f32 %v2772, %v2776
        %v2780 = vrot.slane %v2203, 4
        %v2782 = vadd.f32 %v2103, %v2780
        %v2783 = vadd.f32 %v2104, %v2780
        %s2784 = sld [smem:[#allocation5 + $0x7]]
        %s2785 = smul.f32 %s2784, 2.0
        %v2786 = vstv %s2785
        %v2787 = vmul.f32 %v2745, %v2786
        %v2788 = vmul.f32 %v2728, %v2786
        %v2789 = vadd.f32 %v2788, 1.0
        %v2792 = vrot.slane %v2777, 4
        %v2793 = vrot.slane %v2778, 4
        %v2794 = vsel %vm2387, %v2792, %v2793
        %v2796 = vadd.f32 %v2789, %v2794
        %v2797 = vadd.f32 %v2777, 1.0
        %v2798 = vadd.f32 %v2778, 1.0
        %v2799 = vmul.f32 %v2786, %v2228
        %v2801 = vrot.slane %v2799, 4
        %v2803 = vadd.f32 %v2782, %v2801
        %v2804 = vadd.f32 %v2783, %v2801
        %vm2805 = vcmp.eq.s32.totalorder %v2233, 7
        %vm2806 = vmand %vm2234, %vm2805
        %vm2807 = vcmp.le.s32.totalorder %v2233, 7
        %vm2808 = vmand %vm2234, %vm2807
        %v2809 = vsel %vm2808, %v2796, 1.0
        %v2812 = vrot.slane %v2797, 4
        %v2813 = vrot.slane %v2798, 4
        %v2814 = vsel %vm2387, %v2812, %v2813
        %v2816 = vsel %vm2806, %v2814, %v2809
        %v2819 = vrot.slane %v2803, 4
        %v2820 = vrot.slane %v2804, 4
        %v2821 = vsel %vm2387, %v2819, %v2820
        %v2823 = vsel %vm2808, %v2821, 0.0
        %vm2824 = vmxor %vm2806, 1
        %vm2825 = vmand %vm2808, %vm2824
        %v2826 = vsel %vm2825, %v2787, 0.0
        %v2827 = vmul.f32 %v2826, %v2769
        %v2828 = vsub.f32 %v2816, %v2827
        %v2829 = vmul.f32 %v2826, %v2770
        %v2830 = vsub.f32 %v2823, %v2829
        %v2831 = vrcp.pop %v2828
        %v2832 = vmul.f32 %v2830, %v2831
        %v2833 = vmul.f32 %v2769, %v2832
        %v2834 = vsub.f32 %v2770, %v2833
        %v2835 = vmul.f32 %v2709, %v2834
        %v2836 = vsub.f32 %v2710, %v2835
        %v2837 = vmul.f32 %v2649, %v2836
        %v2838 = vsub.f32 %v2650, %v2837
        %v2839 = vmul.f32 %v2589, %v2838
        %v2840 = vsub.f32 %v2590, %v2839
        %v2841 = vmul.f32 %v2529, %v2840
        %v2842 = vsub.f32 %v2530, %v2841
        %v2843 = vmul.f32 %v2469, %v2842
        %v2844 = vsub.f32 %v2470, %v2843
        %v2845 = vmul.f32 %v2409, %v2844
        %v2846 = vsub.f32 %v2410, %v2845
        %v2847 = vsel %vm2234, 1, 0
        %vm2848 = vcmp.eq.s32.totalorder %v2847, 1
        %vm2849 = vmand %vm2848, %vm2397
        %vm2850 = vmand %vm2848, %vm2449
        %vm2851 = vmand %vm2848, %vm2509
        %vm2852 = vmand %vm2848, %vm2569
        %vm2853 = vmand %vm2848, %vm2629
        %vm2854 = vmand %vm2848, %vm2689
        %vm2855 = vmand %vm2848, %vm2749
        %vm2856 = vmand %vm2848, %vm2807
        %v2857 = vsel %vm2088, 1, 0
        %vm2858 = vcmp.eq.s32.totalorder %v2857, 1
        %vm2859 = vmand %vm2858, %vm2849
        %vm2860 = vmand %vm2858, %vm2850
        %vm2861 = vmand %vm2858, %vm2851
        %vm2862 = vmand %vm2858, %vm2852
        %vm2863 = vmand %vm2858, %vm2853
        %vm2864 = vmand %vm2858, %vm2854
        %vm2865 = vmand %vm2858, %vm2855
        %vm2866 = vmand %vm2858, %vm2856
        %v2867 = vsel %vm2859, %v2846, %v2204
        %v2868 = vsel %vm2860, %v2844, %v2205
        %v2869 = vsel %vm2861, %v2842, %v2206
        %v2870 = vsel %vm2862, %v2840, %v2207
        %v2871 = vsel %vm2863, %v2838, %v2208
        %v2872 = vsel %vm2864, %v2836, %v2209
        %v2873 = vsel %vm2865, %v2834, %v2210
        %v2874 = vsel %vm2866, %v2832, %v2211
        %vm2875 = vcmp.lt.f32.partialorder %v2874, 0.0
        %v2876 = vsub.f32 0.0, %v2874
        %s2877 = sld [smem:[#allocation2 + $0x7]]
        %s2878 = smul.f32 %s2877, 0.5
        %v2879 = vstv %s2878
        %v2880 = vmul.f32 %v2876, %v2879
        %v2881 = vsel %vm2875, %v2880, 0.0
        %v2882 = vmax.f32 %v2867, 0.0
        %v2883 = vmax.f32 %v2868, 0.0
        %v2884 = vmax.f32 %v2869, 0.0
        %v2885 = vmax.f32 %v2870, 0.0
        %v2886 = vmax.f32 %v2871, 0.0
        %v2887 = vmax.f32 %v2872, 0.0
        %v2888 = vmax.f32 %v2873, 0.0
        %v2889 = vmax.f32 %v2874, 0.0
        %v2890 = vsel 0, %v2882, %v2867
        %v2891 = vsel 0, %v2883, %v2868
        %v2892 = vsel 0, %v2884, %v2869
        %v2893 = vsel 0, %v2885, %v2870
        %v2894 = vsel 0, %v2886, %v2871
        %v2895 = vsel 0, %v2887, %v2872
        %v2896 = vsel 0, %v2888, %v2873
        %v2897 = vsel 1, %v2889, %v2874
        %vm2914 = vcmask 1040384
        %v2915 = vrot.slane %v2089, 7
        %v2916 = vrot.slane %v2090, 7
        %v2917 = vsel %vm2914, %v2915, %v2916
        %v2918 = vrot.slane %v2091, 7
        %v2919 = vrot.slane %v2092, 7
        %v2920 = vsel %vm2914, %v2918, %v2919
        %v2921 = vrot.slane %v2093, 7
        %v2922 = vrot.slane %v2094, 7
        %v2923 = vsel %vm2914, %v2921, %v2922
        %v2924 = vrot.slane %v2095, 7
        %v2925 = vrot.slane %v2096, 7
        %v2926 = vsel %vm2914, %v2924, %v2925
        %v2927 = vrot.slane %v2097, 7
        %v2928 = vrot.slane %v2098, 7
        %v2929 = vsel %vm2914, %v2927, %v2928
        %v2930 = vrot.slane %v2099, 7
        %v2931 = vrot.slane %v2100, 7
        %v2932 = vsel %vm2914, %v2930, %v2931
        %v2933 = vrot.slane %v2101, 7
        %v2934 = vrot.slane %v2102, 7
        %v2935 = vsel %vm2914, %v2933, %v2934
        %v2936 = vrot.slane %v2103, 7
        %v2937 = vrot.slane %v2104, 7
        %v2938 = vsel %vm2914, %v2936, %v2937
        %v2955 = vsub.f32 %v2089, %v2915
        %v2956 = vsub.f32 %v2090, %v2917
        %v2957 = vsub.f32 %v2091, %v2918
        %v2958 = vsub.f32 %v2092, %v2920
        %v2959 = vsub.f32 %v2093, %v2921
        %v2960 = vsub.f32 %v2094, %v2923
        %v2961 = vsub.f32 %v2095, %v2924
        %v2962 = vsub.f32 %v2096, %v2926
        %v2963 = vsub.f32 %v2097, %v2927
        %v2964 = vsub.f32 %v2098, %v2929
        %v2965 = vsub.f32 %v2099, %v2930
        %v2966 = vsub.f32 %v2100, %v2932
        %v2967 = vsub.f32 %v2101, %v2933
        %v2968 = vsub.f32 %v2102, %v2935
        %v2969 = vsub.f32 %v2103, %v2936
        %v2970 = vsub.f32 %v2104, %v2938
        %vm2987 = vcmask 1046528
        %v2988 = vrot.slane %v2955, 1
        %v2989 = vrot.slane %v2956, 1
        %v2990 = vsel %vm2987, %v2988, %v2989
        %v2991 = vrot.slane %v2957, 1
        %v2992 = vrot.slane %v2958, 1
        %v2993 = vsel %vm2987, %v2991, %v2992
        %v2994 = vrot.slane %v2959, 1
        %v2995 = vrot.slane %v2960, 1
        %v2996 = vsel %vm2987, %v2994, %v2995
        %v2997 = vrot.slane %v2961, 1
        %v2998 = vrot.slane %v2962, 1
        %v2999 = vsel %vm2987, %v2997, %v2998
        %v3000 = vrot.slane %v2963, 1
        %v3001 = vrot.slane %v2964, 1
        %v3002 = vsel %vm2987, %v3000, %v3001
        %v3003 = vrot.slane %v2965, 1
        %v3004 = vrot.slane %v2966, 1
        %v3005 = vsel %vm2987, %v3003, %v3004
        %v3006 = vrot.slane %v2967, 1
        %v3007 = vrot.slane %v2968, 1
        %v3008 = vsel %vm2987, %v3006, %v3007
        %v3009 = vrot.slane %v2969, 1
        %v3010 = vrot.slane %v2970, 1
        %v3011 = vsel %vm2987, %v3009, %v3010
        %v3028 = vmul.f32 %v2153, %v2990
        %v3029 = vmul.f32 %v2154, %v2989
        %v3030 = vmul.f32 %v2153, %v2993
        %v3031 = vmul.f32 %v2154, %v2992
        %v3032 = vmul.f32 %v2153, %v2996
        %v3033 = vmul.f32 %v2154, %v2995
        %v3034 = vmul.f32 %v2153, %v2999
        %v3035 = vmul.f32 %v2154, %v2998
        %v3036 = vmul.f32 %v2153, %v3002
        %v3037 = vmul.f32 %v2154, %v3001
        %v3038 = vmul.f32 %v2153, %v3005
        %v3039 = vmul.f32 %v2154, %v3004
        %v3040 = vmul.f32 %v2153, %v3008
        %v3041 = vmul.f32 %v2154, %v3007
        %v3042 = vmul.f32 %v2153, %v3011
        %v3043 = vmul.f32 %v2154, %v3010
        %v3044 = vmul.f32 %v3028, %v2121
        %v3045 = vmul.f32 %v3029, %v2122
        %v3046 = vmul.f32 %v3030, %v2123
        %v3047 = vmul.f32 %v3031, %v2124
        %v3048 = vmul.f32 %v3032, %v2125
        %v3049 = vmul.f32 %v3033, %v2126
        %v3050 = vmul.f32 %v3034, %v2127
        %v3051 = vmul.f32 %v3035, %v2128
        %v3052 = vmul.f32 %v3036, %v2129
        %v3053 = vmul.f32 %v3037, %v2130
        %v3054 = vmul.f32 %v3038, %v2131
        %v3055 = vmul.f32 %v3039, %v2132
        %v3056 = vmul.f32 %v3040, %v2133
        %v3057 = vmul.f32 %v3041, %v2134
        %v3058 = vmul.f32 %v3042, %v2135
        %v3059 = vmul.f32 %v3043, %v2136
        %v3076 = vrot.slane %v3044, 7
        %v3077 = vrot.slane %v3045, 7
        %v3078 = vsel %vm2914, %v3076, %v3077
        %v3079 = vrot.slane %v3046, 7
        %v3080 = vrot.slane %v3047, 7
        %v3081 = vsel %vm2914, %v3079, %v3080
        %v3082 = vrot.slane %v3048, 7
        %v3083 = vrot.slane %v3049, 7
        %v3084 = vsel %vm2914, %v3082, %v3083
        %v3085 = vrot.slane %v3050, 7
        %v3086 = vrot.slane %v3051, 7
        %v3087 = vsel %vm2914, %v3085, %v3086
        %v3088 = vrot.slane %v3052, 7
        %v3089 = vrot.slane %v3053, 7
        %v3090 = vsel %vm2914, %v3088, %v3089
        %v3091 = vrot.slane %v3054, 7
        %v3092 = vrot.slane %v3055, 7
        %v3093 = vsel %vm2914, %v3091, %v3092
        %v3094 = vrot.slane %v3056, 7
        %v3095 = vrot.slane %v3057, 7
        %v3096 = vsel %vm2914, %v3094, %v3095
        %v3097 = vrot.slane %v3058, 7
        %v3098 = vrot.slane %v3059, 7
        %v3099 = vsel %vm2914, %v3097, %v3098
        %v3116 = vsub.f32 %v3044, %v3076
        %v3117 = vsub.f32 %v3045, %v3078
        %v3118 = vsub.f32 %v3046, %v3079
        %v3119 = vsub.f32 %v3047, %v3081
        %v3120 = vsub.f32 %v3048, %v3082
        %v3121 = vsub.f32 %v3049, %v3084
        %v3122 = vsub.f32 %v3050, %v3085
        %v3123 = vsub.f32 %v3051, %v3087
        %v3124 = vsub.f32 %v3052, %v3088
        %v3125 = vsub.f32 %v3053, %v3090
        %v3126 = vsub.f32 %v3054, %v3091
        %v3127 = vsub.f32 %v3055, %v3093
        %v3128 = vsub.f32 %v3056, %v3094
        %v3129 = vsub.f32 %v3057, %v3096
        %v3130 = vsub.f32 %v3058, %v3097
        %v3131 = vsub.f32 %v3059, %v3099
        %v3132 = vmul.f32 %v3116, %v2155
        %v3133 = vmul.f32 %v3117, %v2156
        %v3134 = vmul.f32 %v3118, %v2155
        %v3135 = vmul.f32 %v3119, %v2156
        %v3136 = vmul.f32 %v3120, %v2155
        %v3137 = vmul.f32 %v3121, %v2156
        %v3138 = vmul.f32 %v3122, %v2155
        %v3139 = vmul.f32 %v3123, %v2156
        %v3140 = vmul.f32 %v3124, %v2155
        %v3141 = vmul.f32 %v3125, %v2156
        %v3142 = vmul.f32 %v3126, %v2155
        %v3143 = vmul.f32 %v3127, %v2156
        %v3144 = vmul.f32 %v3128, %v2155
        %v3145 = vmul.f32 %v3129, %v2156
        %v3146 = vmul.f32 %v3130, %v2155
        %v3147 = vmul.f32 %v3131, %v2156
        %v3148 = vmul.f32 %v2955, %v2105
        %v3149 = vmul.f32 %v2956, %v2106
        %v3150 = vmul.f32 %v2957, %v2107
        %v3151 = vmul.f32 %v2958, %v2108
        %v3152 = vmul.f32 %v2959, %v2109
        %v3153 = vmul.f32 %v2960, %v2110
        %v3154 = vmul.f32 %v2961, %v2111
        %v3155 = vmul.f32 %v2962, %v2112
        %v3156 = vmul.f32 %v2963, %v2113
        %v3157 = vmul.f32 %v2964, %v2114
        %v3158 = vmul.f32 %v2965, %v2115
        %v3159 = vmul.f32 %v2966, %v2116
        %v3160 = vmul.f32 %v2967, %v2117
        %v3161 = vmul.f32 %v2968, %v2118
        %v3162 = vmul.f32 %v2969, %v2119
        %v3163 = vmul.f32 %v2970, %v2120
        %v3180 = vrot.slane %v2105, 7
        %v3181 = vrot.slane %v2106, 7
        %v3182 = vsel %vm2914, %v3180, %v3181
        %v3183 = vrot.slane %v2107, 7
        %v3184 = vrot.slane %v2108, 7
        %v3185 = vsel %vm2914, %v3183, %v3184
        %v3186 = vrot.slane %v2109, 7
        %v3187 = vrot.slane %v2110, 7
        %v3188 = vsel %vm2914, %v3186, %v3187
        %v3189 = vrot.slane %v2111, 7
        %v3190 = vrot.slane %v2112, 7
        %v3191 = vsel %vm2914, %v3189, %v3190
        %v3192 = vrot.slane %v2113, 7
        %v3193 = vrot.slane %v2114, 7
        %v3194 = vsel %vm2914, %v3192, %v3193
        %v3195 = vrot.slane %v2115, 7
        %v3196 = vrot.slane %v2116, 7
        %v3197 = vsel %vm2914, %v3195, %v3196
        %v3198 = vrot.slane %v2117, 7
        %v3199 = vrot.slane %v2118, 7
        %v3200 = vsel %vm2914, %v3198, %v3199
        %v3201 = vrot.slane %v2119, 7
        %v3202 = vrot.slane %v2120, 7
        %v3203 = vsel %vm2914, %v3201, %v3202
        %v3220 = vmul.f32 %v3148, %v3180
        %v3221 = vmul.f32 %v3149, %v3182
        %v3222 = vmul.f32 %v3150, %v3183
        %v3223 = vmul.f32 %v3151, %v3185
        %v3224 = vmul.f32 %v3152, %v3186
        %v3225 = vmul.f32 %v3153, %v3188
        %v3226 = vmul.f32 %v3154, %v3189
        %v3227 = vmul.f32 %v3155, %v3191
        %v3228 = vmul.f32 %v3156, %v3192
        %v3229 = vmul.f32 %v3157, %v3194
        %v3230 = vmul.f32 %v3158, %v3195
        %v3231 = vmul.f32 %v3159, %v3197
        %v3232 = vmul.f32 %v3160, %v3198
        %v3233 = vmul.f32 %v3161, %v3200
        %v3234 = vmul.f32 %v3162, %v3201
        %v3235 = vmul.f32 %v3163, %v3203
        %v3236 = vand.u32 2147483647, %v2137
        %v3237 = vand.u32 2147483647, %v2138
        %v3238 = vand.u32 2147483647, %v2139
        %v3239 = vand.u32 2147483647, %v2140
        %v3240 = vand.u32 2147483647, %v2141
        %v3241 = vand.u32 2147483647, %v2142
        %v3242 = vand.u32 2147483647, %v2143
        %v3243 = vand.u32 2147483647, %v2144
        %v3244 = vand.u32 2147483647, %v2145
        %v3245 = vand.u32 2147483647, %v2146
        %v3246 = vand.u32 2147483647, %v2147
        %v3247 = vand.u32 2147483647, %v2148
        %v3248 = vand.u32 2147483647, %v2149
        %v3249 = vand.u32 2147483647, %v2150
        %v3250 = vand.u32 2147483647, %v2151
        %v3251 = vand.u32 2147483647, %v2152
        %v3252 = vmul.f32 %v3236, %v2155
        %v3253 = vmul.f32 %v3237, %v2156
        %v3254 = vmul.f32 %v3238, %v2155
        %v3255 = vmul.f32 %v3239, %v2156
        %v3256 = vmul.f32 %v3240, %v2155
        %v3257 = vmul.f32 %v3241, %v2156
        %v3258 = vmul.f32 %v3242, %v2155
        %v3259 = vmul.f32 %v3243, %v2156
        %v3260 = vmul.f32 %v3244, %v2155
        %v3261 = vmul.f32 %v3245, %v2156
        %v3262 = vmul.f32 %v3246, %v2155
        %v3263 = vmul.f32 %v3247, %v2156
        %v3264 = vmul.f32 %v3248, %v2155
        %v3265 = vmul.f32 %v3249, %v2156
        %v3266 = vmul.f32 %v3250, %v2155
        %v3267 = vmul.f32 %v3251, %v2156
        %vm3268 = vcmp.gt.f32.partialorder %v2137, 0.0
        %vm3269 = vcmp.gt.f32.partialorder %v2138, 0.0
        %vm3270 = vcmp.gt.f32.partialorder %v2139, 0.0
        %vm3271 = vcmp.gt.f32.partialorder %v2140, 0.0
        %vm3272 = vcmp.gt.f32.partialorder %v2141, 0.0
        %vm3273 = vcmp.gt.f32.partialorder %v2142, 0.0
        %vm3274 = vcmp.gt.f32.partialorder %v2143, 0.0
        %vm3275 = vcmp.gt.f32.partialorder %v2144, 0.0
        %vm3276 = vcmp.gt.f32.partialorder %v2145, 0.0
        %vm3277 = vcmp.gt.f32.partialorder %v2146, 0.0
        %vm3278 = vcmp.gt.f32.partialorder %v2147, 0.0
        %vm3279 = vcmp.gt.f32.partialorder %v2148, 0.0
        %vm3280 = vcmp.gt.f32.partialorder %v2149, 0.0
        %vm3281 = vcmp.gt.f32.partialorder %v2150, 0.0
        %vm3282 = vcmp.gt.f32.partialorder %v2151, 0.0
        %vm3283 = vcmp.gt.f32.partialorder %v2152, 0.0
        %vm3300 = vcmask 1045504
        %v3301 = vrot.slane %v3220, 2
        %v3302 = vrot.slane %v3221, 2
        %v3303 = vsel %vm3300, %v3301, %v3302
        %v3304 = vrot.slane %v3222, 2
        %v3305 = vrot.slane %v3223, 2
        %v3306 = vsel %vm3300, %v3304, %v3305
        %v3307 = vrot.slane %v3224, 2
        %v3308 = vrot.slane %v3225, 2
        %v3309 = vsel %vm3300, %v3307, %v3308
        %v3310 = vrot.slane %v3226, 2
        %v3311 = vrot.slane %v3227, 2
        %v3312 = vsel %vm3300, %v3310, %v3311
        %v3313 = vrot.slane %v3228, 2
        %v3314 = vrot.slane %v3229, 2
        %v3315 = vsel %vm3300, %v3313, %v3314
        %v3316 = vrot.slane %v3230, 2
        %v3317 = vrot.slane %v3231, 2
        %v3318 = vsel %vm3300, %v3316, %v3317
        %v3319 = vrot.slane %v3232, 2
        %v3320 = vrot.slane %v3233, 2
        %v3321 = vsel %vm3300, %v3319, %v3320
        %v3322 = vrot.slane %v3234, 2
        %v3323 = vrot.slane %v3235, 2
        %v3324 = vsel %vm3300, %v3322, %v3323
        %v3341 = vsel %vm3268, %v3220, %v3303
        %v3342 = vsel %vm3269, %v3221, %v3302
        %v3343 = vsel %vm3270, %v3222, %v3306
        %v3344 = vsel %vm3271, %v3223, %v3305
        %v3345 = vsel %vm3272, %v3224, %v3309
        %v3346 = vsel %vm3273, %v3225, %v3308
        %v3347 = vsel %vm3274, %v3226, %v3312
        %v3348 = vsel %vm3275, %v3227, %v3311
        %v3349 = vsel %vm3276, %v3228, %v3315
        %v3350 = vsel %vm3277, %v3229, %v3314
        %v3351 = vsel %vm3278, %v3230, %v3318
        %v3352 = vsel %vm3279, %v3231, %v3317
        %v3353 = vsel %vm3280, %v3232, %v3321
        %v3354 = vsel %vm3281, %v3233, %v3320
        %v3355 = vsel %vm3282, %v3234, %v3324
        %v3356 = vsel %vm3283, %v3235, %v3323
        %v3357 = vand.u32 2147483647, %v3220
        %v3358 = vand.u32 2147483647, %v3221
        %v3359 = vand.u32 2147483647, %v3222
        %v3360 = vand.u32 2147483647, %v3223
        %v3361 = vand.u32 2147483647, %v3224
        %v3362 = vand.u32 2147483647, %v3225
        %v3363 = vand.u32 2147483647, %v3226
        %v3364 = vand.u32 2147483647, %v3227
        %v3365 = vand.u32 2147483647, %v3228
        %v3366 = vand.u32 2147483647, %v3229
        %v3367 = vand.u32 2147483647, %v3230
        %v3368 = vand.u32 2147483647, %v3231
        %v3369 = vand.u32 2147483647, %v3232
        %v3370 = vand.u32 2147483647, %v3233
        %v3371 = vand.u32 2147483647, %v3234
        %v3372 = vand.u32 2147483647, %v3235
        %vm3373 = vcmp.lt.f32.partialorder %v3357, 1e-20
        %vm3374 = vcmp.lt.f32.partialorder %v3358, 1e-20
        %vm3375 = vcmp.lt.f32.partialorder %v3359, 1e-20
        %vm3376 = vcmp.lt.f32.partialorder %v3360, 1e-20
        %vm3377 = vcmp.lt.f32.partialorder %v3361, 1e-20
        %vm3378 = vcmp.lt.f32.partialorder %v3362, 1e-20
        %vm3379 = vcmp.lt.f32.partialorder %v3363, 1e-20
        %vm3380 = vcmp.lt.f32.partialorder %v3364, 1e-20
        %vm3381 = vcmp.lt.f32.partialorder %v3365, 1e-20
        %vm3382 = vcmp.lt.f32.partialorder %v3366, 1e-20
        %vm3383 = vcmp.lt.f32.partialorder %v3367, 1e-20
        %vm3384 = vcmp.lt.f32.partialorder %v3368, 1e-20
        %vm3385 = vcmp.lt.f32.partialorder %v3369, 1e-20
        %vm3386 = vcmp.lt.f32.partialorder %v3370, 1e-20
        %vm3387 = vcmp.lt.f32.partialorder %v3371, 1e-20
        %vm3388 = vcmp.lt.f32.partialorder %v3372, 1e-20
        %v3389 = vsel %vm3373, 1e-20, %v3220
        %v3390 = vsel %vm3374, 1e-20, %v3221
        %v3391 = vsel %vm3375, 1e-20, %v3222
        %v3392 = vsel %vm3376, 1e-20, %v3223
        %v3393 = vsel %vm3377, 1e-20, %v3224
        %v3394 = vsel %vm3378, 1e-20, %v3225
        %v3395 = vsel %vm3379, 1e-20, %v3226
        %v3396 = vsel %vm3380, 1e-20, %v3227
        %v3397 = vsel %vm3381, 1e-20, %v3228
        %v3398 = vsel %vm3382, 1e-20, %v3229
        %v3399 = vsel %vm3383, 1e-20, %v3230
        %v3400 = vsel %vm3384, 1e-20, %v3231
        %v3401 = vsel %vm3385, 1e-20, %v3232
        %v3402 = vsel %vm3386, 1e-20, %v3233
        %v3403 = vsel %vm3387, 1e-20, %v3234
        %v3404 = vsel %vm3388, 1e-20, %v3235
        %v3405 = vrcp.pop %v3389
        %v3406 = vrcp.pop %v3390
        %v3407 = vrcp.pop %v3391
        %v3408 = vrcp.pop %v3392
        %v3409 = vrcp.pop %v3393
        %v3410 = vrcp.pop %v3394
        %v3411 = vrcp.pop %v3395
        %v3412 = vrcp.pop %v3396
        %v3413 = vrcp.pop %v3397
        %v3414 = vrcp.pop %v3398
        %v3415 = vrcp.pop %v3399
        %v3416 = vrcp.pop %v3400
        %v3417 = vrcp.pop %v3401
        %v3418 = vrcp.pop %v3402
        %v3419 = vrcp.pop %v3403
        %v3420 = vrcp.pop %v3404
        %v3437 = vrot.slane %v3405, 1
        %v3438 = vrot.slane %v3406, 1
        %v3439 = vsel %vm2987, %v3437, %v3438
        %v3440 = vrot.slane %v3407, 1
        %v3441 = vrot.slane %v3408, 1
        %v3442 = vsel %vm2987, %v3440, %v3441
        %v3443 = vrot.slane %v3409, 1
        %v3444 = vrot.slane %v3410, 1
        %v3445 = vsel %vm2987, %v3443, %v3444
        %v3446 = vrot.slane %v3411, 1
        %v3447 = vrot.slane %v3412, 1
        %v3448 = vsel %vm2987, %v3446, %v3447
        %v3449 = vrot.slane %v3413, 1
        %v3450 = vrot.slane %v3414, 1
        %v3451 = vsel %vm2987, %v3449, %v3450
        %v3452 = vrot.slane %v3415, 1
        %v3453 = vrot.slane %v3416, 1
        %v3454 = vsel %vm2987, %v3452, %v3453
        %v3455 = vrot.slane %v3417, 1
        %v3456 = vrot.slane %v3418, 1
        %v3457 = vsel %vm2987, %v3455, %v3456
        %v3458 = vrot.slane %v3419, 1
        %v3459 = vrot.slane %v3420, 1
        %v3460 = vsel %vm2987, %v3458, %v3459
        %v3477 = vmul.f32 %v3341, %v3439
        %v3478 = vmul.f32 %v3342, %v3438
        %v3479 = vmul.f32 %v3343, %v3442
        %v3480 = vmul.f32 %v3344, %v3441
        %v3481 = vmul.f32 %v3345, %v3445
        %v3482 = vmul.f32 %v3346, %v3444
        %v3483 = vmul.f32 %v3347, %v3448
        %v3484 = vmul.f32 %v3348, %v3447
        %v3485 = vmul.f32 %v3349, %v3451
        %v3486 = vmul.f32 %v3350, %v3450
        %v3487 = vmul.f32 %v3351, %v3454
        %v3488 = vmul.f32 %v3352, %v3453
        %v3489 = vmul.f32 %v3353, %v3457
        %v3490 = vmul.f32 %v3354, %v3456
        %v3491 = vmul.f32 %v3355, %v3460
        %v3492 = vmul.f32 %v3356, %v3459
        %v3493 = vmul.f32 %v3477, 2.0
        %v3494 = vmul.f32 %v3478, 2.0
        %v3495 = vmul.f32 %v3479, 2.0
        %v3496 = vmul.f32 %v3480, 2.0
        %v3497 = vmul.f32 %v3481, 2.0
        %v3498 = vmul.f32 %v3482, 2.0
        %v3499 = vmul.f32 %v3483, 2.0
        %v3500 = vmul.f32 %v3484, 2.0
        %v3501 = vmul.f32 %v3485, 2.0
        %v3502 = vmul.f32 %v3486, 2.0
        %v3503 = vmul.f32 %v3487, 2.0
        %v3504 = vmul.f32 %v3488, 2.0
        %v3505 = vmul.f32 %v3489, 2.0
        %v3506 = vmul.f32 %v3490, 2.0
        %v3507 = vmul.f32 %v3491, 2.0
        %v3508 = vmul.f32 %v3492, 2.0
        %v3509 = vmin.f32 %v3493, 1.0
        %v3510 = vmin.f32 %v3494, 1.0
        %v3511 = vmin.f32 %v3495, 1.0
        %v3512 = vmin.f32 %v3496, 1.0
        %v3513 = vmin.f32 %v3497, 1.0
        %v3514 = vmin.f32 %v3498, 1.0
        %v3515 = vmin.f32 %v3499, 1.0
        %v3516 = vmin.f32 %v3500, 1.0
        %v3517 = vmin.f32 %v3501, 1.0
        %v3518 = vmin.f32 %v3502, 1.0
        %v3519 = vmin.f32 %v3503, 1.0
        %v3520 = vmin.f32 %v3504, 1.0
        %v3521 = vmin.f32 %v3505, 1.0
        %v3522 = vmin.f32 %v3506, 1.0
        %v3523 = vmin.f32 %v3507, 1.0
        %v3524 = vmin.f32 %v3508, 1.0
        %v3525 = vadd.f32 %v3477, 1.0
        %v3526 = vadd.f32 %v3478, 1.0
        %v3527 = vadd.f32 %v3479, 1.0
        %v3528 = vadd.f32 %v3480, 1.0
        %v3529 = vadd.f32 %v3481, 1.0
        %v3530 = vadd.f32 %v3482, 1.0
        %v3531 = vadd.f32 %v3483, 1.0
        %v3532 = vadd.f32 %v3484, 1.0
        %v3533 = vadd.f32 %v3485, 1.0
        %v3534 = vadd.f32 %v3486, 1.0
        %v3535 = vadd.f32 %v3487, 1.0
        %v3536 = vadd.f32 %v3488, 1.0
        %v3537 = vadd.f32 %v3489, 1.0
        %v3538 = vadd.f32 %v3490, 1.0
        %v3539 = vadd.f32 %v3491, 1.0
        %v3540 = vadd.f32 %v3492, 1.0
        %v3541 = vmul.f32 %v3525, 0.5
        %v3542 = vmul.f32 %v3526, 0.5
        %v3543 = vmul.f32 %v3527, 0.5
        %v3544 = vmul.f32 %v3528, 0.5
        %v3545 = vmul.f32 %v3529, 0.5
        %v3546 = vmul.f32 %v3530, 0.5
        %v3547 = vmul.f32 %v3531, 0.5
        %v3548 = vmul.f32 %v3532, 0.5
        %v3549 = vmul.f32 %v3533, 0.5
        %v3550 = vmul.f32 %v3534, 0.5
        %v3551 = vmul.f32 %v3535, 0.5
        %v3552 = vmul.f32 %v3536, 0.5
        %v3553 = vmul.f32 %v3537, 0.5
        %v3554 = vmul.f32 %v3538, 0.5
        %v3555 = vmul.f32 %v3539, 0.5
        %v3556 = vmul.f32 %v3540, 0.5
        %v3557 = vmin.f32 %v3541, 2.0
        %v3558 = vmin.f32 %v3542, 2.0
        %v3559 = vmin.f32 %v3543, 2.0
        %v3560 = vmin.f32 %v3544, 2.0
        %v3561 = vmin.f32 %v3545, 2.0
        %v3562 = vmin.f32 %v3546, 2.0
        %v3563 = vmin.f32 %v3547, 2.0
        %v3564 = vmin.f32 %v3548, 2.0
        %v3565 = vmin.f32 %v3549, 2.0
        %v3566 = vmin.f32 %v3550, 2.0
        %v3567 = vmin.f32 %v3551, 2.0
        %v3568 = vmin.f32 %v3552, 2.0
        %v3569 = vmin.f32 %v3553, 2.0
        %v3570 = vmin.f32 %v3554, 2.0
        %v3571 = vmin.f32 %v3555, 2.0
        %v3572 = vmin.f32 %v3556, 2.0
        %v3573 = vmax.f32 %v3509, %v3557
        %v3574 = vmax.f32 %v3510, %v3558
        %v3575 = vmax.f32 %v3511, %v3559
        %v3576 = vmax.f32 %v3512, %v3560
        %v3577 = vmax.f32 %v3513, %v3561
        %v3578 = vmax.f32 %v3514, %v3562
        %v3579 = vmax.f32 %v3515, %v3563
        %v3580 = vmax.f32 %v3516, %v3564
        %v3581 = vmax.f32 %v3517, %v3565
        %v3582 = vmax.f32 %v3518, %v3566
        %v3583 = vmax.f32 %v3519, %v3567
        %v3584 = vmax.f32 %v3520, %v3568
        %v3585 = vmax.f32 %v3521, %v3569
        %v3586 = vmax.f32 %v3522, %v3570
        %v3587 = vmax.f32 %v3523, %v3571
        %v3588 = vmax.f32 %v3524, %v3572
        %v3589 = vmax.f32 %v3573, 0.0
        %v3590 = vmax.f32 %v3574, 0.0
        %v3591 = vmax.f32 %v3575, 0.0
        %v3592 = vmax.f32 %v3576, 0.0
        %v3593 = vmax.f32 %v3577, 0.0
        %v3594 = vmax.f32 %v3578, 0.0
        %v3595 = vmax.f32 %v3579, 0.0
        %v3596 = vmax.f32 %v3580, 0.0
        %v3597 = vmax.f32 %v3581, 0.0
        %v3598 = vmax.f32 %v3582, 0.0
        %v3599 = vmax.f32 %v3583, 0.0
        %v3600 = vmax.f32 %v3584, 0.0
        %v3601 = vmax.f32 %v3585, 0.0
        %v3602 = vmax.f32 %v3586, 0.0
        %v3603 = vmax.f32 %v3587, 0.0
        %v3604 = vmax.f32 %v3588, 0.0
        %v3605 = vadd.f32 %v2089, %v2915
        %v3606 = vadd.f32 %v2090, %v2917
        %v3607 = vadd.f32 %v2091, %v2918
        %v3608 = vadd.f32 %v2092, %v2920
        %v3609 = vadd.f32 %v2093, %v2921
        %v3610 = vadd.f32 %v2094, %v2923
        %v3611 = vadd.f32 %v2095, %v2924
        %v3612 = vadd.f32 %v2096, %v2926
        %v3613 = vadd.f32 %v2097, %v2927
        %v3614 = vadd.f32 %v2098, %v2929
        %v3615 = vadd.f32 %v2099, %v2930
        %v3616 = vadd.f32 %v2100, %v2932
        %v3617 = vadd.f32 %v2101, %v2933
        %v3618 = vadd.f32 %v2102, %v2935
        %v3619 = vadd.f32 %v2103, %v2936
        %v3620 = vadd.f32 %v2104, %v2938
        %v3637 = vrot.slane %v3605, 1
        %v3638 = vrot.slane %v3606, 1
        %v3639 = vsel %vm2987, %v3637, %v3638
        %v3640 = vrot.slane %v3607, 1
        %v3641 = vrot.slane %v3608, 1
        %v3642 = vsel %vm2987, %v3640, %v3641
        %v3643 = vrot.slane %v3609, 1
        %v3644 = vrot.slane %v3610, 1
        %v3645 = vsel %vm2987, %v3643, %v3644
        %v3646 = vrot.slane %v3611, 1
        %v3647 = vrot.slane %v3612, 1
        %v3648 = vsel %vm2987, %v3646, %v3647
        %v3649 = vrot.slane %v3613, 1
        %v3650 = vrot.slane %v3614, 1
        %v3651 = vsel %vm2987, %v3649, %v3650
        %v3652 = vrot.slane %v3615, 1
        %v3653 = vrot.slane %v3616, 1
        %v3654 = vsel %vm2987, %v3652, %v3653
        %v3655 = vrot.slane %v3617, 1
        %v3656 = vrot.slane %v3618, 1
        %v3657 = vsel %vm2987, %v3655, %v3656
        %v3658 = vrot.slane %v3619, 1
        %v3659 = vrot.slane %v3620, 1
        %v3660 = vsel %vm2987, %v3658, %v3659
        %v3677 = vmul.f32 %v2137, %v3639
        %v3678 = vmul.f32 %v2138, %v3638
        %v3679 = vmul.f32 %v2139, %v3642
        %v3680 = vmul.f32 %v2140, %v3641
        %v3681 = vmul.f32 %v2141, %v3645
        %v3682 = vmul.f32 %v2142, %v3644
        %v3683 = vmul.f32 %v2143, %v3648
        %v3684 = vmul.f32 %v2144, %v3647
        %v3685 = vmul.f32 %v2145, %v3651
        %v3686 = vmul.f32 %v2146, %v3650
        %v3687 = vmul.f32 %v2147, %v3654
        %v3688 = vmul.f32 %v2148, %v3653
        %v3689 = vmul.f32 %v2149, %v3657
        %v3690 = vmul.f32 %v2150, %v3656
        %v3691 = vmul.f32 %v2151, %v3660
        %v3692 = vmul.f32 %v2152, %v3659
        %v3693 = vmul.f32 %v3677, 0.5
        %v3694 = vmul.f32 %v3678, 0.5
        %v3695 = vmul.f32 %v3679, 0.5
        %v3696 = vmul.f32 %v3680, 0.5
        %v3697 = vmul.f32 %v3681, 0.5
        %v3698 = vmul.f32 %v3682, 0.5
        %v3699 = vmul.f32 %v3683, 0.5
        %v3700 = vmul.f32 %v3684, 0.5
        %v3701 = vmul.f32 %v3685, 0.5
        %v3702 = vmul.f32 %v3686, 0.5
        %v3703 = vmul.f32 %v3687, 0.5
        %v3704 = vmul.f32 %v3688, 0.5
        %v3705 = vmul.f32 %v3689, 0.5
        %v3706 = vmul.f32 %v3690, 0.5
        %v3707 = vmul.f32 %v3691, 0.5
        %v3708 = vmul.f32 %v3692, 0.5
        %v3709 = vsub.f32 1.0, %v3589
        %v3710 = vsub.f32 1.0, %v3590
        %v3711 = vsub.f32 1.0, %v3591
        %v3712 = vsub.f32 1.0, %v3592
        %v3713 = vsub.f32 1.0, %v3593
        %v3714 = vsub.f32 1.0, %v3594
        %v3715 = vsub.f32 1.0, %v3595
        %v3716 = vsub.f32 1.0, %v3596
        %v3717 = vsub.f32 1.0, %v3597
        %v3718 = vsub.f32 1.0, %v3598
        %v3719 = vsub.f32 1.0, %v3599
        %v3720 = vsub.f32 1.0, %v3600
        %v3721 = vsub.f32 1.0, %v3601
        %v3722 = vsub.f32 1.0, %v3602
        %v3723 = vsub.f32 1.0, %v3603
        %v3724 = vsub.f32 1.0, %v3604
        %v3725 = vmul.f32 %v3252, %v3589
        %v3726 = vmul.f32 %v3253, %v3590
        %v3727 = vmul.f32 %v3254, %v3591
        %v3728 = vmul.f32 %v3255, %v3592
        %v3729 = vmul.f32 %v3256, %v3593
        %v3730 = vmul.f32 %v3257, %v3594
        %v3731 = vmul.f32 %v3258, %v3595
        %v3732 = vmul.f32 %v3259, %v3596
        %v3733 = vmul.f32 %v3260, %v3597
        %v3734 = vmul.f32 %v3261, %v3598
        %v3735 = vmul.f32 %v3262, %v3599
        %v3736 = vmul.f32 %v3263, %v3600
        %v3737 = vmul.f32 %v3264, %v3601
        %v3738 = vmul.f32 %v3265, %v3602
        %v3739 = vmul.f32 %v3266, %v3603
        %v3740 = vmul.f32 %v3267, %v3604
        %v3741 = vadd.f32 %v3709, %v3725
        %v3742 = vadd.f32 %v3710, %v3726
        %v3743 = vadd.f32 %v3711, %v3727
        %v3744 = vadd.f32 %v3712, %v3728
        %v3745 = vadd.f32 %v3713, %v3729
        %v3746 = vadd.f32 %v3714, %v3730
        %v3747 = vadd.f32 %v3715, %v3731
        %v3748 = vadd.f32 %v3716, %v3732
        %v3749 = vadd.f32 %v3717, %v3733
        %v3750 = vadd.f32 %v3718, %v3734
        %v3751 = vadd.f32 %v3719, %v3735
        %v3752 = vadd.f32 %v3720, %v3736
        %v3753 = vadd.f32 %v3721, %v3737
        %v3754 = vadd.f32 %v3722, %v3738
        %v3755 = vadd.f32 %v3723, %v3739
        %v3756 = vadd.f32 %v3724, %v3740
        %v3757 = vmul.f32 %v3236, %v3741
        %v3758 = vmul.f32 %v3237, %v3742
        %v3759 = vmul.f32 %v3238, %v3743
        %v3760 = vmul.f32 %v3239, %v3744
        %v3761 = vmul.f32 %v3240, %v3745
        %v3762 = vmul.f32 %v3241, %v3746
        %v3763 = vmul.f32 %v3242, %v3747
        %v3764 = vmul.f32 %v3243, %v3748
        %v3765 = vmul.f32 %v3244, %v3749
        %v3766 = vmul.f32 %v3245, %v3750
        %v3767 = vmul.f32 %v3246, %v3751
        %v3768 = vmul.f32 %v3247, %v3752
        %v3769 = vmul.f32 %v3248, %v3753
        %v3770 = vmul.f32 %v3249, %v3754
        %v3771 = vmul.f32 %v3250, %v3755
        %v3772 = vmul.f32 %v3251, %v3756
        %v3773 = vrot.slane %v3220, 1
        %v3774 = vrot.slane %v3221, 1
        %v3775 = vsel %vm2987, %v3773, %v3774
        %v3776 = vrot.slane %v3222, 1
        %v3777 = vrot.slane %v3223, 1
        %v3778 = vsel %vm2987, %v3776, %v3777
        %v3779 = vrot.slane %v3224, 1
        %v3780 = vrot.slane %v3225, 1
        %v3781 = vsel %vm2987, %v3779, %v3780
        %v3782 = vrot.slane %v3226, 1
        %v3783 = vrot.slane %v3227, 1
        %v3784 = vsel %vm2987, %v3782, %v3783
        %v3785 = vrot.slane %v3228, 1
        %v3786 = vrot.slane %v3229, 1
        %v3787 = vsel %vm2987, %v3785, %v3786
        %v3788 = vrot.slane %v3230, 1
        %v3789 = vrot.slane %v3231, 1
        %v3790 = vsel %vm2987, %v3788, %v3789
        %v3791 = vrot.slane %v3232, 1
        %v3792 = vrot.slane %v3233, 1
        %v3793 = vsel %vm2987, %v3791, %v3792
        %v3794 = vrot.slane %v3234, 1
        %v3795 = vrot.slane %v3235, 1
        %v3796 = vsel %vm2987, %v3794, %v3795
        %v3813 = vmul.f32 %v3757, %v3775
        %v3814 = vmul.f32 %v3758, %v3774
        %v3815 = vmul.f32 %v3759, %v3778
        %v3816 = vmul.f32 %v3760, %v3777
        %v3817 = vmul.f32 %v3761, %v3781
        %v3818 = vmul.f32 %v3762, %v3780
        %v3819 = vmul.f32 %v3763, %v3784
        %v3820 = vmul.f32 %v3764, %v3783
        %v3821 = vmul.f32 %v3765, %v3787
        %v3822 = vmul.f32 %v3766, %v3786
        %v3823 = vmul.f32 %v3767, %v3790
        %v3824 = vmul.f32 %v3768, %v3789
        %v3825 = vmul.f32 %v3769, %v3793
        %v3826 = vmul.f32 %v3770, %v3792
        %v3827 = vmul.f32 %v3771, %v3796
        %v3828 = vmul.f32 %v3772, %v3795
        %v3829 = vmul.f32 %v3813, 0.5
        %v3830 = vmul.f32 %v3814, 0.5
        %v3831 = vmul.f32 %v3815, 0.5
        %v3832 = vmul.f32 %v3816, 0.5
        %v3833 = vmul.f32 %v3817, 0.5
        %v3834 = vmul.f32 %v3818, 0.5
        %v3835 = vmul.f32 %v3819, 0.5
        %v3836 = vmul.f32 %v3820, 0.5
        %v3837 = vmul.f32 %v3821, 0.5
        %v3838 = vmul.f32 %v3822, 0.5
        %v3839 = vmul.f32 %v3823, 0.5
        %v3840 = vmul.f32 %v3824, 0.5
        %v3841 = vmul.f32 %v3825, 0.5
        %v3842 = vmul.f32 %v3826, 0.5
        %v3843 = vmul.f32 %v3827, 0.5
        %v3844 = vmul.f32 %v3828, 0.5
        %v3845 = vsub.f32 %v3693, %v3829
        %v3846 = vsub.f32 %v3694, %v3830
        %v3847 = vsub.f32 %v3695, %v3831
        %v3848 = vsub.f32 %v3696, %v3832
        %v3849 = vsub.f32 %v3697, %v3833
        %v3850 = vsub.f32 %v3698, %v3834
        %v3851 = vsub.f32 %v3699, %v3835
        %v3852 = vsub.f32 %v3700, %v3836
        %v3853 = vsub.f32 %v3701, %v3837
        %v3854 = vsub.f32 %v3702, %v3838
        %v3855 = vsub.f32 %v3703, %v3839
        %v3856 = vsub.f32 %v3704, %v3840
        %v3857 = vsub.f32 %v3705, %v3841
        %v3858 = vsub.f32 %v3706, %v3842
        %v3859 = vsub.f32 %v3707, %v3843
        %v3860 = vsub.f32 %v3708, %v3844
        %v3877 = vrot.slane %v3845, 7
        %v3878 = vrot.slane %v3846, 7
        %v3879 = vsel %vm2914, %v3877, %v3878
        %v3880 = vrot.slane %v3847, 7
        %v3881 = vrot.slane %v3848, 7
        %v3882 = vsel %vm2914, %v3880, %v3881
        %v3883 = vrot.slane %v3849, 7
        %v3884 = vrot.slane %v3850, 7
        %v3885 = vsel %vm2914, %v3883, %v3884
        %v3886 = vrot.slane %v3851, 7
        %v3887 = vrot.slane %v3852, 7
        %v3888 = vsel %vm2914, %v3886, %v3887
        %v3889 = vrot.slane %v3853, 7
        %v3890 = vrot.slane %v3854, 7
        %v3891 = vsel %vm2914, %v3889, %v3890
        %v3892 = vrot.slane %v3855, 7
        %v3893 = vrot.slane %v3856, 7
        %v3894 = vsel %vm2914, %v3892, %v3893
        %v3895 = vrot.slane %v3857, 7
        %v3896 = vrot.slane %v3858, 7
        %v3897 = vsel %vm2914, %v3895, %v3896
        %v3898 = vrot.slane %v3859, 7
        %v3899 = vrot.slane %v3860, 7
        %v3900 = vsel %vm2914, %v3898, %v3899
        %v3917 = vsub.f32 %v3845, %v3877
        %v3918 = vsub.f32 %v3846, %v3879
        %v3919 = vsub.f32 %v3847, %v3880
        %v3920 = vsub.f32 %v3848, %v3882
        %v3921 = vsub.f32 %v3849, %v3883
        %v3922 = vsub.f32 %v3850, %v3885
        %v3923 = vsub.f32 %v3851, %v3886
        %v3924 = vsub.f32 %v3852, %v3888
        %v3925 = vsub.f32 %v3853, %v3889
        %v3926 = vsub.f32 %v3854, %v3891
        %v3927 = vsub.f32 %v3855, %v3892
        %v3928 = vsub.f32 %v3856, %v3894
        %v3929 = vsub.f32 %v3857, %v3895
        %v3930 = vsub.f32 %v3858, %v3897
        %v3931 = vsub.f32 %v3859, %v3898
        %v3932 = vsub.f32 %v3860, %v3900
        %v3933 = vmul.f32 %v3917, %v2155
        %v3934 = vmul.f32 %v3918, %v2156
        %v3935 = vmul.f32 %v3919, %v2155
        %v3936 = vmul.f32 %v3920, %v2156
        %v3937 = vmul.f32 %v3921, %v2155
        %v3938 = vmul.f32 %v3922, %v2156
        %v3939 = vmul.f32 %v3923, %v2155
        %v3940 = vmul.f32 %v3924, %v2156
        %v3941 = vmul.f32 %v3925, %v2155
        %v3942 = vmul.f32 %v3926, %v2156
        %v3943 = vmul.f32 %v3927, %v2155
        %v3944 = vmul.f32 %v3928, %v2156
        %v3945 = vmul.f32 %v3929, %v2155
        %v3946 = vmul.f32 %v3930, %v2156
        %v3947 = vmul.f32 %v3931, %v2155
        %v3948 = vmul.f32 %v3932, %v2156
        %v3949 = vrot.slane %v2089, 4
        %v3950 = vrot.slane %v2090, 4
        %v3951 = vsel %vm2387, %v3949, %v3950
        %v3952 = vrot.slane %v2091, 4
        %v3953 = vrot.slane %v2092, 4
        %v3954 = vsel %vm2387, %v3952, %v3953
        %v3955 = vrot.slane %v2093, 4
        %v3956 = vrot.slane %v2094, 4
        %v3957 = vsel %vm2387, %v3955, %v3956
        %v3958 = vrot.slane %v2095, 4
        %v3959 = vrot.slane %v2096, 4
        %v3960 = vsel %vm2387, %v3958, %v3959
        %v3961 = vrot.slane %v2097, 4
        %v3962 = vrot.slane %v2098, 4
        %v3963 = vsel %vm2387, %v3961, %v3962
        %v3964 = vrot.slane %v2099, 4
        %v3965 = vrot.slane %v2100, 4
        %v3966 = vsel %vm2387, %v3964, %v3965
        %v3967 = vrot.slane %v2101, 4
        %v3968 = vrot.slane %v2102, 4
        %v3969 = vsel %vm2387, %v3967, %v3968
        %v3970 = vrot.slane %v2103, 4
        %v3971 = vrot.slane %v2104, 4
        %v3972 = vsel %vm2387, %v3970, %v3971
        %3981 = vrot.lane.b32.xlu0 %v3951, 127
        %v3982 = vpop.permute.xlu0 %3981
        %3983 = vrot.lane.b32.xlu0 %v3954, 127
        %v3984 = vpop.permute.xlu0 %3983
        %3985 = vrot.lane.b32.xlu0 %v3957, 127
        %v3986 = vpop.permute.xlu0 %3985
        %3987 = vrot.lane.b32.xlu0 %v3960, 127
        %v3988 = vpop.permute.xlu0 %3987
        %3989 = vrot.lane.b32.xlu0 %v3963, 127
        %v3990 = vpop.permute.xlu0 %3989
        %3991 = vrot.lane.b32.xlu0 %v3966, 127
        %v3992 = vpop.permute.xlu0 %3991
        %3993 = vrot.lane.b32.xlu0 %v3969, 127
        %v3994 = vpop.permute.xlu0 %3993
        %3995 = vrot.lane.b32.xlu0 %v3972, 127
        %v3996 = vpop.permute.xlu0 %3995
        %v3997 = vsub.f32 %v3982, %v3951
        %v3998 = vsub.f32 %v3984, %v3954
        %v3999 = vsub.f32 %v3986, %v3957
        %v4000 = vsub.f32 %v3988, %v3960
        %v4001 = vsub.f32 %v3990, %v3963
        %v4002 = vsub.f32 %v3992, %v3966
        %v4003 = vsub.f32 %v3994, %v3969
        %v4004 = vsub.f32 %v3996, %v3972
        %v4006 = vlaneseq
        %v4007 = vshrl.u32 %v4006, 7
        %v4008 = vsub.s32 0, %v4007
        %v4009 = vrot.slane %v2230, %v4008
        %v4011 = vmul.f32 %v4009, %v3997
        %v4012 = vmul.f32 %v4009, %v3998
        %v4013 = vmul.f32 %v4009, %v3999
        %v4014 = vmul.f32 %v4009, %v4000
        %v4015 = vmul.f32 %v4009, %v4001
        %v4016 = vmul.f32 %v4009, %v4002
        %v4017 = vmul.f32 %v4009, %v4003
        %v4018 = vmul.f32 %v4009, %v4004
        %v4019 = vmul.f32 %v4011, %v2172
        %v4020 = vmul.f32 %v4012, %v2173
        %v4021 = vmul.f32 %v4013, %v2174
        %v4022 = vmul.f32 %v4014, %v2175
        %v4023 = vmul.f32 %v4015, %v2176
        %v4024 = vmul.f32 %v4016, %v2177
        %v4025 = vmul.f32 %v4017, %v2178
        %v4026 = vmul.f32 %v4018, %v2179
        %4027 = vrot.lane.b32.xlu0 %v4019, 1
        %v4028 = vpop.permute.xlu0 %4027
        %4029 = vrot.lane.b32.xlu0 %v4020, 1
        %v4030 = vpop.permute.xlu0 %4029
        %4031 = vrot.lane.b32.xlu0 %v4021, 1
        %v4032 = vpop.permute.xlu0 %4031
        %4033 = vrot.lane.b32.xlu0 %v4022, 1
        %v4034 = vpop.permute.xlu0 %4033
        %4035 = vrot.lane.b32.xlu0 %v4023, 1
        %v4036 = vpop.permute.xlu0 %4035
        %4037 = vrot.lane.b32.xlu0 %v4024, 1
        %v4038 = vpop.permute.xlu0 %4037
        %4039 = vrot.lane.b32.xlu0 %v4025, 1
        %v4040 = vpop.permute.xlu0 %4039
        %4041 = vrot.lane.b32.xlu0 %v4026, 1
        %v4042 = vpop.permute.xlu0 %4041
        %v4043 = vsub.f32 %v4019, %v4028
        %v4044 = vsub.f32 %v4020, %v4030
        %v4045 = vsub.f32 %v4021, %v4032
        %v4046 = vsub.f32 %v4022, %v4034
        %v4047 = vsub.f32 %v4023, %v4036
        %v4048 = vsub.f32 %v4024, %v4038
        %v4049 = vsub.f32 %v4025, %v4040
        %v4050 = vsub.f32 %v4026, %v4042
        %v4052 = vlaneseq
        %v4053 = vshrl.u32 %v4052, 7
        %v4054 = vsub.s32 0, %v4053
        %v4055 = vrot.slane %v2231, %v4054
        %v4057 = vmul.f32 %v4043, %v4055
        %v4058 = vmul.f32 %v4044, %v4055
        %v4059 = vmul.f32 %v4045, %v4055
        %v4060 = vmul.f32 %v4046, %v4055
        %v4061 = vmul.f32 %v4047, %v4055
        %v4062 = vmul.f32 %v4048, %v4055
        %v4063 = vmul.f32 %v4049, %v4055
        %v4064 = vmul.f32 %v4050, %v4055
        %v4065 = vrot.slane %v2105, 4
        %v4066 = vrot.slane %v2106, 4
        %v4067 = vsel %vm2387, %v4065, %v4066
        %v4068 = vrot.slane %v2107, 4
        %v4069 = vrot.slane %v2108, 4
        %v4070 = vsel %vm2387, %v4068, %v4069
        %v4071 = vrot.slane %v2109, 4
        %v4072 = vrot.slane %v2110, 4
        %v4073 = vsel %vm2387, %v4071, %v4072
        %v4074 = vrot.slane %v2111, 4
        %v4075 = vrot.slane %v2112, 4
        %v4076 = vsel %vm2387, %v4074, %v4075
        %v4077 = vrot.slane %v2113, 4
        %v4078 = vrot.slane %v2114, 4
        %v4079 = vsel %vm2387, %v4077, %v4078
        %v4080 = vrot.slane %v2115, 4
        %v4081 = vrot.slane %v2116, 4
        %v4082 = vsel %vm2387, %v4080, %v4081
        %v4083 = vrot.slane %v2117, 4
        %v4084 = vrot.slane %v2118, 4
        %v4085 = vsel %vm2387, %v4083, %v4084
        %v4086 = vrot.slane %v2119, 4
        %v4087 = vrot.slane %v2120, 4
        %v4088 = vsel %vm2387, %v4086, %v4087
        %4097 = vrot.lane.b32.xlu0 %v4067, 127
        %v4098 = vpop.permute.xlu0 %4097
        %4099 = vrot.lane.b32.xlu0 %v4070, 127
        %v4100 = vpop.permute.xlu0 %4099
        %4101 = vrot.lane.b32.xlu0 %v4073, 127
        %v4102 = vpop.permute.xlu0 %4101
        %4103 = vrot.lane.b32.xlu0 %v4076, 127
        %v4104 = vpop.permute.xlu0 %4103
        %4105 = vrot.lane.b32.xlu0 %v4079, 127
        %v4106 = vpop.permute.xlu0 %4105
        %4107 = vrot.lane.b32.xlu0 %v4082, 127
        %v4108 = vpop.permute.xlu0 %4107
        %4109 = vrot.lane.b32.xlu0 %v4085, 127
        %v4110 = vpop.permute.xlu0 %4109
        %4111 = vrot.lane.b32.xlu0 %v4088, 127
        %v4112 = vpop.permute.xlu0 %4111
        %v4113 = vmul.f32 %v4098, %v4067
        %v4114 = vmul.f32 %v4100, %v4070
        %v4115 = vmul.f32 %v4102, %v4073
        %v4116 = vmul.f32 %v4104, %v4076
        %v4117 = vmul.f32 %v4106, %v4079
        %v4118 = vmul.f32 %v4108, %v4082
        %v4119 = vmul.f32 %v4110, %v4085
        %v4120 = vmul.f32 %v4112, %v4088
        %v4121 = vmul.f32 %v3997, %v4113
        %v4122 = vmul.f32 %v3998, %v4114
        %v4123 = vmul.f32 %v3999, %v4115
        %v4124 = vmul.f32 %v4000, %v4116
        %v4125 = vmul.f32 %v4001, %v4117
        %v4126 = vmul.f32 %v4002, %v4118
        %v4127 = vmul.f32 %v4003, %v4119
        %v4128 = vmul.f32 %v4004, %v4120
        %v4130 = vlaneseq
        %v4131 = vshrl.u32 %v4130, 7
        %v4132 = vsub.s32 0, %v4131
        %v4133 = vrot.slane %v2232, %v4132
        %v4135 = vmul.f32 %v4133, %v2157
        %v4136 = vmul.f32 %v4133, %v2158
        %v4137 = vmul.f32 %v4133, %v2159
        %v4138 = vmul.f32 %v4133, %v2160
        %v4139 = vmul.f32 %v4133, %v2161
        %v4140 = vmul.f32 %v4133, %v2162
        %v4141 = vmul.f32 %v4133, %v2163
        %v4142 = vmul.f32 %v4133, %v2164
        %v4143 = vand.u32 2147483647, %v4135
        %v4144 = vand.u32 2147483647, %v4136
        %v4145 = vand.u32 2147483647, %v4137
        %v4146 = vand.u32 2147483647, %v4138
        %v4147 = vand.u32 2147483647, %v4139
        %v4148 = vand.u32 2147483647, %v4140
        %v4149 = vand.u32 2147483647, %v4141
        %v4150 = vand.u32 2147483647, %v4142
        %v4151 = vmul.f32 %v4143, %v4055
        %v4152 = vmul.f32 %v4144, %v4055
        %v4153 = vmul.f32 %v4145, %v4055
        %v4154 = vmul.f32 %v4146, %v4055
        %v4155 = vmul.f32 %v4147, %v4055
        %v4156 = vmul.f32 %v4148, %v4055
        %v4157 = vmul.f32 %v4149, %v4055
        %v4158 = vmul.f32 %v4150, %v4055
        %4159 = vrot.lane.b32.xlu0 %v4121, 127
        %v4160 = vpop.permute.xlu0 %4159
        %4161 = vrot.lane.b32.xlu0 %v4122, 127
        %v4162 = vpop.permute.xlu0 %4161
        %4163 = vrot.lane.b32.xlu0 %v4123, 127
        %v4164 = vpop.permute.xlu0 %4163
        %4165 = vrot.lane.b32.xlu0 %v4124, 127
        %v4166 = vpop.permute.xlu0 %4165
        %4167 = vrot.lane.b32.xlu0 %v4125, 127
        %v4168 = vpop.permute.xlu0 %4167
        %4169 = vrot.lane.b32.xlu0 %v4126, 127
        %v4170 = vpop.permute.xlu0 %4169
        %4171 = vrot.lane.b32.xlu0 %v4127, 127
        %v4172 = vpop.permute.xlu0 %4171
        %4173 = vrot.lane.b32.xlu0 %v4128, 127
        %v4174 = vpop.permute.xlu0 %4173
        %4175 = vrot.lane.b32.xlu0 %v4121, 1
        %v4176 = vpop.permute.xlu0 %4175
        %4177 = vrot.lane.b32.xlu0 %v4122, 1
        %v4178 = vpop.permute.xlu0 %4177
        %4179 = vrot.lane.b32.xlu0 %v4123, 1
        %v4180 = vpop.permute.xlu0 %4179
        %4181 = vrot.lane.b32.xlu0 %v4124, 1
        %v4182 = vpop.permute.xlu0 %4181
        %4183 = vrot.lane.b32.xlu0 %v4125, 1
        %v4184 = vpop.permute.xlu0 %4183
        %4185 = vrot.lane.b32.xlu0 %v4126, 1
        %v4186 = vpop.permute.xlu0 %4185
        %4187 = vrot.lane.b32.xlu0 %v4127, 1
        %v4188 = vpop.permute.xlu0 %4187
        %4189 = vrot.lane.b32.xlu0 %v4128, 1
        %v4190 = vpop.permute.xlu0 %4189
        %vm4191 = vcmp.gt.f32.partialorder %v2157, 0.0
        %vm4192 = vcmp.gt.f32.partialorder %v2158, 0.0
        %vm4193 = vcmp.gt.f32.partialorder %v2159, 0.0
        %vm4194 = vcmp.gt.f32.partialorder %v2160, 0.0
        %vm4195 = vcmp.gt.f32.partialorder %v2161, 0.0
        %vm4196 = vcmp.gt.f32.partialorder %v2162, 0.0
        %vm4197 = vcmp.gt.f32.partialorder %v2163, 0.0
        %vm4198 = vcmp.gt.f32.partialorder %v2164, 0.0
        %v4199 = vsel %vm4191, %v4176, %v4160
        %v4200 = vsel %vm4192, %v4178, %v4162
        %v4201 = vsel %vm4193, %v4180, %v4164
        %v4202 = vsel %vm4194, %v4182, %v4166
        %v4203 = vsel %vm4195, %v4184, %v4168
        %v4204 = vsel %vm4196, %v4186, %v4170
        %v4205 = vsel %vm4197, %v4188, %v4172
        %v4206 = vsel %vm4198, %v4190, %v4174
        %v4207 = vand.u32 2147483647, %v4121
        %v4208 = vand.u32 2147483647, %v4122
        %v4209 = vand.u32 2147483647, %v4123
        %v4210 = vand.u32 2147483647, %v4124
        %v4211 = vand.u32 2147483647, %v4125
        %v4212 = vand.u32 2147483647, %v4126
        %v4213 = vand.u32 2147483647, %v4127
        %v4214 = vand.u32 2147483647, %v4128
        %vm4215 = vcmp.lt.f32.partialorder %v4207, 1e-20
        %vm4216 = vcmp.lt.f32.partialorder %v4208, 1e-20
        %vm4217 = vcmp.lt.f32.partialorder %v4209, 1e-20
        %vm4218 = vcmp.lt.f32.partialorder %v4210, 1e-20
        %vm4219 = vcmp.lt.f32.partialorder %v4211, 1e-20
        %vm4220 = vcmp.lt.f32.partialorder %v4212, 1e-20
        %vm4221 = vcmp.lt.f32.partialorder %v4213, 1e-20
        %vm4222 = vcmp.lt.f32.partialorder %v4214, 1e-20
        %v4223 = vsel %vm4215, 1e-20, %v4121
        %v4224 = vsel %vm4216, 1e-20, %v4122
        %v4225 = vsel %vm4217, 1e-20, %v4123
        %v4226 = vsel %vm4218, 1e-20, %v4124
        %v4227 = vsel %vm4219, 1e-20, %v4125
        %v4228 = vsel %vm4220, 1e-20, %v4126
        %v4229 = vsel %vm4221, 1e-20, %v4127
        %v4230 = vsel %vm4222, 1e-20, %v4128
        %v4231 = vrcp.pop %v4223
        %v4232 = vrcp.pop %v4224
        %v4233 = vrcp.pop %v4225
        %v4234 = vrcp.pop %v4226
        %v4235 = vrcp.pop %v4227
        %v4236 = vrcp.pop %v4228
        %v4237 = vrcp.pop %v4229
        %v4238 = vrcp.pop %v4230
        %v4239 = vmul.f32 %v4199, %v4231
        %v4240 = vmul.f32 %v4200, %v4232
        %v4241 = vmul.f32 %v4201, %v4233
        %v4242 = vmul.f32 %v4202, %v4234
        %v4243 = vmul.f32 %v4203, %v4235
        %v4244 = vmul.f32 %v4204, %v4236
        %v4245 = vmul.f32 %v4205, %v4237
        %v4246 = vmul.f32 %v4206, %v4238
        %v4247 = vmul.f32 %v4239, 2.0
        %v4248 = vmul.f32 %v4240, 2.0
        %v4249 = vmul.f32 %v4241, 2.0
        %v4250 = vmul.f32 %v4242, 2.0
        %v4251 = vmul.f32 %v4243, 2.0
        %v4252 = vmul.f32 %v4244, 2.0
        %v4253 = vmul.f32 %v4245, 2.0
        %v4254 = vmul.f32 %v4246, 2.0
        %v4255 = vmin.f32 %v4247, 1.0
        %v4256 = vmin.f32 %v4248, 1.0
        %v4257 = vmin.f32 %v4249, 1.0
        %v4258 = vmin.f32 %v4250, 1.0
        %v4259 = vmin.f32 %v4251, 1.0
        %v4260 = vmin.f32 %v4252, 1.0
        %v4261 = vmin.f32 %v4253, 1.0
        %v4262 = vmin.f32 %v4254, 1.0
        %v4263 = vadd.f32 %v4239, 1.0
        %v4264 = vadd.f32 %v4240, 1.0
        %v4265 = vadd.f32 %v4241, 1.0
        %v4266 = vadd.f32 %v4242, 1.0
        %v4267 = vadd.f32 %v4243, 1.0
        %v4268 = vadd.f32 %v4244, 1.0
        %v4269 = vadd.f32 %v4245, 1.0
        %v4270 = vadd.f32 %v4246, 1.0
        %v4271 = vmul.f32 %v4263, 0.5
        %v4272 = vmul.f32 %v4264, 0.5
        %v4273 = vmul.f32 %v4265, 0.5
        %v4274 = vmul.f32 %v4266, 0.5
        %v4275 = vmul.f32 %v4267, 0.5
        %v4276 = vmul.f32 %v4268, 0.5
        %v4277 = vmul.f32 %v4269, 0.5
        %v4278 = vmul.f32 %v4270, 0.5
        %v4279 = vmin.f32 %v4271, 2.0
        %v4280 = vmin.f32 %v4272, 2.0
        %v4281 = vmin.f32 %v4273, 2.0
        %v4282 = vmin.f32 %v4274, 2.0
        %v4283 = vmin.f32 %v4275, 2.0
        %v4284 = vmin.f32 %v4276, 2.0
        %v4285 = vmin.f32 %v4277, 2.0
        %v4286 = vmin.f32 %v4278, 2.0
        %v4287 = vmax.f32 %v4255, %v4279
        %v4288 = vmax.f32 %v4256, %v4280
        %v4289 = vmax.f32 %v4257, %v4281
        %v4290 = vmax.f32 %v4258, %v4282
        %v4291 = vmax.f32 %v4259, %v4283
        %v4292 = vmax.f32 %v4260, %v4284
        %v4293 = vmax.f32 %v4261, %v4285
        %v4294 = vmax.f32 %v4262, %v4286
        %v4295 = vmax.f32 %v4287, 0.0
        %v4296 = vmax.f32 %v4288, 0.0
        %v4297 = vmax.f32 %v4289, 0.0
        %v4298 = vmax.f32 %v4290, 0.0
        %v4299 = vmax.f32 %v4291, 0.0
        %v4300 = vmax.f32 %v4292, 0.0
        %v4301 = vmax.f32 %v4293, 0.0
        %v4302 = vmax.f32 %v4294, 0.0
        %v4303 = vadd.f32 %v3982, %v3951
        %v4304 = vadd.f32 %v3984, %v3954
        %v4305 = vadd.f32 %v3986, %v3957
        %v4306 = vadd.f32 %v3988, %v3960
        %v4307 = vadd.f32 %v3990, %v3963
        %v4308 = vadd.f32 %v3992, %v3966
        %v4309 = vadd.f32 %v3994, %v3969
        %v4310 = vadd.f32 %v3996, %v3972
        %v4311 = vmul.f32 %v4135, %v4303
        %v4312 = vmul.f32 %v4136, %v4304
        %v4313 = vmul.f32 %v4137, %v4305
        %v4314 = vmul.f32 %v4138, %v4306
        %v4315 = vmul.f32 %v4139, %v4307
        %v4316 = vmul.f32 %v4140, %v4308
        %v4317 = vmul.f32 %v4141, %v4309
        %v4318 = vmul.f32 %v4142, %v4310
        %v4319 = vmul.f32 %v4311, 0.5
        %v4320 = vmul.f32 %v4312, 0.5
        %v4321 = vmul.f32 %v4313, 0.5
        %v4322 = vmul.f32 %v4314, 0.5
        %v4323 = vmul.f32 %v4315, 0.5
        %v4324 = vmul.f32 %v4316, 0.5
        %v4325 = vmul.f32 %v4317, 0.5
        %v4326 = vmul.f32 %v4318, 0.5
        %v4327 = vsub.f32 1.0, %v4295
        %v4328 = vsub.f32 1.0, %v4296
        %v4329 = vsub.f32 1.0, %v4297
        %v4330 = vsub.f32 1.0, %v4298
        %v4331 = vsub.f32 1.0, %v4299
        %v4332 = vsub.f32 1.0, %v4300
        %v4333 = vsub.f32 1.0, %v4301
        %v4334 = vsub.f32 1.0, %v4302
        %v4335 = vmul.f32 %v4151, %v4295
        %v4336 = vmul.f32 %v4152, %v4296
        %v4337 = vmul.f32 %v4153, %v4297
        %v4338 = vmul.f32 %v4154, %v4298
        %v4339 = vmul.f32 %v4155, %v4299
        %v4340 = vmul.f32 %v4156, %v4300
        %v4341 = vmul.f32 %v4157, %v4301
        %v4342 = vmul.f32 %v4158, %v4302
        %v4343 = vadd.f32 %v4327, %v4335
        %v4344 = vadd.f32 %v4328, %v4336
        %v4345 = vadd.f32 %v4329, %v4337
        %v4346 = vadd.f32 %v4330, %v4338
        %v4347 = vadd.f32 %v4331, %v4339
        %v4348 = vadd.f32 %v4332, %v4340
        %v4349 = vadd.f32 %v4333, %v4341
        %v4350 = vadd.f32 %v4334, %v4342
        %v4351 = vmul.f32 %v4143, %v4343
        %v4352 = vmul.f32 %v4144, %v4344
        %v4353 = vmul.f32 %v4145, %v4345
        %v4354 = vmul.f32 %v4146, %v4346
        %v4355 = vmul.f32 %v4147, %v4347
        %v4356 = vmul.f32 %v4148, %v4348
        %v4357 = vmul.f32 %v4149, %v4349
        %v4358 = vmul.f32 %v4150, %v4350
        %v4359 = vmul.f32 %v4351, %v4121
        %v4360 = vmul.f32 %v4352, %v4122
        %v4361 = vmul.f32 %v4353, %v4123
        %v4362 = vmul.f32 %v4354, %v4124
        %v4363 = vmul.f32 %v4355, %v4125
        %v4364 = vmul.f32 %v4356, %v4126
        %v4365 = vmul.f32 %v4357, %v4127
        %v4366 = vmul.f32 %v4358, %v4128
        %v4367 = vmul.f32 %v4359, 0.5
        %v4368 = vmul.f32 %v4360, 0.5
        %v4369 = vmul.f32 %v4361, 0.5
        %v4370 = vmul.f32 %v4362, 0.5
        %v4371 = vmul.f32 %v4363, 0.5
        %v4372 = vmul.f32 %v4364, 0.5
        %v4373 = vmul.f32 %v4365, 0.5
        %v4374 = vmul.f32 %v4366, 0.5
        %v4375 = vsub.f32 %v4319, %v4367
        %v4376 = vsub.f32 %v4320, %v4368
        %v4377 = vsub.f32 %v4321, %v4369
        %v4378 = vsub.f32 %v4322, %v4370
        %v4379 = vsub.f32 %v4323, %v4371
        %v4380 = vsub.f32 %v4324, %v4372
        %v4381 = vsub.f32 %v4325, %v4373
        %v4382 = vsub.f32 %v4326, %v4374
        %4383 = vrot.lane.b32.xlu0 %v4375, 1
        %v4384 = vpop.permute.xlu0 %4383
        %4385 = vrot.lane.b32.xlu0 %v4376, 1
        %v4386 = vpop.permute.xlu0 %4385
        %4387 = vrot.lane.b32.xlu0 %v4377, 1
        %v4388 = vpop.permute.xlu0 %4387
        %4389 = vrot.lane.b32.xlu0 %v4378, 1
        %v4390 = vpop.permute.xlu0 %4389
        %4391 = vrot.lane.b32.xlu0 %v4379, 1
        %v4392 = vpop.permute.xlu0 %4391
        %4393 = vrot.lane.b32.xlu0 %v4380, 1
        %v4394 = vpop.permute.xlu0 %4393
        %4395 = vrot.lane.b32.xlu0 %v4381, 1
        %v4396 = vpop.permute.xlu0 %4395
        %4397 = vrot.lane.b32.xlu0 %v4382, 1
        %v4398 = vpop.permute.xlu0 %4397
        %v4399 = vsub.f32 %v4375, %v4384
        %v4400 = vsub.f32 %v4376, %v4386
        %v4401 = vsub.f32 %v4377, %v4388
        %v4402 = vsub.f32 %v4378, %v4390
        %v4403 = vsub.f32 %v4379, %v4392
        %v4404 = vsub.f32 %v4380, %v4394
        %v4405 = vsub.f32 %v4381, %v4396
        %v4406 = vsub.f32 %v4382, %v4398
        %v4407 = vmul.f32 %v4399, %v4055
        %v4408 = vmul.f32 %v4400, %v4055
        %v4409 = vmul.f32 %v4401, %v4055
        %v4410 = vmul.f32 %v4402, %v4055
        %v4411 = vmul.f32 %v4403, %v4055
        %v4412 = vmul.f32 %v4404, %v4055
        %v4413 = vmul.f32 %v4405, %v4055
        %v4414 = vmul.f32 %v4406, %v4055
        %v4415 = vsub.f32 %v2091, %v2089
        %v4416 = vsub.f32 %v2092, %v2090
        %v4417 = vmul.f32 %v4415, %v2107
        %v4418 = vmul.f32 %v4416, %v2108
        %v4419 = vmul.f32 %v4417, %v2105
        %v4420 = vmul.f32 %v4418, %v2106
        %v4421 = vsub.f32 %v2093, %v2091
        %v4422 = vsub.f32 %v2094, %v2092
        %v4423 = vmul.f32 %v4421, %v2109
        %v4424 = vmul.f32 %v4422, %v2110
        %v4425 = vmul.f32 %v4423, %v2107
        %v4426 = vmul.f32 %v4424, %v2108
        %v4427 = vsub.f32 %v2095, %v2093
        %v4428 = vsub.f32 %v2096, %v2094
        %v4429 = vmul.f32 %v4427, %v2111
        %v4430 = vmul.f32 %v4428, %v2112
        %v4431 = vmul.f32 %v4429, %v2109
        %v4432 = vmul.f32 %v4430, %v2110
        %v4433 = vsub.f32 %v2097, %v2095
        %v4434 = vsub.f32 %v2098, %v2096
        %v4435 = vmul.f32 %v4433, %v2113
        %v4436 = vmul.f32 %v4434, %v2114
        %v4437 = vmul.f32 %v4435, %v2111
        %v4438 = vmul.f32 %v4436, %v2112
        %v4439 = vsub.f32 %v2099, %v2097
        %v4440 = vsub.f32 %v2100, %v2098
        %v4441 = vmul.f32 %v4439, %v2115
        %v4442 = vmul.f32 %v4440, %v2116
        %v4443 = vmul.f32 %v4441, %v2113
        %v4444 = vmul.f32 %v4442, %v2114
        %v4445 = vsub.f32 %v2101, %v2099
        %v4446 = vsub.f32 %v2102, %v2100
        %v4447 = vmul.f32 %v4445, %v2117
        %v4448 = vmul.f32 %v4446, %v2118
        %v4449 = vmul.f32 %v4447, %v2115
        %v4450 = vmul.f32 %v4448, %v2116
        %v4451 = vsub.f32 %v2103, %v2101
        %v4452 = vsub.f32 %v2104, %v2102
        %v4453 = vmul.f32 %v4451, %v2119
        %v4454 = vmul.f32 %v4452, %v2120
        %v4455 = vmul.f32 %v4453, %v2117
        %v4456 = vmul.f32 %v4454, %v2118
        %v4457 = vand.u32 2147483647, %v2165
        %v4458 = vmul.f32 %v4457, %v2382
        %vm4459 = vcmp.gt.f32.partialorder %v2165, 0.0
        %v4462 = vrot.slane %v4425, 4
        %v4463 = vrot.slane %v4426, 4
        %v4464 = vsel %vm2387, %v4462, %v4463
        %v4466 = vsel %vm4459, 0.0, %v4464
        %v4467 = vand.u32 2147483647, %v4419
        %v4468 = vand.u32 2147483647, %v4420
        %vm4469 = vcmp.lt.f32.partialorder %v4467, 1e-20
        %vm4470 = vcmp.lt.f32.partialorder %v4468, 1e-20
        %v4471 = vsel %vm4469, 1e-20, %v4419
        %v4472 = vsel %vm4470, 1e-20, %v4420
        %v4473 = vrcp.pop %v4471
        %v4474 = vrcp.pop %v4472
        %v4477 = vrot.slane %v4473, 4
        %v4478 = vrot.slane %v4474, 4
        %v4479 = vsel %vm2387, %v4477, %v4478
        %v4481 = vmul.f32 %v4466, %v4479
        %v4482 = vmul.f32 %v4481, 2.0
        %v4483 = vmin.f32 %v4482, 1.0
        %v4484 = vadd.f32 %v4481, 1.0
        %v4485 = vmul.f32 %v4484, 0.5
        %v4486 = vmin.f32 %v4485, 2.0
        %v4487 = vmax.f32 %v4483, %v4486
        %v4488 = vmax.f32 %v4487, 0.0
        %v4489 = vadd.f32 %v2091, %v2089
        %v4490 = vadd.f32 %v2092, %v2090
        %v4493 = vrot.slane %v4489, 4
        %v4494 = vrot.slane %v4490, 4
        %v4495 = vsel %vm2387, %v4493, %v4494
        %v4497 = vmul.f32 %v2165, %v4495
        %v4498 = vmul.f32 %v4497, 0.5
        %v4499 = vsub.f32 1.0, %v4488
        %v4500 = vmul.f32 %v4458, %v4488
        %v4501 = vadd.f32 %v4499, %v4500
        %v4502 = vmul.f32 %v4457, %v4501
        %v4505 = vrot.slane %v4419, 4
        %v4506 = vrot.slane %v4420, 4
        %v4507 = vsel %vm2387, %v4505, %v4506
        %v4509 = vmul.f32 %v4502, %v4507
        %v4510 = vmul.f32 %v4509, 0.5
        %v4511 = vsub.f32 %v4498, %v4510
        %v4512 = vand.u32 2147483647, %v2166
        %v4513 = vmul.f32 %v4512, %v2430
        %vm4514 = vcmp.gt.f32.partialorder %v2166, 0.0
        %v4517 = vrot.slane %v4431, 4
        %v4518 = vrot.slane %v4432, 4
        %v4519 = vsel %vm2387, %v4517, %v4518
        %v4521 = vsel %vm4514, %v4507, %v4519
        %v4522 = vand.u32 2147483647, %v4425
        %v4523 = vand.u32 2147483647, %v4426
        %vm4524 = vcmp.lt.f32.partialorder %v4522, 1e-20
        %vm4525 = vcmp.lt.f32.partialorder %v4523, 1e-20
        %v4526 = vsel %vm4524, 1e-20, %v4425
        %v4527 = vsel %vm4525, 1e-20, %v4426
        %v4528 = vrcp.pop %v4526
        %v4529 = vrcp.pop %v4527
        %v4532 = vrot.slane %v4528, 4
        %v4533 = vrot.slane %v4529, 4
        %v4534 = vsel %vm2387, %v4532, %v4533
        %v4536 = vmul.f32 %v4521, %v4534
        %v4537 = vmul.f32 %v4536, 2.0
        %v4538 = vmin.f32 %v4537, 1.0
        %v4539 = vadd.f32 %v4536, 1.0
        %v4540 = vmul.f32 %v4539, 0.5
        %v4541 = vmin.f32 %v4540, 2.0
        %v4542 = vmax.f32 %v4538, %v4541
        %v4543 = vmax.f32 %v4542, 0.0
        %v4544 = vadd.f32 %v2093, %v2091
        %v4545 = vadd.f32 %v2094, %v2092
        %v4548 = vrot.slane %v4544, 4
        %v4549 = vrot.slane %v4545, 4
        %v4550 = vsel %vm2387, %v4548, %v4549
        %v4552 = vmul.f32 %v2166, %v4550
        %v4553 = vmul.f32 %v4552, 0.5
        %v4554 = vsub.f32 1.0, %v4543
        %v4555 = vmul.f32 %v4513, %v4543
        %v4556 = vadd.f32 %v4554, %v4555
        %v4557 = vmul.f32 %v4512, %v4556
        %v4558 = vmul.f32 %v4557, %v4464
        %v4559 = vmul.f32 %v4558, 0.5
        %v4560 = vsub.f32 %v4553, %v4559
        %v4561 = vand.u32 2147483647, %v2167
        %v4562 = vmul.f32 %v4561, %v2490
        %vm4563 = vcmp.gt.f32.partialorder %v2167, 0.0
        %v4566 = vrot.slane %v4437, 4
        %v4567 = vrot.slane %v4438, 4
        %v4568 = vsel %vm2387, %v4566, %v4567
        %v4570 = vsel %vm4563, %v4464, %v4568
        %v4571 = vand.u32 2147483647, %v4431
        %v4572 = vand.u32 2147483647, %v4432
        %vm4573 = vcmp.lt.f32.partialorder %v4571, 1e-20
        %vm4574 = vcmp.lt.f32.partialorder %v4572, 1e-20
        %v4575 = vsel %vm4573, 1e-20, %v4431
        %v4576 = vsel %vm4574, 1e-20, %v4432
        %v4577 = vrcp.pop %v4575
        %v4578 = vrcp.pop %v4576
        %v4581 = vrot.slane %v4577, 4
        %v4582 = vrot.slane %v4578, 4
        %v4583 = vsel %vm2387, %v4581, %v4582
        %v4585 = vmul.f32 %v4570, %v4583
        %v4586 = vmul.f32 %v4585, 2.0
        %v4587 = vmin.f32 %v4586, 1.0
        %v4588 = vadd.f32 %v4585, 1.0
        %v4589 = vmul.f32 %v4588, 0.5
        %v4590 = vmin.f32 %v4589, 2.0
        %v4591 = vmax.f32 %v4587, %v4590
        %v4592 = vmax.f32 %v4591, 0.0
        %v4593 = vadd.f32 %v2095, %v2093
        %v4594 = vadd.f32 %v2096, %v2094
        %v4597 = vrot.slane %v4593, 4
        %v4598 = vrot.slane %v4594, 4
        %v4599 = vsel %vm2387, %v4597, %v4598
        %v4601 = vmul.f32 %v2167, %v4599
        %v4602 = vmul.f32 %v4601, 0.5
        %v4603 = vsub.f32 1.0, %v4592
        %v4604 = vmul.f32 %v4562, %v4592
        %v4605 = vadd.f32 %v4603, %v4604
        %v4606 = vmul.f32 %v4561, %v4605
        %v4607 = vmul.f32 %v4606, %v4519
        %v4608 = vmul.f32 %v4607, 0.5
        %v4609 = vsub.f32 %v4602, %v4608
        %v4610 = vand.u32 2147483647, %v2168
        %v4611 = vmul.f32 %v4610, %v2550
        %vm4612 = vcmp.gt.f32.partialorder %v2168, 0.0
        %v4615 = vrot.slane %v4443, 4
        %v4616 = vrot.slane %v4444, 4
        %v4617 = vsel %vm2387, %v4615, %v4616
        %v4619 = vsel %vm4612, %v4519, %v4617
        %v4620 = vand.u32 2147483647, %v4437
        %v4621 = vand.u32 2147483647, %v4438
        %vm4622 = vcmp.lt.f32.partialorder %v4620, 1e-20
        %vm4623 = vcmp.lt.f32.partialorder %v4621, 1e-20
        %v4624 = vsel %vm4622, 1e-20, %v4437
        %v4625 = vsel %vm4623, 1e-20, %v4438
        %v4626 = vrcp.pop %v4624
        %v4627 = vrcp.pop %v4625
        %v4630 = vrot.slane %v4626, 4
        %v4631 = vrot.slane %v4627, 4
        %v4632 = vsel %vm2387, %v4630, %v4631
        %v4634 = vmul.f32 %v4619, %v4632
        %v4635 = vmul.f32 %v4634, 2.0
        %v4636 = vmin.f32 %v4635, 1.0
        %v4637 = vadd.f32 %v4634, 1.0
        %v4638 = vmul.f32 %v4637, 0.5
        %v4639 = vmin.f32 %v4638, 2.0
        %v4640 = vmax.f32 %v4636, %v4639
        %v4641 = vmax.f32 %v4640, 0.0
        %v4642 = vadd.f32 %v2097, %v2095
        %v4643 = vadd.f32 %v2098, %v2096
        %v4646 = vrot.slane %v4642, 4
        %v4647 = vrot.slane %v4643, 4
        %v4648 = vsel %vm2387, %v4646, %v4647
        %v4650 = vmul.f32 %v2168, %v4648
        %v4651 = vmul.f32 %v4650, 0.5
        %v4652 = vsub.f32 1.0, %v4641
        %v4653 = vmul.f32 %v4611, %v4641
        %v4654 = vadd.f32 %v4652, %v4653
        %v4655 = vmul.f32 %v4610, %v4654
        %v4656 = vmul.f32 %v4655, %v4568
        %v4657 = vmul.f32 %v4656, 0.5
        %v4658 = vsub.f32 %v4651, %v4657
        %v4659 = vand.u32 2147483647, %v2169
        %v4660 = vmul.f32 %v4659, %v2610
        %vm4661 = vcmp.gt.f32.partialorder %v2169, 0.0
        %v4664 = vrot.slane %v4449, 4
        %v4665 = vrot.slane %v4450, 4
        %v4666 = vsel %vm2387, %v4664, %v4665
        %v4668 = vsel %vm4661, %v4568, %v4666
        %v4669 = vand.u32 2147483647, %v4443
        %v4670 = vand.u32 2147483647, %v4444
        %vm4671 = vcmp.lt.f32.partialorder %v4669, 1e-20
        %vm4672 = vcmp.lt.f32.partialorder %v4670, 1e-20
        %v4673 = vsel %vm4671, 1e-20, %v4443
        %v4674 = vsel %vm4672, 1e-20, %v4444
        %v4675 = vrcp.pop %v4673
        %v4676 = vrcp.pop %v4674
        %v4679 = vrot.slane %v4675, 4
        %v4680 = vrot.slane %v4676, 4
        %v4681 = vsel %vm2387, %v4679, %v4680
        %v4683 = vmul.f32 %v4668, %v4681
        %v4684 = vmul.f32 %v4683, 2.0
        %v4685 = vmin.f32 %v4684, 1.0
        %v4686 = vadd.f32 %v4683, 1.0
        %v4687 = vmul.f32 %v4686, 0.5
        %v4688 = vmin.f32 %v4687, 2.0
        %v4689 = vmax.f32 %v4685, %v4688
        %v4690 = vmax.f32 %v4689, 0.0
        %v4691 = vadd.f32 %v2099, %v2097
        %v4692 = vadd.f32 %v2100, %v2098
        %v4695 = vrot.slane %v4691, 4
        %v4696 = vrot.slane %v4692, 4
        %v4697 = vsel %vm2387, %v4695, %v4696
        %v4699 = vmul.f32 %v2169, %v4697
        %v4700 = vmul.f32 %v4699, 0.5
        %v4701 = vsub.f32 1.0, %v4690
        %v4702 = vmul.f32 %v4660, %v4690
        %v4703 = vadd.f32 %v4701, %v4702
        %v4704 = vmul.f32 %v4659, %v4703
        %v4705 = vmul.f32 %v4704, %v4617
        %v4706 = vmul.f32 %v4705, 0.5
        %v4707 = vsub.f32 %v4700, %v4706
        %v4708 = vand.u32 2147483647, %v2170
        %v4709 = vmul.f32 %v4708, %v2670
        %vm4710 = vcmp.gt.f32.partialorder %v2170, 0.0
        %v4713 = vrot.slane %v4455, 4
        %v4714 = vrot.slane %v4456, 4
        %v4715 = vsel %vm2387, %v4713, %v4714
        %v4717 = vsel %vm4710, %v4617, %v4715
        %v4718 = vand.u32 2147483647, %v4449
        %v4719 = vand.u32 2147483647, %v4450
        %vm4720 = vcmp.lt.f32.partialorder %v4718, 1e-20
        %vm4721 = vcmp.lt.f32.partialorder %v4719, 1e-20
        %v4722 = vsel %vm4720, 1e-20, %v4449
        %v4723 = vsel %vm4721, 1e-20, %v4450
        %v4724 = vrcp.pop %v4722
        %v4725 = vrcp.pop %v4723
        %v4728 = vrot.slane %v4724, 4
        %v4729 = vrot.slane %v4725, 4
        %v4730 = vsel %vm2387, %v4728, %v4729
        %v4732 = vmul.f32 %v4717, %v4730
        %v4733 = vmul.f32 %v4732, 2.0
        %v4734 = vmin.f32 %v4733, 1.0
        %v4735 = vadd.f32 %v4732, 1.0
        %v4736 = vmul.f32 %v4735, 0.5
        %v4737 = vmin.f32 %v4736, 2.0
        %v4738 = vmax.f32 %v4734, %v4737
        %v4739 = vmax.f32 %v4738, 0.0
        %v4740 = vadd.f32 %v2101, %v2099
        %v4741 = vadd.f32 %v2102, %v2100
        %v4744 = vrot.slane %v4740, 4
        %v4745 = vrot.slane %v4741, 4
        %v4746 = vsel %vm2387, %v4744, %v4745
        %v4748 = vmul.f32 %v2170, %v4746
        %v4749 = vmul.f32 %v4748, 0.5
        %v4750 = vsub.f32 1.0, %v4739
        %v4751 = vmul.f32 %v4709, %v4739
        %v4752 = vadd.f32 %v4750, %v4751
        %v4753 = vmul.f32 %v4708, %v4752
        %v4754 = vmul.f32 %v4753, %v4666
        %v4755 = vmul.f32 %v4754, 0.5
        %v4756 = vsub.f32 %v4749, %v4755
        %v4757 = vand.u32 2147483647, %v2171
        %v4758 = vmul.f32 %v4757, %v2730
        %vm4759 = vcmp.gt.f32.partialorder %v2171, 0.0
        %v4760 = vsel %vm4759, %v4666, 0.0
        %v4761 = vand.u32 2147483647, %v4455
        %v4762 = vand.u32 2147483647, %v4456
        %vm4763 = vcmp.lt.f32.partialorder %v4761, 1e-20
        %vm4764 = vcmp.lt.f32.partialorder %v4762, 1e-20
        %v4765 = vsel %vm4763, 1e-20, %v4455
        %v4766 = vsel %vm4764, 1e-20, %v4456
        %v4767 = vrcp.pop %v4765
        %v4768 = vrcp.pop %v4766
        %v4771 = vrot.slane %v4767, 4
        %v4772 = vrot.slane %v4768, 4
        %v4773 = vsel %vm2387, %v4771, %v4772
        %v4775 = vmul.f32 %v4760, %v4773
        %v4776 = vmul.f32 %v4775, 2.0
        %v4777 = vmin.f32 %v4776, 1.0
        %v4778 = vadd.f32 %v4775, 1.0
        %v4779 = vmul.f32 %v4778, 0.5
        %v4780 = vmin.f32 %v4779, 2.0
        %v4781 = vmax.f32 %v4777, %v4780
        %v4782 = vmax.f32 %v4781, 0.0
        %v4783 = vadd.f32 %v2103, %v2101
        %v4784 = vadd.f32 %v2104, %v2102
        %v4787 = vrot.slane %v4783, 4
        %v4788 = vrot.slane %v4784, 4
        %v4789 = vsel %vm2387, %v4787, %v4788
        %v4791 = vmul.f32 %v2171, %v4789
        %v4792 = vmul.f32 %v4791, 0.5
        %v4793 = vsub.f32 1.0, %v4782
        %v4794 = vmul.f32 %v4758, %v4782
        %v4795 = vadd.f32 %v4793, %v4794
        %v4796 = vmul.f32 %v4757, %v4795
        %v4797 = vmul.f32 %v4796, %v4715
        %v4798 = vmul.f32 %v4797, 0.5
        %v4799 = vsub.f32 %v4792, %v4798
        %v4800 = vsub.f32 0.0, %v4511
        %v4801 = vmul.f32 %v4800, %v2382
        %v4802 = vsub.f32 %v4560, %v4511
        %v4803 = vsub.f32 0.0, %v4802
        %v4804 = vmul.f32 %v4803, %v2430
        %v4805 = vsub.f32 %v4609, %v4560
        %v4806 = vsub.f32 0.0, %v4805
        %v4807 = vmul.f32 %v4806, %v2490
        %v4808 = vsub.f32 %v4658, %v4609
        %v4809 = vsub.f32 0.0, %v4808
        %v4810 = vmul.f32 %v4809, %v2550
        %v4811 = vsub.f32 %v4707, %v4658
        %v4812 = vsub.f32 0.0, %v4811
        %v4813 = vmul.f32 %v4812, %v2610
        %v4814 = vsub.f32 %v4756, %v4707
        %v4815 = vsub.f32 0.0, %v4814
        %v4816 = vmul.f32 %v4815, %v2670
        %v4817 = vsub.f32 %v4799, %v4756
        %v4818 = vsub.f32 0.0, %v4817
        %v4819 = vmul.f32 %v4818, %v2730
        %v4820 = vmul.f32 %v4799, %v2786
        %v4829 = vrot.slane %v4057, 4
        %v4830 = vrot.slane %v4058, 4
        %v4831 = vrot.slane %v4059, 4
        %v4832 = vrot.slane %v4060, 4
        %v4833 = vrot.slane %v4061, 4
        %v4834 = vrot.slane %v4062, 4
        %v4835 = vrot.slane %v4063, 4
        %v4836 = vrot.slane %v4064, 4
        %v4845 = vadd.f32 %v3132, %v4829
        %v4846 = vadd.f32 %v3133, %v4829
        %v4847 = vadd.f32 %v3134, %v4830
        %v4848 = vadd.f32 %v3135, %v4830
        %v4849 = vadd.f32 %v3136, %v4831
        %v4850 = vadd.f32 %v3137, %v4831
        %v4851 = vadd.f32 %v3138, %v4832
        %v4852 = vadd.f32 %v3139, %v4832
        %v4853 = vadd.f32 %v3140, %v4833
        %v4854 = vadd.f32 %v3141, %v4833
        %v4855 = vadd.f32 %v3142, %v4834
        %v4856 = vadd.f32 %v3143, %v4834
        %v4857 = vadd.f32 %v3144, %v4835
        %v4858 = vadd.f32 %v3145, %v4835
        %v4859 = vadd.f32 %v3146, %v4836
        %v4860 = vadd.f32 %v3147, %v4836
        %v4861 = vmul.f32 %v2105, %v4845
        %v4862 = vmul.f32 %v2106, %v4846
        %v4863 = vmul.f32 %v2107, %v4847
        %v4864 = vmul.f32 %v2108, %v4848
        %v4865 = vmul.f32 %v2109, %v4849
        %v4866 = vmul.f32 %v2110, %v4850
        %v4867 = vmul.f32 %v2111, %v4851
        %v4868 = vmul.f32 %v2112, %v4852
        %v4869 = vmul.f32 %v2113, %v4853
        %v4870 = vmul.f32 %v2114, %v4854
        %v4871 = vmul.f32 %v2115, %v4855
        %v4872 = vmul.f32 %v2116, %v4856
        %v4873 = vmul.f32 %v2117, %v4857
        %v4874 = vmul.f32 %v2118, %v4858
        %v4875 = vmul.f32 %v2119, %v4859
        %v4876 = vmul.f32 %v2120, %v4860
        %v4877 = vsub.f32 0.0, %v3933
        %v4878 = vsub.f32 0.0, %v3934
        %v4879 = vsub.f32 0.0, %v3935
        %v4880 = vsub.f32 0.0, %v3936
        %v4881 = vsub.f32 0.0, %v3937
        %v4882 = vsub.f32 0.0, %v3938
        %v4883 = vsub.f32 0.0, %v3939
        %v4884 = vsub.f32 0.0, %v3940
        %v4885 = vsub.f32 0.0, %v3941
        %v4886 = vsub.f32 0.0, %v3942
        %v4887 = vsub.f32 0.0, %v3943
        %v4888 = vsub.f32 0.0, %v3944
        %v4889 = vsub.f32 0.0, %v3945
        %v4890 = vsub.f32 0.0, %v3946
        %v4891 = vsub.f32 0.0, %v3947
        %v4892 = vsub.f32 0.0, %v3948
        %v4901 = vrot.slane %v4407, 4
        %v4902 = vrot.slane %v4408, 4
        %v4903 = vrot.slane %v4409, 4
        %v4904 = vrot.slane %v4410, 4
        %v4905 = vrot.slane %v4411, 4
        %v4906 = vrot.slane %v4412, 4
        %v4907 = vrot.slane %v4413, 4
        %v4908 = vrot.slane %v4414, 4
        %v4917 = vsub.f32 %v4877, %v4901
        %v4918 = vsub.f32 %v4878, %v4901
        %v4919 = vsub.f32 %v4879, %v4902
        %v4920 = vsub.f32 %v4880, %v4902
        %v4921 = vsub.f32 %v4881, %v4903
        %v4922 = vsub.f32 %v4882, %v4903
        %v4923 = vsub.f32 %v4883, %v4904
        %v4924 = vsub.f32 %v4884, %v4904
        %v4925 = vsub.f32 %v4885, %v4905
        %v4926 = vsub.f32 %v4886, %v4905
        %v4927 = vsub.f32 %v4887, %v4906
        %v4928 = vsub.f32 %v4888, %v4906
        %v4929 = vsub.f32 %v4889, %v4907
        %v4930 = vsub.f32 %v4890, %v4907
        %v4931 = vsub.f32 %v4891, %v4908
        %v4932 = vsub.f32 %v4892, %v4908
        %v4933 = vmul.f32 %v2105, %v4917
        %v4934 = vmul.f32 %v2106, %v4918
        %v4935 = vmul.f32 %v2107, %v4919
        %v4936 = vmul.f32 %v2108, %v4920
        %v4937 = vmul.f32 %v2109, %v4921
        %v4938 = vmul.f32 %v2110, %v4922
        %v4939 = vmul.f32 %v2111, %v4923
        %v4940 = vmul.f32 %v2112, %v4924
        %v4941 = vmul.f32 %v2113, %v4925
        %v4942 = vmul.f32 %v2114, %v4926
        %v4943 = vmul.f32 %v2115, %v4927
        %v4944 = vmul.f32 %v2116, %v4928
        %v4945 = vmul.f32 %v2117, %v4929
        %v4946 = vmul.f32 %v2118, %v4930
        %v4947 = vmul.f32 %v2119, %v4931
        %v4948 = vmul.f32 %v2120, %v4932
        %v4957 = vrot.slane %v4801, 4
        %v4958 = vrot.slane %v4804, 4
        %v4959 = vrot.slane %v4807, 4
        %v4960 = vrot.slane %v4810, 4
        %v4961 = vrot.slane %v4813, 4
        %v4962 = vrot.slane %v4816, 4
        %v4963 = vrot.slane %v4819, 4
        %v4964 = vrot.slane %v4820, 4
        %v4973 = vadd.f32 %v4933, %v4957
        %v4974 = vadd.f32 %v4934, %v4957
        %v4975 = vadd.f32 %v4935, %v4958
        %v4976 = vadd.f32 %v4936, %v4958
        %v4977 = vadd.f32 %v4937, %v4959
        %v4978 = vadd.f32 %v4938, %v4959
        %v4979 = vadd.f32 %v4939, %v4960
        %v4980 = vadd.f32 %v4940, %v4960
        %v4981 = vadd.f32 %v4941, %v4961
        %v4982 = vadd.f32 %v4942, %v4961
        %v4983 = vadd.f32 %v4943, %v4962
        %v4984 = vadd.f32 %v4944, %v4962
        %v4985 = vadd.f32 %v4945, %v4963
        %v4986 = vadd.f32 %v4946, %v4963
        %v4987 = vadd.f32 %v4947, %v4964
        %v4988 = vadd.f32 %v4948, %v4964
        %v5005 = vrot.slane %v4973, 4
        %v5006 = vrot.slane %v4974, 4
        %v5007 = vsel %vm2387, %v5005, %v5006
        %v5008 = vrot.slane %v4975, 4
        %v5009 = vrot.slane %v4976, 4
        %v5010 = vsel %vm2387, %v5008, %v5009
        %v5011 = vrot.slane %v4977, 4
        %v5012 = vrot.slane %v4978, 4
        %v5013 = vsel %vm2387, %v5011, %v5012
        %v5014 = vrot.slane %v4979, 4
        %v5015 = vrot.slane %v4980, 4
        %v5016 = vsel %vm2387, %v5014, %v5015
        %v5017 = vrot.slane %v4981, 4
        %v5018 = vrot.slane %v4982, 4
        %v5019 = vsel %vm2387, %v5017, %v5018
        %v5020 = vrot.slane %v4983, 4
        %v5021 = vrot.slane %v4984, 4
        %v5022 = vsel %vm2387, %v5020, %v5021
        %v5023 = vrot.slane %v4985, 4
        %v5024 = vrot.slane %v4986, 4
        %v5025 = vsel %vm2387, %v5023, %v5024
        %v5026 = vrot.slane %v4987, 4
        %v5027 = vrot.slane %v4988, 4
        %v5028 = vsel %vm2387, %v5026, %v5027
        %v5037 = vsel %vm2858, %v5007, %v2212
        %v5038 = vsel %vm2858, %v5010, %v2213
        %v5039 = vsel %vm2858, %v5013, %v2214
        %v5040 = vsel %vm2858, %v5016, %v2215
        %v5041 = vsel %vm2858, %v5019, %v2216
        %v5042 = vsel %vm2858, %v5022, %v2217
        %v5043 = vsel %vm2858, %v5025, %v2218
        %v5044 = vsel %vm2858, %v5028, %v2219
        %v5061 = vrot.slane %v4861, 4
        %v5062 = vrot.slane %v4862, 4
        %v5063 = vsel %vm2387, %v5061, %v5062
        %v5064 = vrot.slane %v4863, 4
        %v5065 = vrot.slane %v4864, 4
        %v5066 = vsel %vm2387, %v5064, %v5065
        %v5067 = vrot.slane %v4865, 4
        %v5068 = vrot.slane %v4866, 4
        %v5069 = vsel %vm2387, %v5067, %v5068
        %v5070 = vrot.slane %v4867, 4
        %v5071 = vrot.slane %v4868, 4
        %v5072 = vsel %vm2387, %v5070, %v5071
        %v5073 = vrot.slane %v4869, 4
        %v5074 = vrot.slane %v4870, 4
        %v5075 = vsel %vm2387, %v5073, %v5074
        %v5076 = vrot.slane %v4871, 4
        %v5077 = vrot.slane %v4872, 4
        %v5078 = vsel %vm2387, %v5076, %v5077
        %v5079 = vrot.slane %v4873, 4
        %v5080 = vrot.slane %v4874, 4
        %v5081 = vsel %vm2387, %v5079, %v5080
        %v5082 = vrot.slane %v4875, 4
        %v5083 = vrot.slane %v4876, 4
        %v5084 = vsel %vm2387, %v5082, %v5083
        %v5093 = vsel %vm2858, %v5063, 0.0
        %v5094 = vsel %vm2858, %v5066, 0.0
        %v5095 = vsel %vm2858, %v5069, 0.0
        %v5096 = vsel %vm2858, %v5072, 0.0
        %v5097 = vsel %vm2858, %v5075, 0.0
        %v5098 = vsel %vm2858, %v5078, 0.0
        %v5099 = vsel %vm2858, %v5081, 0.0
        %v5100 = vsel %vm2858, %v5084, 0.0
        %v5101 = vadd.f32 %v2890, %v5093
        %v5102 = vadd.f32 %v2891, %v5094
        %v5103 = vadd.f32 %v2892, %v5095
        %v5104 = vadd.f32 %v2893, %v5096
        %v5105 = vadd.f32 %v2894, %v5097
        %v5106 = vadd.f32 %v2895, %v5098
        %v5107 = vadd.f32 %v2896, %v5099
        %v5108 = vadd.f32 %v2897, %v5100
        %v5109 = vmul.f32 %v5037, 1.6
        %v5110 = vmul.f32 %v5038, 1.6
        %v5111 = vmul.f32 %v5039, 1.6
        %v5112 = vmul.f32 %v5040, 1.6
        %v5113 = vmul.f32 %v5041, 1.6
        %v5114 = vmul.f32 %v5042, 1.6
        %v5115 = vmul.f32 %v5043, 1.6
        %v5116 = vmul.f32 %v5044, 1.6
        %v5117 = vmul.f32 %v2220, 0.6
        %v5118 = vmul.f32 %v2221, 0.6
        %v5119 = vmul.f32 %v2222, 0.6
        %v5120 = vmul.f32 %v2223, 0.6
        %v5121 = vmul.f32 %v2224, 0.6
        %v5122 = vmul.f32 %v2225, 0.6
        %v5123 = vmul.f32 %v2226, 0.6
        %v5124 = vmul.f32 %v2227, 0.6
        %v5125 = vsub.f32 %v5109, %v5117
        %v5126 = vsub.f32 %v5110, %v5118
        %v5127 = vsub.f32 %v5111, %v5119
        %v5128 = vsub.f32 %v5112, %v5120
        %v5129 = vsub.f32 %v5113, %v5121
        %v5130 = vsub.f32 %v5114, %v5122
        %v5131 = vsub.f32 %v5115, %v5123
        %v5132 = vsub.f32 %v5116, %v5124
        %v5133 = vadd.f32 %v5101, %v5125
        %v5134 = vadd.f32 %v5102, %v5126
        %v5135 = vadd.f32 %v5103, %v5127
        %v5136 = vadd.f32 %v5104, %v5128
        %v5137 = vadd.f32 %v5105, %v5129
        %v5138 = vadd.f32 %v5106, %v5130
        %v5139 = vadd.f32 %v5107, %v5131
        %v5140 = vadd.f32 %v5108, %v5132
        %5141 = vst [vmem:[%s2037] sm:$0xff] %v5133
        %5142 = vst [vmem:[%s2037 + $0x8] sm:$0xff] %v5134
        %5143 = vst [vmem:[%s2037 + $0x10] sm:$0xff] %v5135
        %5144 = vst [vmem:[%s2037 + $0x18] sm:$0xff] %v5136
        %5145 = vst [vmem:[%s2037 + $0x20] sm:$0xff] %v5137
        %5146 = vst [vmem:[%s2037 + $0x28] sm:$0xff] %v5138
        %5147 = vst [vmem:[%s2037 + $0x30] sm:$0xff] %v5139
        %5148 = vst [vmem:[%s2037 + $0x38] sm:$0xff] %v5140
        %5149 = vst [vmem:[%s2043] sm:$0xff] %v5037
        %5150 = vst [vmem:[%s2043 + $0x8] sm:$0xff] %v5038
        %5151 = vst [vmem:[%s2043 + $0x10] sm:$0xff] %v5039
        %5152 = vst [vmem:[%s2043 + $0x18] sm:$0xff] %v5040
        %5153 = vst [vmem:[%s2043 + $0x20] sm:$0xff] %v5041
        %5154 = vst [vmem:[%s2043 + $0x28] sm:$0xff] %v5042
        %5155 = vst [vmem:[%s2043 + $0x30] sm:$0xff] %v5043
        %5156 = vst [vmem:[%s2043 + $0x38] sm:$0xff] %v5044
        %5157 = vst [vmem:[%s2050] sm:$0xff] %v2881
        %s5158 = sand.u32 %s618, 1
        %s5159 = sand.u32 %s618, 1
        %s5160 = smul.addr %s5159, 64
        %s5161 = scalar_lea.vmem [#allocation21], %s5160
        %s5162 = sand.u32 %s644, 1
        %s5163 = sand.u32 %s644, 1
        %s5164 = smul.addr %s5163, 64
        %s5165 = scalar_lea.vmem [#allocation22], %s5164
        %s5166 = sand.u32 %s670, 1
        %s5167 = scalar_lea.sflag [#allocation3], %s5166
        %s5168 = sand.u32 %s670, 1
        %s5169 = smul.addr %s5168, 8
        %s5170 = scalar_lea.vmem [#allocation23], %s5169
        // Predicated region
        $region619: #{_lambda_.1} parent=553 // pred_check
          %p5171 = pneg %p628
        $region620: #{_lambda_.1} parent=553 // pred_check_branch
          %5173 = sbr.rel (%p5171) target = $region622
        $region621: #{_lambda_.1} parent=553 // pred_region
          %s5174 = smul.addr %s42, 8
          %s5175 = scalar_lea.vmem %s23, %s5174
          // Predicated region
          $region623: #{_lambda_.1} parent=621 // pred_check
            _
          $region624: #{_lambda_.1} parent=621 // pred_check_branch
            %5177 = sbr.rel (0) target = $region626
          $region625: #{_lambda_.1} parent=621 // pred_region
            // Predicated region
            $region627: #{_lambda_.1} parent=625 // pred_check
              _
            $region628: #{_lambda_.1} parent=625 // pred_check_branch
              %5179 = sbr.rel (0) target = $region630
            $region629: #{_lambda_.1} parent=625 // pred_region
              // Predicated region
              $region642: #{_lambda_.1} parent=629 // pred_check
                _
              $region643: #{_lambda_.1} parent=629 // pred_check_branch
                %5208 = sbr.rel (0) target = $region645
              $region644: #{_lambda_.1} parent=629 // pred_region
                loop: start=0, step=1, limit=1
                $region646: #{_lambda_.1} parent=644 // loop_pre_header
                  _
                $region647: #{_lambda_.1} parent=644 // loop_header
                  %s5210 = sphi 0, %s5214
                  %p5211 = scmp.ge.s32.totalorder %s5210, 1
                  %s5215 = sphi %s5161, %s5161
                  %s5216 = sphi %s5175, %s5175
                $region648: #{_lambda_.1} parent=644 // loop_header_branch
                  %5213 = sbr.rel (%p5211) target = $region652
                $region649: #{_lambda_.1} parent=644 // loop_body
                  %v5217 = vld [vmem:[%s5215] sm:$0xff]
                  %5218 = vst [vmem:[%s5216] sm:$0xff] %v5217
                  %v5219 = vld [vmem:[%s5215 + $0x8] sm:$0xff]
                  %5220 = vst [vmem:[%s5216 + $0x10] sm:$0xff] %v5219
                  %v5221 = vld [vmem:[%s5215 + $0x10] sm:$0xff]
                  %5222 = vst [vmem:[%s5216 + $0x20] sm:$0xff] %v5221
                  %v5223 = vld [vmem:[%s5215 + $0x18] sm:$0xff]
                  %5224 = vst [vmem:[%s5216 + $0x30] sm:$0xff] %v5223
                  %v5225 = vld [vmem:[%s5215 + $0x20] sm:$0xff]
                  %5226 = vst [vmem:[%s5216 + $0x40] sm:$0xff] %v5225
                  %v5227 = vld [vmem:[%s5215 + $0x28] sm:$0xff]
                  %5228 = vst [vmem:[%s5216 + $0x50] sm:$0xff] %v5227
                  %v5229 = vld [vmem:[%s5215 + $0x30] sm:$0xff]
                  %5230 = vst [vmem:[%s5216 + $0x60] sm:$0xff] %v5229
                  %v5231 = vld [vmem:[%s5215 + $0x38] sm:$0xff]
                  %5232 = vst [vmem:[%s5216 + $0x70] sm:$0xff] %v5231
                $region650: #{_lambda_.1} parent=644 // loop_footer
                  %s5214 = sadd.s32 1, %s5210
                $region651: #{_lambda_.1} parent=644 // loop_footer_branch
                  %5209 = sbr.rel target = $region647
                $region652: #{_lambda_.1} parent=644 // loop_exit
                  _
              $region645: #{_lambda_.1} parent=629 // pred_fallthru
                _
              // Predicated region
              $region653: #{_lambda_.1} parent=629 // pred_check
                _
              $region654: #{_lambda_.1} parent=629 // pred_check_branch
                %5234 = sbr.rel target = $region656
              $region655: #{_lambda_.1} parent=629 // pred_region
                _
              $region656: #{_lambda_.1} parent=629 // pred_fallthru
                _
            $region630: #{_lambda_.1} parent=625 // pred_fallthru
              _
            // Predicated region
            $region631: #{_lambda_.1} parent=625 // pred_check
              _
            $region632: #{_lambda_.1} parent=625 // pred_check_branch
              %5181 = sbr.rel target = $region634
            $region633: #{_lambda_.1} parent=625 // pred_region
              loop: start=0, step=1, limit=1
              $region635: #{_lambda_.1} parent=633 // loop_pre_header
                _
              $region636: #{_lambda_.1} parent=633 // loop_header
                %s5184 = sphi 0, %s5188
                %p5185 = scmp.ge.s32.totalorder %s5184, 1
                %s5189 = sphi %s5161, %s5161
                %s5190 = sphi %s5175, %s5175
              $region637: #{_lambda_.1} parent=633 // loop_header_branch
                %5187 = sbr.rel (%p5185) target = $region641
              $region638: #{_lambda_.1} parent=633 // loop_body
                %v5191 = vld [vmem:[%s5189] sm:$0xff]
                %5192 = vst [vmem:[%s5190] sm:$0xff] %v5191
                %v5193 = vld [vmem:[%s5189 + $0x8] sm:$0xff]
                %5194 = vst [vmem:[%s5190 + $0x10] sm:$0xff] %v5193
                %v5195 = vld [vmem:[%s5189 + $0x10] sm:$0xff]
                %5196 = vst [vmem:[%s5190 + $0x20] sm:$0xff] %v5195
                %v5197 = vld [vmem:[%s5189 + $0x18] sm:$0xff]
                %5198 = vst [vmem:[%s5190 + $0x30] sm:$0xff] %v5197
                %v5199 = vld [vmem:[%s5189 + $0x20] sm:$0xff]
                %5200 = vst [vmem:[%s5190 + $0x40] sm:$0xff] %v5199
                %v5201 = vld [vmem:[%s5189 + $0x28] sm:$0xff]
                %5202 = vst [vmem:[%s5190 + $0x50] sm:$0xff] %v5201
                %v5203 = vld [vmem:[%s5189 + $0x30] sm:$0xff]
                %5204 = vst [vmem:[%s5190 + $0x60] sm:$0xff] %v5203
                %v5205 = vld [vmem:[%s5189 + $0x38] sm:$0xff]
                %5206 = vst [vmem:[%s5190 + $0x70] sm:$0xff] %v5205
              $region639: #{_lambda_.1} parent=633 // loop_footer
                %s5188 = sadd.s32 1, %s5184
              $region640: #{_lambda_.1} parent=633 // loop_footer_branch
                %5183 = sbr.rel target = $region636
              $region641: #{_lambda_.1} parent=633 // loop_exit
                _
            $region634: #{_lambda_.1} parent=625 // pred_fallthru
              _
          $region626: #{_lambda_.1} parent=621 // pred_fallthru
            _
          %5235 = vnop
        $region622: #{_lambda_.1} parent=553 // pred_fallthru
          _
        // Predicated region
        $region657: #{_lambda_.1} parent=553 // pred_check
          %p5236 = pneg %p654
        $region658: #{_lambda_.1} parent=553 // pred_check_branch
          %5238 = sbr.rel (%p5236) target = $region660
        $region659: #{_lambda_.1} parent=553 // pred_region
          %s5239 = smul.addr %s42, 8
          %s5240 = scalar_lea.vmem %s24, %s5239
          // Predicated region
          $region661: #{_lambda_.1} parent=659 // pred_check
            _
          $region662: #{_lambda_.1} parent=659 // pred_check_branch
            %5242 = sbr.rel (0) target = $region664
          $region663: #{_lambda_.1} parent=659 // pred_region
            // Predicated region
            $region665: #{_lambda_.1} parent=663 // pred_check
              _
            $region666: #{_lambda_.1} parent=663 // pred_check_branch
              %5244 = sbr.rel (0) target = $region668
            $region667: #{_lambda_.1} parent=663 // pred_region
              // Predicated region
              $region680: #{_lambda_.1} parent=667 // pred_check
                _
              $region681: #{_lambda_.1} parent=667 // pred_check_branch
                %5273 = sbr.rel (0) target = $region683
              $region682: #{_lambda_.1} parent=667 // pred_region
                loop: start=0, step=1, limit=1
                $region684: #{_lambda_.1} parent=682 // loop_pre_header
                  _
                $region685: #{_lambda_.1} parent=682 // loop_header
                  %s5275 = sphi 0, %s5279
                  %p5276 = scmp.ge.s32.totalorder %s5275, 1
                  %s5280 = sphi %s5165, %s5165
                  %s5281 = sphi %s5240, %s5240
                $region686: #{_lambda_.1} parent=682 // loop_header_branch
                  %5278 = sbr.rel (%p5276) target = $region690
                $region687: #{_lambda_.1} parent=682 // loop_body
                  %v5282 = vld [vmem:[%s5280] sm:$0xff]
                  %5283 = vst [vmem:[%s5281] sm:$0xff] %v5282
                  %v5284 = vld [vmem:[%s5280 + $0x8] sm:$0xff]
                  %5285 = vst [vmem:[%s5281 + $0x10] sm:$0xff] %v5284
                  %v5286 = vld [vmem:[%s5280 + $0x10] sm:$0xff]
                  %5287 = vst [vmem:[%s5281 + $0x20] sm:$0xff] %v5286
                  %v5288 = vld [vmem:[%s5280 + $0x18] sm:$0xff]
                  %5289 = vst [vmem:[%s5281 + $0x30] sm:$0xff] %v5288
                  %v5290 = vld [vmem:[%s5280 + $0x20] sm:$0xff]
                  %5291 = vst [vmem:[%s5281 + $0x40] sm:$0xff] %v5290
                  %v5292 = vld [vmem:[%s5280 + $0x28] sm:$0xff]
                  %5293 = vst [vmem:[%s5281 + $0x50] sm:$0xff] %v5292
                  %v5294 = vld [vmem:[%s5280 + $0x30] sm:$0xff]
                  %5295 = vst [vmem:[%s5281 + $0x60] sm:$0xff] %v5294
                  %v5296 = vld [vmem:[%s5280 + $0x38] sm:$0xff]
                  %5297 = vst [vmem:[%s5281 + $0x70] sm:$0xff] %v5296
                $region688: #{_lambda_.1} parent=682 // loop_footer
                  %s5279 = sadd.s32 1, %s5275
                $region689: #{_lambda_.1} parent=682 // loop_footer_branch
                  %5274 = sbr.rel target = $region685
                $region690: #{_lambda_.1} parent=682 // loop_exit
                  _
              $region683: #{_lambda_.1} parent=667 // pred_fallthru
                _
              // Predicated region
              $region691: #{_lambda_.1} parent=667 // pred_check
                _
              $region692: #{_lambda_.1} parent=667 // pred_check_branch
                %5299 = sbr.rel target = $region694
              $region693: #{_lambda_.1} parent=667 // pred_region
                _
              $region694: #{_lambda_.1} parent=667 // pred_fallthru
                _
            $region668: #{_lambda_.1} parent=663 // pred_fallthru
              _
            // Predicated region
            $region669: #{_lambda_.1} parent=663 // pred_check
              _
            $region670: #{_lambda_.1} parent=663 // pred_check_branch
              %5246 = sbr.rel target = $region672
            $region671: #{_lambda_.1} parent=663 // pred_region
              loop: start=0, step=1, limit=1
              $region673: #{_lambda_.1} parent=671 // loop_pre_header
                _
              $region674: #{_lambda_.1} parent=671 // loop_header
                %s5249 = sphi 0, %s5253
                %p5250 = scmp.ge.s32.totalorder %s5249, 1
                %s5254 = sphi %s5165, %s5165
                %s5255 = sphi %s5240, %s5240
              $region675: #{_lambda_.1} parent=671 // loop_header_branch
                %5252 = sbr.rel (%p5250) target = $region679
              $region676: #{_lambda_.1} parent=671 // loop_body
                %v5256 = vld [vmem:[%s5254] sm:$0xff]
                %5257 = vst [vmem:[%s5255] sm:$0xff] %v5256
                %v5258 = vld [vmem:[%s5254 + $0x8] sm:$0xff]
                %5259 = vst [vmem:[%s5255 + $0x10] sm:$0xff] %v5258
                %v5260 = vld [vmem:[%s5254 + $0x10] sm:$0xff]
                %5261 = vst [vmem:[%s5255 + $0x20] sm:$0xff] %v5260
                %v5262 = vld [vmem:[%s5254 + $0x18] sm:$0xff]
                %5263 = vst [vmem:[%s5255 + $0x30] sm:$0xff] %v5262
                %v5264 = vld [vmem:[%s5254 + $0x20] sm:$0xff]
                %5265 = vst [vmem:[%s5255 + $0x40] sm:$0xff] %v5264
                %v5266 = vld [vmem:[%s5254 + $0x28] sm:$0xff]
                %5267 = vst [vmem:[%s5255 + $0x50] sm:$0xff] %v5266
                %v5268 = vld [vmem:[%s5254 + $0x30] sm:$0xff]
                %5269 = vst [vmem:[%s5255 + $0x60] sm:$0xff] %v5268
                %v5270 = vld [vmem:[%s5254 + $0x38] sm:$0xff]
                %5271 = vst [vmem:[%s5255 + $0x70] sm:$0xff] %v5270
              $region677: #{_lambda_.1} parent=671 // loop_footer
                %s5253 = sadd.s32 1, %s5249
              $region678: #{_lambda_.1} parent=671 // loop_footer_branch
                %5248 = sbr.rel target = $region674
              $region679: #{_lambda_.1} parent=671 // loop_exit
                _
            $region672: #{_lambda_.1} parent=663 // pred_fallthru
              _
          $region664: #{_lambda_.1} parent=659 // pred_fallthru
            _
          %5300 = vnop
        $region660: #{_lambda_.1} parent=553 // pred_fallthru
          _
        // Predicated region
        $region695: #{_lambda_.1} parent=553 // pred_check
          %p5301 = pneg %p680
        $region696: #{_lambda_.1} parent=553 // pred_check_branch
          %5303 = sbr.rel (%p5301) target = $region698
        $region697: #{_lambda_.1} parent=553 // pred_region
          %s5305 = ssub.s32 128, 128
          %5306 = vsyncadd %s5167, %s5305
          %s5307 = smul.addr %s42, 128
          %s5308 = scalar_lea.hbm %s25, %s5307
          %s5310 = sshll.u32 %s5170, 4
          %s5311 = int_to_ptr.vmem [resolvable:$true] %s5310
          %5313 = dma.vmem_to_hbm [thread:$0]  %s5311, 128, %s5308, %s5167
        $region698: #{_lambda_.1} parent=553 // pred_fallthru
          _
      $region554: #{_lambda_.1} parent=5 // pred_fallthru
        _
      %p5314 = scmp.le.s32.totalorder 2, %s37
      // Predicated region
      $region699: #{_lambda_.1} parent=5 // pred_check
        %p5315 = pneg %p5314
      $region700: #{_lambda_.1} parent=5 // pred_check_branch
        %5317 = sbr.rel (%p5315) target = $region702
      $region701: #{_lambda_.1} parent=5 // pred_region
        %s5318 = ssub.s32 %s37, 2
        // Predicated region
        $region703: #{_lambda_.1} parent=701 // pred_check
          %p5319 = pneg %p634
        $region704: #{_lambda_.1} parent=701 // pred_check_branch
          %5321 = sbr.rel (%p5319) target = $region706
        $region705: #{_lambda_.1} parent=701 // pred_region
          %s5322 = sand.u32 %s619, 1
          %s5323 = sand.u32 %s619, 1
          %s5324 = smul.addr %s5323, 64
          %s5325 = scalar_lea.vmem [#allocation21], %s5324
        $region706: #{_lambda_.1} parent=701 // pred_fallthru
          _
        // Predicated region
        $region707: #{_lambda_.1} parent=701 // pred_check
          %p5326 = pneg %p660
        $region708: #{_lambda_.1} parent=701 // pred_check_branch
          %5328 = sbr.rel (%p5326) target = $region710
        $region709: #{_lambda_.1} parent=701 // pred_region
          %s5329 = sand.u32 %s645, 1
          %s5330 = sand.u32 %s645, 1
          %s5331 = smul.addr %s5330, 64
          %s5332 = scalar_lea.vmem [#allocation22], %s5331
        $region710: #{_lambda_.1} parent=701 // pred_fallthru
          _
        // Predicated region
        $region711: #{_lambda_.1} parent=701 // pred_check
          %p5333 = pneg %p686
        $region712: #{_lambda_.1} parent=701 // pred_check_branch
          %5335 = sbr.rel (%p5333) target = $region714
        $region713: #{_lambda_.1} parent=701 // pred_region
          %s5336 = sand.u32 %s671, 1
          %s5337 = scalar_lea.sflag [#allocation3], %s5336
          %s5338 = sand.u32 %s671, 1
          %s5339 = smul.addr %s5338, 8
          %s5340 = scalar_lea.vmem [#allocation23], %s5339
          %5341 = dma.done %s5337, 128
        $region714: #{_lambda_.1} parent=701 // pred_fallthru
          _
      $region702: #{_lambda_.1} parent=5 // pred_fallthru
        _
    $region6: #{_lambda_.1} parent=1 // loop_footer
      %s41 = sadd.s32 1, %s37
    $region7: #{_lambda_.1} parent=1 // loop_footer_branch
      %36 = sbr.rel target = $region3
    $region8: #{_lambda_.1} parent=1 // loop_exit
      _
    %5342 = vsyncpa [#allocation3], 1
    %s5343 = scalar_lea.sflag [#allocation3], 1
    %5344 = vsyncpa %s5343, 1
    %5345 = vsyncpa [#allocation4], 1
    %s5346 = scalar_lea.sflag [#allocation4], 1
    %5347 = vsyncpa %s5346, 1
    %5348 = vsyncpa [#allocation6], 1

</llo_original>
